<compile_context>
chip_gen: v7x
topology: tpu7x:2x2x1
jax: 0.10.0
libtpu: 0.0.40
codegen_flags: <defaults>
</compile_context>

<pallas_src>
import math
from functools import partial

import jax
import jax.numpy as jnp
from jax import lax
from jax.experimental import pallas as pl
from jax.experimental.pallas import tpu as pltpu

PAD = 0
NEG_INF = -1e9          # finite stand-in for -inf (NaN-free masking)
LN_EPS = 1e-5

_N_ENC_W = 12
_N_DEC_W = 20

_ENC_KEYS = ("wqkv", "bqkv", "wo", "bo", "w1", "b1", "w2", "b2",
             "g1", "be1", "g2", "be2")
_DEC_KEYS = ("wqkv", "bqkv", "wso", "bso", "wcq", "bcq", "wckv", "bckv",
             "wco", "bco", "w1", "b1", "w2", "b2",
             "g1", "be1", "g2", "be2", "g3", "be3")


# ------------------------------------------------------------------ in-kernel helpers

def _mm(x, w, b):
    """x @ W + b with bf16 MXU operands and f32 accumulation."""
    return jnp.dot(x.astype(w.dtype), w, preferred_element_type=jnp.float32) + b


def _layernorm(x, g, b):
    mu = jnp.mean(x, axis=-1, keepdims=True)
    var = jnp.mean(jnp.square(x - mu), axis=-1, keepdims=True)
    return (x - mu) * lax.rsqrt(var + LN_EPS) * g + b


def _mha(q, k, v, mask_t, head_sel, bones, n_heads):
    """All heads in ONE QK^T and ONE PV matmul (no per-head slicing / concat).

    q: (Sq, D) f32   (1/sqrt(Dh) already folded into the Q projection)
    k, v: (Sk, D) f32
    mask_t: additive mask broadcastable to (Sq, H*Sk) in head-tiled key layout
    head_sel: (H*Sk, D) 0/1 — rows h*Sk:(h+1)*Sk select head h's columns
    bones: (H*Sk, H*Sk) 0/1 block-diagonal — per-head softmax denominator broadcast
    Returns (Sq, D) f32 with each head already in its output columns.
    """
    # Block-diagonal K / V: row h*Sk+kk holds head h's slice of k[kk], zeros elsewhere.
    k_bd = (jnp.concatenate([k] * n_heads, axis=0) * head_sel).astype(jnp.bfloat16)
    v_bd = (jnp.concatenate([v] * n_heads, axis=0) * head_sel).astype(jnp.bfloat16)
    s = lax.dot_general(q.astype(jnp.bfloat16), k_bd, (((1,), (1,)), ((), ())),
                        preferred_element_type=jnp.float32)            # (Sq, H*Sk)
    s = s + mask_t
    # Row max is a valid stabilizer for every head in the row (the constant cancels
    # per head after the per-head normalization); only degrades for a >~85 score
    # spread between heads in one row, which does not occur here.
    mx = jnp.max(s, axis=-1, keepdims=True)
    p = jnp.exp(s - mx)
    den = jnp.dot(p, bones, preferred_element_type=jnp.float32)        # per-head sums
    pn = (p * pl.reciprocal(den, approx=True)).astype(jnp.bfloat16)    # EUP reciprocal
    return jnp.dot(pn, v_bd, preferred_element_type=jnp.float32)       # (Sq, D)


def _encoder_layer(x, mask_t, head_sel, bones, n_heads,
                   wqkv, bqkv, wo, bo, w1, b1, w2, b2, g1, be1, g2, be2):
    D = x.shape[-1]
    qkv = _mm(x, wqkv, bqkv)                                   # fused QKV projection
    q, k, v = qkv[:, :D], qkv[:, D:2 * D], qkv[:, 2 * D:]
    a = _mm(_mha(q, k, v, mask_t, head_sel, bones, n_heads), wo, bo)
    h1 = _layernorm(x + a, g1, be1)                            # post-norm
    f = _mm(jnp.maximum(_mm(h1, w1, b1), 0.0), w2, b2)         # linear1 -> ReLU -> linear2
    return _layernorm(h1 + f, g2, be2)


def _decoder_layer(y, mem, self_mask, cross_mask, hs_y, hs_x, bo_y, bo_x, n_heads,
                   wqkv, bqkv, wso, bso, wcq, bcq, wckv, bckv, wco, bco,
                   w1, b1, w2, b2, g1, be1, g2, be2, g3, be3):
    D = y.shape[-1]
    # masked self-attention
    qkv = _mm(y, wqkv, bqkv)
    q, k, v = qkv[:, :D], qkv[:, D:2 * D], qkv[:, 2 * D:]
    sa = _mm(_mha(q, k, v, self_mask, hs_y, bo_y, n_heads), wso, bso)
    h1 = _layernorm(y + sa, g1, be1)
    # cross-attention over encoder memory (fused K/V projection)
    cq = _mm(h1, wcq, bcq)
    ckv = _mm(mem, wckv, bckv)
    ck, cv = ckv[:, :D], ckv[:, D:]
    ca = _mm(_mha(cq, ck, cv, cross_mask, hs_x, bo_x, n_heads), wco, bco)
    h2 = _layernorm(h1 + ca, g2, be2)
    # FFN
    f = _mm(jnp.maximum(_mm(h2, w1, b1), 0.0), w2, b2)
    return _layernorm(h2 + f, g3, be3)


# ------------------------------------------------------------------- the fused kernel

def _fused_forward_kernel(x_tok_ref, y_tok_ref, mask_x_ref, mask_y_ref,
                          enc_emb_ref, dec_emb_ref, pe_ref,
                          hsx_ref, hsy_ref, box_ref, boy_ref,
                          *rest, n_heads, n_layers, n_head_linear):
    o_ref = rest[-1]
    enc_w = rest[:_N_ENC_W]
    dec_w = rest[_N_ENC_W:_N_ENC_W + _N_DEC_W]
    head_w = rest[_N_ENC_W + _N_DEC_W:_N_ENC_W + _N_DEC_W + 2 * n_head_linear]

    Sx = x_tok_ref.shape[1]
    Sy = y_tok_ref.shape[1]

    hs_x, hs_y = hsx_ref[...], hsy_ref[...]
    bo_x, bo_y = box_ref[...], boy_ref[...]
    mask_x = mask_x_ref[0]                       # (1, H*Sx)  key-pad (enc self + cross)
    mask_y = mask_y_ref[0]                       # (Sy, H*Sy) causal + tgt key-pad
    pe = pe_ref[...]

    # Embedding lookup in-kernel via one-hot matmul + positional encoding
    # (dropout = identity at inference).
    def embed(tok_ref, table_ref, s):
        ids = tok_ref[0]                                         # (s, 1) int32
        vocab = table_ref.shape[0]
        onehot = (ids == lax.broadcasted_iota(jnp.int32, (s, vocab), 1)
                  ).astype(jnp.float32)
        return jnp.dot(onehot, table_ref[...],
                       preferred_element_type=jnp.float32) + pe[:s]

    x = embed(x_tok_ref, enc_emb_ref, Sx)
    y = embed(y_tok_ref, dec_emb_ref, Sy)

    for l in range(n_layers):                                    # encoder stack
        x = _encoder_layer(x, mask_x, hs_x, bo_x, n_heads,
                           *[r[l] for r in enc_w])
    memory = x

    for l in range(n_layers):                                    # decoder stack
        y = _decoder_layer(y, memory, mask_y, mask_x, hs_y, hs_x, bo_y, bo_x,
                           n_heads, *[r[l] for r in dec_w])

    # TODO(synk): ClassifierHead definition not provided in the source; assumed a
    # Linear->ReLU stack over head_layers ending in Linear(d_model -> output_vocab).
    h = y
    for i in range(n_head_linear):
        h = _mm(h, head_w[2 * i][...], head_w[2 * i + 1][...])
        if i < n_head_linear - 1:
            h = jnp.maximum(h, 0.0)
    o_ref[0] = h.astype(o_ref.dtype)              # lane-dense (128-padded vocab) store


# ----------------------------------------------------------------------- kernel wrapper

def _pad_rows(t, mult=8):
    r = (-t.shape[0]) % mult
    return jnp.pad(t, ((0, r), (0, 0))) if r else t


def transformer_translator_forward(params, x_tok, y_tok, n_heads):
    B, Sx = x_tok.shape
    Sy = y_tok.shape[1]
    pe = params["pe"]
    D = pe.shape[1]
    H = n_heads
    Dh = D // H
    n_layers = params["enc"]["wqkv"].shape[0]
    n_head_linear = len(params["head"])

    x_tok = x_tok.astype(jnp.int32)
    y_tok = y_tok.astype(jnp.int32)

    # ---- per-batch kernel inputs -------------------------------------------------
    x3 = x_tok[..., None]                                         # (B, Sx, 1)
    y3 = y_tok[..., None]                                         # (B, Sy, 1)

    pad_x = jnp.where(x_tok == PAD, NEG_INF, 0.0).astype(jnp.float32)     # (B, Sx)
    pad_y = jnp.where(y_tok == PAD, NEG_INF, 0.0).astype(jnp.float32)     # (B, Sy)
    causal = jnp.where(jnp.arange(Sy)[None, :] > jnp.arange(Sy)[:, None],
                       NEG_INF, 0.0).astype(jnp.float32)                  # (Sy, Sy)
    # head-tiled key layout: [head0 | head1 | ... ] along the last axis
    mask_x = jnp.tile(pad_x[:, None, :], (1, 1, H))               # (B, 1, H*Sx)
    mask_y = jnp.tile(pad_y[:, None, :] + causal[None], (1, 1, H))  # (B, Sy, H*Sy)

    # ---- static head bookkeeping matrices (constant-folded by XLA) ----------------
    def head_sel(sk):
        r = jnp.arange(H * sk)[:, None] // sk
        c = jnp.arange(D)[None, :] // Dh
        return (r == c).astype(jnp.float32)                       # (H*sk, D)

    def block_ones(sk):
        r = jnp.arange(H * sk)[:, None] // sk
        c = jnp.arange(H * sk)[None, :] // sk
        return (r == c).astype(jnp.float32)                       # (H*sk, H*sk)

    hs_x, hs_y = head_sel(Sx), head_sel(Sy)
    bo_x, bo_y = block_ones(Sx), block_ones(Sy)

    # ---- weights (stacked per layer in init_params) --------------------------------
    enc_flat = [params["enc"][k] for k in _ENC_KEYS]
    dec_flat = [params["dec"][k] for k in _DEC_KEYS]

    head = params["head"]
    out_vocab = head[-1][0].shape[1]
    v_pad = ((out_vocab + 127) // 128) * 128                      # lane-dense logits
    head_flat = []
    for i, (w, b) in enumerate(head):
        if i == n_head_linear - 1:
            w = jnp.pad(w, ((0, 0), (0, v_pad - out_vocab)))
            b = jnp.pad(b, ((0, 0), (0, v_pad - out_vocab)))
        head_flat += [w, b]

    enc_emb = _pad_rows(params["enc_embed"])                      # pad vocab rows to 8
    dec_emb = _pad_rows(params["dec_embed"])

    per_batch = [x3, y3, mask_x, mask_y]
    constants = ([enc_emb, dec_emb, pe, hs_x, hs_y, bo_x, bo_y]
                 + enc_flat + dec_flat + head_flat)

    def pb_spec(a):
        nd = a.ndim
        return pl.BlockSpec((1,) + a.shape[1:], lambda b: (b,) + (0,) * (nd - 1))

    def full_spec(a):
        nd = a.ndim
        return pl.BlockSpec(a.shape, lambda b: (0,) * nd)

    kernel = partial(_fused_forward_kernel, n_heads=H, n_layers=n_layers,
                     n_head_linear=n_head_linear)

    out = pl.pallas_call(
        kernel,
        out_shape=jax.ShapeDtypeStruct((B, Sy, v_pad), jnp.float32),
        grid=(B,),
        in_specs=([pb_spec(a) for a in per_batch]
                  + [full_spec(a) for a in constants]),
        out_specs=pl.BlockSpec((1, Sy, v_pad), lambda b: (b, 0, 0)),
        compiler_params=pltpu.CompilerParams(
            dimension_semantics=("parallel",),       # v7x: one batch element per TC
            vmem_limit_bytes=32 * 1024 * 1024),
    )(*per_batch, *constants)
    return out[..., :out_vocab]                                   # (B, Sy, output_vocab)


# -------------------------------------------------------------------------- model build

def sinusoidal_pe(max_len, d_model):
    pos = jnp.arange(max_len, dtype=jnp.float32)[:, None]
    idx = jnp.arange(0, d_model, 2, dtype=jnp.float32)
    div = jnp.exp(-math.log(10000.0) * idx / d_model)
    pe = jnp.zeros((max_len, d_model), jnp.float32)
    pe = pe.at[:, 0::2].set(jnp.sin(pos * div))
    pe = pe.at[:, 1::2].set(jnp.cos(pos * div))
    return pe


def init_params(key, input_vocab, output_vocab, d_model, d_inner,
                n_layers, n_heads, head_layers, max_seq_len):
    keys = iter(jax.random.split(key, 512))
    q_scale = 1.0 / math.sqrt(d_model // n_heads)

    def w(din, dout):
        return jax.random.normal(next(keys), (din, dout), jnp.float32) / math.sqrt(din)

    def b(dout):
        return jnp.zeros((1, dout), jnp.float32)

    def norm():
        return (jnp.ones((1, d_model), jnp.float32),
                jnp.zeros((1, d_model), jnp.float32))

    def enc_layer():
        # 1/sqrt(Dh) folded into the Q columns of the fused QKV projection.
        # (If loading real PyTorch weights, also fold it into the Q bias slice.)
        wqkv = w(d_model, 3 * d_model).at[:, :d_model].multiply(q_scale)
        g1, be1 = norm(); g2, be2 = norm()
        return dict(wqkv=wqkv.astype(jnp.bfloat16), bqkv=b(3 * d_model),
                    wo=w(d_model, d_model).astype(jnp.bfloat16), bo=b(d_model),
                    w1=w(d_model, d_inner).astype(jnp.bfloat16), b1=b(d_inner),
                    w2=w(d_inner, d_model).astype(jnp.bfloat16), b2=b(d_model),
                    g1=g1, be1=be1, g2=g2, be2=be2)

    def dec_layer():
        wqkv = w(d_model, 3 * d_model).at[:, :d_model].multiply(q_scale)
        wcq = w(d_model, d_model) * q_scale
        g1, be1 = norm(); g2, be2 = norm(); g3, be3 = norm()
        return dict(wqkv=wqkv.astype(jnp.bfloat16), bqkv=b(3 * d_model),
                    wso=w(d_model, d_model).astype(jnp.bfloat16), bso=b(d_model),
                    wcq=wcq.astype(jnp.bfloat16), bcq=b(d_model),
                    wckv=w(d_model, 2 * d_model).astype(jnp.bfloat16),
                    bckv=b(2 * d_model),
                    wco=w(d_model, d_model).astype(jnp.bfloat16), bco=b(d_model),
                    w1=w(d_model, d_inner).astype(jnp.bfloat16), b1=b(d_inner),
                    w2=w(d_inner, d_model).astype(jnp.bfloat16), b2=b(d_model),
                    g1=g1, be1=be1, g2=g2, be2=be2, g3=g3, be3=be3)

    enc_layers = [enc_layer() for _ in range(n_layers)]
    dec_layers = [dec_layer() for _ in range(n_layers)]
    enc = {k: jnp.stack([ly[k] for ly in enc_layers]) for k in _ENC_KEYS}
    dec = {k: jnp.stack([ly[k] for ly in dec_layers]) for k in _DEC_KEYS}

    dims = [d_model] + list(head_layers) + [output_vocab]
    head = [(w(dims[i], dims[i + 1]).astype(jnp.bfloat16), b(dims[i + 1]))
            for i in range(len(dims) - 1)]

    return dict(
        enc_embed=jax.random.normal(next(keys), (input_vocab, d_model),
                                    jnp.float32) * 0.02,
        dec_embed=jax.random.normal(next(keys), (output_vocab, d_model),
                                    jnp.float32) * 0.02,
        pe=sinusoidal_pe(max_seq_len, d_model),
        enc=enc, dec=dec, head=head)


# --------------------------------------------------------------------------------- main

if __name__ == "__main__":
    INPUT_VOCAB = 37
    OUTPUT_VOCAB = 41
    D_MODEL = 32
    D_INNER = 64
    N_LAYERS = 2
    N_HEADS = 4
    HEAD_LAYERS = [48]
    MAX_SEQ_LEN = 16
    B, SX, SY = 2, 8, 8

    root = jax.random.PRNGKey(0)
    k_params, k_x, k_y = jax.random.split(root, 3)

    params = init_params(k_params, INPUT_VOCAB, OUTPUT_VOCAB, D_MODEL, D_INNER,
                         N_LAYERS, N_HEADS, HEAD_LAYERS, MAX_SEQ_LEN)

    # token ids in [1, vocab); last position of each sequence is PAD to exercise masks
    x_tok = jax.random.randint(k_x, (B, SX), 1, INPUT_VOCAB, dtype=jnp.int32)
    y_tok = jax.random.randint(k_y, (B, SY), 1, OUTPUT_VOCAB, dtype=jnp.int32)
    x_tok = x_tok.at[:, -1].set(PAD)
    y_tok = y_tok.at[:, -1].set(PAD)

    fwd = jax.jit(partial(transformer_translator_forward, n_heads=N_HEADS))
    out = fwd(params, x_tok, y_tok)
    out = jax.block_until_ready(out)

    assert out.shape == (B, SY, OUTPUT_VOCAB), out.shape
    assert bool(jnp.all(jnp.isfinite(out)))
    print("KERNEL_OK")
</pallas_src>

<mosaic_0001>
module attributes {stable_mosaic.version = 11 : i64} {
  func.func @_fused_forward_kernel(%arg0: i32, %arg1: memref<1x8x1xi32, #tpu.memory_space<vmem>>, %arg2: memref<1x8x1xi32, #tpu.memory_space<vmem>>, %arg3: memref<1x1x32xf32, #tpu.memory_space<vmem>>, %arg4: memref<1x8x32xf32, #tpu.memory_space<vmem>>, %arg5: memref<40x32xf32, #tpu.memory_space<vmem>>, %arg6: memref<48x32xf32, #tpu.memory_space<vmem>>, %arg7: memref<16x32xf32, #tpu.memory_space<vmem>>, %arg8: memref<32x32xf32, #tpu.memory_space<vmem>>, %arg9: memref<32x32xf32, #tpu.memory_space<vmem>>, %arg10: memref<32x32xf32, #tpu.memory_space<vmem>>, %arg11: memref<32x32xf32, #tpu.memory_space<vmem>>, %arg12: memref<2x32x96xbf16, #tpu.memory_space<vmem>>, %arg13: memref<2x1x96xf32, #tpu.memory_space<vmem>>, %arg14: memref<2x32x32xbf16, #tpu.memory_space<vmem>>, %arg15: memref<2x1x32xf32, #tpu.memory_space<vmem>>, %arg16: memref<2x32x64xbf16, #tpu.memory_space<vmem>>, %arg17: memref<2x1x64xf32, #tpu.memory_space<vmem>>, %arg18: memref<2x64x32xbf16, #tpu.memory_space<vmem>>, %arg19: memref<2x1x32xf32, #tpu.memory_space<vmem>>, %arg20: memref<2x1x32xf32, #tpu.memory_space<vmem>>, %arg21: memref<2x1x32xf32, #tpu.memory_space<vmem>>, %arg22: memref<2x1x32xf32, #tpu.memory_space<vmem>>, %arg23: memref<2x1x32xf32, #tpu.memory_space<vmem>>, %arg24: memref<2x32x96xbf16, #tpu.memory_space<vmem>>, %arg25: memref<2x1x96xf32, #tpu.memory_space<vmem>>, %arg26: memref<2x32x32xbf16, #tpu.memory_space<vmem>>, %arg27: memref<2x1x32xf32, #tpu.memory_space<vmem>>, %arg28: memref<2x32x32xbf16, #tpu.memory_space<vmem>>, %arg29: memref<2x1x32xf32, #tpu.memory_space<vmem>>, %arg30: memref<2x32x64xbf16, #tpu.memory_space<vmem>>, %arg31: memref<2x1x64xf32, #tpu.memory_space<vmem>>, %arg32: memref<2x32x32xbf16, #tpu.memory_space<vmem>>, %arg33: memref<2x1x32xf32, #tpu.memory_space<vmem>>, %arg34: memref<2x32x64xbf16, #tpu.memory_space<vmem>>, %arg35: memref<2x1x64xf32, #tpu.memory_space<vmem>>, %arg36: memref<2x64x32xbf16, #tpu.memory_space<vmem>>, %arg37: memref<2x1x32xf32, #tpu.memory_space<vmem>>, %arg38: memref<2x1x32xf32, #tpu.memory_space<vmem>>, %arg39: memref<2x1x32xf32, #tpu.memory_space<vmem>>, %arg40: memref<2x1x32xf32, #tpu.memory_space<vmem>>, %arg41: memref<2x1x32xf32, #tpu.memory_space<vmem>>, %arg42: memref<2x1x32xf32, #tpu.memory_space<vmem>>, %arg43: memref<2x1x32xf32, #tpu.memory_space<vmem>>, %arg44: memref<32x48xbf16, #tpu.memory_space<vmem>>, %arg45: memref<1x48xf32, #tpu.memory_space<vmem>>, %arg46: memref<48x128xbf16, #tpu.memory_space<vmem>>, %arg47: memref<1x128xf32, #tpu.memory_space<vmem>>, %arg48: memref<1x8x128xf32, #tpu.memory_space<vmem>>) attributes {dimension_semantics = [#tpu.dimension_semantics<parallel>], iteration_bounds = array<i64: 2>, scalar_prefetch = 0 : i64, scratch_operands = 0 : i64, tpu.core_type = #tpu.core_type<tc>, window_params = [{transform_indices = @transform_0, window_bounds = array<i64: 1, 8, 1>}, {transform_indices = @transform_1, window_bounds = array<i64: 1, 8, 1>}, {transform_indices = @transform_2, window_bounds = array<i64: 1, 1, 32>}, {transform_indices = @transform_3, window_bounds = array<i64: 1, 8, 32>}, {pipeline_mode = #tpu.pipeline_mode<synchronous>, transform_indices = @transform_4, window_bounds = array<i64: 40, 32>}, {pipeline_mode = #tpu.pipeline_mode<synchronous>, transform_indices = @transform_5, window_bounds = array<i64: 48, 32>}, {pipeline_mode = #tpu.pipeline_mode<synchronous>, transform_indices = @transform_6, window_bounds = array<i64: 16, 32>}, {pipeline_mode = #tpu.pipeline_mode<synchronous>, transform_indices = @transform_7, window_bounds = array<i64: 32, 32>}, {pipeline_mode = #tpu.pipeline_mode<synchronous>, transform_indices = @transform_8, window_bounds = array<i64: 32, 32>}, {pipeline_mode = #tpu.pipeline_mode<synchronous>, transform_indices = @transform_9, window_bounds = array<i64: 32, 32>}, {pipeline_mode = #tpu.pipeline_mode<synchronous>, transform_indices = @transform_10, window_bounds = array<i64: 32, 32>}, {pipeline_mode = #tpu.pipeline_mode<synchronous>, transform_indices = @transform_11, window_bounds = array<i64: 2, 32, 96>}, {pipeline_mode = #tpu.pipeline_mode<synchronous>, transform_indices = @transform_12, window_bounds = array<i64: 2, 1, 96>}, {pipeline_mode = #tpu.pipeline_mode<synchronous>, transform_indices = @transform_13, window_bounds = array<i64: 2, 32, 32>}, {pipeline_mode = #tpu.pipeline_mode<synchronous>, transform_indices = @transform_14, window_bounds = array<i64: 2, 1, 32>}, {pipeline_mode = #tpu.pipeline_mode<synchronous>, transform_indices = @transform_15, window_bounds = array<i64: 2, 32, 64>}, {pipeline_mode = #tpu.pipeline_mode<synchronous>, transform_indices = @transform_16, window_bounds = array<i64: 2, 1, 64>}, {pipeline_mode = #tpu.pipeline_mode<synchronous>, transform_indices = @transform_17, window_bounds = array<i64: 2, 64, 32>}, {pipeline_mode = #tpu.pipeline_mode<synchronous>, transform_indices = @transform_18, window_bounds = array<i64: 2, 1, 32>}, {pipeline_mode = #tpu.pipeline_mode<synchronous>, transform_indices = @transform_19, window_bounds = array<i64: 2, 1, 32>}, {pipeline_mode = #tpu.pipeline_mode<synchronous>, transform_indices = @transform_20, window_bounds = array<i64: 2, 1, 32>}, {pipeline_mode = #tpu.pipeline_mode<synchronous>, transform_indices = @transform_21, window_bounds = array<i64: 2, 1, 32>}, {pipeline_mode = #tpu.pipeline_mode<synchronous>, transform_indices = @transform_22, window_bounds = array<i64: 2, 1, 32>}, {pipeline_mode = #tpu.pipeline_mode<synchronous>, transform_indices = @transform_23, window_bounds = array<i64: 2, 32, 96>}, {pipeline_mode = #tpu.pipeline_mode<synchronous>, transform_indices = @transform_24, window_bounds = array<i64: 2, 1, 96>}, {pipeline_mode = #tpu.pipeline_mode<synchronous>, transform_indices = @transform_25, window_bounds = array<i64: 2, 32, 32>}, {pipeline_mode = #tpu.pipeline_mode<synchronous>, transform_indices = @transform_26, window_bounds = array<i64: 2, 1, 32>}, {pipeline_mode = #tpu.pipeline_mode<synchronous>, transform_indices = @transform_27, window_bounds = array<i64: 2, 32, 32>}, {pipeline_mode = #tpu.pipeline_mode<synchronous>, transform_indices = @transform_28, window_bounds = array<i64: 2, 1, 32>}, {pipeline_mode = #tpu.pipeline_mode<synchronous>, transform_indices = @transform_29, window_bounds = array<i64: 2, 32, 64>}, {pipeline_mode = #tpu.pipeline_mode<synchronous>, transform_indices = @transform_30, window_bounds = array<i64: 2, 1, 64>}, {pipeline_mode = #tpu.pipeline_mode<synchronous>, transform_indices = @transform_31, window_bounds = array<i64: 2, 32, 32>}, {pipeline_mode = #tpu.pipeline_mode<synchronous>, transform_indices = @transform_32, window_bounds = array<i64: 2, 1, 32>}, {pipeline_mode = #tpu.pipeline_mode<synchronous>, transform_indices = @transform_33, window_bounds = array<i64: 2, 32, 64>}, {pipeline_mode = #tpu.pipeline_mode<synchronous>, transform_indices = @transform_34, window_bounds = array<i64: 2, 1, 64>}, {pipeline_mode = #tpu.pipeline_mode<synchronous>, transform_indices = @transform_35, window_bounds = array<i64: 2, 64, 32>}, {pipeline_mode = #tpu.pipeline_mode<synchronous>, transform_indices = @transform_36, window_bounds = array<i64: 2, 1, 32>}, {pipeline_mode = #tpu.pipeline_mode<synchronous>, transform_indices = @transform_37, window_bounds = array<i64: 2, 1, 32>}, {pipeline_mode = #tpu.pipeline_mode<synchronous>, transform_indices = @transform_38, window_bounds = array<i64: 2, 1, 32>}, {pipeline_mode = #tpu.pipeline_mode<synchronous>, transform_indices = @transform_39, window_bounds = array<i64: 2, 1, 32>}, {pipeline_mode = #tpu.pipeline_mode<synchronous>, transform_indices = @transform_40, window_bounds = array<i64: 2, 1, 32>}, {pipeline_mode = #tpu.pipeline_mode<synchronous>, transform_indices = @transform_41, window_bounds = array<i64: 2, 1, 32>}, {pipeline_mode = #tpu.pipeline_mode<synchronous>, transform_indices = @transform_42, window_bounds = array<i64: 2, 1, 32>}, {pipeline_mode = #tpu.pipeline_mode<synchronous>, transform_indices = @transform_43, window_bounds = array<i64: 32, 48>}, {pipeline_mode = #tpu.pipeline_mode<synchronous>, transform_indices = @transform_44, window_bounds = array<i64: 1, 48>}, {pipeline_mode = #tpu.pipeline_mode<synchronous>, transform_indices = @transform_45, window_bounds = array<i64: 48, 128>}, {pipeline_mode = #tpu.pipeline_mode<synchronous>, transform_indices = @transform_46, window_bounds = array<i64: 1, 128>}, {transform_indices = @transform_47, window_bounds = array<i64: 1, 8, 128>}]} {
    %c0 = arith.constant 0 : index
    %c0_0 = arith.constant 0 : index
    %0 = vector.load %arg8[%c0, %c0_0] : memref<32x32xf32, #tpu.memory_space<vmem>>, vector<32x32xf32>
    %c0_1 = arith.constant 0 : index
    %c0_2 = arith.constant 0 : index
    %1 = vector.load %arg9[%c0_1, %c0_2] : memref<32x32xf32, #tpu.memory_space<vmem>>, vector<32x32xf32>
    %c0_3 = arith.constant 0 : index
    %c0_4 = arith.constant 0 : index
    %2 = vector.load %arg10[%c0_3, %c0_4] : memref<32x32xf32, #tpu.memory_space<vmem>>, vector<32x32xf32>
    %c0_5 = arith.constant 0 : index
    %c0_6 = arith.constant 0 : index
    %3 = vector.load %arg11[%c0_5, %c0_6] : memref<32x32xf32, #tpu.memory_space<vmem>>, vector<32x32xf32>
    %c0_7 = arith.constant 0 : index
    %c0_8 = arith.constant 0 : index
    %c0_9 = arith.constant 0 : index
    %4 = vector.load %arg3[%c0_7, %c0_8, %c0_9] : memref<1x1x32xf32, #tpu.memory_space<vmem>>, vector<1x1x32xf32>
    %5 = vector.shape_cast %4 : vector<1x1x32xf32> to vector<1x32xf32>
    %c0_10 = arith.constant 0 : index
    %c0_11 = arith.constant 0 : index
    %c0_12 = arith.constant 0 : index
    %6 = vector.load %arg4[%c0_10, %c0_11, %c0_12] : memref<1x8x32xf32, #tpu.memory_space<vmem>>, vector<1x8x32xf32>
    %7 = vector.shape_cast %6 : vector<1x8x32xf32> to vector<8x32xf32>
    %c0_13 = arith.constant 0 : index
    %c0_14 = arith.constant 0 : index
    %8 = vector.load %arg7[%c0_13, %c0_14] : memref<16x32xf32, #tpu.memory_space<vmem>>, vector<16x32xf32>
    %c0_15 = arith.constant 0 : index
    %c0_16 = arith.constant 0 : index
    %c0_17 = arith.constant 0 : index
    %9 = vector.load %arg1[%c0_15, %c0_16, %c0_17] : memref<1x8x1xi32, #tpu.memory_space<vmem>>, vector<1x8x1xi32>
    %10 = vector.shape_cast %9 : vector<1x8x1xi32> to vector<8x1xi32>
    %11 = tpu.iota {dimensions = array<i32: 1>} : vector<8x40xi32>
    %12 = vector.broadcast %10 : vector<8x1xi32> to vector<8x40xi32>
    %13 = arith.cmpi eq, %12, %11 : vector<8x40xi32>
    %14 = arith.extui %13 : vector<8x40xi1> to vector<8x40xi32>
    %15 = arith.sitofp %14 : vector<8x40xi32> to vector<8x40xf32>
    %c0_18 = arith.constant 0 : index
    %c0_19 = arith.constant 0 : index
    %16 = vector.load %arg5[%c0_18, %c0_19] : memref<40x32xf32, #tpu.memory_space<vmem>>, vector<40x32xf32>
    %cst = arith.constant dense<0.000000e+00> : vector<8x32xf32>
    %17 = tpu.matmul %15, %16, %cst {dimension_numbers = #tpu.dot_dimension_numbers<[1], [0], [0], [1], [0, 0, 1, 1], [], []>} : vector<8x40xf32>, vector<40x32xf32>, vector<8x32xf32> -> vector<8x32xf32>
    %18 = vector.extract_strided_slice %8 {offsets = [0, 0], sizes = [8, 32], strides = [1, 1]} : vector<16x32xf32> to vector<8x32xf32>
    %19 = arith.addf %17, %18 : vector<8x32xf32>
    %c0_20 = arith.constant 0 : index
    %c0_21 = arith.constant 0 : index
    %c0_22 = arith.constant 0 : index
    %20 = vector.load %arg2[%c0_20, %c0_21, %c0_22] : memref<1x8x1xi32, #tpu.memory_space<vmem>>, vector<1x8x1xi32>
    %21 = vector.shape_cast %20 : vector<1x8x1xi32> to vector<8x1xi32>
    %22 = tpu.iota {dimensions = array<i32: 1>} : vector<8x48xi32>
    %23 = vector.broadcast %21 : vector<8x1xi32> to vector<8x48xi32>
    %24 = arith.cmpi eq, %23, %22 : vector<8x48xi32>
    %25 = arith.extui %24 : vector<8x48xi1> to vector<8x48xi32>
    %26 = arith.sitofp %25 : vector<8x48xi32> to vector<8x48xf32>
    %c0_23 = arith.constant 0 : index
    %c0_24 = arith.constant 0 : index
    %27 = vector.load %arg6[%c0_23, %c0_24] : memref<48x32xf32, #tpu.memory_space<vmem>>, vector<48x32xf32>
    %cst_25 = arith.constant dense<0.000000e+00> : vector<8x32xf32>
    %28 = tpu.matmul %26, %27, %cst_25 {dimension_numbers = #tpu.dot_dimension_numbers<[1], [0], [0], [1], [0, 0, 1, 1], [], []>} : vector<8x48xf32>, vector<48x32xf32>, vector<8x32xf32> -> vector<8x32xf32>
    %29 = vector.extract_strided_slice %8 {offsets = [0, 0], sizes = [8, 32], strides = [1, 1]} : vector<16x32xf32> to vector<8x32xf32>
    %30 = arith.addf %28, %29 : vector<8x32xf32>
    %c0_26 = arith.constant 0 : index
    %c0_27 = arith.constant 0 : index
    %c0_28 = arith.constant 0 : index
    %31 = vector.load %arg12[%c0_26, %c0_27, %c0_28] : memref<2x32x96xbf16, #tpu.memory_space<vmem>>, vector<1x32x96xbf16>
    %32 = vector.shape_cast %31 : vector<1x32x96xbf16> to vector<32x96xbf16>
    %c0_29 = arith.constant 0 : index
    %c0_30 = arith.constant 0 : index
    %c0_31 = arith.constant 0 : index
    %33 = vector.load %arg13[%c0_29, %c0_30, %c0_31] : memref<2x1x96xf32, #tpu.memory_space<vmem>>, vector<1x1x96xf32>
    %34 = vector.shape_cast %33 : vector<1x1x96xf32> to vector<1x96xf32>
    %c0_32 = arith.constant 0 : index
    %c0_33 = arith.constant 0 : index
    %c0_34 = arith.constant 0 : index
    %35 = vector.load %arg14[%c0_32, %c0_33, %c0_34] : memref<2x32x32xbf16, #tpu.memory_space<vmem>>, vector<1x32x32xbf16>
    %36 = vector.shape_cast %35 : vector<1x32x32xbf16> to vector<32x32xbf16>
    %c0_35 = arith.constant 0 : index
    %c0_36 = arith.constant 0 : index
    %c0_37 = arith.constant 0 : index
    %37 = vector.load %arg15[%c0_35, %c0_36, %c0_37] : memref<2x1x32xf32, #tpu.memory_space<vmem>>, vector<1x1x32xf32>
    %38 = vector.shape_cast %37 : vector<1x1x32xf32> to vector<1x32xf32>
    %c0_38 = arith.constant 0 : index
    %c0_39 = arith.constant 0 : index
    %c0_40 = arith.constant 0 : index
    %39 = vector.load %arg16[%c0_38, %c0_39, %c0_40] : memref<2x32x64xbf16, #tpu.memory_space<vmem>>, vector<1x32x64xbf16>
    %40 = vector.shape_cast %39 : vector<1x32x64xbf16> to vector<32x64xbf16>
    %c0_41 = arith.constant 0 : index
    %c0_42 = arith.constant 0 : index
    %c0_43 = arith.constant 0 : index
    %41 = vector.load %arg17[%c0_41, %c0_42, %c0_43] : memref<2x1x64xf32, #tpu.memory_space<vmem>>, vector<1x1x64xf32>
    %42 = vector.shape_cast %41 : vector<1x1x64xf32> to vector<1x64xf32>
    %c0_44 = arith.constant 0 : index
    %c0_45 = arith.constant 0 : index
    %c0_46 = arith.constant 0 : index
    %43 = vector.load %arg18[%c0_44, %c0_45, %c0_46] : memref<2x64x32xbf16, #tpu.memory_space<vmem>>, vector<1x64x32xbf16>
    %44 = vector.shape_cast %43 : vector<1x64x32xbf16> to vector<64x32xbf16>
    %c0_47 = arith.constant 0 : index
    %c0_48 = arith.constant 0 : index
    %c0_49 = arith.constant 0 : index
    %45 = vector.load %arg19[%c0_47, %c0_48, %c0_49] : memref<2x1x32xf32, #tpu.memory_space<vmem>>, vector<1x1x32xf32>
    %46 = vector.shape_cast %45 : vector<1x1x32xf32> to vector<1x32xf32>
    %c0_50 = arith.constant 0 : index
    %c0_51 = arith.constant 0 : index
    %c0_52 = arith.constant 0 : index
    %47 = vector.load %arg20[%c0_50, %c0_51, %c0_52] : memref<2x1x32xf32, #tpu.memory_space<vmem>>, vector<1x1x32xf32>
    %48 = vector.shape_cast %47 : vector<1x1x32xf32> to vector<1x32xf32>
    %c0_53 = arith.constant 0 : index
    %c0_54 = arith.constant 0 : index
    %c0_55 = arith.constant 0 : index
    %49 = vector.load %arg21[%c0_53, %c0_54, %c0_55] : memref<2x1x32xf32, #tpu.memory_space<vmem>>, vector<1x1x32xf32>
    %50 = vector.shape_cast %49 : vector<1x1x32xf32> to vector<1x32xf32>
    %c0_56 = arith.constant 0 : index
    %c0_57 = arith.constant 0 : index
    %c0_58 = arith.constant 0 : index
    %51 = vector.load %arg22[%c0_56, %c0_57, %c0_58] : memref<2x1x32xf32, #tpu.memory_space<vmem>>, vector<1x1x32xf32>
    %52 = vector.shape_cast %51 : vector<1x1x32xf32> to vector<1x32xf32>
    %c0_59 = arith.constant 0 : index
    %c0_60 = arith.constant 0 : index
    %c0_61 = arith.constant 0 : index
    %53 = vector.load %arg23[%c0_59, %c0_60, %c0_61] : memref<2x1x32xf32, #tpu.memory_space<vmem>>, vector<1x1x32xf32>
    %54 = vector.shape_cast %53 : vector<1x1x32xf32> to vector<1x32xf32>
    %55 = arith.truncf %19 : vector<8x32xf32> to vector<8x32xbf16>
    %cst_62 = arith.constant dense<0.000000e+00> : vector<8x96xf32>
    %56 = tpu.matmul %55, %32, %cst_62 {dimension_numbers = #tpu.dot_dimension_numbers<[1], [0], [0], [1], [0, 0, 1, 1], [], []>} : vector<8x32xbf16>, vector<32x96xbf16>, vector<8x96xf32> -> vector<8x96xf32>
    %57 = vector.broadcast %34 : vector<1x96xf32> to vector<8x96xf32>
    %58 = arith.addf %56, %57 : vector<8x96xf32>
    %59 = vector.extract_strided_slice %58 {offsets = [0, 0], sizes = [8, 32], strides = [1, 1]} : vector<8x96xf32> to vector<8x32xf32>
    %60 = vector.extract_strided_slice %58 {offsets = [0, 32], sizes = [8, 32], strides = [1, 1]} : vector<8x96xf32> to vector<8x32xf32>
    %61 = vector.extract_strided_slice %58 {offsets = [0, 64], sizes = [8, 32], strides = [1, 1]} : vector<8x96xf32> to vector<8x32xf32>
    %62 = tpu.concatenate %60, %60, %60, %60 in 0 : vector<8x32xf32>, vector<8x32xf32>, vector<8x32xf32>, vector<8x32xf32> -> vector<32x32xf32>
    %63 = arith.mulf %62, %0 : vector<32x32xf32>
    %64 = arith.truncf %63 : vector<32x32xf32> to vector<32x32xbf16>
    %65 = tpu.concatenate %61, %61, %61, %61 in 0 : vector<8x32xf32>, vector<8x32xf32>, vector<8x32xf32>, vector<8x32xf32> -> vector<32x32xf32>
    %66 = arith.mulf %65, %0 : vector<32x32xf32>
    %67 = arith.truncf %66 : vector<32x32xf32> to vector<32x32xbf16>
    %68 = arith.truncf %59 : vector<8x32xf32> to vector<8x32xbf16>
    %cst_63 = arith.constant dense<0.000000e+00> : vector<8x32xf32>
    %69 = tpu.matmul %68, %64, %cst_63 {dimension_numbers = #tpu.dot_dimension_numbers<[1], [1], [0], [0], [0, 0, 1, 0], [], []>} : vector<8x32xbf16>, vector<32x32xbf16>, vector<8x32xf32> -> vector<8x32xf32>
    %70 = vector.broadcast %5 : vector<1x32xf32> to vector<8x32xf32>
    %71 = arith.addf %69, %70 : vector<8x32xf32>
    %cst_64 = arith.constant dense<0xFF800000> : vector<8xf32>
    %72 = vector.multi_reduction <maximumf>, %71, %cst_64 [1] : vector<8x32xf32> to vector<8xf32>
    %73 = vector.shape_cast %72 : vector<8xf32> to vector<8x1xf32>
    %74 = vector.broadcast %73 : vector<8x1xf32> to vector<8x32xf32>
    %75 = arith.subf %71, %74 : vector<8x32xf32>
    %76 = math.exp %75 : vector<8x32xf32>
    %cst_65 = arith.constant dense<0.000000e+00> : vector<8x32xf32>
    %77 = tpu.matmul %76, %2, %cst_65 {dimension_numbers = #tpu.dot_dimension_numbers<[1], [0], [0], [1], [0, 0, 1, 1], [], []>} : vector<8x32xf32>, vector<32x32xf32>, vector<8x32xf32> -> vector<8x32xf32>
    %78 = tpu.reciprocal %77 {approx = true} : vector<8x32xf32> -> vector<8x32xf32>
    %79 = arith.mulf %76, %78 : vector<8x32xf32>
    %80 = arith.truncf %79 : vector<8x32xf32> to vector<8x32xbf16>
    %cst_66 = arith.constant dense<0.000000e+00> : vector<8x32xf32>
    %81 = tpu.matmul %80, %67, %cst_66 {dimension_numbers = #tpu.dot_dimension_numbers<[1], [0], [0], [1], [0, 0, 1, 1], [], []>} : vector<8x32xbf16>, vector<32x32xbf16>, vector<8x32xf32> -> vector<8x32xf32>
    %82 = arith.truncf %81 : vector<8x32xf32> to vector<8x32xbf16>
    %cst_67 = arith.constant dense<0.000000e+00> : vector<8x32xf32>
    %83 = tpu.matmul %82, %36, %cst_67 {dimension_numbers = #tpu.dot_dimension_numbers<[1], [0], [0], [1], [0, 0, 1, 1], [], []>} : vector<8x32xbf16>, vector<32x32xbf16>, vector<8x32xf32> -> vector<8x32xf32>
    %84 = vector.broadcast %38 : vector<1x32xf32> to vector<8x32xf32>
    %85 = arith.addf %83, %84 : vector<8x32xf32>
    %86 = arith.addf %19, %85 : vector<8x32xf32>
    %cst_68 = arith.constant dense<0.000000e+00> : vector<8xf32>
    %87 = vector.multi_reduction <add>, %86, %cst_68 [1] : vector<8x32xf32> to vector<8xf32>
    %88 = vector.shape_cast %87 : vector<8xf32> to vector<8x1xf32>
    %cst_69 = arith.constant 3.200000e+01 : f32
    %89 = vector.broadcast %cst_69 : f32 to vector<8x1xf32>
    %90 = arith.divf %88, %89 : vector<8x1xf32>
    %91 = vector.broadcast %90 : vector<8x1xf32> to vector<8x32xf32>
    %92 = arith.subf %86, %91 : vector<8x32xf32>
    %93 = arith.mulf %92, %92 : vector<8x32xf32>
    %cst_70 = arith.constant dense<0.000000e+00> : vector<8xf32>
    %94 = vector.multi_reduction <add>, %93, %cst_70 [1] : vector<8x32xf32> to vector<8xf32>
    %95 = vector.shape_cast %94 : vector<8xf32> to vector<8x1xf32>
    %cst_71 = arith.constant 3.200000e+01 : f32
    %96 = vector.broadcast %cst_71 : f32 to vector<8x1xf32>
    %97 = arith.divf %95, %96 : vector<8x1xf32>
    %98 = vector.broadcast %90 : vector<8x1xf32> to vector<8x32xf32>
    %99 = arith.subf %86, %98 : vector<8x32xf32>
    %cst_72 = arith.constant 9.99999974E-6 : f32
    %100 = vector.broadcast %cst_72 : f32 to vector<8x1xf32>
    %101 = arith.addf %97, %100 : vector<8x1xf32>
    %102 = math.rsqrt %101 : vector<8x1xf32>
    %103 = vector.broadcast %102 : vector<8x1xf32> to vector<8x32xf32>
    %104 = arith.mulf %99, %103 : vector<8x32xf32>
    %105 = vector.broadcast %48 : vector<1x32xf32> to vector<8x32xf32>
    %106 = arith.mulf %104, %105 : vector<8x32xf32>
    %107 = vector.broadcast %50 : vector<1x32xf32> to vector<8x32xf32>
    %108 = arith.addf %106, %107 : vector<8x32xf32>
    %109 = arith.truncf %108 : vector<8x32xf32> to vector<8x32xbf16>
    %cst_73 = arith.constant dense<0.000000e+00> : vector<8x64xf32>
    %110 = tpu.matmul %109, %40, %cst_73 {dimension_numbers = #tpu.dot_dimension_numbers<[1], [0], [0], [1], [0, 0, 1, 1], [], []>} : vector<8x32xbf16>, vector<32x64xbf16>, vector<8x64xf32> -> vector<8x64xf32>
    %111 = vector.broadcast %42 : vector<1x64xf32> to vector<8x64xf32>
    %112 = arith.addf %110, %111 : vector<8x64xf32>
    %cst_74 = arith.constant 0.000000e+00 : f32
    %113 = vector.broadcast %cst_74 : f32 to vector<8x64xf32>
    %114 = arith.maximumf %112, %113 : vector<8x64xf32>
    %115 = arith.truncf %114 : vector<8x64xf32> to vector<8x64xbf16>
    %cst_75 = arith.constant dense<0.000000e+00> : vector<8x32xf32>
    %116 = tpu.matmul %115, %44, %cst_75 {dimension_numbers = #tpu.dot_dimension_numbers<[1], [0], [0], [1], [0, 0, 1, 1], [], []>} : vector<8x64xbf16>, vector<64x32xbf16>, vector<8x32xf32> -> vector<8x32xf32>
    %117 = vector.broadcast %46 : vector<1x32xf32> to vector<8x32xf32>
    %118 = arith.addf %116, %117 : vector<8x32xf32>
    %119 = arith.addf %108, %118 : vector<8x32xf32>
    %cst_76 = arith.constant dense<0.000000e+00> : vector<8xf32>
    %120 = vector.multi_reduction <add>, %119, %cst_76 [1] : vector<8x32xf32> to vector<8xf32>
    %121 = vector.shape_cast %120 : vector<8xf32> to vector<8x1xf32>
    %cst_77 = arith.constant 3.200000e+01 : f32
    %122 = vector.broadcast %cst_77 : f32 to vector<8x1xf32>
    %123 = arith.divf %121, %122 : vector<8x1xf32>
    %124 = vector.broadcast %123 : vector<8x1xf32> to vector<8x32xf32>
    %125 = arith.subf %119, %124 : vector<8x32xf32>
    %126 = arith.mulf %125, %125 : vector<8x32xf32>
    %cst_78 = arith.constant dense<0.000000e+00> : vector<8xf32>
    %127 = vector.multi_reduction <add>, %126, %cst_78 [1] : vector<8x32xf32> to vector<8xf32>
    %128 = vector.shape_cast %127 : vector<8xf32> to vector<8x1xf32>
    %cst_79 = arith.constant 3.200000e+01 : f32
    %129 = vector.broadcast %cst_79 : f32 to vector<8x1xf32>
    %130 = arith.divf %128, %129 : vector<8x1xf32>
    %131 = vector.broadcast %123 : vector<8x1xf32> to vector<8x32xf32>
    %132 = arith.subf %119, %131 : vector<8x32xf32>
    %cst_80 = arith.constant 9.99999974E-6 : f32
    %133 = vector.broadcast %cst_80 : f32 to vector<8x1xf32>
    %134 = arith.addf %130, %133 : vector<8x1xf32>
    %135 = math.rsqrt %134 : vector<8x1xf32>
    %136 = vector.broadcast %135 : vector<8x1xf32> to vector<8x32xf32>
    %137 = arith.mulf %132, %136 : vector<8x32xf32>
    %138 = vector.broadcast %52 : vector<1x32xf32> to vector<8x32xf32>
    %139 = arith.mulf %137, %138 : vector<8x32xf32>
    %140 = vector.broadcast %54 : vector<1x32xf32> to vector<8x32xf32>
    %141 = arith.addf %139, %140 : vector<8x32xf32>
    %c1 = arith.constant 1 : index
    %c0_81 = arith.constant 0 : index
    %c0_82 = arith.constant 0 : index
    %142 = vector.load %arg12[%c1, %c0_81, %c0_82] : memref<2x32x96xbf16, #tpu.memory_space<vmem>>, vector<1x32x96xbf16>
    %143 = vector.shape_cast %142 : vector<1x32x96xbf16> to vector<32x96xbf16>
    %c1_83 = arith.constant 1 : index
    %c0_84 = arith.constant 0 : index
    %c0_85 = arith.constant 0 : index
    %144 = vector.load %arg13[%c1_83, %c0_84, %c0_85] : memref<2x1x96xf32, #tpu.memory_space<vmem>>, vector<1x1x96xf32>
    %145 = vector.shape_cast %144 : vector<1x1x96xf32> to vector<1x96xf32>
    %c1_86 = arith.constant 1 : index
    %c0_87 = arith.constant 0 : index
    %c0_88 = arith.constant 0 : index
    %146 = vector.load %arg14[%c1_86, %c0_87, %c0_88] : memref<2x32x32xbf16, #tpu.memory_space<vmem>>, vector<1x32x32xbf16>
    %147 = vector.shape_cast %146 : vector<1x32x32xbf16> to vector<32x32xbf16>
    %c1_89 = arith.constant 1 : index
    %c0_90 = arith.constant 0 : index
    %c0_91 = arith.constant 0 : index
    %148 = vector.load %arg15[%c1_89, %c0_90, %c0_91] : memref<2x1x32xf32, #tpu.memory_space<vmem>>, vector<1x1x32xf32>
    %149 = vector.shape_cast %148 : vector<1x1x32xf32> to vector<1x32xf32>
    %c1_92 = arith.constant 1 : index
    %c0_93 = arith.constant 0 : index
    %c0_94 = arith.constant 0 : index
    %150 = vector.load %arg16[%c1_92, %c0_93, %c0_94] : memref<2x32x64xbf16, #tpu.memory_space<vmem>>, vector<1x32x64xbf16>
    %151 = vector.shape_cast %150 : vector<1x32x64xbf16> to vector<32x64xbf16>
    %c1_95 = arith.constant 1 : index
    %c0_96 = arith.constant 0 : index
    %c0_97 = arith.constant 0 : index
    %152 = vector.load %arg17[%c1_95, %c0_96, %c0_97] : memref<2x1x64xf32, #tpu.memory_space<vmem>>, vector<1x1x64xf32>
    %153 = vector.shape_cast %152 : vector<1x1x64xf32> to vector<1x64xf32>
    %c1_98 = arith.constant 1 : index
    %c0_99 = arith.constant 0 : index
    %c0_100 = arith.constant 0 : index
    %154 = vector.load %arg18[%c1_98, %c0_99, %c0_100] : memref<2x64x32xbf16, #tpu.memory_space<vmem>>, vector<1x64x32xbf16>
    %155 = vector.shape_cast %154 : vector<1x64x32xbf16> to vector<64x32xbf16>
    %c1_101 = arith.constant 1 : index
    %c0_102 = arith.constant 0 : index
    %c0_103 = arith.constant 0 : index
    %156 = vector.load %arg19[%c1_101, %c0_102, %c0_103] : memref<2x1x32xf32, #tpu.memory_space<vmem>>, vector<1x1x32xf32>
    %157 = vector.shape_cast %156 : vector<1x1x32xf32> to vector<1x32xf32>
    %c1_104 = arith.constant 1 : index
    %c0_105 = arith.constant 0 : index
    %c0_106 = arith.constant 0 : index
    %158 = vector.load %arg20[%c1_104, %c0_105, %c0_106] : memref<2x1x32xf32, #tpu.memory_space<vmem>>, vector<1x1x32xf32>
    %159 = vector.shape_cast %158 : vector<1x1x32xf32> to vector<1x32xf32>
    %c1_107 = arith.constant 1 : index
    %c0_108 = arith.constant 0 : index
    %c0_109 = arith.constant 0 : index
    %160 = vector.load %arg21[%c1_107, %c0_108, %c0_109] : memref<2x1x32xf32, #tpu.memory_space<vmem>>, vector<1x1x32xf32>
    %161 = vector.shape_cast %160 : vector<1x1x32xf32> to vector<1x32xf32>
    %c1_110 = arith.constant 1 : index
    %c0_111 = arith.constant 0 : index
    %c0_112 = arith.constant 0 : index
    %162 = vector.load %arg22[%c1_110, %c0_111, %c0_112] : memref<2x1x32xf32, #tpu.memory_space<vmem>>, vector<1x1x32xf32>
    %163 = vector.shape_cast %162 : vector<1x1x32xf32> to vector<1x32xf32>
    %c1_113 = arith.constant 1 : index
    %c0_114 = arith.constant 0 : index
    %c0_115 = arith.constant 0 : index
    %164 = vector.load %arg23[%c1_113, %c0_114, %c0_115] : memref<2x1x32xf32, #tpu.memory_space<vmem>>, vector<1x1x32xf32>
    %165 = vector.shape_cast %164 : vector<1x1x32xf32> to vector<1x32xf32>
    %166 = arith.truncf %141 : vector<8x32xf32> to vector<8x32xbf16>
    %cst_116 = arith.constant dense<0.000000e+00> : vector<8x96xf32>
    %167 = tpu.matmul %166, %143, %cst_116 {dimension_numbers = #tpu.dot_dimension_numbers<[1], [0], [0], [1], [0, 0, 1, 1], [], []>} : vector<8x32xbf16>, vector<32x96xbf16>, vector<8x96xf32> -> vector<8x96xf32>
    %168 = vector.broadcast %145 : vector<1x96xf32> to vector<8x96xf32>
    %169 = arith.addf %167, %168 : vector<8x96xf32>
    %170 = vector.extract_strided_slice %169 {offsets = [0, 0], sizes = [8, 32], strides = [1, 1]} : vector<8x96xf32> to vector<8x32xf32>
    %171 = vector.extract_strided_slice %169 {offsets = [0, 32], sizes = [8, 32], strides = [1, 1]} : vector<8x96xf32> to vector<8x32xf32>
    %172 = vector.extract_strided_slice %169 {offsets = [0, 64], sizes = [8, 32], strides = [1, 1]} : vector<8x96xf32> to vector<8x32xf32>
    %173 = tpu.concatenate %171, %171, %171, %171 in 0 : vector<8x32xf32>, vector<8x32xf32>, vector<8x32xf32>, vector<8x32xf32> -> vector<32x32xf32>
    %174 = arith.mulf %173, %0 : vector<32x32xf32>
    %175 = arith.truncf %174 : vector<32x32xf32> to vector<32x32xbf16>
    %176 = tpu.concatenate %172, %172, %172, %172 in 0 : vector<8x32xf32>, vector<8x32xf32>, vector<8x32xf32>, vector<8x32xf32> -> vector<32x32xf32>
    %177 = arith.mulf %176, %0 : vector<32x32xf32>
    %178 = arith.truncf %177 : vector<32x32xf32> to vector<32x32xbf16>
    %179 = arith.truncf %170 : vector<8x32xf32> to vector<8x32xbf16>
    %cst_117 = arith.constant dense<0.000000e+00> : vector<8x32xf32>
    %180 = tpu.matmul %179, %175, %cst_117 {dimension_numbers = #tpu.dot_dimension_numbers<[1], [1], [0], [0], [0, 0, 1, 0], [], []>} : vector<8x32xbf16>, vector<32x32xbf16>, vector<8x32xf32> -> vector<8x32xf32>
    %181 = vector.broadcast %5 : vector<1x32xf32> to vector<8x32xf32>
    %182 = arith.addf %180, %181 : vector<8x32xf32>
    %cst_118 = arith.constant dense<0xFF800000> : vector<8xf32>
    %183 = vector.multi_reduction <maximumf>, %182, %cst_118 [1] : vector<8x32xf32> to vector<8xf32>
    %184 = vector.shape_cast %183 : vector<8xf32> to vector<8x1xf32>
    %185 = vector.broadcast %184 : vector<8x1xf32> to vector<8x32xf32>
    %186 = arith.subf %182, %185 : vector<8x32xf32>
    %187 = math.exp %186 : vector<8x32xf32>
    %cst_119 = arith.constant dense<0.000000e+00> : vector<8x32xf32>
    %188 = tpu.matmul %187, %2, %cst_119 {dimension_numbers = #tpu.dot_dimension_numbers<[1], [0], [0], [1], [0, 0, 1, 1], [], []>} : vector<8x32xf32>, vector<32x32xf32>, vector<8x32xf32> -> vector<8x32xf32>
    %189 = tpu.reciprocal %188 {approx = true} : vector<8x32xf32> -> vector<8x32xf32>
    %190 = arith.mulf %187, %189 : vector<8x32xf32>
    %191 = arith.truncf %190 : vector<8x32xf32> to vector<8x32xbf16>
    %cst_120 = arith.constant dense<0.000000e+00> : vector<8x32xf32>
    %192 = tpu.matmul %191, %178, %cst_120 {dimension_numbers = #tpu.dot_dimension_numbers<[1], [0], [0], [1], [0, 0, 1, 1], [], []>} : vector<8x32xbf16>, vector<32x32xbf16>, vector<8x32xf32> -> vector<8x32xf32>
    %193 = arith.truncf %192 : vector<8x32xf32> to vector<8x32xbf16>
    %cst_121 = arith.constant dense<0.000000e+00> : vector<8x32xf32>
    %194 = tpu.matmul %193, %147, %cst_121 {dimension_numbers = #tpu.dot_dimension_numbers<[1], [0], [0], [1], [0, 0, 1, 1], [], []>} : vector<8x32xbf16>, vector<32x32xbf16>, vector<8x32xf32> -> vector<8x32xf32>
    %195 = vector.broadcast %149 : vector<1x32xf32> to vector<8x32xf32>
    %196 = arith.addf %194, %195 : vector<8x32xf32>
    %197 = arith.addf %141, %196 : vector<8x32xf32>
    %cst_122 = arith.constant dense<0.000000e+00> : vector<8xf32>
    %198 = vector.multi_reduction <add>, %197, %cst_122 [1] : vector<8x32xf32> to vector<8xf32>
    %199 = vector.shape_cast %198 : vector<8xf32> to vector<8x1xf32>
    %cst_123 = arith.constant 3.200000e+01 : f32
    %200 = vector.broadcast %cst_123 : f32 to vector<8x1xf32>
    %201 = arith.divf %199, %200 : vector<8x1xf32>
    %202 = vector.broadcast %201 : vector<8x1xf32> to vector<8x32xf32>
    %203 = arith.subf %197, %202 : vector<8x32xf32>
    %204 = arith.mulf %203, %203 : vector<8x32xf32>
    %cst_124 = arith.constant dense<0.000000e+00> : vector<8xf32>
    %205 = vector.multi_reduction <add>, %204, %cst_124 [1] : vector<8x32xf32> to vector<8xf32>
    %206 = vector.shape_cast %205 : vector<8xf32> to vector<8x1xf32>
    %cst_125 = arith.constant 3.200000e+01 : f32
    %207 = vector.broadcast %cst_125 : f32 to vector<8x1xf32>
    %208 = arith.divf %206, %207 : vector<8x1xf32>
    %209 = vector.broadcast %201 : vector<8x1xf32> to vector<8x32xf32>
    %210 = arith.subf %197, %209 : vector<8x32xf32>
    %cst_126 = arith.constant 9.99999974E-6 : f32
    %211 = vector.broadcast %cst_126 : f32 to vector<8x1xf32>
    %212 = arith.addf %208, %211 : vector<8x1xf32>
    %213 = math.rsqrt %212 : vector<8x1xf32>
    %214 = vector.broadcast %213 : vector<8x1xf32> to vector<8x32xf32>
    %215 = arith.mulf %210, %214 : vector<8x32xf32>
    %216 = vector.broadcast %159 : vector<1x32xf32> to vector<8x32xf32>
    %217 = arith.mulf %215, %216 : vector<8x32xf32>
    %218 = vector.broadcast %161 : vector<1x32xf32> to vector<8x32xf32>
    %219 = arith.addf %217, %218 : vector<8x32xf32>
    %220 = arith.truncf %219 : vector<8x32xf32> to vector<8x32xbf16>
    %cst_127 = arith.constant dense<0.000000e+00> : vector<8x64xf32>
    %221 = tpu.matmul %220, %151, %cst_127 {dimension_numbers = #tpu.dot_dimension_numbers<[1], [0], [0], [1], [0, 0, 1, 1], [], []>} : vector<8x32xbf16>, vector<32x64xbf16>, vector<8x64xf32> -> vector<8x64xf32>
    %222 = vector.broadcast %153 : vector<1x64xf32> to vector<8x64xf32>
    %223 = arith.addf %221, %222 : vector<8x64xf32>
    %cst_128 = arith.constant 0.000000e+00 : f32
    %224 = vector.broadcast %cst_128 : f32 to vector<8x64xf32>
    %225 = arith.maximumf %223, %224 : vector<8x64xf32>
    %226 = arith.truncf %225 : vector<8x64xf32> to vector<8x64xbf16>
    %cst_129 = arith.constant dense<0.000000e+00> : vector<8x32xf32>
    %227 = tpu.matmul %226, %155, %cst_129 {dimension_numbers = #tpu.dot_dimension_numbers<[1], [0], [0], [1], [0, 0, 1, 1], [], []>} : vector<8x64xbf16>, vector<64x32xbf16>, vector<8x32xf32> -> vector<8x32xf32>
    %228 = vector.broadcast %157 : vector<1x32xf32> to vector<8x32xf32>
    %229 = arith.addf %227, %228 : vector<8x32xf32>
    %230 = arith.addf %219, %229 : vector<8x32xf32>
    %cst_130 = arith.constant dense<0.000000e+00> : vector<8xf32>
    %231 = vector.multi_reduction <add>, %230, %cst_130 [1] : vector<8x32xf32> to vector<8xf32>
    %232 = vector.shape_cast %231 : vector<8xf32> to vector<8x1xf32>
    %cst_131 = arith.constant 3.200000e+01 : f32
    %233 = vector.broadcast %cst_131 : f32 to vector<8x1xf32>
    %234 = arith.divf %232, %233 : vector<8x1xf32>
    %235 = vector.broadcast %234 : vector<8x1xf32> to vector<8x32xf32>
    %236 = arith.subf %230, %235 : vector<8x32xf32>
    %237 = arith.mulf %236, %236 : vector<8x32xf32>
    %cst_132 = arith.constant dense<0.000000e+00> : vector<8xf32>
    %238 = vector.multi_reduction <add>, %237, %cst_132 [1] : vector<8x32xf32> to vector<8xf32>
    %239 = vector.shape_cast %238 : vector<8xf32> to vector<8x1xf32>
    %cst_133 = arith.constant 3.200000e+01 : f32
    %240 = vector.broadcast %cst_133 : f32 to vector<8x1xf32>
    %241 = arith.divf %239, %240 : vector<8x1xf32>
    %242 = vector.broadcast %234 : vector<8x1xf32> to vector<8x32xf32>
    %243 = arith.subf %230, %242 : vector<8x32xf32>
    %cst_134 = arith.constant 9.99999974E-6 : f32
    %244 = vector.broadcast %cst_134 : f32 to vector<8x1xf32>
    %245 = arith.addf %241, %244 : vector<8x1xf32>
    %246 = math.rsqrt %245 : vector<8x1xf32>
    %247 = vector.broadcast %246 : vector<8x1xf32> to vector<8x32xf32>
    %248 = arith.mulf %243, %247 : vector<8x32xf32>
    %249 = vector.broadcast %163 : vector<1x32xf32> to vector<8x32xf32>
    %250 = arith.mulf %248, %249 : vector<8x32xf32>
    %251 = vector.broadcast %165 : vector<1x32xf32> to vector<8x32xf32>
    %252 = arith.addf %250, %251 : vector<8x32xf32>
    %c0_135 = arith.constant 0 : index
    %c0_136 = arith.constant 0 : index
    %c0_137 = arith.constant 0 : index
    %253 = vector.load %arg24[%c0_135, %c0_136, %c0_137] : memref<2x32x96xbf16, #tpu.memory_space<vmem>>, vector<1x32x96xbf16>
    %254 = vector.shape_cast %253 : vector<1x32x96xbf16> to vector<32x96xbf16>
    %c0_138 = arith.constant 0 : index
    %c0_139 = arith.constant 0 : index
    %c0_140 = arith.constant 0 : index
    %255 = vector.load %arg25[%c0_138, %c0_139, %c0_140] : memref<2x1x96xf32, #tpu.memory_space<vmem>>, vector<1x1x96xf32>
    %256 = vector.shape_cast %255 : vector<1x1x96xf32> to vector<1x96xf32>
    %c0_141 = arith.constant 0 : index
    %c0_142 = arith.constant 0 : index
    %c0_143 = arith.constant 0 : index
    %257 = vector.load %arg26[%c0_141, %c0_142, %c0_143] : memref<2x32x32xbf16, #tpu.memory_space<vmem>>, vector<1x32x32xbf16>
    %258 = vector.shape_cast %257 : vector<1x32x32xbf16> to vector<32x32xbf16>
    %c0_144 = arith.constant 0 : index
    %c0_145 = arith.constant 0 : index
    %c0_146 = arith.constant 0 : index
    %259 = vector.load %arg27[%c0_144, %c0_145, %c0_146] : memref<2x1x32xf32, #tpu.memory_space<vmem>>, vector<1x1x32xf32>
    %260 = vector.shape_cast %259 : vector<1x1x32xf32> to vector<1x32xf32>
    %c0_147 = arith.constant 0 : index
    %c0_148 = arith.constant 0 : index
    %c0_149 = arith.constant 0 : index
    %261 = vector.load %arg28[%c0_147, %c0_148, %c0_149] : memref<2x32x32xbf16, #tpu.memory_space<vmem>>, vector<1x32x32xbf16>
    %262 = vector.shape_cast %261 : vector<1x32x32xbf16> to vector<32x32xbf16>
    %c0_150 = arith.constant 0 : index
    %c0_151 = arith.constant 0 : index
    %c0_152 = arith.constant 0 : index
    %263 = vector.load %arg29[%c0_150, %c0_151, %c0_152] : memref<2x1x32xf32, #tpu.memory_space<vmem>>, vector<1x1x32xf32>
    %264 = vector.shape_cast %263 : vector<1x1x32xf32> to vector<1x32xf32>
    %c0_153 = arith.constant 0 : index
    %c0_154 = arith.constant 0 : index
    %c0_155 = arith.constant 0 : index
    %265 = vector.load %arg30[%c0_153, %c0_154, %c0_155] : memref<2x32x64xbf16, #tpu.memory_space<vmem>>, vector<1x32x64xbf16>
    %266 = vector.shape_cast %265 : vector<1x32x64xbf16> to vector<32x64xbf16>
    %c0_156 = arith.constant 0 : index
    %c0_157 = arith.constant 0 : index
    %c0_158 = arith.constant 0 : index
    %267 = vector.load %arg31[%c0_156, %c0_157, %c0_158] : memref<2x1x64xf32, #tpu.memory_space<vmem>>, vector<1x1x64xf32>
    %268 = vector.shape_cast %267 : vector<1x1x64xf32> to vector<1x64xf32>
    %c0_159 = arith.constant 0 : index
    %c0_160 = arith.constant 0 : index
    %c0_161 = arith.constant 0 : index
    %269 = vector.load %arg32[%c0_159, %c0_160, %c0_161] : memref<2x32x32xbf16, #tpu.memory_space<vmem>>, vector<1x32x32xbf16>
    %270 = vector.shape_cast %269 : vector<1x32x32xbf16> to vector<32x32xbf16>
    %c0_162 = arith.constant 0 : index
    %c0_163 = arith.constant 0 : index
    %c0_164 = arith.constant 0 : index
    %271 = vector.load %arg33[%c0_162, %c0_163, %c0_164] : memref<2x1x32xf32, #tpu.memory_space<vmem>>, vector<1x1x32xf32>
    %272 = vector.shape_cast %271 : vector<1x1x32xf32> to vector<1x32xf32>
    %c0_165 = arith.constant 0 : index
    %c0_166 = arith.constant 0 : index
    %c0_167 = arith.constant 0 : index
    %273 = vector.load %arg34[%c0_165, %c0_166, %c0_167] : memref<2x32x64xbf16, #tpu.memory_space<vmem>>, vector<1x32x64xbf16>
    %274 = vector.shape_cast %273 : vector<1x32x64xbf16> to vector<32x64xbf16>
    %c0_168 = arith.constant 0 : index
    %c0_169 = arith.constant 0 : index
    %c0_170 = arith.constant 0 : index
    %275 = vector.load %arg35[%c0_168, %c0_169, %c0_170] : memref<2x1x64xf32, #tpu.memory_space<vmem>>, vector<1x1x64xf32>
    %276 = vector.shape_cast %275 : vector<1x1x64xf32> to vector<1x64xf32>
    %c0_171 = arith.constant 0 : index
    %c0_172 = arith.constant 0 : index
    %c0_173 = arith.constant 0 : index
    %277 = vector.load %arg36[%c0_171, %c0_172, %c0_173] : memref<2x64x32xbf16, #tpu.memory_space<vmem>>, vector<1x64x32xbf16>
    %278 = vector.shape_cast %277 : vector<1x64x32xbf16> to vector<64x32xbf16>
    %c0_174 = arith.constant 0 : index
    %c0_175 = arith.constant 0 : index
    %c0_176 = arith.constant 0 : index
    %279 = vector.load %arg37[%c0_174, %c0_175, %c0_176] : memref<2x1x32xf32, #tpu.memory_space<vmem>>, vector<1x1x32xf32>
    %280 = vector.shape_cast %279 : vector<1x1x32xf32> to vector<1x32xf32>
    %c0_177 = arith.constant 0 : index
    %c0_178 = arith.constant 0 : index
    %c0_179 = arith.constant 0 : index
    %281 = vector.load %arg38[%c0_177, %c0_178, %c0_179] : memref<2x1x32xf32, #tpu.memory_space<vmem>>, vector<1x1x32xf32>
    %282 = vector.shape_cast %281 : vector<1x1x32xf32> to vector<1x32xf32>
    %c0_180 = arith.constant 0 : index
    %c0_181 = arith.constant 0 : index
    %c0_182 = arith.constant 0 : index
    %283 = vector.load %arg39[%c0_180, %c0_181, %c0_182] : memref<2x1x32xf32, #tpu.memory_space<vmem>>, vector<1x1x32xf32>
    %284 = vector.shape_cast %283 : vector<1x1x32xf32> to vector<1x32xf32>
    %c0_183 = arith.constant 0 : index
    %c0_184 = arith.constant 0 : index
    %c0_185 = arith.constant 0 : index
    %285 = vector.load %arg40[%c0_183, %c0_184, %c0_185] : memref<2x1x32xf32, #tpu.memory_space<vmem>>, vector<1x1x32xf32>
    %286 = vector.shape_cast %285 : vector<1x1x32xf32> to vector<1x32xf32>
    %c0_186 = arith.constant 0 : index
    %c0_187 = arith.constant 0 : index
    %c0_188 = arith.constant 0 : index
    %287 = vector.load %arg41[%c0_186, %c0_187, %c0_188] : memref<2x1x32xf32, #tpu.memory_space<vmem>>, vector<1x1x32xf32>
    %288 = vector.shape_cast %287 : vector<1x1x32xf32> to vector<1x32xf32>
    %c0_189 = arith.constant 0 : index
    %c0_190 = arith.constant 0 : index
    %c0_191 = arith.constant 0 : index
    %289 = vector.load %arg42[%c0_189, %c0_190, %c0_191] : memref<2x1x32xf32, #tpu.memory_space<vmem>>, vector<1x1x32xf32>
    %290 = vector.shape_cast %289 : vector<1x1x32xf32> to vector<1x32xf32>
    %c0_192 = arith.constant 0 : index
    %c0_193 = arith.constant 0 : index
    %c0_194 = arith.constant 0 : index
    %291 = vector.load %arg43[%c0_192, %c0_193, %c0_194] : memref<2x1x32xf32, #tpu.memory_space<vmem>>, vector<1x1x32xf32>
    %292 = vector.shape_cast %291 : vector<1x1x32xf32> to vector<1x32xf32>
    %293 = arith.truncf %30 : vector<8x32xf32> to vector<8x32xbf16>
    %cst_195 = arith.constant dense<0.000000e+00> : vector<8x96xf32>
    %294 = tpu.matmul %293, %254, %cst_195 {dimension_numbers = #tpu.dot_dimension_numbers<[1], [0], [0], [1], [0, 0, 1, 1], [], []>} : vector<8x32xbf16>, vector<32x96xbf16>, vector<8x96xf32> -> vector<8x96xf32>
    %295 = vector.broadcast %256 : vector<1x96xf32> to vector<8x96xf32>
    %296 = arith.addf %294, %295 : vector<8x96xf32>
    %297 = vector.extract_strided_slice %296 {offsets = [0, 0], sizes = [8, 32], strides = [1, 1]} : vector<8x96xf32> to vector<8x32xf32>
    %298 = vector.extract_strided_slice %296 {offsets = [0, 32], sizes = [8, 32], strides = [1, 1]} : vector<8x96xf32> to vector<8x32xf32>
    %299 = vector.extract_strided_slice %296 {offsets = [0, 64], sizes = [8, 32], strides = [1, 1]} : vector<8x96xf32> to vector<8x32xf32>
    %300 = tpu.concatenate %298, %298, %298, %298 in 0 : vector<8x32xf32>, vector<8x32xf32>, vector<8x32xf32>, vector<8x32xf32> -> vector<32x32xf32>
    %301 = arith.mulf %300, %1 : vector<32x32xf32>
    %302 = arith.truncf %301 : vector<32x32xf32> to vector<32x32xbf16>
    %303 = tpu.concatenate %299, %299, %299, %299 in 0 : vector<8x32xf32>, vector<8x32xf32>, vector<8x32xf32>, vector<8x32xf32> -> vector<32x32xf32>
    %304 = arith.mulf %303, %1 : vector<32x32xf32>
    %305 = arith.truncf %304 : vector<32x32xf32> to vector<32x32xbf16>
    %306 = arith.truncf %297 : vector<8x32xf32> to vector<8x32xbf16>
    %cst_196 = arith.constant dense<0.000000e+00> : vector<8x32xf32>
    %307 = tpu.matmul %306, %302, %cst_196 {dimension_numbers = #tpu.dot_dimension_numbers<[1], [1], [0], [0], [0, 0, 1, 0], [], []>} : vector<8x32xbf16>, vector<32x32xbf16>, vector<8x32xf32> -> vector<8x32xf32>
    %308 = arith.addf %307, %7 : vector<8x32xf32>
    %cst_197 = arith.constant dense<0xFF800000> : vector<8xf32>
    %309 = vector.multi_reduction <maximumf>, %308, %cst_197 [1] : vector<8x32xf32> to vector<8xf32>
    %310 = vector.shape_cast %309 : vector<8xf32> to vector<8x1xf32>
    %311 = vector.broadcast %310 : vector<8x1xf32> to vector<8x32xf32>
    %312 = arith.subf %308, %311 : vector<8x32xf32>
    %313 = math.exp %312 : vector<8x32xf32>
    %cst_198 = arith.constant dense<0.000000e+00> : vector<8x32xf32>
    %314 = tpu.matmul %313, %3, %cst_198 {dimension_numbers = #tpu.dot_dimension_numbers<[1], [0], [0], [1], [0, 0, 1, 1], [], []>} : vector<8x32xf32>, vector<32x32xf32>, vector<8x32xf32> -> vector<8x32xf32>
    %315 = tpu.reciprocal %314 {approx = true} : vector<8x32xf32> -> vector<8x32xf32>
    %316 = arith.mulf %313, %315 : vector<8x32xf32>
    %317 = arith.truncf %316 : vector<8x32xf32> to vector<8x32xbf16>
    %cst_199 = arith.constant dense<0.000000e+00> : vector<8x32xf32>
    %318 = tpu.matmul %317, %305, %cst_199 {dimension_numbers = #tpu.dot_dimension_numbers<[1], [0], [0], [1], [0, 0, 1, 1], [], []>} : vector<8x32xbf16>, vector<32x32xbf16>, vector<8x32xf32> -> vector<8x32xf32>
    %319 = arith.truncf %318 : vector<8x32xf32> to vector<8x32xbf16>
    %cst_200 = arith.constant dense<0.000000e+00> : vector<8x32xf32>
    %320 = tpu.matmul %319, %258, %cst_200 {dimension_numbers = #tpu.dot_dimension_numbers<[1], [0], [0], [1], [0, 0, 1, 1], [], []>} : vector<8x32xbf16>, vector<32x32xbf16>, vector<8x32xf32> -> vector<8x32xf32>
    %321 = vector.broadcast %260 : vector<1x32xf32> to vector<8x32xf32>
    %322 = arith.addf %320, %321 : vector<8x32xf32>
    %323 = arith.addf %30, %322 : vector<8x32xf32>
    %cst_201 = arith.constant dense<0.000000e+00> : vector<8xf32>
    %324 = vector.multi_reduction <add>, %323, %cst_201 [1] : vector<8x32xf32> to vector<8xf32>
    %325 = vector.shape_cast %324 : vector<8xf32> to vector<8x1xf32>
    %cst_202 = arith.constant 3.200000e+01 : f32
    %326 = vector.broadcast %cst_202 : f32 to vector<8x1xf32>
    %327 = arith.divf %325, %326 : vector<8x1xf32>
    %328 = vector.broadcast %327 : vector<8x1xf32> to vector<8x32xf32>
    %329 = arith.subf %323, %328 : vector<8x32xf32>
    %330 = arith.mulf %329, %329 : vector<8x32xf32>
    %cst_203 = arith.constant dense<0.000000e+00> : vector<8xf32>
    %331 = vector.multi_reduction <add>, %330, %cst_203 [1] : vector<8x32xf32> to vector<8xf32>
    %332 = vector.shape_cast %331 : vector<8xf32> to vector<8x1xf32>
    %cst_204 = arith.constant 3.200000e+01 : f32
    %333 = vector.broadcast %cst_204 : f32 to vector<8x1xf32>
    %334 = arith.divf %332, %333 : vector<8x1xf32>
    %335 = vector.broadcast %327 : vector<8x1xf32> to vector<8x32xf32>
    %336 = arith.subf %323, %335 : vector<8x32xf32>
    %cst_205 = arith.constant 9.99999974E-6 : f32
    %337 = vector.broadcast %cst_205 : f32 to vector<8x1xf32>
    %338 = arith.addf %334, %337 : vector<8x1xf32>
    %339 = math.rsqrt %338 : vector<8x1xf32>
    %340 = vector.broadcast %339 : vector<8x1xf32> to vector<8x32xf32>
    %341 = arith.mulf %336, %340 : vector<8x32xf32>
    %342 = vector.broadcast %282 : vector<1x32xf32> to vector<8x32xf32>
    %343 = arith.mulf %341, %342 : vector<8x32xf32>
    %344 = vector.broadcast %284 : vector<1x32xf32> to vector<8x32xf32>
    %345 = arith.addf %343, %344 : vector<8x32xf32>
    %346 = arith.truncf %345 : vector<8x32xf32> to vector<8x32xbf16>
    %cst_206 = arith.constant dense<0.000000e+00> : vector<8x32xf32>
    %347 = tpu.matmul %346, %262, %cst_206 {dimension_numbers = #tpu.dot_dimension_numbers<[1], [0], [0], [1], [0, 0, 1, 1], [], []>} : vector<8x32xbf16>, vector<32x32xbf16>, vector<8x32xf32> -> vector<8x32xf32>
    %348 = vector.broadcast %264 : vector<1x32xf32> to vector<8x32xf32>
    %349 = arith.addf %347, %348 : vector<8x32xf32>
    %350 = arith.truncf %252 : vector<8x32xf32> to vector<8x32xbf16>
    %cst_207 = arith.constant dense<0.000000e+00> : vector<8x64xf32>
    %351 = tpu.matmul %350, %266, %cst_207 {dimension_numbers = #tpu.dot_dimension_numbers<[1], [0], [0], [1], [0, 0, 1, 1], [], []>} : vector<8x32xbf16>, vector<32x64xbf16>, vector<8x64xf32> -> vector<8x64xf32>
    %352 = vector.broadcast %268 : vector<1x64xf32> to vector<8x64xf32>
    %353 = arith.addf %351, %352 : vector<8x64xf32>
    %354 = vector.extract_strided_slice %353 {offsets = [0, 0], sizes = [8, 32], strides = [1, 1]} : vector<8x64xf32> to vector<8x32xf32>
    %355 = vector.extract_strided_slice %353 {offsets = [0, 32], sizes = [8, 32], strides = [1, 1]} : vector<8x64xf32> to vector<8x32xf32>
    %356 = tpu.concatenate %354, %354, %354, %354 in 0 : vector<8x32xf32>, vector<8x32xf32>, vector<8x32xf32>, vector<8x32xf32> -> vector<32x32xf32>
    %357 = arith.mulf %356, %0 : vector<32x32xf32>
    %358 = arith.truncf %357 : vector<32x32xf32> to vector<32x32xbf16>
    %359 = tpu.concatenate %355, %355, %355, %355 in 0 : vector<8x32xf32>, vector<8x32xf32>, vector<8x32xf32>, vector<8x32xf32> -> vector<32x32xf32>
    %360 = arith.mulf %359, %0 : vector<32x32xf32>
    %361 = arith.truncf %360 : vector<32x32xf32> to vector<32x32xbf16>
    %362 = arith.truncf %349 : vector<8x32xf32> to vector<8x32xbf16>
    %cst_208 = arith.constant dense<0.000000e+00> : vector<8x32xf32>
    %363 = tpu.matmul %362, %358, %cst_208 {dimension_numbers = #tpu.dot_dimension_numbers<[1], [1], [0], [0], [0, 0, 1, 0], [], []>} : vector<8x32xbf16>, vector<32x32xbf16>, vector<8x32xf32> -> vector<8x32xf32>
    %364 = vector.broadcast %5 : vector<1x32xf32> to vector<8x32xf32>
    %365 = arith.addf %363, %364 : vector<8x32xf32>
    %cst_209 = arith.constant dense<0xFF800000> : vector<8xf32>
    %366 = vector.multi_reduction <maximumf>, %365, %cst_209 [1] : vector<8x32xf32> to vector<8xf32>
    %367 = vector.shape_cast %366 : vector<8xf32> to vector<8x1xf32>
    %368 = vector.broadcast %367 : vector<8x1xf32> to vector<8x32xf32>
    %369 = arith.subf %365, %368 : vector<8x32xf32>
    %370 = math.exp %369 : vector<8x32xf32>
    %cst_210 = arith.constant dense<0.000000e+00> : vector<8x32xf32>
    %371 = tpu.matmul %370, %2, %cst_210 {dimension_numbers = #tpu.dot_dimension_numbers<[1], [0], [0], [1], [0, 0, 1, 1], [], []>} : vector<8x32xf32>, vector<32x32xf32>, vector<8x32xf32> -> vector<8x32xf32>
    %372 = tpu.reciprocal %371 {approx = true} : vector<8x32xf32> -> vector<8x32xf32>
    %373 = arith.mulf %370, %372 : vector<8x32xf32>
    %374 = arith.truncf %373 : vector<8x32xf32> to vector<8x32xbf16>
    %cst_211 = arith.constant dense<0.000000e+00> : vector<8x32xf32>
    %375 = tpu.matmul %374, %361, %cst_211 {dimension_numbers = #tpu.dot_dimension_numbers<[1], [0], [0], [1], [0, 0, 1, 1], [], []>} : vector<8x32xbf16>, vector<32x32xbf16>, vector<8x32xf32> -> vector<8x32xf32>
    %376 = arith.truncf %375 : vector<8x32xf32> to vector<8x32xbf16>
    %cst_212 = arith.constant dense<0.000000e+00> : vector<8x32xf32>
    %377 = tpu.matmul %376, %270, %cst_212 {dimension_numbers = #tpu.dot_dimension_numbers<[1], [0], [0], [1], [0, 0, 1, 1], [], []>} : vector<8x32xbf16>, vector<32x32xbf16>, vector<8x32xf32> -> vector<8x32xf32>
    %378 = vector.broadcast %272 : vector<1x32xf32> to vector<8x32xf32>
    %379 = arith.addf %377, %378 : vector<8x32xf32>
    %380 = arith.addf %345, %379 : vector<8x32xf32>
    %cst_213 = arith.constant dense<0.000000e+00> : vector<8xf32>
    %381 = vector.multi_reduction <add>, %380, %cst_213 [1] : vector<8x32xf32> to vector<8xf32>
    %382 = vector.shape_cast %381 : vector<8xf32> to vector<8x1xf32>
    %cst_214 = arith.constant 3.200000e+01 : f32
    %383 = vector.broadcast %cst_214 : f32 to vector<8x1xf32>
    %384 = arith.divf %382, %383 : vector<8x1xf32>
    %385 = vector.broadcast %384 : vector<8x1xf32> to vector<8x32xf32>
    %386 = arith.subf %380, %385 : vector<8x32xf32>
    %387 = arith.mulf %386, %386 : vector<8x32xf32>
    %cst_215 = arith.constant dense<0.000000e+00> : vector<8xf32>
    %388 = vector.multi_reduction <add>, %387, %cst_215 [1] : vector<8x32xf32> to vector<8xf32>
    %389 = vector.shape_cast %388 : vector<8xf32> to vector<8x1xf32>
    %cst_216 = arith.constant 3.200000e+01 : f32
    %390 = vector.broadcast %cst_216 : f32 to vector<8x1xf32>
    %391 = arith.divf %389, %390 : vector<8x1xf32>
    %392 = vector.broadcast %384 : vector<8x1xf32> to vector<8x32xf32>
    %393 = arith.subf %380, %392 : vector<8x32xf32>
    %cst_217 = arith.constant 9.99999974E-6 : f32
    %394 = vector.broadcast %cst_217 : f32 to vector<8x1xf32>
    %395 = arith.addf %391, %394 : vector<8x1xf32>
    %396 = math.rsqrt %395 : vector<8x1xf32>
    %397 = vector.broadcast %396 : vector<8x1xf32> to vector<8x32xf32>
    %398 = arith.mulf %393, %397 : vector<8x32xf32>
    %399 = vector.broadcast %286 : vector<1x32xf32> to vector<8x32xf32>
    %400 = arith.mulf %398, %399 : vector<8x32xf32>
    %401 = vector.broadcast %288 : vector<1x32xf32> to vector<8x32xf32>
    %402 = arith.addf %400, %401 : vector<8x32xf32>
    %403 = arith.truncf %402 : vector<8x32xf32> to vector<8x32xbf16>
    %cst_218 = arith.constant dense<0.000000e+00> : vector<8x64xf32>
    %404 = tpu.matmul %403, %274, %cst_218 {dimension_numbers = #tpu.dot_dimension_numbers<[1], [0], [0], [1], [0, 0, 1, 1], [], []>} : vector<8x32xbf16>, vector<32x64xbf16>, vector<8x64xf32> -> vector<8x64xf32>
    %405 = vector.broadcast %276 : vector<1x64xf32> to vector<8x64xf32>
    %406 = arith.addf %404, %405 : vector<8x64xf32>
    %cst_219 = arith.constant 0.000000e+00 : f32
    %407 = vector.broadcast %cst_219 : f32 to vector<8x64xf32>
    %408 = arith.maximumf %406, %407 : vector<8x64xf32>
    %409 = arith.truncf %408 : vector<8x64xf32> to vector<8x64xbf16>
    %cst_220 = arith.constant dense<0.000000e+00> : vector<8x32xf32>
    %410 = tpu.matmul %409, %278, %cst_220 {dimension_numbers = #tpu.dot_dimension_numbers<[1], [0], [0], [1], [0, 0, 1, 1], [], []>} : vector<8x64xbf16>, vector<64x32xbf16>, vector<8x32xf32> -> vector<8x32xf32>
    %411 = vector.broadcast %280 : vector<1x32xf32> to vector<8x32xf32>
    %412 = arith.addf %410, %411 : vector<8x32xf32>
    %413 = arith.addf %402, %412 : vector<8x32xf32>
    %cst_221 = arith.constant dense<0.000000e+00> : vector<8xf32>
    %414 = vector.multi_reduction <add>, %413, %cst_221 [1] : vector<8x32xf32> to vector<8xf32>
    %415 = vector.shape_cast %414 : vector<8xf32> to vector<8x1xf32>
    %cst_222 = arith.constant 3.200000e+01 : f32
    %416 = vector.broadcast %cst_222 : f32 to vector<8x1xf32>
    %417 = arith.divf %415, %416 : vector<8x1xf32>
    %418 = vector.broadcast %417 : vector<8x1xf32> to vector<8x32xf32>
    %419 = arith.subf %413, %418 : vector<8x32xf32>
    %420 = arith.mulf %419, %419 : vector<8x32xf32>
    %cst_223 = arith.constant dense<0.000000e+00> : vector<8xf32>
    %421 = vector.multi_reduction <add>, %420, %cst_223 [1] : vector<8x32xf32> to vector<8xf32>
    %422 = vector.shape_cast %421 : vector<8xf32> to vector<8x1xf32>
    %cst_224 = arith.constant 3.200000e+01 : f32
    %423 = vector.broadcast %cst_224 : f32 to vector<8x1xf32>
    %424 = arith.divf %422, %423 : vector<8x1xf32>
    %425 = vector.broadcast %417 : vector<8x1xf32> to vector<8x32xf32>
    %426 = arith.subf %413, %425 : vector<8x32xf32>
    %cst_225 = arith.constant 9.99999974E-6 : f32
    %427 = vector.broadcast %cst_225 : f32 to vector<8x1xf32>
    %428 = arith.addf %424, %427 : vector<8x1xf32>
    %429 = math.rsqrt %428 : vector<8x1xf32>
    %430 = vector.broadcast %429 : vector<8x1xf32> to vector<8x32xf32>
    %431 = arith.mulf %426, %430 : vector<8x32xf32>
    %432 = vector.broadcast %290 : vector<1x32xf32> to vector<8x32xf32>
    %433 = arith.mulf %431, %432 : vector<8x32xf32>
    %434 = vector.broadcast %292 : vector<1x32xf32> to vector<8x32xf32>
    %435 = arith.addf %433, %434 : vector<8x32xf32>
    %c1_226 = arith.constant 1 : index
    %c0_227 = arith.constant 0 : index
    %c0_228 = arith.constant 0 : index
    %436 = vector.load %arg24[%c1_226, %c0_227, %c0_228] : memref<2x32x96xbf16, #tpu.memory_space<vmem>>, vector<1x32x96xbf16>
    %437 = vector.shape_cast %436 : vector<1x32x96xbf16> to vector<32x96xbf16>
    %c1_229 = arith.constant 1 : index
    %c0_230 = arith.constant 0 : index
    %c0_231 = arith.constant 0 : index
    %438 = vector.load %arg25[%c1_229, %c0_230, %c0_231] : memref<2x1x96xf32, #tpu.memory_space<vmem>>, vector<1x1x96xf32>
    %439 = vector.shape_cast %438 : vector<1x1x96xf32> to vector<1x96xf32>
    %c1_232 = arith.constant 1 : index
    %c0_233 = arith.constant 0 : index
    %c0_234 = arith.constant 0 : index
    %440 = vector.load %arg26[%c1_232, %c0_233, %c0_234] : memref<2x32x32xbf16, #tpu.memory_space<vmem>>, vector<1x32x32xbf16>
    %441 = vector.shape_cast %440 : vector<1x32x32xbf16> to vector<32x32xbf16>
    %c1_235 = arith.constant 1 : index
    %c0_236 = arith.constant 0 : index
    %c0_237 = arith.constant 0 : index
    %442 = vector.load %arg27[%c1_235, %c0_236, %c0_237] : memref<2x1x32xf32, #tpu.memory_space<vmem>>, vector<1x1x32xf32>
    %443 = vector.shape_cast %442 : vector<1x1x32xf32> to vector<1x32xf32>
    %c1_238 = arith.constant 1 : index
    %c0_239 = arith.constant 0 : index
    %c0_240 = arith.constant 0 : index
    %444 = vector.load %arg28[%c1_238, %c0_239, %c0_240] : memref<2x32x32xbf16, #tpu.memory_space<vmem>>, vector<1x32x32xbf16>
    %445 = vector.shape_cast %444 : vector<1x32x32xbf16> to vector<32x32xbf16>
    %c1_241 = arith.constant 1 : index
    %c0_242 = arith.constant 0 : index
    %c0_243 = arith.constant 0 : index
    %446 = vector.load %arg29[%c1_241, %c0_242, %c0_243] : memref<2x1x32xf32, #tpu.memory_space<vmem>>, vector<1x1x32xf32>
    %447 = vector.shape_cast %446 : vector<1x1x32xf32> to vector<1x32xf32>
    %c1_244 = arith.constant 1 : index
    %c0_245 = arith.constant 0 : index
    %c0_246 = arith.constant 0 : index
    %448 = vector.load %arg30[%c1_244, %c0_245, %c0_246] : memref<2x32x64xbf16, #tpu.memory_space<vmem>>, vector<1x32x64xbf16>
    %449 = vector.shape_cast %448 : vector<1x32x64xbf16> to vector<32x64xbf16>
    %c1_247 = arith.constant 1 : index
    %c0_248 = arith.constant 0 : index
    %c0_249 = arith.constant 0 : index
    %450 = vector.load %arg31[%c1_247, %c0_248, %c0_249] : memref<2x1x64xf32, #tpu.memory_space<vmem>>, vector<1x1x64xf32>
    %451 = vector.shape_cast %450 : vector<1x1x64xf32> to vector<1x64xf32>
    %c1_250 = arith.constant 1 : index
    %c0_251 = arith.constant 0 : index
    %c0_252 = arith.constant 0 : index
    %452 = vector.load %arg32[%c1_250, %c0_251, %c0_252] : memref<2x32x32xbf16, #tpu.memory_space<vmem>>, vector<1x32x32xbf16>
    %453 = vector.shape_cast %452 : vector<1x32x32xbf16> to vector<32x32xbf16>
    %c1_253 = arith.constant 1 : index
    %c0_254 = arith.constant 0 : index
    %c0_255 = arith.constant 0 : index
    %454 = vector.load %arg33[%c1_253, %c0_254, %c0_255] : memref<2x1x32xf32, #tpu.memory_space<vmem>>, vector<1x1x32xf32>
    %455 = vector.shape_cast %454 : vector<1x1x32xf32> to vector<1x32xf32>
    %c1_256 = arith.constant 1 : index
    %c0_257 = arith.constant 0 : index
    %c0_258 = arith.constant 0 : index
    %456 = vector.load %arg34[%c1_256, %c0_257, %c0_258] : memref<2x32x64xbf16, #tpu.memory_space<vmem>>, vector<1x32x64xbf16>
    %457 = vector.shape_cast %456 : vector<1x32x64xbf16> to vector<32x64xbf16>
    %c1_259 = arith.constant 1 : index
    %c0_260 = arith.constant 0 : index
    %c0_261 = arith.constant 0 : index
    %458 = vector.load %arg35[%c1_259, %c0_260, %c0_261] : memref<2x1x64xf32, #tpu.memory_space<vmem>>, vector<1x1x64xf32>
    %459 = vector.shape_cast %458 : vector<1x1x64xf32> to vector<1x64xf32>
    %c1_262 = arith.constant 1 : index
    %c0_263 = arith.constant 0 : index
    %c0_264 = arith.constant 0 : index
    %460 = vector.load %arg36[%c1_262, %c0_263, %c0_264] : memref<2x64x32xbf16, #tpu.memory_space<vmem>>, vector<1x64x32xbf16>
    %461 = vector.shape_cast %460 : vector<1x64x32xbf16> to vector<64x32xbf16>
    %c1_265 = arith.constant 1 : index
    %c0_266 = arith.constant 0 : index
    %c0_267 = arith.constant 0 : index
    %462 = vector.load %arg37[%c1_265, %c0_266, %c0_267] : memref<2x1x32xf32, #tpu.memory_space<vmem>>, vector<1x1x32xf32>
    %463 = vector.shape_cast %462 : vector<1x1x32xf32> to vector<1x32xf32>
    %c1_268 = arith.constant 1 : index
    %c0_269 = arith.constant 0 : index
    %c0_270 = arith.constant 0 : index
    %464 = vector.load %arg38[%c1_268, %c0_269, %c0_270] : memref<2x1x32xf32, #tpu.memory_space<vmem>>, vector<1x1x32xf32>
    %465 = vector.shape_cast %464 : vector<1x1x32xf32> to vector<1x32xf32>
    %c1_271 = arith.constant 1 : index
    %c0_272 = arith.constant 0 : index
    %c0_273 = arith.constant 0 : index
    %466 = vector.load %arg39[%c1_271, %c0_272, %c0_273] : memref<2x1x32xf32, #tpu.memory_space<vmem>>, vector<1x1x32xf32>
    %467 = vector.shape_cast %466 : vector<1x1x32xf32> to vector<1x32xf32>
    %c1_274 = arith.constant 1 : index
    %c0_275 = arith.constant 0 : index
    %c0_276 = arith.constant 0 : index
    %468 = vector.load %arg40[%c1_274, %c0_275, %c0_276] : memref<2x1x32xf32, #tpu.memory_space<vmem>>, vector<1x1x32xf32>
    %469 = vector.shape_cast %468 : vector<1x1x32xf32> to vector<1x32xf32>
    %c1_277 = arith.constant 1 : index
    %c0_278 = arith.constant 0 : index
    %c0_279 = arith.constant 0 : index
    %470 = vector.load %arg41[%c1_277, %c0_278, %c0_279] : memref<2x1x32xf32, #tpu.memory_space<vmem>>, vector<1x1x32xf32>
    %471 = vector.shape_cast %470 : vector<1x1x32xf32> to vector<1x32xf32>
    %c1_280 = arith.constant 1 : index
    %c0_281 = arith.constant 0 : index
    %c0_282 = arith.constant 0 : index
    %472 = vector.load %arg42[%c1_280, %c0_281, %c0_282] : memref<2x1x32xf32, #tpu.memory_space<vmem>>, vector<1x1x32xf32>
    %473 = vector.shape_cast %472 : vector<1x1x32xf32> to vector<1x32xf32>
    %c1_283 = arith.constant 1 : index
    %c0_284 = arith.constant 0 : index
    %c0_285 = arith.constant 0 : index
    %474 = vector.load %arg43[%c1_283, %c0_284, %c0_285] : memref<2x1x32xf32, #tpu.memory_space<vmem>>, vector<1x1x32xf32>
    %475 = vector.shape_cast %474 : vector<1x1x32xf32> to vector<1x32xf32>
    %476 = arith.truncf %435 : vector<8x32xf32> to vector<8x32xbf16>
    %cst_286 = arith.constant dense<0.000000e+00> : vector<8x96xf32>
    %477 = tpu.matmul %476, %437, %cst_286 {dimension_numbers = #tpu.dot_dimension_numbers<[1], [0], [0], [1], [0, 0, 1, 1], [], []>} : vector<8x32xbf16>, vector<32x96xbf16>, vector<8x96xf32> -> vector<8x96xf32>
    %478 = vector.broadcast %439 : vector<1x96xf32> to vector<8x96xf32>
    %479 = arith.addf %477, %478 : vector<8x96xf32>
    %480 = vector.extract_strided_slice %479 {offsets = [0, 0], sizes = [8, 32], strides = [1, 1]} : vector<8x96xf32> to vector<8x32xf32>
    %481 = vector.extract_strided_slice %479 {offsets = [0, 32], sizes = [8, 32], strides = [1, 1]} : vector<8x96xf32> to vector<8x32xf32>
    %482 = vector.extract_strided_slice %479 {offsets = [0, 64], sizes = [8, 32], strides = [1, 1]} : vector<8x96xf32> to vector<8x32xf32>
    %483 = tpu.concatenate %481, %481, %481, %481 in 0 : vector<8x32xf32>, vector<8x32xf32>, vector<8x32xf32>, vector<8x32xf32> -> vector<32x32xf32>
    %484 = arith.mulf %483, %1 : vector<32x32xf32>
    %485 = arith.truncf %484 : vector<32x32xf32> to vector<32x32xbf16>
    %486 = tpu.concatenate %482, %482, %482, %482 in 0 : vector<8x32xf32>, vector<8x32xf32>, vector<8x32xf32>, vector<8x32xf32> -> vector<32x32xf32>
    %487 = arith.mulf %486, %1 : vector<32x32xf32>
    %488 = arith.truncf %487 : vector<32x32xf32> to vector<32x32xbf16>
    %489 = arith.truncf %480 : vector<8x32xf32> to vector<8x32xbf16>
    %cst_287 = arith.constant dense<0.000000e+00> : vector<8x32xf32>
    %490 = tpu.matmul %489, %485, %cst_287 {dimension_numbers = #tpu.dot_dimension_numbers<[1], [1], [0], [0], [0, 0, 1, 0], [], []>} : vector<8x32xbf16>, vector<32x32xbf16>, vector<8x32xf32> -> vector<8x32xf32>
    %491 = arith.addf %490, %7 : vector<8x32xf32>
    %cst_288 = arith.constant dense<0xFF800000> : vector<8xf32>
    %492 = vector.multi_reduction <maximumf>, %491, %cst_288 [1] : vector<8x32xf32> to vector<8xf32>
    %493 = vector.shape_cast %492 : vector<8xf32> to vector<8x1xf32>
    %494 = vector.broadcast %493 : vector<8x1xf32> to vector<8x32xf32>
    %495 = arith.subf %491, %494 : vector<8x32xf32>
    %496 = math.exp %495 : vector<8x32xf32>
    %cst_289 = arith.constant dense<0.000000e+00> : vector<8x32xf32>
    %497 = tpu.matmul %496, %3, %cst_289 {dimension_numbers = #tpu.dot_dimension_numbers<[1], [0], [0], [1], [0, 0, 1, 1], [], []>} : vector<8x32xf32>, vector<32x32xf32>, vector<8x32xf32> -> vector<8x32xf32>
    %498 = tpu.reciprocal %497 {approx = true} : vector<8x32xf32> -> vector<8x32xf32>
    %499 = arith.mulf %496, %498 : vector<8x32xf32>
    %500 = arith.truncf %499 : vector<8x32xf32> to vector<8x32xbf16>
    %cst_290 = arith.constant dense<0.000000e+00> : vector<8x32xf32>
    %501 = tpu.matmul %500, %488, %cst_290 {dimension_numbers = #tpu.dot_dimension_numbers<[1], [0], [0], [1], [0, 0, 1, 1], [], []>} : vector<8x32xbf16>, vector<32x32xbf16>, vector<8x32xf32> -> vector<8x32xf32>
    %502 = arith.truncf %501 : vector<8x32xf32> to vector<8x32xbf16>
    %cst_291 = arith.constant dense<0.000000e+00> : vector<8x32xf32>
    %503 = tpu.matmul %502, %441, %cst_291 {dimension_numbers = #tpu.dot_dimension_numbers<[1], [0], [0], [1], [0, 0, 1, 1], [], []>} : vector<8x32xbf16>, vector<32x32xbf16>, vector<8x32xf32> -> vector<8x32xf32>
    %504 = vector.broadcast %443 : vector<1x32xf32> to vector<8x32xf32>
    %505 = arith.addf %503, %504 : vector<8x32xf32>
    %506 = arith.addf %435, %505 : vector<8x32xf32>
    %cst_292 = arith.constant dense<0.000000e+00> : vector<8xf32>
    %507 = vector.multi_reduction <add>, %506, %cst_292 [1] : vector<8x32xf32> to vector<8xf32>
    %508 = vector.shape_cast %507 : vector<8xf32> to vector<8x1xf32>
    %cst_293 = arith.constant 3.200000e+01 : f32
    %509 = vector.broadcast %cst_293 : f32 to vector<8x1xf32>
    %510 = arith.divf %508, %509 : vector<8x1xf32>
    %511 = vector.broadcast %510 : vector<8x1xf32> to vector<8x32xf32>
    %512 = arith.subf %506, %511 : vector<8x32xf32>
    %513 = arith.mulf %512, %512 : vector<8x32xf32>
    %cst_294 = arith.constant dense<0.000000e+00> : vector<8xf32>
    %514 = vector.multi_reduction <add>, %513, %cst_294 [1] : vector<8x32xf32> to vector<8xf32>
    %515 = vector.shape_cast %514 : vector<8xf32> to vector<8x1xf32>
    %cst_295 = arith.constant 3.200000e+01 : f32
    %516 = vector.broadcast %cst_295 : f32 to vector<8x1xf32>
    %517 = arith.divf %515, %516 : vector<8x1xf32>
    %518 = vector.broadcast %510 : vector<8x1xf32> to vector<8x32xf32>
    %519 = arith.subf %506, %518 : vector<8x32xf32>
    %cst_296 = arith.constant 9.99999974E-6 : f32
    %520 = vector.broadcast %cst_296 : f32 to vector<8x1xf32>
    %521 = arith.addf %517, %520 : vector<8x1xf32>
    %522 = math.rsqrt %521 : vector<8x1xf32>
    %523 = vector.broadcast %522 : vector<8x1xf32> to vector<8x32xf32>
    %524 = arith.mulf %519, %523 : vector<8x32xf32>
    %525 = vector.broadcast %465 : vector<1x32xf32> to vector<8x32xf32>
    %526 = arith.mulf %524, %525 : vector<8x32xf32>
    %527 = vector.broadcast %467 : vector<1x32xf32> to vector<8x32xf32>
    %528 = arith.addf %526, %527 : vector<8x32xf32>
    %529 = arith.truncf %528 : vector<8x32xf32> to vector<8x32xbf16>
    %cst_297 = arith.constant dense<0.000000e+00> : vector<8x32xf32>
    %530 = tpu.matmul %529, %445, %cst_297 {dimension_numbers = #tpu.dot_dimension_numbers<[1], [0], [0], [1], [0, 0, 1, 1], [], []>} : vector<8x32xbf16>, vector<32x32xbf16>, vector<8x32xf32> -> vector<8x32xf32>
    %531 = vector.broadcast %447 : vector<1x32xf32> to vector<8x32xf32>
    %532 = arith.addf %530, %531 : vector<8x32xf32>
    %533 = arith.truncf %252 : vector<8x32xf32> to vector<8x32xbf16>
    %cst_298 = arith.constant dense<0.000000e+00> : vector<8x64xf32>
    %534 = tpu.matmul %533, %449, %cst_298 {dimension_numbers = #tpu.dot_dimension_numbers<[1], [0], [0], [1], [0, 0, 1, 1], [], []>} : vector<8x32xbf16>, vector<32x64xbf16>, vector<8x64xf32> -> vector<8x64xf32>
    %535 = vector.broadcast %451 : vector<1x64xf32> to vector<8x64xf32>
    %536 = arith.addf %534, %535 : vector<8x64xf32>
    %537 = vector.extract_strided_slice %536 {offsets = [0, 0], sizes = [8, 32], strides = [1, 1]} : vector<8x64xf32> to vector<8x32xf32>
    %538 = vector.extract_strided_slice %536 {offsets = [0, 32], sizes = [8, 32], strides = [1, 1]} : vector<8x64xf32> to vector<8x32xf32>
    %539 = tpu.concatenate %537, %537, %537, %537 in 0 : vector<8x32xf32>, vector<8x32xf32>, vector<8x32xf32>, vector<8x32xf32> -> vector<32x32xf32>
    %540 = arith.mulf %539, %0 : vector<32x32xf32>
    %541 = arith.truncf %540 : vector<32x32xf32> to vector<32x32xbf16>
    %542 = tpu.concatenate %538, %538, %538, %538 in 0 : vector<8x32xf32>, vector<8x32xf32>, vector<8x32xf32>, vector<8x32xf32> -> vector<32x32xf32>
    %543 = arith.mulf %542, %0 : vector<32x32xf32>
    %544 = arith.truncf %543 : vector<32x32xf32> to vector<32x32xbf16>
    %545 = arith.truncf %532 : vector<8x32xf32> to vector<8x32xbf16>
    %cst_299 = arith.constant dense<0.000000e+00> : vector<8x32xf32>
    %546 = tpu.matmul %545, %541, %cst_299 {dimension_numbers = #tpu.dot_dimension_numbers<[1], [1], [0], [0], [0, 0, 1, 0], [], []>} : vector<8x32xbf16>, vector<32x32xbf16>, vector<8x32xf32> -> vector<8x32xf32>
    %547 = vector.broadcast %5 : vector<1x32xf32> to vector<8x32xf32>
    %548 = arith.addf %546, %547 : vector<8x32xf32>
    %cst_300 = arith.constant dense<0xFF800000> : vector<8xf32>
    %549 = vector.multi_reduction <maximumf>, %548, %cst_300 [1] : vector<8x32xf32> to vector<8xf32>
    %550 = vector.shape_cast %549 : vector<8xf32> to vector<8x1xf32>
    %551 = vector.broadcast %550 : vector<8x1xf32> to vector<8x32xf32>
    %552 = arith.subf %548, %551 : vector<8x32xf32>
    %553 = math.exp %552 : vector<8x32xf32>
    %cst_301 = arith.constant dense<0.000000e+00> : vector<8x32xf32>
    %554 = tpu.matmul %553, %2, %cst_301 {dimension_numbers = #tpu.dot_dimension_numbers<[1], [0], [0], [1], [0, 0, 1, 1], [], []>} : vector<8x32xf32>, vector<32x32xf32>, vector<8x32xf32> -> vector<8x32xf32>
    %555 = tpu.reciprocal %554 {approx = true} : vector<8x32xf32> -> vector<8x32xf32>
    %556 = arith.mulf %553, %555 : vector<8x32xf32>
    %557 = arith.truncf %556 : vector<8x32xf32> to vector<8x32xbf16>
    %cst_302 = arith.constant dense<0.000000e+00> : vector<8x32xf32>
    %558 = tpu.matmul %557, %544, %cst_302 {dimension_numbers = #tpu.dot_dimension_numbers<[1], [0], [0], [1], [0, 0, 1, 1], [], []>} : vector<8x32xbf16>, vector<32x32xbf16>, vector<8x32xf32> -> vector<8x32xf32>
    %559 = arith.truncf %558 : vector<8x32xf32> to vector<8x32xbf16>
    %cst_303 = arith.constant dense<0.000000e+00> : vector<8x32xf32>
    %560 = tpu.matmul %559, %453, %cst_303 {dimension_numbers = #tpu.dot_dimension_numbers<[1], [0], [0], [1], [0, 0, 1, 1], [], []>} : vector<8x32xbf16>, vector<32x32xbf16>, vector<8x32xf32> -> vector<8x32xf32>
    %561 = vector.broadcast %455 : vector<1x32xf32> to vector<8x32xf32>
    %562 = arith.addf %560, %561 : vector<8x32xf32>
    %563 = arith.addf %528, %562 : vector<8x32xf32>
    %cst_304 = arith.constant dense<0.000000e+00> : vector<8xf32>
    %564 = vector.multi_reduction <add>, %563, %cst_304 [1] : vector<8x32xf32> to vector<8xf32>
    %565 = vector.shape_cast %564 : vector<8xf32> to vector<8x1xf32>
    %cst_305 = arith.constant 3.200000e+01 : f32
    %566 = vector.broadcast %cst_305 : f32 to vector<8x1xf32>
    %567 = arith.divf %565, %566 : vector<8x1xf32>
    %568 = vector.broadcast %567 : vector<8x1xf32> to vector<8x32xf32>
    %569 = arith.subf %563, %568 : vector<8x32xf32>
    %570 = arith.mulf %569, %569 : vector<8x32xf32>
    %cst_306 = arith.constant dense<0.000000e+00> : vector<8xf32>
    %571 = vector.multi_reduction <add>, %570, %cst_306 [1] : vector<8x32xf32> to vector<8xf32>
    %572 = vector.shape_cast %571 : vector<8xf32> to vector<8x1xf32>
    %cst_307 = arith.constant 3.200000e+01 : f32
    %573 = vector.broadcast %cst_307 : f32 to vector<8x1xf32>
    %574 = arith.divf %572, %573 : vector<8x1xf32>
    %575 = vector.broadcast %567 : vector<8x1xf32> to vector<8x32xf32>
    %576 = arith.subf %563, %575 : vector<8x32xf32>
    %cst_308 = arith.constant 9.99999974E-6 : f32
    %577 = vector.broadcast %cst_308 : f32 to vector<8x1xf32>
    %578 = arith.addf %574, %577 : vector<8x1xf32>
    %579 = math.rsqrt %578 : vector<8x1xf32>
    %580 = vector.broadcast %579 : vector<8x1xf32> to vector<8x32xf32>
    %581 = arith.mulf %576, %580 : vector<8x32xf32>
    %582 = vector.broadcast %469 : vector<1x32xf32> to vector<8x32xf32>
    %583 = arith.mulf %581, %582 : vector<8x32xf32>
    %584 = vector.broadcast %471 : vector<1x32xf32> to vector<8x32xf32>
    %585 = arith.addf %583, %584 : vector<8x32xf32>
    %586 = arith.truncf %585 : vector<8x32xf32> to vector<8x32xbf16>
    %cst_309 = arith.constant dense<0.000000e+00> : vector<8x64xf32>
    %587 = tpu.matmul %586, %457, %cst_309 {dimension_numbers = #tpu.dot_dimension_numbers<[1], [0], [0], [1], [0, 0, 1, 1], [], []>} : vector<8x32xbf16>, vector<32x64xbf16>, vector<8x64xf32> -> vector<8x64xf32>
    %588 = vector.broadcast %459 : vector<1x64xf32> to vector<8x64xf32>
    %589 = arith.addf %587, %588 : vector<8x64xf32>
    %cst_310 = arith.constant 0.000000e+00 : f32
    %590 = vector.broadcast %cst_310 : f32 to vector<8x64xf32>
    %591 = arith.maximumf %589, %590 : vector<8x64xf32>
    %592 = arith.truncf %591 : vector<8x64xf32> to vector<8x64xbf16>
    %cst_311 = arith.constant dense<0.000000e+00> : vector<8x32xf32>
    %593 = tpu.matmul %592, %461, %cst_311 {dimension_numbers = #tpu.dot_dimension_numbers<[1], [0], [0], [1], [0, 0, 1, 1], [], []>} : vector<8x64xbf16>, vector<64x32xbf16>, vector<8x32xf32> -> vector<8x32xf32>
    %594 = vector.broadcast %463 : vector<1x32xf32> to vector<8x32xf32>
    %595 = arith.addf %593, %594 : vector<8x32xf32>
    %596 = arith.addf %585, %595 : vector<8x32xf32>
    %cst_312 = arith.constant dense<0.000000e+00> : vector<8xf32>
    %597 = vector.multi_reduction <add>, %596, %cst_312 [1] : vector<8x32xf32> to vector<8xf32>
    %598 = vector.shape_cast %597 : vector<8xf32> to vector<8x1xf32>
    %cst_313 = arith.constant 3.200000e+01 : f32
    %599 = vector.broadcast %cst_313 : f32 to vector<8x1xf32>
    %600 = arith.divf %598, %599 : vector<8x1xf32>
    %601 = vector.broadcast %600 : vector<8x1xf32> to vector<8x32xf32>
    %602 = arith.subf %596, %601 : vector<8x32xf32>
    %603 = arith.mulf %602, %602 : vector<8x32xf32>
    %cst_314 = arith.constant dense<0.000000e+00> : vector<8xf32>
    %604 = vector.multi_reduction <add>, %603, %cst_314 [1] : vector<8x32xf32> to vector<8xf32>
    %605 = vector.shape_cast %604 : vector<8xf32> to vector<8x1xf32>
    %cst_315 = arith.constant 3.200000e+01 : f32
    %606 = vector.broadcast %cst_315 : f32 to vector<8x1xf32>
    %607 = arith.divf %605, %606 : vector<8x1xf32>
    %608 = vector.broadcast %600 : vector<8x1xf32> to vector<8x32xf32>
    %609 = arith.subf %596, %608 : vector<8x32xf32>
    %cst_316 = arith.constant 9.99999974E-6 : f32
    %610 = vector.broadcast %cst_316 : f32 to vector<8x1xf32>
    %611 = arith.addf %607, %610 : vector<8x1xf32>
    %612 = math.rsqrt %611 : vector<8x1xf32>
    %613 = vector.broadcast %612 : vector<8x1xf32> to vector<8x32xf32>
    %614 = arith.mulf %609, %613 : vector<8x32xf32>
    %615 = vector.broadcast %473 : vector<1x32xf32> to vector<8x32xf32>
    %616 = arith.mulf %614, %615 : vector<8x32xf32>
    %617 = vector.broadcast %475 : vector<1x32xf32> to vector<8x32xf32>
    %618 = arith.addf %616, %617 : vector<8x32xf32>
    %c0_317 = arith.constant 0 : index
    %c0_318 = arith.constant 0 : index
    %619 = vector.load %arg44[%c0_317, %c0_318] : memref<32x48xbf16, #tpu.memory_space<vmem>>, vector<32x48xbf16>
    %c0_319 = arith.constant 0 : index
    %c0_320 = arith.constant 0 : index
    %620 = vector.load %arg45[%c0_319, %c0_320] : memref<1x48xf32, #tpu.memory_space<vmem>>, vector<1x48xf32>
    %621 = arith.truncf %618 : vector<8x32xf32> to vector<8x32xbf16>
    %cst_321 = arith.constant dense<0.000000e+00> : vector<8x48xf32>
    %622 = tpu.matmul %621, %619, %cst_321 {dimension_numbers = #tpu.dot_dimension_numbers<[1], [0], [0], [1], [0, 0, 1, 1], [], []>} : vector<8x32xbf16>, vector<32x48xbf16>, vector<8x48xf32> -> vector<8x48xf32>
    %623 = vector.broadcast %620 : vector<1x48xf32> to vector<8x48xf32>
    %624 = arith.addf %622, %623 : vector<8x48xf32>
    %cst_322 = arith.constant 0.000000e+00 : f32
    %625 = vector.broadcast %cst_322 : f32 to vector<8x48xf32>
    %626 = arith.maximumf %624, %625 : vector<8x48xf32>
    %c0_323 = arith.constant 0 : index
    %c0_324 = arith.constant 0 : index
    %627 = vector.load %arg46[%c0_323, %c0_324] : memref<48x128xbf16, #tpu.memory_space<vmem>>, vector<48x128xbf16>
    %c0_325 = arith.constant 0 : index
    %c0_326 = arith.constant 0 : index
    %628 = vector.load %arg47[%c0_325, %c0_326] : memref<1x128xf32, #tpu.memory_space<vmem>>, vector<1x128xf32>
    %629 = arith.truncf %626 : vector<8x48xf32> to vector<8x48xbf16>
    %cst_327 = arith.constant dense<0.000000e+00> : vector<8x128xf32>
    %630 = tpu.matmul %629, %627, %cst_327 {dimension_numbers = #tpu.dot_dimension_numbers<[1], [0], [0], [1], [0, 0, 1, 1], [], []>} : vector<8x48xbf16>, vector<48x128xbf16>, vector<8x128xf32> -> vector<8x128xf32>
    %631 = vector.broadcast %628 : vector<1x128xf32> to vector<8x128xf32>
    %632 = arith.addf %630, %631 : vector<8x128xf32>
    %c0_328 = arith.constant 0 : index
    %c0_329 = arith.constant 0 : index
    %c0_330 = arith.constant 0 : index
    %633 = vector.load %arg48[%c0_328, %c0_329, %c0_330] : memref<1x8x128xf32, #tpu.memory_space<vmem>>, vector<1x8x128xf32>
    %634 = vector.shape_cast %633 : vector<1x8x128xf32> to vector<8x128xf32>
    %635 = vector.shape_cast %632 : vector<8x128xf32> to vector<1x8x128xf32>
    tpu.vector_store %arg48[%c0_328, %c0_329, %c0_330], %635 {strides = array<i32>} : memref<1x8x128xf32, #tpu.memory_space<vmem>>, vector<1x8x128xf32>,
    return
  }
  func.func @transform_0(%arg0: i32) -> (i32, i32, i32) {
    %c0_i32 = arith.constant 0 : i32
    %c0_i32_0 = arith.constant 0 : i32
    %c0_i32_1 = arith.constant 0 : i32
    return %arg0, %c0_i32, %c0_i32_0 : i32, i32, i32
  }
  func.func @transform_1(%arg0: i32) -> (i32, i32, i32) {
    %c0_i32 = arith.constant 0 : i32
    %c0_i32_0 = arith.constant 0 : i32
    %c0_i32_1 = arith.constant 0 : i32
    return %arg0, %c0_i32, %c0_i32_0 : i32, i32, i32
  }
  func.func @transform_2(%arg0: i32) -> (i32, i32, i32) {
    %c0_i32 = arith.constant 0 : i32
    %c0_i32_0 = arith.constant 0 : i32
    %c0_i32_1 = arith.constant 0 : i32
    return %arg0, %c0_i32, %c0_i32_0 : i32, i32, i32
  }
  func.func @transform_3(%arg0: i32) -> (i32, i32, i32) {
    %c0_i32 = arith.constant 0 : i32
    %c0_i32_0 = arith.constant 0 : i32
    %c0_i32_1 = arith.constant 0 : i32
    return %arg0, %c0_i32, %c0_i32_0 : i32, i32, i32
  }
  func.func @transform_4(%arg0: i32) -> (i32, i32) {
    %c0_i32 = arith.constant 0 : i32
    %c0_i32_0 = arith.constant 0 : i32
    %c0_i32_1 = arith.constant 0 : i32
    return %c0_i32, %c0_i32_0 : i32, i32
  }
  func.func @transform_5(%arg0: i32) -> (i32, i32) {
    %c0_i32 = arith.constant 0 : i32
    %c0_i32_0 = arith.constant 0 : i32
    %c0_i32_1 = arith.constant 0 : i32
    return %c0_i32, %c0_i32_0 : i32, i32
  }
  func.func @transform_6(%arg0: i32) -> (i32, i32) {
    %c0_i32 = arith.constant 0 : i32
    %c0_i32_0 = arith.constant 0 : i32
    %c0_i32_1 = arith.constant 0 : i32
    return %c0_i32, %c0_i32_0 : i32, i32
  }
  func.func @transform_7(%arg0: i32) -> (i32, i32) {
    %c0_i32 = arith.constant 0 : i32
    %c0_i32_0 = arith.constant 0 : i32
    %c0_i32_1 = arith.constant 0 : i32
    return %c0_i32, %c0_i32_0 : i32, i32
  }
  func.func @transform_8(%arg0: i32) -> (i32, i32) {
    %c0_i32 = arith.constant 0 : i32
    %c0_i32_0 = arith.constant 0 : i32
    %c0_i32_1 = arith.constant 0 : i32
    return %c0_i32, %c0_i32_0 : i32, i32
  }
  func.func @transform_9(%arg0: i32) -> (i32, i32) {
    %c0_i32 = arith.constant 0 : i32
    %c0_i32_0 = arith.constant 0 : i32
    %c0_i32_1 = arith.constant 0 : i32
    return %c0_i32, %c0_i32_0 : i32, i32
  }
  func.func @transform_10(%arg0: i32) -> (i32, i32) {
    %c0_i32 = arith.constant 0 : i32
    %c0_i32_0 = arith.constant 0 : i32
    %c0_i32_1 = arith.constant 0 : i32
    return %c0_i32, %c0_i32_0 : i32, i32
  }
  func.func @transform_11(%arg0: i32) -> (i32, i32, i32) {
    %c0_i32 = arith.constant 0 : i32
    %c0_i32_0 = arith.constant 0 : i32
    %c0_i32_1 = arith.constant 0 : i32
    %c0_i32_2 = arith.constant 0 : i32
    return %c0_i32, %c0_i32_0, %c0_i32_1 : i32, i32, i32
  }
  func.func @transform_12(%arg0: i32) -> (i32, i32, i32) {
    %c0_i32 = arith.constant 0 : i32
    %c0_i32_0 = arith.constant 0 : i32
    %c0_i32_1 = arith.constant 0 : i32
    %c0_i32_2 = arith.constant 0 : i32
    return %c0_i32, %c0_i32_0, %c0_i32_1 : i32, i32, i32
  }
  func.func @transform_13(%arg0: i32) -> (i32, i32, i32) {
    %c0_i32 = arith.constant 0 : i32
    %c0_i32_0 = arith.constant 0 : i32
    %c0_i32_1 = arith.constant 0 : i32
    %c0_i32_2 = arith.constant 0 : i32
    return %c0_i32, %c0_i32_0, %c0_i32_1 : i32, i32, i32
  }
  func.func @transform_14(%arg0: i32) -> (i32, i32, i32) {
    %c0_i32 = arith.constant 0 : i32
    %c0_i32_0 = arith.constant 0 : i32
    %c0_i32_1 = arith.constant 0 : i32
    %c0_i32_2 = arith.constant 0 : i32
    return %c0_i32, %c0_i32_0, %c0_i32_1 : i32, i32, i32
  }
  func.func @transform_15(%arg0: i32) -> (i32, i32, i32) {
    %c0_i32 = arith.constant 0 : i32
    %c0_i32_0 = arith.constant 0 : i32
    %c0_i32_1 = arith.constant 0 : i32
    %c0_i32_2 = arith.constant 0 : i32
    return %c0_i32, %c0_i32_0, %c0_i32_1 : i32, i32, i32
  }
  func.func @transform_16(%arg0: i32) -> (i32, i32, i32) {
    %c0_i32 = arith.constant 0 : i32
    %c0_i32_0 = arith.constant 0 : i32
    %c0_i32_1 = arith.constant 0 : i32
    %c0_i32_2 = arith.constant 0 : i32
    return %c0_i32, %c0_i32_0, %c0_i32_1 : i32, i32, i32
  }
  func.func @transform_17(%arg0: i32) -> (i32, i32, i32) {
    %c0_i32 = arith.constant 0 : i32
    %c0_i32_0 = arith.constant 0 : i32
    %c0_i32_1 = arith.constant 0 : i32
    %c0_i32_2 = arith.constant 0 : i32
    return %c0_i32, %c0_i32_0, %c0_i32_1 : i32, i32, i32
  }
  func.func @transform_18(%arg0: i32) -> (i32, i32, i32) {
    %c0_i32 = arith.constant 0 : i32
    %c0_i32_0 = arith.constant 0 : i32
    %c0_i32_1 = arith.constant 0 : i32
    %c0_i32_2 = arith.constant 0 : i32
    return %c0_i32, %c0_i32_0, %c0_i32_1 : i32, i32, i32
  }
  func.func @transform_19(%arg0: i32) -> (i32, i32, i32) {
    %c0_i32 = arith.constant 0 : i32
    %c0_i32_0 = arith.constant 0 : i32
    %c0_i32_1 = arith.constant 0 : i32
    %c0_i32_2 = arith.constant 0 : i32
    return %c0_i32, %c0_i32_0, %c0_i32_1 : i32, i32, i32
  }
  func.func @transform_20(%arg0: i32) -> (i32, i32, i32) {
    %c0_i32 = arith.constant 0 : i32
    %c0_i32_0 = arith.constant 0 : i32
    %c0_i32_1 = arith.constant 0 : i32
    %c0_i32_2 = arith.constant 0 : i32
    return %c0_i32, %c0_i32_0, %c0_i32_1 : i32, i32, i32
  }
  func.func @transform_21(%arg0: i32) -> (i32, i32, i32) {
    %c0_i32 = arith.constant 0 : i32
    %c0_i32_0 = arith.constant 0 : i32
    %c0_i32_1 = arith.constant 0 : i32
    %c0_i32_2 = arith.constant 0 : i32
    return %c0_i32, %c0_i32_0, %c0_i32_1 : i32, i32, i32
  }
  func.func @transform_22(%arg0: i32) -> (i32, i32, i32) {
    %c0_i32 = arith.constant 0 : i32
    %c0_i32_0 = arith.constant 0 : i32
    %c0_i32_1 = arith.constant 0 : i32
    %c0_i32_2 = arith.constant 0 : i32
    return %c0_i32, %c0_i32_0, %c0_i32_1 : i32, i32, i32
  }
  func.func @transform_23(%arg0: i32) -> (i32, i32, i32) {
    %c0_i32 = arith.constant 0 : i32
    %c0_i32_0 = arith.constant 0 : i32
    %c0_i32_1 = arith.constant 0 : i32
    %c0_i32_2 = arith.constant 0 : i32
    return %c0_i32, %c0_i32_0, %c0_i32_1 : i32, i32, i32
  }
  func.func @transform_24(%arg0: i32) -> (i32, i32, i32) {
    %c0_i32 = arith.constant 0 : i32
    %c0_i32_0 = arith.constant 0 : i32
    %c0_i32_1 = arith.constant 0 : i32
    %c0_i32_2 = arith.constant 0 : i32
    return %c0_i32, %c0_i32_0, %c0_i32_1 : i32, i32, i32
  }
  func.func @transform_25(%arg0: i32) -> (i32, i32, i32) {
    %c0_i32 = arith.constant 0 : i32
    %c0_i32_0 = arith.constant 0 : i32
    %c0_i32_1 = arith.constant 0 : i32
    %c0_i32_2 = arith.constant 0 : i32
    return %c0_i32, %c0_i32_0, %c0_i32_1 : i32, i32, i32
  }
  func.func @transform_26(%arg0: i32) -> (i32, i32, i32) {
    %c0_i32 = arith.constant 0 : i32
    %c0_i32_0 = arith.constant 0 : i32
    %c0_i32_1 = arith.constant 0 : i32
    %c0_i32_2 = arith.constant 0 : i32
    return %c0_i32, %c0_i32_0, %c0_i32_1 : i32, i32, i32
  }
  func.func @transform_27(%arg0: i32) -> (i32, i32, i32) {
    %c0_i32 = arith.constant 0 : i32
    %c0_i32_0 = arith.constant 0 : i32
    %c0_i32_1 = arith.constant 0 : i32
    %c0_i32_2 = arith.constant 0 : i32
    return %c0_i32, %c0_i32_0, %c0_i32_1 : i32, i32, i32
  }
  func.func @transform_28(%arg0: i32) -> (i32, i32, i32) {
    %c0_i32 = arith.constant 0 : i32
    %c0_i32_0 = arith.constant 0 : i32
    %c0_i32_1 = arith.constant 0 : i32
    %c0_i32_2 = arith.constant 0 : i32
    return %c0_i32, %c0_i32_0, %c0_i32_1 : i32, i32, i32
  }
  func.func @transform_29(%arg0: i32) -> (i32, i32, i32) {
    %c0_i32 = arith.constant 0 : i32
    %c0_i32_0 = arith.constant 0 : i32
    %c0_i32_1 = arith.constant 0 : i32
    %c0_i32_2 = arith.constant 0 : i32
    return %c0_i32, %c0_i32_0, %c0_i32_1 : i32, i32, i32
  }
  func.func @transform_30(%arg0: i32) -> (i32, i32, i32) {
    %c0_i32 = arith.constant 0 : i32
    %c0_i32_0 = arith.constant 0 : i32
    %c0_i32_1 = arith.constant 0 : i32
    %c0_i32_2 = arith.constant 0 : i32
    return %c0_i32, %c0_i32_0, %c0_i32_1 : i32, i32, i32
  }
  func.func @transform_31(%arg0: i32) -> (i32, i32, i32) {
    %c0_i32 = arith.constant 0 : i32
    %c0_i32_0 = arith.constant 0 : i32
    %c0_i32_1 = arith.constant 0 : i32
    %c0_i32_2 = arith.constant 0 : i32
    return %c0_i32, %c0_i32_0, %c0_i32_1 : i32, i32, i32
  }
  func.func @transform_32(%arg0: i32) -> (i32, i32, i32) {
    %c0_i32 = arith.constant 0 : i32
    %c0_i32_0 = arith.constant 0 : i32
    %c0_i32_1 = arith.constant 0 : i32
    %c0_i32_2 = arith.constant 0 : i32
    return %c0_i32, %c0_i32_0, %c0_i32_1 : i32, i32, i32
  }
  func.func @transform_33(%arg0: i32) -> (i32, i32, i32) {
    %c0_i32 = arith.constant 0 : i32
    %c0_i32_0 = arith.constant 0 : i32
    %c0_i32_1 = arith.constant 0 : i32
    %c0_i32_2 = arith.constant 0 : i32
    return %c0_i32, %c0_i32_0, %c0_i32_1 : i32, i32, i32
  }
  func.func @transform_34(%arg0: i32) -> (i32, i32, i32) {
    %c0_i32 = arith.constant 0 : i32
    %c0_i32_0 = arith.constant 0 : i32
    %c0_i32_1 = arith.constant 0 : i32
    %c0_i32_2 = arith.constant 0 : i32
    return %c0_i32, %c0_i32_0, %c0_i32_1 : i32, i32, i32
  }
  func.func @transform_35(%arg0: i32) -> (i32, i32, i32) {
    %c0_i32 = arith.constant 0 : i32
    %c0_i32_0 = arith.constant 0 : i32
    %c0_i32_1 = arith.constant 0 : i32
    %c0_i32_2 = arith.constant 0 : i32
    return %c0_i32, %c0_i32_0, %c0_i32_1 : i32, i32, i32
  }
  func.func @transform_36(%arg0: i32) -> (i32, i32, i32) {
    %c0_i32 = arith.constant 0 : i32
    %c0_i32_0 = arith.constant 0 : i32
    %c0_i32_1 = arith.constant 0 : i32
    %c0_i32_2 = arith.constant 0 : i32
    return %c0_i32, %c0_i32_0, %c0_i32_1 : i32, i32, i32
  }
  func.func @transform_37(%arg0: i32) -> (i32, i32, i32) {
    %c0_i32 = arith.constant 0 : i32
    %c0_i32_0 = arith.constant 0 : i32
    %c0_i32_1 = arith.constant 0 : i32
    %c0_i32_2 = arith.constant 0 : i32
    return %c0_i32, %c0_i32_0, %c0_i32_1 : i32, i32, i32
  }
  func.func @transform_38(%arg0: i32) -> (i32, i32, i32) {
    %c0_i32 = arith.constant 0 : i32
    %c0_i32_0 = arith.constant 0 : i32
    %c0_i32_1 = arith.constant 0 : i32
    %c0_i32_2 = arith.constant 0 : i32
    return %c0_i32, %c0_i32_0, %c0_i32_1 : i32, i32, i32
  }
  func.func @transform_39(%arg0: i32) -> (i32, i32, i32) {
    %c0_i32 = arith.constant 0 : i32
    %c0_i32_0 = arith.constant 0 : i32
    %c0_i32_1 = arith.constant 0 : i32
    %c0_i32_2 = arith.constant 0 : i32
    return %c0_i32, %c0_i32_0, %c0_i32_1 : i32, i32, i32
  }
  func.func @transform_40(%arg0: i32) -> (i32, i32, i32) {
    %c0_i32 = arith.constant 0 : i32
    %c0_i32_0 = arith.constant 0 : i32
    %c0_i32_1 = arith.constant 0 : i32
    %c0_i32_2 = arith.constant 0 : i32
    return %c0_i32, %c0_i32_0, %c0_i32_1 : i32, i32, i32
  }
  func.func @transform_41(%arg0: i32) -> (i32, i32, i32) {
    %c0_i32 = arith.constant 0 : i32
    %c0_i32_0 = arith.constant 0 : i32
    %c0_i32_1 = arith.constant 0 : i32
    %c0_i32_2 = arith.constant 0 : i32
    return %c0_i32, %c0_i32_0, %c0_i32_1 : i32, i32, i32
  }
  func.func @transform_42(%arg0: i32) -> (i32, i32, i32) {
    %c0_i32 = arith.constant 0 : i32
    %c0_i32_0 = arith.constant 0 : i32
    %c0_i32_1 = arith.constant 0 : i32
    %c0_i32_2 = arith.constant 0 : i32
    return %c0_i32, %c0_i32_0, %c0_i32_1 : i32, i32, i32
  }
  func.func @transform_43(%arg0: i32) -> (i32, i32) {
    %c0_i32 = arith.constant 0 : i32
    %c0_i32_0 = arith.constant 0 : i32
    %c0_i32_1 = arith.constant 0 : i32
    return %c0_i32, %c0_i32_0 : i32, i32
  }
  func.func @transform_44(%arg0: i32) -> (i32, i32) {
    %c0_i32 = arith.constant 0 : i32
    %c0_i32_0 = arith.constant 0 : i32
    %c0_i32_1 = arith.constant 0 : i32
    return %c0_i32, %c0_i32_0 : i32, i32
  }
  func.func @transform_45(%arg0: i32) -> (i32, i32) {
    %c0_i32 = arith.constant 0 : i32
    %c0_i32_0 = arith.constant 0 : i32
    %c0_i32_1 = arith.constant 0 : i32
    return %c0_i32, %c0_i32_0 : i32, i32
  }
  func.func @transform_46(%arg0: i32) -> (i32, i32) {
    %c0_i32 = arith.constant 0 : i32
    %c0_i32_0 = arith.constant 0 : i32
    %c0_i32_1 = arith.constant 0 : i32
    return %c0_i32, %c0_i32_0 : i32, i32
  }
  func.func @transform_47(%arg0: i32) -> (i32, i32, i32) {
    %c0_i32 = arith.constant 0 : i32
    %c0_i32_0 = arith.constant 0 : i32
    %c0_i32_1 = arith.constant 0 : i32
    return %arg0, %c0_i32, %c0_i32_0 : i32, i32, i32
  }
}

</mosaic_0001>

<llo_original>
// kernel: tile.17
$region0: #{tile.17}
  %s0 = inlined_call_operand.vmem [shape: f32[2,8,4,8], index: 0, kind: input, shape index: {}]
  %s1 = inlined_call_operand.vmem [shape: f32[2,8,32], index: 1, kind: output, shape index: {}]
  $region1: #{tile.17} parent=0
    #allocation0 [shape = 'u8[65536]{0}', space=vmem, size = 0x10000, scoped, tag = 'scoped mem for input reshape']
    %s3 = sshllo.u32 0, 4
    %s4 = smul.addr 4, 15
    %s5 = scalar_lea.vmem %s0, %s4
    %v6 = vld [vmem:[%s5] sm:%s3]
    %s7 = scalar_lea.vmem [#allocation0], 120
    %8 = vst [vmem:[%s7] sm:%s3] %v6
    %s9 = smul.addr 4, 14
    %s10 = scalar_lea.vmem %s0, %s9
    %v11 = vld [vmem:[%s10] sm:%s3]
    %s12 = scalar_lea.vmem [#allocation0], 112
    %13 = vst [vmem:[%s12] sm:%s3] %v11
    %s14 = smul.addr 4, 13
    %s15 = scalar_lea.vmem %s0, %s14
    %v16 = vld [vmem:[%s15] sm:%s3]
    %s17 = scalar_lea.vmem [#allocation0], 104
    %18 = vst [vmem:[%s17] sm:%s3] %v16
    %s19 = smul.addr 4, 12
    %s20 = scalar_lea.vmem %s0, %s19
    %v21 = vld [vmem:[%s20] sm:%s3]
    %s22 = scalar_lea.vmem [#allocation0], 96
    %23 = vst [vmem:[%s22] sm:%s3] %v21
    %s24 = smul.addr 4, 11
    %s25 = scalar_lea.vmem %s0, %s24
    %v26 = vld [vmem:[%s25] sm:%s3]
    %s27 = scalar_lea.vmem [#allocation0], 88
    %28 = vst [vmem:[%s27] sm:%s3] %v26
    %s29 = smul.addr 4, 10
    %s30 = scalar_lea.vmem %s0, %s29
    %v31 = vld [vmem:[%s30] sm:%s3]
    %s32 = scalar_lea.vmem [#allocation0], 80
    %33 = vst [vmem:[%s32] sm:%s3] %v31
    %s34 = smul.addr 4, 9
    %s35 = scalar_lea.vmem %s0, %s34
    %v36 = vld [vmem:[%s35] sm:%s3]
    %s37 = scalar_lea.vmem [#allocation0], 72
    %38 = vst [vmem:[%s37] sm:%s3] %v36
    %s39 = smul.addr 4, 8
    %s40 = scalar_lea.vmem %s0, %s39
    %v41 = vld [vmem:[%s40] sm:%s3]
    %s42 = scalar_lea.vmem [#allocation0], 64
    %43 = vst [vmem:[%s42] sm:%s3] %v41
    %s44 = smul.addr 4, 7
    %s45 = scalar_lea.vmem %s0, %s44
    %v46 = vld [vmem:[%s45] sm:%s3]
    %s47 = scalar_lea.vmem [#allocation0], 56
    %48 = vst [vmem:[%s47] sm:%s3] %v46
    %s49 = smul.addr 4, 6
    %s50 = scalar_lea.vmem %s0, %s49
    %v51 = vld [vmem:[%s50] sm:%s3]
    %s52 = scalar_lea.vmem [#allocation0], 48
    %53 = vst [vmem:[%s52] sm:%s3] %v51
    %s54 = smul.addr 4, 5
    %s55 = scalar_lea.vmem %s0, %s54
    %v56 = vld [vmem:[%s55] sm:%s3]
    %s57 = scalar_lea.vmem [#allocation0], 40
    %58 = vst [vmem:[%s57] sm:%s3] %v56
    %s59 = smul.addr 4, 4
    %s60 = scalar_lea.vmem %s0, %s59
    %v61 = vld [vmem:[%s60] sm:%s3]
    %s62 = scalar_lea.vmem [#allocation0], 32
    %63 = vst [vmem:[%s62] sm:%s3] %v61
    %s64 = smul.addr 4, 3
    %s65 = scalar_lea.vmem %s0, %s64
    %v66 = vld [vmem:[%s65] sm:%s3]
    %s67 = scalar_lea.vmem [#allocation0], 24
    %68 = vst [vmem:[%s67] sm:%s3] %v66
    %s69 = smul.addr 4, 2
    %s70 = scalar_lea.vmem %s0, %s69
    %v71 = vld [vmem:[%s70] sm:%s3]
    %s72 = scalar_lea.vmem [#allocation0], 16
    %73 = vst [vmem:[%s72] sm:%s3] %v71
    %s74 = scalar_lea.vmem %s0, 4
    %v75 = vld [vmem:[%s74] sm:%s3]
    %s76 = scalar_lea.vmem [#allocation0], 8
    %77 = vst [vmem:[%s76] sm:%s3] %v75
    %v78 = vld [vmem:[%s0] sm:%s3]
    %79 = vst [vmem:[#allocation0] sm:%s3] %v78
    %v80 = vld [vmem:[#allocation0] ss:$8 sm:$0xf]
    %v81 = vld [vmem:[#allocation0] ss:$8 sm:$0xf0]
    %vm82 = vcmask 1047556
    %v83 = vsel %vm82, %v81, %v80
    %vm84 = vcmask 64512
    %85 = vst.msk [vmem:[%s1] sm:$0xff] %vm84, %v83
    %s86 = scalar_lea.vmem [#allocation0], 64
    %v87 = vld [vmem:[%s86] ss:$8 sm:$0xf]
    %s88 = scalar_lea.vmem [#allocation0], 64
    %v89 = vld [vmem:[%s88] ss:$8 sm:$0xf0]
    %vm90 = vcmask 1047556
    %v91 = vsel %vm90, %v89, %v87
    %vm92 = vcmask 64512
    %s93 = scalar_lea.vmem %s1, 8
    %94 = vst.msk [vmem:[%s93] sm:$0xff] %vm92, %v91
    %s95 = scalar_lea.vmem [#allocation0], 3
    %v96 = vld [vmem:[%s95] ss:$8 sm:$0xf]
    %s97 = scalar_lea.vmem [#allocation0], 3
    %v98 = vld [vmem:[%s97] ss:$8 sm:$0xf0]
    %vm99 = vcmask 1047556
    %v100 = vsel %vm99, %v98, %v96
    %101 = vrot.lane.b32.xlu0 %v100, 24
    %v102 = vpop.permute.xlu0 %101
    %vm103 = vcmask 261312
    %104 = vst.msk [vmem:[%s1] sm:$0xff] %vm103, %v102
    %s105 = scalar_lea.vmem [#allocation0], 67
    %v106 = vld [vmem:[%s105] ss:$8 sm:$0xf]
    %s107 = scalar_lea.vmem [#allocation0], 67
    %v108 = vld [vmem:[%s107] ss:$8 sm:$0xf0]
    %vm109 = vcmask 1047556
    %v110 = vsel %vm109, %v108, %v106
    %111 = vrot.lane.b32.xlu0 %v110, 24
    %v112 = vpop.permute.xlu0 %111
    %vm113 = vcmask 261312
    %s114 = scalar_lea.vmem %s1, 8
    %115 = vst.msk [vmem:[%s114] sm:$0xff] %vm113, %v112
    %s116 = scalar_lea.vmem [#allocation0], 2
    %v117 = vld [vmem:[%s116] ss:$8 sm:$0xf]
    %s118 = scalar_lea.vmem [#allocation0], 2
    %v119 = vld [vmem:[%s118] ss:$8 sm:$0xf0]
    %vm120 = vcmask 1047556
    %v121 = vsel %vm120, %v119, %v117
    %122 = vrot.lane.b32.xlu0 %v121, 16
    %v123 = vpop.permute.xlu0 %122
    %vm124 = vcmask 195712
    %125 = vst.msk [vmem:[%s1] sm:$0xff] %vm124, %v123
    %s126 = scalar_lea.vmem [#allocation0], 66
    %v127 = vld [vmem:[%s126] ss:$8 sm:$0xf]
    %s128 = scalar_lea.vmem [#allocation0], 66
    %v129 = vld [vmem:[%s128] ss:$8 sm:$0xf0]
    %vm130 = vcmask 1047556
    %v131 = vsel %vm130, %v129, %v127
    %132 = vrot.lane.b32.xlu0 %v131, 16
    %v133 = vpop.permute.xlu0 %132
    %vm134 = vcmask 195712
    %s135 = scalar_lea.vmem %s1, 8
    %136 = vst.msk [vmem:[%s135] sm:$0xff] %vm134, %v133
    %s137 = scalar_lea.vmem [#allocation0], 1
    %v138 = vld [vmem:[%s137] ss:$8 sm:$0xf]
    %s139 = scalar_lea.vmem [#allocation0], 1
    %v140 = vld [vmem:[%s139] ss:$8 sm:$0xf0]
    %vm141 = vcmask 1047556
    %v142 = vsel %vm141, %v140, %v138
    %143 = vrot.lane.b32.xlu0 %v142, 8
    %v144 = vpop.permute.xlu0 %143
    %vm145 = vcmask 130112
    %146 = vst.msk [vmem:[%s1] sm:$0xff] %vm145, %v144
    %s147 = scalar_lea.vmem [#allocation0], 65
    %v148 = vld [vmem:[%s147] ss:$8 sm:$0xf]
    %s149 = scalar_lea.vmem [#allocation0], 65
    %v150 = vld [vmem:[%s149] ss:$8 sm:$0xf0]
    %vm151 = vcmask 1047556
    %v152 = vsel %vm151, %v150, %v148
    %153 = vrot.lane.b32.xlu0 %v152, 8
    %v154 = vpop.permute.xlu0 %153
    %vm155 = vcmask 130112
    %s156 = scalar_lea.vmem %s1, 8
    %157 = vst.msk [vmem:[%s156] sm:$0xff] %vm155, %v154

// kernel: transformer_translator_forward.1
$region0: #{transformer_translator_forward.1}
  #allocation0 [shape = 'u32[]', space=smem, size = 0x4, offset = 0x4, fixed_abs, tag = 'smem constant byte address 0x4 - core index']
  #allocation1 [shape = 'u32[144,128]{1,0:T(1,128)}', space=vmem, size = 0x12000, scoped, tag = 'internal scratch']
  %s0 = inlined_call_operand.smem [shape: u32[48], index: -1, kind: input, shape index: {}]
  %s1 = sld [smem:[%s0]]
  %s2 = scalar_lea.smem %s0, 1
  %s3 = sld [smem:[%s2]]
  %s4 = scalar_lea.smem %s0, 2
  %s5 = sld [smem:[%s4]]
  %s6 = scalar_lea.smem %s0, 3
  %s7 = sld [smem:[%s6]]
  %s8 = scalar_lea.smem %s0, 4
  %s9 = sld [smem:[%s8]]
  %s10 = scalar_lea.smem %s0, 5
  %s11 = sld [smem:[%s10]]
  %s12 = scalar_lea.smem %s0, 6
  %s13 = sld [smem:[%s12]]
  %s14 = scalar_lea.smem %s0, 7
  %s15 = sld [smem:[%s14]]
  %s16 = scalar_lea.smem %s0, 8
  %s17 = sld [smem:[%s16]]
  %s18 = scalar_lea.smem %s0, 9
  %s19 = sld [smem:[%s18]]
  %s20 = scalar_lea.smem %s0, 10
  %s21 = sld [smem:[%s20]]
  %s22 = scalar_lea.smem %s0, 11
  %s23 = sld [smem:[%s22]]
  %s24 = scalar_lea.smem %s0, 12
  %s25 = sld [smem:[%s24]]
  %s26 = scalar_lea.smem %s0, 13
  %s27 = sld [smem:[%s26]]
  %s28 = scalar_lea.smem %s0, 14
  %s29 = sld [smem:[%s28]]
  %s30 = scalar_lea.smem %s0, 15
  %s31 = sld [smem:[%s30]]
  %s32 = scalar_lea.smem %s0, 16
  %s33 = sld [smem:[%s32]]
  %s34 = scalar_lea.smem %s0, 17
  %s35 = sld [smem:[%s34]]
  %s36 = scalar_lea.smem %s0, 18
  %s37 = sld [smem:[%s36]]
  %s38 = scalar_lea.smem %s0, 19
  %s39 = sld [smem:[%s38]]
  %s40 = scalar_lea.smem %s0, 20
  %s41 = sld [smem:[%s40]]
  %s42 = scalar_lea.smem %s0, 21
  %s43 = sld [smem:[%s42]]
  %s44 = scalar_lea.smem %s0, 22
  %s45 = sld [smem:[%s44]]
  %s46 = scalar_lea.smem %s0, 23
  %s47 = sld [smem:[%s46]]
  %s48 = scalar_lea.smem %s0, 24
  %s49 = sld [smem:[%s48]]
  %s50 = scalar_lea.smem %s0, 25
  %s51 = sld [smem:[%s50]]
  %s52 = scalar_lea.smem %s0, 26
  %s53 = sld [smem:[%s52]]
  %s54 = scalar_lea.smem %s0, 27
  %s55 = sld [smem:[%s54]]
  %s56 = scalar_lea.smem %s0, 28
  %s57 = sld [smem:[%s56]]
  %s58 = scalar_lea.smem %s0, 29
  %s59 = sld [smem:[%s58]]
  %s60 = scalar_lea.smem %s0, 30
  %s61 = sld [smem:[%s60]]
  %s62 = scalar_lea.smem %s0, 31
  %s63 = sld [smem:[%s62]]
  %s64 = scalar_lea.smem %s0, 32
  %s65 = sld [smem:[%s64]]
  %s66 = scalar_lea.smem %s0, 33
  %s67 = sld [smem:[%s66]]
  %s68 = scalar_lea.smem %s0, 34
  %s69 = sld [smem:[%s68]]
  %s70 = scalar_lea.smem %s0, 35
  %s71 = sld [smem:[%s70]]
  %s72 = scalar_lea.smem %s0, 36
  %s73 = sld [smem:[%s72]]
  %s74 = scalar_lea.smem %s0, 37
  %s75 = sld [smem:[%s74]]
  %s76 = scalar_lea.smem %s0, 38
  %s77 = sld [smem:[%s76]]
  %s78 = scalar_lea.smem %s0, 39
  %s79 = sld [smem:[%s78]]
  %s80 = scalar_lea.smem %s0, 40
  %s81 = sld [smem:[%s80]]
  %s82 = scalar_lea.smem %s0, 41
  %s83 = sld [smem:[%s82]]
  %s84 = scalar_lea.smem %s0, 42
  %s85 = sld [smem:[%s84]]
  %s86 = scalar_lea.smem %s0, 43
  %s87 = sld [smem:[%s86]]
  %s88 = scalar_lea.smem %s0, 44
  %s89 = sld [smem:[%s88]]
  %s90 = scalar_lea.smem %s0, 45
  %s91 = sld [smem:[%s90]]
  %s92 = scalar_lea.smem %s0, 46
  %s93 = sld [smem:[%s92]]
  %s94 = scalar_lea.smem %s0, 47
  %s95 = sld [smem:[%s94]]
  %s96 = sld [smem:[#allocation0]]
  $region221: #{transformer_translator_forward.1} parent=0
    _
  %s98 = ssub.s32 1, %s96
  %s99 = scalar_select 0, %s98, %s96
  $region1: #{transformer_translator_forward.1} parent=0
    #allocation2 [shape = 'u8[8192]{0}', space=vmem, size = 0x2000, scoped, tag = 'output window, operand 0']
    #allocation3 [shape = 's32[2]{0}', space=sflag, size = 0x8, scoped, tag = 'scoped memory for transformer_translator_forward.1']
    %100 = vsyncpa [#allocation3], 0
    %s101 = scalar_lea.sflag [#allocation3], 1
    %102 = vsyncpa %s101, 0
    loop: start=0, step=1, limit=4
    $region2: #{transformer_translator_forward.1} parent=1 // loop_pre_header
      _
    $region3: #{transformer_translator_forward.1} parent=1 // loop_header
      %s104 = sphi 0, %s108
      %p105 = scmp.ge.s32.totalorder %s104, 4
      %s114 = sphi 0, %s116
      %s117 = sphi 0, %s114
      %s118 = sphi 0, %s117
      %s134 = sphi 0, %s118
      %s140 = sphi 0, %s142
      %s143 = sphi 0, %s140
      %s144 = sphi 0, %s143
      %s160 = sphi 0, %s144
      %s166 = sphi 0, %s168
      %s169 = sphi 0, %s166
      %s170 = sphi 0, %s169
      %s186 = sphi 0, %s170
      %s192 = sphi 0, %s194
      %s195 = sphi 0, %s192
      %s196 = sphi 0, %s195
      %s212 = sphi 0, %s196
      %s216 = sphi 0, %s216
      %s218 = sphi 0, %s216
      %s219 = sphi 0, %s218
      %s233 = sphi 0, %s219
      %s237 = sphi 0, %s237
      %s239 = sphi 0, %s237
      %s240 = sphi 0, %s239
      %s254 = sphi 0, %s240
      %s258 = sphi 0, %s258
      %s260 = sphi 0, %s258
      %s261 = sphi 0, %s260
      %s275 = sphi 0, %s261
      %s279 = sphi 0, %s279
      %s281 = sphi 0, %s279
      %s282 = sphi 0, %s281
      %s296 = sphi 0, %s282
      %s300 = sphi 0, %s300
      %s302 = sphi 0, %s300
      %s303 = sphi 0, %s302
      %s317 = sphi 0, %s303
      %s321 = sphi 0, %s321
      %s323 = sphi 0, %s321
      %s324 = sphi 0, %s323
      %s338 = sphi 0, %s324
      %s342 = sphi 0, %s342
      %s344 = sphi 0, %s342
      %s345 = sphi 0, %s344
      %s359 = sphi 0, %s345
      %s363 = sphi 0, %s363
      %s365 = sphi 0, %s363
      %s366 = sphi 0, %s365
      %s380 = sphi 0, %s366
      %s384 = sphi 0, %s384
      %s386 = sphi 0, %s384
      %s387 = sphi 0, %s386
      %s401 = sphi 0, %s387
      %s405 = sphi 0, %s405
      %s407 = sphi 0, %s405
      %s408 = sphi 0, %s407
      %s422 = sphi 0, %s408
      %s426 = sphi 0, %s426
      %s428 = sphi 0, %s426
      %s429 = sphi 0, %s428
      %s443 = sphi 0, %s429
      %s447 = sphi 0, %s447
      %s449 = sphi 0, %s447
      %s450 = sphi 0, %s449
      %s464 = sphi 0, %s450
      %s468 = sphi 0, %s468
      %s470 = sphi 0, %s468
      %s471 = sphi 0, %s470
      %s485 = sphi 0, %s471
      %s489 = sphi 0, %s489
      %s491 = sphi 0, %s489
      %s492 = sphi 0, %s491
      %s506 = sphi 0, %s492
      %s510 = sphi 0, %s510
      %s512 = sphi 0, %s510
      %s513 = sphi 0, %s512
      %s527 = sphi 0, %s513
      %s531 = sphi 0, %s531
      %s533 = sphi 0, %s531
      %s534 = sphi 0, %s533
      %s548 = sphi 0, %s534
      %s552 = sphi 0, %s552
      %s554 = sphi 0, %s552
      %s555 = sphi 0, %s554
      %s569 = sphi 0, %s555
      %s573 = sphi 0, %s573
      %s575 = sphi 0, %s573
      %s576 = sphi 0, %s575
      %s590 = sphi 0, %s576
      %s594 = sphi 0, %s594
      %s596 = sphi 0, %s594
      %s597 = sphi 0, %s596
      %s611 = sphi 0, %s597
      %s615 = sphi 0, %s615
      %s617 = sphi 0, %s615
      %s618 = sphi 0, %s617
      %s632 = sphi 0, %s618
      %s636 = sphi 0, %s636
      %s638 = sphi 0, %s636
      %s639 = sphi 0, %s638
      %s653 = sphi 0, %s639
      %s657 = sphi 0, %s657
      %s659 = sphi 0, %s657
      %s660 = sphi 0, %s659
      %s674 = sphi 0, %s660
      %s678 = sphi 0, %s678
      %s680 = sphi 0, %s678
      %s681 = sphi 0, %s680
      %s695 = sphi 0, %s681
      %s699 = sphi 0, %s699
      %s701 = sphi 0, %s699
      %s702 = sphi 0, %s701
      %s716 = sphi 0, %s702
      %s720 = sphi 0, %s720
      %s722 = sphi 0, %s720
      %s723 = sphi 0, %s722
      %s737 = sphi 0, %s723
      %s741 = sphi 0, %s741
      %s743 = sphi 0, %s741
      %s744 = sphi 0, %s743
      %s758 = sphi 0, %s744
      %s762 = sphi 0, %s762
      %s764 = sphi 0, %s762
      %s765 = sphi 0, %s764
      %s779 = sphi 0, %s765
      %s783 = sphi 0, %s783
      %s785 = sphi 0, %s783
      %s786 = sphi 0, %s785
      %s800 = sphi 0, %s786
      %s804 = sphi 0, %s804
      %s806 = sphi 0, %s804
      %s807 = sphi 0, %s806
      %s821 = sphi 0, %s807
      %s825 = sphi 0, %s825
      %s827 = sphi 0, %s825
      %s828 = sphi 0, %s827
      %s842 = sphi 0, %s828
      %s846 = sphi 0, %s846
      %s848 = sphi 0, %s846
      %s849 = sphi 0, %s848
      %s863 = sphi 0, %s849
      %s867 = sphi 0, %s867
      %s869 = sphi 0, %s867
      %s870 = sphi 0, %s869
      %s884 = sphi 0, %s870
      %s888 = sphi 0, %s888
      %s890 = sphi 0, %s888
      %s891 = sphi 0, %s890
      %s905 = sphi 0, %s891
      %s909 = sphi 0, %s909
      %s911 = sphi 0, %s909
      %s912 = sphi 0, %s911
      %s926 = sphi 0, %s912
      %s930 = sphi 0, %s930
      %s932 = sphi 0, %s930
      %s933 = sphi 0, %s932
      %s947 = sphi 0, %s933
      %s951 = sphi 0, %s951
      %s953 = sphi 0, %s951
      %s954 = sphi 0, %s953
      %s968 = sphi 0, %s954
      %s972 = sphi 0, %s972
      %s974 = sphi 0, %s972
      %s975 = sphi 0, %s974
      %s989 = sphi 0, %s975
      %s993 = sphi 0, %s993
      %s995 = sphi 0, %s993
      %s996 = sphi 0, %s995
      %s1010 = sphi 0, %s996
      %s1014 = sphi 0, %s1014
      %s1016 = sphi 0, %s1014
      %s1017 = sphi 0, %s1016
      %s1031 = sphi 0, %s1017
      %s1035 = sphi 0, %s1035
      %s1037 = sphi 0, %s1035
      %s1038 = sphi 0, %s1037
      %s1052 = sphi 0, %s1038
      %s1056 = sphi 0, %s1056
      %s1058 = sphi 0, %s1056
      %s1059 = sphi 0, %s1058
      %s1073 = sphi 0, %s1059
      %s1077 = sphi 0, %s1077
      %s1079 = sphi 0, %s1077
      %s1080 = sphi 0, %s1079
      %s1094 = sphi 0, %s1080
      %s1098 = sphi 0, %s1098
      %s1100 = sphi 0, %s1098
      %s1101 = sphi 0, %s1100
      %s1115 = sphi 0, %s1101
      %s1121 = sphi 0, %s1123
      %s1124 = sphi 0, %s1121
      %s1125 = sphi 0, %s1124
      %s1141 = sphi 0, %s1125
    $region4: #{transformer_translator_forward.1} parent=1 // loop_header_branch
      %107 = sbr.rel (%p105) target = $region8
    $region5: #{transformer_translator_forward.1} parent=1 // loop_body
      %s109 = ssub.s32 %s104, 1
      %s110 = ssub.s32 %s104, 2
      %s111 = sadd.s32 %s104, 1
      %s112 = ssub.s32 %s104, %s111
      %p113 = scmp.eq.s32.totalorder %s112, 0
      %s115 = sadd.s32 %s114, 1
      %s116 = scalar_select %p113, %s114, %s115
      %p119 = pneg %p113
      %p120 = scmp.eq.s32.totalorder %s104, 1
      %p121 = por %p119, %p120
      %p122 = scmp.ne.s32.totalorder %s114, %s117
      %p123 = scmp.eq.s32.totalorder %s104, 0
      %p124 = por %p122, %p123
      %p125 = scmp.ne.s32.totalorder %s114, %s117
      %p126 = scmp.eq.s32.totalorder %s109, 1
      %p127 = por %p125, %p126
      %p128 = scmp.ne.s32.totalorder %s117, %s118
      %p129 = scmp.eq.s32.totalorder %s109, 0
      %p130 = por %p128, %p129
      %p131 = scmp.ne.s32.totalorder %s117, %s118
      %p132 = scmp.eq.s32.totalorder %s110, 1
      %p133 = por %p131, %p132
      %p135 = scmp.ne.s32.totalorder %s118, %s134
      %p136 = scmp.eq.s32.totalorder %s110, 0
      %p137 = por %p135, %p136
      %s138 = ssub.s32 %s104, %s111
      %p139 = scmp.eq.s32.totalorder %s138, 0
      %s141 = sadd.s32 %s140, 1
      %s142 = scalar_select %p139, %s140, %s141
      %p145 = pneg %p139
      %p146 = scmp.eq.s32.totalorder %s104, 1
      %p147 = por %p145, %p146
      %p148 = scmp.ne.s32.totalorder %s140, %s143
      %p149 = scmp.eq.s32.totalorder %s104, 0
      %p150 = por %p148, %p149
      %p151 = scmp.ne.s32.totalorder %s140, %s143
      %p152 = scmp.eq.s32.totalorder %s109, 1
      %p153 = por %p151, %p152
      %p154 = scmp.ne.s32.totalorder %s143, %s144
      %p155 = scmp.eq.s32.totalorder %s109, 0
      %p156 = por %p154, %p155
      %p157 = scmp.ne.s32.totalorder %s143, %s144
      %p158 = scmp.eq.s32.totalorder %s110, 1
      %p159 = por %p157, %p158
      %p161 = scmp.ne.s32.totalorder %s144, %s160
      %p162 = scmp.eq.s32.totalorder %s110, 0
      %p163 = por %p161, %p162
      %s164 = ssub.s32 %s104, %s111
      %p165 = scmp.eq.s32.totalorder %s164, 0
      %s167 = sadd.s32 %s166, 1
      %s168 = scalar_select %p165, %s166, %s167
      %p171 = pneg %p165
      %p172 = scmp.eq.s32.totalorder %s104, 1
      %p173 = por %p171, %p172
      %p174 = scmp.ne.s32.totalorder %s166, %s169
      %p175 = scmp.eq.s32.totalorder %s104, 0
      %p176 = por %p174, %p175
      %p177 = scmp.ne.s32.totalorder %s166, %s169
      %p178 = scmp.eq.s32.totalorder %s109, 1
      %p179 = por %p177, %p178
      %p180 = scmp.ne.s32.totalorder %s169, %s170
      %p181 = scmp.eq.s32.totalorder %s109, 0
      %p182 = por %p180, %p181
      %p183 = scmp.ne.s32.totalorder %s169, %s170
      %p184 = scmp.eq.s32.totalorder %s110, 1
      %p185 = por %p183, %p184
      %p187 = scmp.ne.s32.totalorder %s170, %s186
      %p188 = scmp.eq.s32.totalorder %s110, 0
      %p189 = por %p187, %p188
      %s190 = ssub.s32 %s104, %s111
      %p191 = scmp.eq.s32.totalorder %s190, 0
      %s193 = sadd.s32 %s192, 1
      %s194 = scalar_select %p191, %s192, %s193
      %p197 = pneg %p191
      %p198 = scmp.eq.s32.totalorder %s104, 1
      %p199 = por %p197, %p198
      %p200 = scmp.ne.s32.totalorder %s192, %s195
      %p201 = scmp.eq.s32.totalorder %s104, 0
      %p202 = por %p200, %p201
      %p203 = scmp.ne.s32.totalorder %s192, %s195
      %p204 = scmp.eq.s32.totalorder %s109, 1
      %p205 = por %p203, %p204
      %p206 = scmp.ne.s32.totalorder %s195, %s196
      %p207 = scmp.eq.s32.totalorder %s109, 0
      %p208 = por %p206, %p207
      %p209 = scmp.ne.s32.totalorder %s195, %s196
      %p210 = scmp.eq.s32.totalorder %s110, 1
      %p211 = por %p209, %p210
      %p213 = scmp.ne.s32.totalorder %s196, %s212
      %p214 = scmp.eq.s32.totalorder %s110, 0
      %p215 = por %p213, %p214
      %s217 = sadd.s32 %s216, 1
      %p220 = scmp.eq.s32.totalorder %s104, 1
      %p221 = scmp.ne.s32.totalorder %s216, %s218
      %p222 = scmp.eq.s32.totalorder %s104, 0
      %p223 = por %p221, %p222
      %p224 = scmp.ne.s32.totalorder %s216, %s218
      %p225 = scmp.eq.s32.totalorder %s109, 1
      %p226 = por %p224, %p225
      %p227 = scmp.ne.s32.totalorder %s218, %s219
      %p228 = scmp.eq.s32.totalorder %s109, 0
      %p229 = por %p227, %p228
      %p230 = scmp.ne.s32.totalorder %s218, %s219
      %p231 = scmp.eq.s32.totalorder %s110, 1
      %p232 = por %p230, %p231
      %p234 = scmp.ne.s32.totalorder %s219, %s233
      %p235 = scmp.eq.s32.totalorder %s110, 0
      %p236 = por %p234, %p235
      %s238 = sadd.s32 %s237, 1
      %p241 = scmp.eq.s32.totalorder %s104, 1
      %p242 = scmp.ne.s32.totalorder %s237, %s239
      %p243 = scmp.eq.s32.totalorder %s104, 0
      %p244 = por %p242, %p243
      %p245 = scmp.ne.s32.totalorder %s237, %s239
      %p246 = scmp.eq.s32.totalorder %s109, 1
      %p247 = por %p245, %p246
      %p248 = scmp.ne.s32.totalorder %s239, %s240
      %p249 = scmp.eq.s32.totalorder %s109, 0
      %p250 = por %p248, %p249
      %p251 = scmp.ne.s32.totalorder %s239, %s240
      %p252 = scmp.eq.s32.totalorder %s110, 1
      %p253 = por %p251, %p252
      %p255 = scmp.ne.s32.totalorder %s240, %s254
      %p256 = scmp.eq.s32.totalorder %s110, 0
      %p257 = por %p255, %p256
      %s259 = sadd.s32 %s258, 1
      %p262 = scmp.eq.s32.totalorder %s104, 1
      %p263 = scmp.ne.s32.totalorder %s258, %s260
      %p264 = scmp.eq.s32.totalorder %s104, 0
      %p265 = por %p263, %p264
      %p266 = scmp.ne.s32.totalorder %s258, %s260
      %p267 = scmp.eq.s32.totalorder %s109, 1
      %p268 = por %p266, %p267
      %p269 = scmp.ne.s32.totalorder %s260, %s261
      %p270 = scmp.eq.s32.totalorder %s109, 0
      %p271 = por %p269, %p270
      %p272 = scmp.ne.s32.totalorder %s260, %s261
      %p273 = scmp.eq.s32.totalorder %s110, 1
      %p274 = por %p272, %p273
      %p276 = scmp.ne.s32.totalorder %s261, %s275
      %p277 = scmp.eq.s32.totalorder %s110, 0
      %p278 = por %p276, %p277
      %s280 = sadd.s32 %s279, 1
      %p283 = scmp.eq.s32.totalorder %s104, 1
      %p284 = scmp.ne.s32.totalorder %s279, %s281
      %p285 = scmp.eq.s32.totalorder %s104, 0
      %p286 = por %p284, %p285
      %p287 = scmp.ne.s32.totalorder %s279, %s281
      %p288 = scmp.eq.s32.totalorder %s109, 1
      %p289 = por %p287, %p288
      %p290 = scmp.ne.s32.totalorder %s281, %s282
      %p291 = scmp.eq.s32.totalorder %s109, 0
      %p292 = por %p290, %p291
      %p293 = scmp.ne.s32.totalorder %s281, %s282
      %p294 = scmp.eq.s32.totalorder %s110, 1
      %p295 = por %p293, %p294
      %p297 = scmp.ne.s32.totalorder %s282, %s296
      %p298 = scmp.eq.s32.totalorder %s110, 0
      %p299 = por %p297, %p298
      %s301 = sadd.s32 %s300, 1
      %p304 = scmp.eq.s32.totalorder %s104, 1
      %p305 = scmp.ne.s32.totalorder %s300, %s302
      %p306 = scmp.eq.s32.totalorder %s104, 0
      %p307 = por %p305, %p306
      %p308 = scmp.ne.s32.totalorder %s300, %s302
      %p309 = scmp.eq.s32.totalorder %s109, 1
      %p310 = por %p308, %p309
      %p311 = scmp.ne.s32.totalorder %s302, %s303
      %p312 = scmp.eq.s32.totalorder %s109, 0
      %p313 = por %p311, %p312
      %p314 = scmp.ne.s32.totalorder %s302, %s303
      %p315 = scmp.eq.s32.totalorder %s110, 1
      %p316 = por %p314, %p315
      %p318 = scmp.ne.s32.totalorder %s303, %s317
      %p319 = scmp.eq.s32.totalorder %s110, 0
      %p320 = por %p318, %p319
      %s322 = sadd.s32 %s321, 1
      %p325 = scmp.eq.s32.totalorder %s104, 1
      %p326 = scmp.ne.s32.totalorder %s321, %s323
      %p327 = scmp.eq.s32.totalorder %s104, 0
      %p328 = por %p326, %p327
      %p329 = scmp.ne.s32.totalorder %s321, %s323
      %p330 = scmp.eq.s32.totalorder %s109, 1
      %p331 = por %p329, %p330
      %p332 = scmp.ne.s32.totalorder %s323, %s324
      %p333 = scmp.eq.s32.totalorder %s109, 0
      %p334 = por %p332, %p333
      %p335 = scmp.ne.s32.totalorder %s323, %s324
      %p336 = scmp.eq.s32.totalorder %s110, 1
      %p337 = por %p335, %p336
      %p339 = scmp.ne.s32.totalorder %s324, %s338
      %p340 = scmp.eq.s32.totalorder %s110, 0
      %p341 = por %p339, %p340
      %s343 = sadd.s32 %s342, 1
      %p346 = scmp.eq.s32.totalorder %s104, 1
      %p347 = scmp.ne.s32.totalorder %s342, %s344
      %p348 = scmp.eq.s32.totalorder %s104, 0
      %p349 = por %p347, %p348
      %p350 = scmp.ne.s32.totalorder %s342, %s344
      %p351 = scmp.eq.s32.totalorder %s109, 1
      %p352 = por %p350, %p351
      %p353 = scmp.ne.s32.totalorder %s344, %s345
      %p354 = scmp.eq.s32.totalorder %s109, 0
      %p355 = por %p353, %p354
      %p356 = scmp.ne.s32.totalorder %s344, %s345
      %p357 = scmp.eq.s32.totalorder %s110, 1
      %p358 = por %p356, %p357
      %p360 = scmp.ne.s32.totalorder %s345, %s359
      %p361 = scmp.eq.s32.totalorder %s110, 0
      %p362 = por %p360, %p361
      %s364 = sadd.s32 %s363, 1
      %p367 = scmp.eq.s32.totalorder %s104, 1
      %p368 = scmp.ne.s32.totalorder %s363, %s365
      %p369 = scmp.eq.s32.totalorder %s104, 0
      %p370 = por %p368, %p369
      %p371 = scmp.ne.s32.totalorder %s363, %s365
      %p372 = scmp.eq.s32.totalorder %s109, 1
      %p373 = por %p371, %p372
      %p374 = scmp.ne.s32.totalorder %s365, %s366
      %p375 = scmp.eq.s32.totalorder %s109, 0
      %p376 = por %p374, %p375
      %p377 = scmp.ne.s32.totalorder %s365, %s366
      %p378 = scmp.eq.s32.totalorder %s110, 1
      %p379 = por %p377, %p378
      %p381 = scmp.ne.s32.totalorder %s366, %s380
      %p382 = scmp.eq.s32.totalorder %s110, 0
      %p383 = por %p381, %p382
      %s385 = sadd.s32 %s384, 1
      %p388 = scmp.eq.s32.totalorder %s104, 1
      %p389 = scmp.ne.s32.totalorder %s384, %s386
      %p390 = scmp.eq.s32.totalorder %s104, 0
      %p391 = por %p389, %p390
      %p392 = scmp.ne.s32.totalorder %s384, %s386
      %p393 = scmp.eq.s32.totalorder %s109, 1
      %p394 = por %p392, %p393
      %p395 = scmp.ne.s32.totalorder %s386, %s387
      %p396 = scmp.eq.s32.totalorder %s109, 0
      %p397 = por %p395, %p396
      %p398 = scmp.ne.s32.totalorder %s386, %s387
      %p399 = scmp.eq.s32.totalorder %s110, 1
      %p400 = por %p398, %p399
      %p402 = scmp.ne.s32.totalorder %s387, %s401
      %p403 = scmp.eq.s32.totalorder %s110, 0
      %p404 = por %p402, %p403
      %s406 = sadd.s32 %s405, 1
      %p409 = scmp.eq.s32.totalorder %s104, 1
      %p410 = scmp.ne.s32.totalorder %s405, %s407
      %p411 = scmp.eq.s32.totalorder %s104, 0
      %p412 = por %p410, %p411
      %p413 = scmp.ne.s32.totalorder %s405, %s407
      %p414 = scmp.eq.s32.totalorder %s109, 1
      %p415 = por %p413, %p414
      %p416 = scmp.ne.s32.totalorder %s407, %s408
      %p417 = scmp.eq.s32.totalorder %s109, 0
      %p418 = por %p416, %p417
      %p419 = scmp.ne.s32.totalorder %s407, %s408
      %p420 = scmp.eq.s32.totalorder %s110, 1
      %p421 = por %p419, %p420
      %p423 = scmp.ne.s32.totalorder %s408, %s422
      %p424 = scmp.eq.s32.totalorder %s110, 0
      %p425 = por %p423, %p424
      %s427 = sadd.s32 %s426, 1
      %p430 = scmp.eq.s32.totalorder %s104, 1
      %p431 = scmp.ne.s32.totalorder %s426, %s428
      %p432 = scmp.eq.s32.totalorder %s104, 0
      %p433 = por %p431, %p432
      %p434 = scmp.ne.s32.totalorder %s426, %s428
      %p435 = scmp.eq.s32.totalorder %s109, 1
      %p436 = por %p434, %p435
      %p437 = scmp.ne.s32.totalorder %s428, %s429
      %p438 = scmp.eq.s32.totalorder %s109, 0
      %p439 = por %p437, %p438
      %p440 = scmp.ne.s32.totalorder %s428, %s429
      %p441 = scmp.eq.s32.totalorder %s110, 1
      %p442 = por %p440, %p441
      %p444 = scmp.ne.s32.totalorder %s429, %s443
      %p445 = scmp.eq.s32.totalorder %s110, 0
      %p446 = por %p444, %p445
      %s448 = sadd.s32 %s447, 1
      %p451 = scmp.eq.s32.totalorder %s104, 1
      %p452 = scmp.ne.s32.totalorder %s447, %s449
      %p453 = scmp.eq.s32.totalorder %s104, 0
      %p454 = por %p452, %p453
      %p455 = scmp.ne.s32.totalorder %s447, %s449
      %p456 = scmp.eq.s32.totalorder %s109, 1
      %p457 = por %p455, %p456
      %p458 = scmp.ne.s32.totalorder %s449, %s450
      %p459 = scmp.eq.s32.totalorder %s109, 0
      %p460 = por %p458, %p459
      %p461 = scmp.ne.s32.totalorder %s449, %s450
      %p462 = scmp.eq.s32.totalorder %s110, 1
      %p463 = por %p461, %p462
      %p465 = scmp.ne.s32.totalorder %s450, %s464
      %p466 = scmp.eq.s32.totalorder %s110, 0
      %p467 = por %p465, %p466
      %s469 = sadd.s32 %s468, 1
      %p472 = scmp.eq.s32.totalorder %s104, 1
      %p473 = scmp.ne.s32.totalorder %s468, %s470
      %p474 = scmp.eq.s32.totalorder %s104, 0
      %p475 = por %p473, %p474
      %p476 = scmp.ne.s32.totalorder %s468, %s470
      %p477 = scmp.eq.s32.totalorder %s109, 1
      %p478 = por %p476, %p477
      %p479 = scmp.ne.s32.totalorder %s470, %s471
      %p480 = scmp.eq.s32.totalorder %s109, 0
      %p481 = por %p479, %p480
      %p482 = scmp.ne.s32.totalorder %s470, %s471
      %p483 = scmp.eq.s32.totalorder %s110, 1
      %p484 = por %p482, %p483
      %p486 = scmp.ne.s32.totalorder %s471, %s485
      %p487 = scmp.eq.s32.totalorder %s110, 0
      %p488 = por %p486, %p487
      %s490 = sadd.s32 %s489, 1
      %p493 = scmp.eq.s32.totalorder %s104, 1
      %p494 = scmp.ne.s32.totalorder %s489, %s491
      %p495 = scmp.eq.s32.totalorder %s104, 0
      %p496 = por %p494, %p495
      %p497 = scmp.ne.s32.totalorder %s489, %s491
      %p498 = scmp.eq.s32.totalorder %s109, 1
      %p499 = por %p497, %p498
      %p500 = scmp.ne.s32.totalorder %s491, %s492
      %p501 = scmp.eq.s32.totalorder %s109, 0
      %p502 = por %p500, %p501
      %p503 = scmp.ne.s32.totalorder %s491, %s492
      %p504 = scmp.eq.s32.totalorder %s110, 1
      %p505 = por %p503, %p504
      %p507 = scmp.ne.s32.totalorder %s492, %s506
      %p508 = scmp.eq.s32.totalorder %s110, 0
      %p509 = por %p507, %p508
      %s511 = sadd.s32 %s510, 1
      %p514 = scmp.eq.s32.totalorder %s104, 1
      %p515 = scmp.ne.s32.totalorder %s510, %s512
      %p516 = scmp.eq.s32.totalorder %s104, 0
      %p517 = por %p515, %p516
      %p518 = scmp.ne.s32.totalorder %s510, %s512
      %p519 = scmp.eq.s32.totalorder %s109, 1
      %p520 = por %p518, %p519
      %p521 = scmp.ne.s32.totalorder %s512, %s513
      %p522 = scmp.eq.s32.totalorder %s109, 0
      %p523 = por %p521, %p522
      %p524 = scmp.ne.s32.totalorder %s512, %s513
      %p525 = scmp.eq.s32.totalorder %s110, 1
      %p526 = por %p524, %p525
      %p528 = scmp.ne.s32.totalorder %s513, %s527
      %p529 = scmp.eq.s32.totalorder %s110, 0
      %p530 = por %p528, %p529
      %s532 = sadd.s32 %s531, 1
      %p535 = scmp.eq.s32.totalorder %s104, 1
      %p536 = scmp.ne.s32.totalorder %s531, %s533
      %p537 = scmp.eq.s32.totalorder %s104, 0
      %p538 = por %p536, %p537
      %p539 = scmp.ne.s32.totalorder %s531, %s533
      %p540 = scmp.eq.s32.totalorder %s109, 1
      %p541 = por %p539, %p540
      %p542 = scmp.ne.s32.totalorder %s533, %s534
      %p543 = scmp.eq.s32.totalorder %s109, 0
      %p544 = por %p542, %p543
      %p545 = scmp.ne.s32.totalorder %s533, %s534
      %p546 = scmp.eq.s32.totalorder %s110, 1
      %p547 = por %p545, %p546
      %p549 = scmp.ne.s32.totalorder %s534, %s548
      %p550 = scmp.eq.s32.totalorder %s110, 0
      %p551 = por %p549, %p550
      %s553 = sadd.s32 %s552, 1
      %p556 = scmp.eq.s32.totalorder %s104, 1
      %p557 = scmp.ne.s32.totalorder %s552, %s554
      %p558 = scmp.eq.s32.totalorder %s104, 0
      %p559 = por %p557, %p558
      %p560 = scmp.ne.s32.totalorder %s552, %s554
      %p561 = scmp.eq.s32.totalorder %s109, 1
      %p562 = por %p560, %p561
      %p563 = scmp.ne.s32.totalorder %s554, %s555
      %p564 = scmp.eq.s32.totalorder %s109, 0
      %p565 = por %p563, %p564
      %p566 = scmp.ne.s32.totalorder %s554, %s555
      %p567 = scmp.eq.s32.totalorder %s110, 1
      %p568 = por %p566, %p567
      %p570 = scmp.ne.s32.totalorder %s555, %s569
      %p571 = scmp.eq.s32.totalorder %s110, 0
      %p572 = por %p570, %p571
      %s574 = sadd.s32 %s573, 1
      %p577 = scmp.eq.s32.totalorder %s104, 1
      %p578 = scmp.ne.s32.totalorder %s573, %s575
      %p579 = scmp.eq.s32.totalorder %s104, 0
      %p580 = por %p578, %p579
      %p581 = scmp.ne.s32.totalorder %s573, %s575
      %p582 = scmp.eq.s32.totalorder %s109, 1
      %p583 = por %p581, %p582
      %p584 = scmp.ne.s32.totalorder %s575, %s576
      %p585 = scmp.eq.s32.totalorder %s109, 0
      %p586 = por %p584, %p585
      %p587 = scmp.ne.s32.totalorder %s575, %s576
      %p588 = scmp.eq.s32.totalorder %s110, 1
      %p589 = por %p587, %p588
      %p591 = scmp.ne.s32.totalorder %s576, %s590
      %p592 = scmp.eq.s32.totalorder %s110, 0
      %p593 = por %p591, %p592
      %s595 = sadd.s32 %s594, 1
      %p598 = scmp.eq.s32.totalorder %s104, 1
      %p599 = scmp.ne.s32.totalorder %s594, %s596
      %p600 = scmp.eq.s32.totalorder %s104, 0
      %p601 = por %p599, %p600
      %p602 = scmp.ne.s32.totalorder %s594, %s596
      %p603 = scmp.eq.s32.totalorder %s109, 1
      %p604 = por %p602, %p603
      %p605 = scmp.ne.s32.totalorder %s596, %s597
      %p606 = scmp.eq.s32.totalorder %s109, 0
      %p607 = por %p605, %p606
      %p608 = scmp.ne.s32.totalorder %s596, %s597
      %p609 = scmp.eq.s32.totalorder %s110, 1
      %p610 = por %p608, %p609
      %p612 = scmp.ne.s32.totalorder %s597, %s611
      %p613 = scmp.eq.s32.totalorder %s110, 0
      %p614 = por %p612, %p613
      %s616 = sadd.s32 %s615, 1
      %p619 = scmp.eq.s32.totalorder %s104, 1
      %p620 = scmp.ne.s32.totalorder %s615, %s617
      %p621 = scmp.eq.s32.totalorder %s104, 0
      %p622 = por %p620, %p621
      %p623 = scmp.ne.s32.totalorder %s615, %s617
      %p624 = scmp.eq.s32.totalorder %s109, 1
      %p625 = por %p623, %p624
      %p626 = scmp.ne.s32.totalorder %s617, %s618
      %p627 = scmp.eq.s32.totalorder %s109, 0
      %p628 = por %p626, %p627
      %p629 = scmp.ne.s32.totalorder %s617, %s618
      %p630 = scmp.eq.s32.totalorder %s110, 1
      %p631 = por %p629, %p630
      %p633 = scmp.ne.s32.totalorder %s618, %s632
      %p634 = scmp.eq.s32.totalorder %s110, 0
      %p635 = por %p633, %p634
      %s637 = sadd.s32 %s636, 1
      %p640 = scmp.eq.s32.totalorder %s104, 1
      %p641 = scmp.ne.s32.totalorder %s636, %s638
      %p642 = scmp.eq.s32.totalorder %s104, 0
      %p643 = por %p641, %p642
      %p644 = scmp.ne.s32.totalorder %s636, %s638
      %p645 = scmp.eq.s32.totalorder %s109, 1
      %p646 = por %p644, %p645
      %p647 = scmp.ne.s32.totalorder %s638, %s639
      %p648 = scmp.eq.s32.totalorder %s109, 0
      %p649 = por %p647, %p648
      %p650 = scmp.ne.s32.totalorder %s638, %s639
      %p651 = scmp.eq.s32.totalorder %s110, 1
      %p652 = por %p650, %p651
      %p654 = scmp.ne.s32.totalorder %s639, %s653
      %p655 = scmp.eq.s32.totalorder %s110, 0
      %p656 = por %p654, %p655
      %s658 = sadd.s32 %s657, 1
      %p661 = scmp.eq.s32.totalorder %s104, 1
      %p662 = scmp.ne.s32.totalorder %s657, %s659
      %p663 = scmp.eq.s32.totalorder %s104, 0
      %p664 = por %p662, %p663
      %p665 = scmp.ne.s32.totalorder %s657, %s659
      %p666 = scmp.eq.s32.totalorder %s109, 1
      %p667 = por %p665, %p666
      %p668 = scmp.ne.s32.totalorder %s659, %s660
      %p669 = scmp.eq.s32.totalorder %s109, 0
      %p670 = por %p668, %p669
      %p671 = scmp.ne.s32.totalorder %s659, %s660
      %p672 = scmp.eq.s32.totalorder %s110, 1
      %p673 = por %p671, %p672
      %p675 = scmp.ne.s32.totalorder %s660, %s674
      %p676 = scmp.eq.s32.totalorder %s110, 0
      %p677 = por %p675, %p676
      %s679 = sadd.s32 %s678, 1
      %p682 = scmp.eq.s32.totalorder %s104, 1
      %p683 = scmp.ne.s32.totalorder %s678, %s680
      %p684 = scmp.eq.s32.totalorder %s104, 0
      %p685 = por %p683, %p684
      %p686 = scmp.ne.s32.totalorder %s678, %s680
      %p687 = scmp.eq.s32.totalorder %s109, 1
      %p688 = por %p686, %p687
      %p689 = scmp.ne.s32.totalorder %s680, %s681
      %p690 = scmp.eq.s32.totalorder %s109, 0
      %p691 = por %p689, %p690
      %p692 = scmp.ne.s32.totalorder %s680, %s681
      %p693 = scmp.eq.s32.totalorder %s110, 1
      %p694 = por %p692, %p693
      %p696 = scmp.ne.s32.totalorder %s681, %s695
      %p697 = scmp.eq.s32.totalorder %s110, 0
      %p698 = por %p696, %p697
      %s700 = sadd.s32 %s699, 1
      %p703 = scmp.eq.s32.totalorder %s104, 1
      %p704 = scmp.ne.s32.totalorder %s699, %s701
      %p705 = scmp.eq.s32.totalorder %s104, 0
      %p706 = por %p704, %p705
      %p707 = scmp.ne.s32.totalorder %s699, %s701
      %p708 = scmp.eq.s32.totalorder %s109, 1
      %p709 = por %p707, %p708
      %p710 = scmp.ne.s32.totalorder %s701, %s702
      %p711 = scmp.eq.s32.totalorder %s109, 0
      %p712 = por %p710, %p711
      %p713 = scmp.ne.s32.totalorder %s701, %s702
      %p714 = scmp.eq.s32.totalorder %s110, 1
      %p715 = por %p713, %p714
      %p717 = scmp.ne.s32.totalorder %s702, %s716
      %p718 = scmp.eq.s32.totalorder %s110, 0
      %p719 = por %p717, %p718
      %s721 = sadd.s32 %s720, 1
      %p724 = scmp.eq.s32.totalorder %s104, 1
      %p725 = scmp.ne.s32.totalorder %s720, %s722
      %p726 = scmp.eq.s32.totalorder %s104, 0
      %p727 = por %p725, %p726
      %p728 = scmp.ne.s32.totalorder %s720, %s722
      %p729 = scmp.eq.s32.totalorder %s109, 1
      %p730 = por %p728, %p729
      %p731 = scmp.ne.s32.totalorder %s722, %s723
      %p732 = scmp.eq.s32.totalorder %s109, 0
      %p733 = por %p731, %p732
      %p734 = scmp.ne.s32.totalorder %s722, %s723
      %p735 = scmp.eq.s32.totalorder %s110, 1
      %p736 = por %p734, %p735
      %p738 = scmp.ne.s32.totalorder %s723, %s737
      %p739 = scmp.eq.s32.totalorder %s110, 0
      %p740 = por %p738, %p739
      %s742 = sadd.s32 %s741, 1
      %p745 = scmp.eq.s32.totalorder %s104, 1
      %p746 = scmp.ne.s32.totalorder %s741, %s743
      %p747 = scmp.eq.s32.totalorder %s104, 0
      %p748 = por %p746, %p747
      %p749 = scmp.ne.s32.totalorder %s741, %s743
      %p750 = scmp.eq.s32.totalorder %s109, 1
      %p751 = por %p749, %p750
      %p752 = scmp.ne.s32.totalorder %s743, %s744
      %p753 = scmp.eq.s32.totalorder %s109, 0
      %p754 = por %p752, %p753
      %p755 = scmp.ne.s32.totalorder %s743, %s744
      %p756 = scmp.eq.s32.totalorder %s110, 1
      %p757 = por %p755, %p756
      %p759 = scmp.ne.s32.totalorder %s744, %s758
      %p760 = scmp.eq.s32.totalorder %s110, 0
      %p761 = por %p759, %p760
      %s763 = sadd.s32 %s762, 1
      %p766 = scmp.eq.s32.totalorder %s104, 1
      %p767 = scmp.ne.s32.totalorder %s762, %s764
      %p768 = scmp.eq.s32.totalorder %s104, 0
      %p769 = por %p767, %p768
      %p770 = scmp.ne.s32.totalorder %s762, %s764
      %p771 = scmp.eq.s32.totalorder %s109, 1
      %p772 = por %p770, %p771
      %p773 = scmp.ne.s32.totalorder %s764, %s765
      %p774 = scmp.eq.s32.totalorder %s109, 0
      %p775 = por %p773, %p774
      %p776 = scmp.ne.s32.totalorder %s764, %s765
      %p777 = scmp.eq.s32.totalorder %s110, 1
      %p778 = por %p776, %p777
      %p780 = scmp.ne.s32.totalorder %s765, %s779
      %p781 = scmp.eq.s32.totalorder %s110, 0
      %p782 = por %p780, %p781
      %s784 = sadd.s32 %s783, 1
      %p787 = scmp.eq.s32.totalorder %s104, 1
      %p788 = scmp.ne.s32.totalorder %s783, %s785
      %p789 = scmp.eq.s32.totalorder %s104, 0
      %p790 = por %p788, %p789
      %p791 = scmp.ne.s32.totalorder %s783, %s785
      %p792 = scmp.eq.s32.totalorder %s109, 1
      %p793 = por %p791, %p792
      %p794 = scmp.ne.s32.totalorder %s785, %s786
      %p795 = scmp.eq.s32.totalorder %s109, 0
      %p796 = por %p794, %p795
      %p797 = scmp.ne.s32.totalorder %s785, %s786
      %p798 = scmp.eq.s32.totalorder %s110, 1
      %p799 = por %p797, %p798
      %p801 = scmp.ne.s32.totalorder %s786, %s800
      %p802 = scmp.eq.s32.totalorder %s110, 0
      %p803 = por %p801, %p802
      %s805 = sadd.s32 %s804, 1
      %p808 = scmp.eq.s32.totalorder %s104, 1
      %p809 = scmp.ne.s32.totalorder %s804, %s806
      %p810 = scmp.eq.s32.totalorder %s104, 0
      %p811 = por %p809, %p810
      %p812 = scmp.ne.s32.totalorder %s804, %s806
      %p813 = scmp.eq.s32.totalorder %s109, 1
      %p814 = por %p812, %p813
      %p815 = scmp.ne.s32.totalorder %s806, %s807
      %p816 = scmp.eq.s32.totalorder %s109, 0
      %p817 = por %p815, %p816
      %p818 = scmp.ne.s32.totalorder %s806, %s807
      %p819 = scmp.eq.s32.totalorder %s110, 1
      %p820 = por %p818, %p819
      %p822 = scmp.ne.s32.totalorder %s807, %s821
      %p823 = scmp.eq.s32.totalorder %s110, 0
      %p824 = por %p822, %p823
      %s826 = sadd.s32 %s825, 1
      %p829 = scmp.eq.s32.totalorder %s104, 1
      %p830 = scmp.ne.s32.totalorder %s825, %s827
      %p831 = scmp.eq.s32.totalorder %s104, 0
      %p832 = por %p830, %p831
      %p833 = scmp.ne.s32.totalorder %s825, %s827
      %p834 = scmp.eq.s32.totalorder %s109, 1
      %p835 = por %p833, %p834
      %p836 = scmp.ne.s32.totalorder %s827, %s828
      %p837 = scmp.eq.s32.totalorder %s109, 0
      %p838 = por %p836, %p837
      %p839 = scmp.ne.s32.totalorder %s827, %s828
      %p840 = scmp.eq.s32.totalorder %s110, 1
      %p841 = por %p839, %p840
      %p843 = scmp.ne.s32.totalorder %s828, %s842
      %p844 = scmp.eq.s32.totalorder %s110, 0
      %p845 = por %p843, %p844
      %s847 = sadd.s32 %s846, 1
      %p850 = scmp.eq.s32.totalorder %s104, 1
      %p851 = scmp.ne.s32.totalorder %s846, %s848
      %p852 = scmp.eq.s32.totalorder %s104, 0
      %p853 = por %p851, %p852
      %p854 = scmp.ne.s32.totalorder %s846, %s848
      %p855 = scmp.eq.s32.totalorder %s109, 1
      %p856 = por %p854, %p855
      %p857 = scmp.ne.s32.totalorder %s848, %s849
      %p858 = scmp.eq.s32.totalorder %s109, 0
      %p859 = por %p857, %p858
      %p860 = scmp.ne.s32.totalorder %s848, %s849
      %p861 = scmp.eq.s32.totalorder %s110, 1
      %p862 = por %p860, %p861
      %p864 = scmp.ne.s32.totalorder %s849, %s863
      %p865 = scmp.eq.s32.totalorder %s110, 0
      %p866 = por %p864, %p865
      %s868 = sadd.s32 %s867, 1
      %p871 = scmp.eq.s32.totalorder %s104, 1
      %p872 = scmp.ne.s32.totalorder %s867, %s869
      %p873 = scmp.eq.s32.totalorder %s104, 0
      %p874 = por %p872, %p873
      %p875 = scmp.ne.s32.totalorder %s867, %s869
      %p876 = scmp.eq.s32.totalorder %s109, 1
      %p877 = por %p875, %p876
      %p878 = scmp.ne.s32.totalorder %s869, %s870
      %p879 = scmp.eq.s32.totalorder %s109, 0
      %p880 = por %p878, %p879
      %p881 = scmp.ne.s32.totalorder %s869, %s870
      %p882 = scmp.eq.s32.totalorder %s110, 1
      %p883 = por %p881, %p882
      %p885 = scmp.ne.s32.totalorder %s870, %s884
      %p886 = scmp.eq.s32.totalorder %s110, 0
      %p887 = por %p885, %p886
      %s889 = sadd.s32 %s888, 1
      %p892 = scmp.eq.s32.totalorder %s104, 1
      %p893 = scmp.ne.s32.totalorder %s888, %s890
      %p894 = scmp.eq.s32.totalorder %s104, 0
      %p895 = por %p893, %p894
      %p896 = scmp.ne.s32.totalorder %s888, %s890
      %p897 = scmp.eq.s32.totalorder %s109, 1
      %p898 = por %p896, %p897
      %p899 = scmp.ne.s32.totalorder %s890, %s891
      %p900 = scmp.eq.s32.totalorder %s109, 0
      %p901 = por %p899, %p900
      %p902 = scmp.ne.s32.totalorder %s890, %s891
      %p903 = scmp.eq.s32.totalorder %s110, 1
      %p904 = por %p902, %p903
      %p906 = scmp.ne.s32.totalorder %s891, %s905
      %p907 = scmp.eq.s32.totalorder %s110, 0
      %p908 = por %p906, %p907
      %s910 = sadd.s32 %s909, 1
      %p913 = scmp.eq.s32.totalorder %s104, 1
      %p914 = scmp.ne.s32.totalorder %s909, %s911
      %p915 = scmp.eq.s32.totalorder %s104, 0
      %p916 = por %p914, %p915
      %p917 = scmp.ne.s32.totalorder %s909, %s911
      %p918 = scmp.eq.s32.totalorder %s109, 1
      %p919 = por %p917, %p918
      %p920 = scmp.ne.s32.totalorder %s911, %s912
      %p921 = scmp.eq.s32.totalorder %s109, 0
      %p922 = por %p920, %p921
      %p923 = scmp.ne.s32.totalorder %s911, %s912
      %p924 = scmp.eq.s32.totalorder %s110, 1
      %p925 = por %p923, %p924
      %p927 = scmp.ne.s32.totalorder %s912, %s926
      %p928 = scmp.eq.s32.totalorder %s110, 0
      %p929 = por %p927, %p928
      %s931 = sadd.s32 %s930, 1
      %p934 = scmp.eq.s32.totalorder %s104, 1
      %p935 = scmp.ne.s32.totalorder %s930, %s932
      %p936 = scmp.eq.s32.totalorder %s104, 0
      %p937 = por %p935, %p936
      %p938 = scmp.ne.s32.totalorder %s930, %s932
      %p939 = scmp.eq.s32.totalorder %s109, 1
      %p940 = por %p938, %p939
      %p941 = scmp.ne.s32.totalorder %s932, %s933
      %p942 = scmp.eq.s32.totalorder %s109, 0
      %p943 = por %p941, %p942
      %p944 = scmp.ne.s32.totalorder %s932, %s933
      %p945 = scmp.eq.s32.totalorder %s110, 1
      %p946 = por %p944, %p945
      %p948 = scmp.ne.s32.totalorder %s933, %s947
      %p949 = scmp.eq.s32.totalorder %s110, 0
      %p950 = por %p948, %p949
      %s952 = sadd.s32 %s951, 1
      %p955 = scmp.eq.s32.totalorder %s104, 1
      %p956 = scmp.ne.s32.totalorder %s951, %s953
      %p957 = scmp.eq.s32.totalorder %s104, 0
      %p958 = por %p956, %p957
      %p959 = scmp.ne.s32.totalorder %s951, %s953
      %p960 = scmp.eq.s32.totalorder %s109, 1
      %p961 = por %p959, %p960
      %p962 = scmp.ne.s32.totalorder %s953, %s954
      %p963 = scmp.eq.s32.totalorder %s109, 0
      %p964 = por %p962, %p963
      %p965 = scmp.ne.s32.totalorder %s953, %s954
      %p966 = scmp.eq.s32.totalorder %s110, 1
      %p967 = por %p965, %p966
      %p969 = scmp.ne.s32.totalorder %s954, %s968
      %p970 = scmp.eq.s32.totalorder %s110, 0
      %p971 = por %p969, %p970
      %s973 = sadd.s32 %s972, 1
      %p976 = scmp.eq.s32.totalorder %s104, 1
      %p977 = scmp.ne.s32.totalorder %s972, %s974
      %p978 = scmp.eq.s32.totalorder %s104, 0
      %p979 = por %p977, %p978
      %p980 = scmp.ne.s32.totalorder %s972, %s974
      %p981 = scmp.eq.s32.totalorder %s109, 1
      %p982 = por %p980, %p981
      %p983 = scmp.ne.s32.totalorder %s974, %s975
      %p984 = scmp.eq.s32.totalorder %s109, 0
      %p985 = por %p983, %p984
      %p986 = scmp.ne.s32.totalorder %s974, %s975
      %p987 = scmp.eq.s32.totalorder %s110, 1
      %p988 = por %p986, %p987
      %p990 = scmp.ne.s32.totalorder %s975, %s989
      %p991 = scmp.eq.s32.totalorder %s110, 0
      %p992 = por %p990, %p991
      %s994 = sadd.s32 %s993, 1
      %p997 = scmp.eq.s32.totalorder %s104, 1
      %p998 = scmp.ne.s32.totalorder %s993, %s995
      %p999 = scmp.eq.s32.totalorder %s104, 0
      %p1000 = por %p998, %p999
      %p1001 = scmp.ne.s32.totalorder %s993, %s995
      %p1002 = scmp.eq.s32.totalorder %s109, 1
      %p1003 = por %p1001, %p1002
      %p1004 = scmp.ne.s32.totalorder %s995, %s996
      %p1005 = scmp.eq.s32.totalorder %s109, 0
      %p1006 = por %p1004, %p1005
      %p1007 = scmp.ne.s32.totalorder %s995, %s996
      %p1008 = scmp.eq.s32.totalorder %s110, 1
      %p1009 = por %p1007, %p1008
      %p1011 = scmp.ne.s32.totalorder %s996, %s1010
      %p1012 = scmp.eq.s32.totalorder %s110, 0
      %p1013 = por %p1011, %p1012
      %s1015 = sadd.s32 %s1014, 1
      %p1018 = scmp.eq.s32.totalorder %s104, 1
      %p1019 = scmp.ne.s32.totalorder %s1014, %s1016
      %p1020 = scmp.eq.s32.totalorder %s104, 0
      %p1021 = por %p1019, %p1020
      %p1022 = scmp.ne.s32.totalorder %s1014, %s1016
      %p1023 = scmp.eq.s32.totalorder %s109, 1
      %p1024 = por %p1022, %p1023
      %p1025 = scmp.ne.s32.totalorder %s1016, %s1017
      %p1026 = scmp.eq.s32.totalorder %s109, 0
      %p1027 = por %p1025, %p1026
      %p1028 = scmp.ne.s32.totalorder %s1016, %s1017
      %p1029 = scmp.eq.s32.totalorder %s110, 1
      %p1030 = por %p1028, %p1029
      %p1032 = scmp.ne.s32.totalorder %s1017, %s1031
      %p1033 = scmp.eq.s32.totalorder %s110, 0
      %p1034 = por %p1032, %p1033
      %s1036 = sadd.s32 %s1035, 1
      %p1039 = scmp.eq.s32.totalorder %s104, 1
      %p1040 = scmp.ne.s32.totalorder %s1035, %s1037
      %p1041 = scmp.eq.s32.totalorder %s104, 0
      %p1042 = por %p1040, %p1041
      %p1043 = scmp.ne.s32.totalorder %s1035, %s1037
      %p1044 = scmp.eq.s32.totalorder %s109, 1
      %p1045 = por %p1043, %p1044
      %p1046 = scmp.ne.s32.totalorder %s1037, %s1038
      %p1047 = scmp.eq.s32.totalorder %s109, 0
      %p1048 = por %p1046, %p1047
      %p1049 = scmp.ne.s32.totalorder %s1037, %s1038
      %p1050 = scmp.eq.s32.totalorder %s110, 1
      %p1051 = por %p1049, %p1050
      %p1053 = scmp.ne.s32.totalorder %s1038, %s1052
      %p1054 = scmp.eq.s32.totalorder %s110, 0
      %p1055 = por %p1053, %p1054
      %s1057 = sadd.s32 %s1056, 1
      %p1060 = scmp.eq.s32.totalorder %s104, 1
      %p1061 = scmp.ne.s32.totalorder %s1056, %s1058
      %p1062 = scmp.eq.s32.totalorder %s104, 0
      %p1063 = por %p1061, %p1062
      %p1064 = scmp.ne.s32.totalorder %s1056, %s1058
      %p1065 = scmp.eq.s32.totalorder %s109, 1
      %p1066 = por %p1064, %p1065
      %p1067 = scmp.ne.s32.totalorder %s1058, %s1059
      %p1068 = scmp.eq.s32.totalorder %s109, 0
      %p1069 = por %p1067, %p1068
      %p1070 = scmp.ne.s32.totalorder %s1058, %s1059
      %p1071 = scmp.eq.s32.totalorder %s110, 1
      %p1072 = por %p1070, %p1071
      %p1074 = scmp.ne.s32.totalorder %s1059, %s1073
      %p1075 = scmp.eq.s32.totalorder %s110, 0
      %p1076 = por %p1074, %p1075
      %s1078 = sadd.s32 %s1077, 1
      %p1081 = scmp.eq.s32.totalorder %s104, 1
      %p1082 = scmp.ne.s32.totalorder %s1077, %s1079
      %p1083 = scmp.eq.s32.totalorder %s104, 0
      %p1084 = por %p1082, %p1083
      %p1085 = scmp.ne.s32.totalorder %s1077, %s1079
      %p1086 = scmp.eq.s32.totalorder %s109, 1
      %p1087 = por %p1085, %p1086
      %p1088 = scmp.ne.s32.totalorder %s1079, %s1080
      %p1089 = scmp.eq.s32.totalorder %s109, 0
      %p1090 = por %p1088, %p1089
      %p1091 = scmp.ne.s32.totalorder %s1079, %s1080
      %p1092 = scmp.eq.s32.totalorder %s110, 1
      %p1093 = por %p1091, %p1092
      %p1095 = scmp.ne.s32.totalorder %s1080, %s1094
      %p1096 = scmp.eq.s32.totalorder %s110, 0
      %p1097 = por %p1095, %p1096
      %s1099 = sadd.s32 %s1098, 1
      %p1102 = scmp.eq.s32.totalorder %s104, 1
      %p1103 = scmp.ne.s32.totalorder %s1098, %s1100
      %p1104 = scmp.eq.s32.totalorder %s104, 0
      %p1105 = por %p1103, %p1104
      %p1106 = scmp.ne.s32.totalorder %s1098, %s1100
      %p1107 = scmp.eq.s32.totalorder %s109, 1
      %p1108 = por %p1106, %p1107
      %p1109 = scmp.ne.s32.totalorder %s1100, %s1101
      %p1110 = scmp.eq.s32.totalorder %s109, 0
      %p1111 = por %p1109, %p1110
      %p1112 = scmp.ne.s32.totalorder %s1100, %s1101
      %p1113 = scmp.eq.s32.totalorder %s110, 1
      %p1114 = por %p1112, %p1113
      %p1116 = scmp.ne.s32.totalorder %s1101, %s1115
      %p1117 = scmp.eq.s32.totalorder %s110, 0
      %p1118 = por %p1116, %p1117
      %s1119 = ssub.s32 %s104, %s111
      %p1120 = scmp.eq.s32.totalorder %s1119, 0
      %s1122 = sadd.s32 %s1121, 1
      %s1123 = scalar_select %p1120, %s1121, %s1122
      %p1126 = pneg %p1120
      %p1127 = scmp.eq.s32.totalorder %s104, 1
      %p1128 = por %p1126, %p1127
      %p1129 = scmp.ne.s32.totalorder %s1121, %s1124
      %p1130 = scmp.eq.s32.totalorder %s104, 0
      %p1131 = por %p1129, %p1130
      %p1132 = scmp.ne.s32.totalorder %s1121, %s1124
      %p1133 = scmp.eq.s32.totalorder %s109, 1
      %p1134 = por %p1132, %p1133
      %p1135 = scmp.ne.s32.totalorder %s1124, %s1125
      %p1136 = scmp.eq.s32.totalorder %s109, 0
      %p1137 = por %p1135, %p1136
      %p1138 = scmp.ne.s32.totalorder %s1124, %s1125
      %p1139 = scmp.eq.s32.totalorder %s110, 1
      %p1140 = por %p1138, %p1139
      %p1142 = scmp.ne.s32.totalorder %s1125, %s1141
      %p1143 = scmp.eq.s32.totalorder %s110, 0
      %p1144 = por %p1142, %p1143
      %p1145 = scmp.le.s32.totalorder 1, %s104
      %p1146 = scmp.lt.s32.totalorder %s104, 3
      %p1147 = pnand %p1145, %p1146
      %p1148 = pneg %p1147
      // Predicated region
      $region9: #{transformer_translator_forward.1} parent=5 // pred_check
        _
      $region10: #{transformer_translator_forward.1} parent=5 // pred_check_branch
        %1150 = sbr.rel (%p1147) target = $region12
      $region11: #{transformer_translator_forward.1} parent=5 // pred_region
        %s1151 = ssub.s32 %s104, 1
        // Predicated region
        $region13: #{transformer_translator_forward.1} parent=11 // pred_check
          %p1152 = pneg %p229
        $region14: #{transformer_translator_forward.1} parent=11 // pred_check_branch
          %1154 = sbr.rel (%p1152) target = $region16
        $region15: #{transformer_translator_forward.1} parent=11 // pred_region
          _
        $region16: #{transformer_translator_forward.1} parent=11 // pred_fallthru
          _
        // Predicated region
        $region17: #{transformer_translator_forward.1} parent=11 // pred_check
          %p1155 = pneg %p250
        $region18: #{transformer_translator_forward.1} parent=11 // pred_check_branch
          %1157 = sbr.rel (%p1155) target = $region20
        $region19: #{transformer_translator_forward.1} parent=11 // pred_region
          _
        $region20: #{transformer_translator_forward.1} parent=11 // pred_fallthru
          _
        // Predicated region
        $region21: #{transformer_translator_forward.1} parent=11 // pred_check
          %p1158 = pneg %p271
        $region22: #{transformer_translator_forward.1} parent=11 // pred_check_branch
          %1160 = sbr.rel (%p1158) target = $region24
        $region23: #{transformer_translator_forward.1} parent=11 // pred_region
          _
        $region24: #{transformer_translator_forward.1} parent=11 // pred_fallthru
          _
        // Predicated region
        $region25: #{transformer_translator_forward.1} parent=11 // pred_check
          %p1161 = pneg %p292
        $region26: #{transformer_translator_forward.1} parent=11 // pred_check_branch
          %1163 = sbr.rel (%p1161) target = $region28
        $region27: #{transformer_translator_forward.1} parent=11 // pred_region
          _
        $region28: #{transformer_translator_forward.1} parent=11 // pred_fallthru
          _
        // Predicated region
        $region29: #{transformer_translator_forward.1} parent=11 // pred_check
          %p1164 = pneg %p313
        $region30: #{transformer_translator_forward.1} parent=11 // pred_check_branch
          %1166 = sbr.rel (%p1164) target = $region32
        $region31: #{transformer_translator_forward.1} parent=11 // pred_region
          _
        $region32: #{transformer_translator_forward.1} parent=11 // pred_fallthru
          _
        // Predicated region
        $region33: #{transformer_translator_forward.1} parent=11 // pred_check
          %p1167 = pneg %p334
        $region34: #{transformer_translator_forward.1} parent=11 // pred_check_branch
          %1169 = sbr.rel (%p1167) target = $region36
        $region35: #{transformer_translator_forward.1} parent=11 // pred_region
          _
        $region36: #{transformer_translator_forward.1} parent=11 // pred_fallthru
          _
        // Predicated region
        $region37: #{transformer_translator_forward.1} parent=11 // pred_check
          %p1170 = pneg %p355
        $region38: #{transformer_translator_forward.1} parent=11 // pred_check_branch
          %1172 = sbr.rel (%p1170) target = $region40
        $region39: #{transformer_translator_forward.1} parent=11 // pred_region
          _
        $region40: #{transformer_translator_forward.1} parent=11 // pred_fallthru
          _
        // Predicated region
        $region41: #{transformer_translator_forward.1} parent=11 // pred_check
          %p1173 = pneg %p376
        $region42: #{transformer_translator_forward.1} parent=11 // pred_check_branch
          %1175 = sbr.rel (%p1173) target = $region44
        $region43: #{transformer_translator_forward.1} parent=11 // pred_region
          _
        $region44: #{transformer_translator_forward.1} parent=11 // pred_fallthru
          _
        // Predicated region
        $region45: #{transformer_translator_forward.1} parent=11 // pred_check
          %p1176 = pneg %p397
        $region46: #{transformer_translator_forward.1} parent=11 // pred_check_branch
          %1178 = sbr.rel (%p1176) target = $region48
        $region47: #{transformer_translator_forward.1} parent=11 // pred_region
          _
        $region48: #{transformer_translator_forward.1} parent=11 // pred_fallthru
          _
        // Predicated region
        $region49: #{transformer_translator_forward.1} parent=11 // pred_check
          %p1179 = pneg %p418
        $region50: #{transformer_translator_forward.1} parent=11 // pred_check_branch
          %1181 = sbr.rel (%p1179) target = $region52
        $region51: #{transformer_translator_forward.1} parent=11 // pred_region
          _
        $region52: #{transformer_translator_forward.1} parent=11 // pred_fallthru
          _
        // Predicated region
        $region53: #{transformer_translator_forward.1} parent=11 // pred_check
          %p1182 = pneg %p439
        $region54: #{transformer_translator_forward.1} parent=11 // pred_check_branch
          %1184 = sbr.rel (%p1182) target = $region56
        $region55: #{transformer_translator_forward.1} parent=11 // pred_region
          _
        $region56: #{transformer_translator_forward.1} parent=11 // pred_fallthru
          _
        // Predicated region
        $region57: #{transformer_translator_forward.1} parent=11 // pred_check
          %p1185 = pneg %p460
        $region58: #{transformer_translator_forward.1} parent=11 // pred_check_branch
          %1187 = sbr.rel (%p1185) target = $region60
        $region59: #{transformer_translator_forward.1} parent=11 // pred_region
          _
        $region60: #{transformer_translator_forward.1} parent=11 // pred_fallthru
          _
        // Predicated region
        $region61: #{transformer_translator_forward.1} parent=11 // pred_check
          %p1188 = pneg %p481
        $region62: #{transformer_translator_forward.1} parent=11 // pred_check_branch
          %1190 = sbr.rel (%p1188) target = $region64
        $region63: #{transformer_translator_forward.1} parent=11 // pred_region
          _
        $region64: #{transformer_translator_forward.1} parent=11 // pred_fallthru
          _
        // Predicated region
        $region65: #{transformer_translator_forward.1} parent=11 // pred_check
          %p1191 = pneg %p502
        $region66: #{transformer_translator_forward.1} parent=11 // pred_check_branch
          %1193 = sbr.rel (%p1191) target = $region68
        $region67: #{transformer_translator_forward.1} parent=11 // pred_region
          _
        $region68: #{transformer_translator_forward.1} parent=11 // pred_fallthru
          _
        // Predicated region
        $region69: #{transformer_translator_forward.1} parent=11 // pred_check
          %p1194 = pneg %p523
        $region70: #{transformer_translator_forward.1} parent=11 // pred_check_branch
          %1196 = sbr.rel (%p1194) target = $region72
        $region71: #{transformer_translator_forward.1} parent=11 // pred_region
          _
        $region72: #{transformer_translator_forward.1} parent=11 // pred_fallthru
          _
        // Predicated region
        $region73: #{transformer_translator_forward.1} parent=11 // pred_check
          %p1197 = pneg %p544
        $region74: #{transformer_translator_forward.1} parent=11 // pred_check_branch
          %1199 = sbr.rel (%p1197) target = $region76
        $region75: #{transformer_translator_forward.1} parent=11 // pred_region
          _
        $region76: #{transformer_translator_forward.1} parent=11 // pred_fallthru
          _
        // Predicated region
        $region77: #{transformer_translator_forward.1} parent=11 // pred_check
          %p1200 = pneg %p565
        $region78: #{transformer_translator_forward.1} parent=11 // pred_check_branch
          %1202 = sbr.rel (%p1200) target = $region80
        $region79: #{transformer_translator_forward.1} parent=11 // pred_region
          _
        $region80: #{transformer_translator_forward.1} parent=11 // pred_fallthru
          _
        // Predicated region
        $region81: #{transformer_translator_forward.1} parent=11 // pred_check
          %p1203 = pneg %p586
        $region82: #{transformer_translator_forward.1} parent=11 // pred_check_branch
          %1205 = sbr.rel (%p1203) target = $region84
        $region83: #{transformer_translator_forward.1} parent=11 // pred_region
          _
        $region84: #{transformer_translator_forward.1} parent=11 // pred_fallthru
          _
        // Predicated region
        $region85: #{transformer_translator_forward.1} parent=11 // pred_check
          %p1206 = pneg %p607
        $region86: #{transformer_translator_forward.1} parent=11 // pred_check_branch
          %1208 = sbr.rel (%p1206) target = $region88
        $region87: #{transformer_translator_forward.1} parent=11 // pred_region
          _
        $region88: #{transformer_translator_forward.1} parent=11 // pred_fallthru
          _
        // Predicated region
        $region89: #{transformer_translator_forward.1} parent=11 // pred_check
          %p1209 = pneg %p628
        $region90: #{transformer_translator_forward.1} parent=11 // pred_check_branch
          %1211 = sbr.rel (%p1209) target = $region92
        $region91: #{transformer_translator_forward.1} parent=11 // pred_region
          _
        $region92: #{transformer_translator_forward.1} parent=11 // pred_fallthru
          _
        // Predicated region
        $region93: #{transformer_translator_forward.1} parent=11 // pred_check
          %p1212 = pneg %p649
        $region94: #{transformer_translator_forward.1} parent=11 // pred_check_branch
          %1214 = sbr.rel (%p1212) target = $region96
        $region95: #{transformer_translator_forward.1} parent=11 // pred_region
          _
        $region96: #{transformer_translator_forward.1} parent=11 // pred_fallthru
          _
        // Predicated region
        $region97: #{transformer_translator_forward.1} parent=11 // pred_check
          %p1215 = pneg %p670
        $region98: #{transformer_translator_forward.1} parent=11 // pred_check_branch
          %1217 = sbr.rel (%p1215) target = $region100
        $region99: #{transformer_translator_forward.1} parent=11 // pred_region
          _
        $region100: #{transformer_translator_forward.1} parent=11 // pred_fallthru
          _
        // Predicated region
        $region101: #{transformer_translator_forward.1} parent=11 // pred_check
          %p1218 = pneg %p691
        $region102: #{transformer_translator_forward.1} parent=11 // pred_check_branch
          %1220 = sbr.rel (%p1218) target = $region104
        $region103: #{transformer_translator_forward.1} parent=11 // pred_region
          _
        $region104: #{transformer_translator_forward.1} parent=11 // pred_fallthru
          _
        // Predicated region
        $region105: #{transformer_translator_forward.1} parent=11 // pred_check
          %p1221 = pneg %p712
        $region106: #{transformer_translator_forward.1} parent=11 // pred_check_branch
          %1223 = sbr.rel (%p1221) target = $region108
        $region107: #{transformer_translator_forward.1} parent=11 // pred_region
          _
        $region108: #{transformer_translator_forward.1} parent=11 // pred_fallthru
          _
        // Predicated region
        $region109: #{transformer_translator_forward.1} parent=11 // pred_check
          %p1224 = pneg %p733
        $region110: #{transformer_translator_forward.1} parent=11 // pred_check_branch
          %1226 = sbr.rel (%p1224) target = $region112
        $region111: #{transformer_translator_forward.1} parent=11 // pred_region
          _
        $region112: #{transformer_translator_forward.1} parent=11 // pred_fallthru
          _
        // Predicated region
        $region113: #{transformer_translator_forward.1} parent=11 // pred_check
          %p1227 = pneg %p754
        $region114: #{transformer_translator_forward.1} parent=11 // pred_check_branch
          %1229 = sbr.rel (%p1227) target = $region116
        $region115: #{transformer_translator_forward.1} parent=11 // pred_region
          _
        $region116: #{transformer_translator_forward.1} parent=11 // pred_fallthru
          _
        // Predicated region
        $region117: #{transformer_translator_forward.1} parent=11 // pred_check
          %p1230 = pneg %p775
        $region118: #{transformer_translator_forward.1} parent=11 // pred_check_branch
          %1232 = sbr.rel (%p1230) target = $region120
        $region119: #{transformer_translator_forward.1} parent=11 // pred_region
          _
        $region120: #{transformer_translator_forward.1} parent=11 // pred_fallthru
          _
        // Predicated region
        $region121: #{transformer_translator_forward.1} parent=11 // pred_check
          %p1233 = pneg %p796
        $region122: #{transformer_translator_forward.1} parent=11 // pred_check_branch
          %1235 = sbr.rel (%p1233) target = $region124
        $region123: #{transformer_translator_forward.1} parent=11 // pred_region
          _
        $region124: #{transformer_translator_forward.1} parent=11 // pred_fallthru
          _
        // Predicated region
        $region125: #{transformer_translator_forward.1} parent=11 // pred_check
          %p1236 = pneg %p817
        $region126: #{transformer_translator_forward.1} parent=11 // pred_check_branch
          %1238 = sbr.rel (%p1236) target = $region128
        $region127: #{transformer_translator_forward.1} parent=11 // pred_region
          _
        $region128: #{transformer_translator_forward.1} parent=11 // pred_fallthru
          _
        // Predicated region
        $region129: #{transformer_translator_forward.1} parent=11 // pred_check
          %p1239 = pneg %p838
        $region130: #{transformer_translator_forward.1} parent=11 // pred_check_branch
          %1241 = sbr.rel (%p1239) target = $region132
        $region131: #{transformer_translator_forward.1} parent=11 // pred_region
          _
        $region132: #{transformer_translator_forward.1} parent=11 // pred_fallthru
          _
        // Predicated region
        $region133: #{transformer_translator_forward.1} parent=11 // pred_check
          %p1242 = pneg %p859
        $region134: #{transformer_translator_forward.1} parent=11 // pred_check_branch
          %1244 = sbr.rel (%p1242) target = $region136
        $region135: #{transformer_translator_forward.1} parent=11 // pred_region
          _
        $region136: #{transformer_translator_forward.1} parent=11 // pred_fallthru
          _
        // Predicated region
        $region137: #{transformer_translator_forward.1} parent=11 // pred_check
          %p1245 = pneg %p880
        $region138: #{transformer_translator_forward.1} parent=11 // pred_check_branch
          %1247 = sbr.rel (%p1245) target = $region140
        $region139: #{transformer_translator_forward.1} parent=11 // pred_region
          _
        $region140: #{transformer_translator_forward.1} parent=11 // pred_fallthru
          _
        // Predicated region
        $region141: #{transformer_translator_forward.1} parent=11 // pred_check
          %p1248 = pneg %p901
        $region142: #{transformer_translator_forward.1} parent=11 // pred_check_branch
          %1250 = sbr.rel (%p1248) target = $region144
        $region143: #{transformer_translator_forward.1} parent=11 // pred_region
          _
        $region144: #{transformer_translator_forward.1} parent=11 // pred_fallthru
          _
        // Predicated region
        $region145: #{transformer_translator_forward.1} parent=11 // pred_check
          %p1251 = pneg %p922
        $region146: #{transformer_translator_forward.1} parent=11 // pred_check_branch
          %1253 = sbr.rel (%p1251) target = $region148
        $region147: #{transformer_translator_forward.1} parent=11 // pred_region
          _
        $region148: #{transformer_translator_forward.1} parent=11 // pred_fallthru
          _
        // Predicated region
        $region149: #{transformer_translator_forward.1} parent=11 // pred_check
          %p1254 = pneg %p943
        $region150: #{transformer_translator_forward.1} parent=11 // pred_check_branch
          %1256 = sbr.rel (%p1254) target = $region152
        $region151: #{transformer_translator_forward.1} parent=11 // pred_region
          _
        $region152: #{transformer_translator_forward.1} parent=11 // pred_fallthru
          _
        // Predicated region
        $region153: #{transformer_translator_forward.1} parent=11 // pred_check
          %p1257 = pneg %p964
        $region154: #{transformer_translator_forward.1} parent=11 // pred_check_branch
          %1259 = sbr.rel (%p1257) target = $region156
        $region155: #{transformer_translator_forward.1} parent=11 // pred_region
          _
        $region156: #{transformer_translator_forward.1} parent=11 // pred_fallthru
          _
        // Predicated region
        $region157: #{transformer_translator_forward.1} parent=11 // pred_check
          %p1260 = pneg %p985
        $region158: #{transformer_translator_forward.1} parent=11 // pred_check_branch
          %1262 = sbr.rel (%p1260) target = $region160
        $region159: #{transformer_translator_forward.1} parent=11 // pred_region
          _
        $region160: #{transformer_translator_forward.1} parent=11 // pred_fallthru
          _
        // Predicated region
        $region161: #{transformer_translator_forward.1} parent=11 // pred_check
          %p1263 = pneg %p1006
        $region162: #{transformer_translator_forward.1} parent=11 // pred_check_branch
          %1265 = sbr.rel (%p1263) target = $region164
        $region163: #{transformer_translator_forward.1} parent=11 // pred_region
          _
        $region164: #{transformer_translator_forward.1} parent=11 // pred_fallthru
          _
        // Predicated region
        $region165: #{transformer_translator_forward.1} parent=11 // pred_check
          %p1266 = pneg %p1027
        $region166: #{transformer_translator_forward.1} parent=11 // pred_check_branch
          %1268 = sbr.rel (%p1266) target = $region168
        $region167: #{transformer_translator_forward.1} parent=11 // pred_region
          _
        $region168: #{transformer_translator_forward.1} parent=11 // pred_fallthru
          _
        // Predicated region
        $region169: #{transformer_translator_forward.1} parent=11 // pred_check
          %p1269 = pneg %p1048
        $region170: #{transformer_translator_forward.1} parent=11 // pred_check_branch
          %1271 = sbr.rel (%p1269) target = $region172
        $region171: #{transformer_translator_forward.1} parent=11 // pred_region
          _
        $region172: #{transformer_translator_forward.1} parent=11 // pred_fallthru
          _
        // Predicated region
        $region173: #{transformer_translator_forward.1} parent=11 // pred_check
          %p1272 = pneg %p1069
        $region174: #{transformer_translator_forward.1} parent=11 // pred_check_branch
          %1274 = sbr.rel (%p1272) target = $region176
        $region175: #{transformer_translator_forward.1} parent=11 // pred_region
          _
        $region176: #{transformer_translator_forward.1} parent=11 // pred_fallthru
          _
        // Predicated region
        $region177: #{transformer_translator_forward.1} parent=11 // pred_check
          %p1275 = pneg %p1090
        $region178: #{transformer_translator_forward.1} parent=11 // pred_check_branch
          %1277 = sbr.rel (%p1275) target = $region180
        $region179: #{transformer_translator_forward.1} parent=11 // pred_region
          _
        $region180: #{transformer_translator_forward.1} parent=11 // pred_fallthru
          _
        // Predicated region
        $region181: #{transformer_translator_forward.1} parent=11 // pred_check
          %p1278 = pneg %p1111
        $region182: #{transformer_translator_forward.1} parent=11 // pred_check_branch
          %1280 = sbr.rel (%p1278) target = $region184
        $region183: #{transformer_translator_forward.1} parent=11 // pred_region
          _
        $region184: #{transformer_translator_forward.1} parent=11 // pred_fallthru
          _
      $region12: #{transformer_translator_forward.1} parent=5 // pred_fallthru
        _
      %p1281 = scmp.lt.s32.totalorder %s104, 2
      // Predicated region
      $region185: #{transformer_translator_forward.1} parent=5 // pred_check
        %p1282 = pneg %p1281
      $region186: #{transformer_translator_forward.1} parent=5 // pred_check_branch
        %1284 = sbr.rel (%p1282) target = $region188
      $region187: #{transformer_translator_forward.1} parent=5 // pred_region
        // Predicated region
        $region189: #{transformer_translator_forward.1} parent=187 // pred_check
          %p1285 = pneg %p124
        $region190: #{transformer_translator_forward.1} parent=187 // pred_check_branch
          %1287 = sbr.rel (%p1285) target = $region192
        $region191: #{transformer_translator_forward.1} parent=187 // pred_region
          %p1288 = scmp.lt.s32.totalorder %s104, 1
          %s1289 = scalar_select %p1288, %s104, 1
          %s1290 = smul.addr %s1289, 8
          %s1291 = scalar_lea.vmem %s1, %s1290
        $region192: #{transformer_translator_forward.1} parent=187 // pred_fallthru
          _
        // Predicated region
        $region193: #{transformer_translator_forward.1} parent=187 // pred_check
          %p1292 = pneg %p150
        $region194: #{transformer_translator_forward.1} parent=187 // pred_check_branch
          %1294 = sbr.rel (%p1292) target = $region196
        $region195: #{transformer_translator_forward.1} parent=187 // pred_region
          %p1295 = scmp.lt.s32.totalorder %s104, 1
          %s1296 = scalar_select %p1295, %s104, 1
          %s1297 = smul.addr %s1296, 8
          %s1298 = scalar_lea.vmem %s3, %s1297
        $region196: #{transformer_translator_forward.1} parent=187 // pred_fallthru
          _
        // Predicated region
        $region197: #{transformer_translator_forward.1} parent=187 // pred_check
          %p1299 = pneg %p176
        $region198: #{transformer_translator_forward.1} parent=187 // pred_check_branch
          %1301 = sbr.rel (%p1299) target = $region200
        $region199: #{transformer_translator_forward.1} parent=187 // pred_region
          %p1302 = scmp.lt.s32.totalorder %s104, 1
          %s1303 = scalar_select %p1302, %s104, 1
          %s1304 = scalar_lea.vmem %s5, %s1303
        $region200: #{transformer_translator_forward.1} parent=187 // pred_fallthru
          _
        // Predicated region
        $region201: #{transformer_translator_forward.1} parent=187 // pred_check
          %p1305 = pneg %p202
        $region202: #{transformer_translator_forward.1} parent=187 // pred_check_branch
          %1307 = sbr.rel (%p1305) target = $region204
        $region203: #{transformer_translator_forward.1} parent=187 // pred_region
          %p1308 = scmp.lt.s32.totalorder %s104, 1
          %s1309 = scalar_select %p1308, %s104, 1
          %s1310 = smul.addr %s1309, 8
          %s1311 = scalar_lea.vmem %s7, %s1310
        $region204: #{transformer_translator_forward.1} parent=187 // pred_fallthru
          _
      $region188: #{transformer_translator_forward.1} parent=5 // pred_fallthru
        _
      %p1312 = scmp.le.s32.totalorder 1, %s104
      %p1313 = scmp.lt.s32.totalorder %s104, 3
      %p1314 = pnand %p1312, %p1313
      %p1315 = pneg %p1314
      // Predicated region
      $region205: #{transformer_translator_forward.1} parent=5 // pred_check
        _
      $region206: #{transformer_translator_forward.1} parent=5 // pred_check_branch
        %1317 = sbr.rel (%p1314) target = $region208
      $region207: #{transformer_translator_forward.1} parent=5 // pred_region
        %s1318 = ssub.s32 %s104, 1
        %p1319 = scmp.lt.s32.totalorder %s109, 1
        %s1320 = scalar_select %p1319, %s109, 1
        %s1321 = smul.addr %s1320, 8
        %s1322 = scalar_lea.vmem %s1, %s1321
        %p1323 = pneg %p130
        %p1324 = pneg %p127
        %p1325 = scmp.lt.s32.totalorder %s109, 1
        %s1326 = scalar_select %p1325, %s109, 1
        %s1327 = smul.addr %s1326, 8
        %s1328 = scalar_lea.vmem %s3, %s1327
        %p1329 = pneg %p156
        %p1330 = pneg %p153
        %p1331 = scmp.lt.s32.totalorder %s109, 1
        %s1332 = scalar_select %p1331, %s109, 1
        %s1333 = scalar_lea.vmem %s5, %s1332
        %p1334 = pneg %p182
        %p1335 = pneg %p179
        %p1336 = scmp.lt.s32.totalorder %s109, 1
        %s1337 = scalar_select %p1336, %s109, 1
        %s1338 = smul.addr %s1337, 8
        %s1339 = scalar_lea.vmem %s7, %s1338
        %p1340 = pneg %p208
        %p1341 = pneg %p205
        %p1342 = pneg %p229
        %p1343 = pneg %p226
        %p1344 = pneg %p250
        %p1345 = pneg %p247
        %p1346 = pneg %p271
        %p1347 = pneg %p268
        %p1348 = pneg %p292
        %p1349 = pneg %p289
        %p1350 = pneg %p313
        %p1351 = pneg %p310
        %p1352 = pneg %p334
        %p1353 = pneg %p331
        %p1354 = pneg %p355
        %p1355 = pneg %p352
        %p1356 = pneg %p376
        %p1357 = pneg %p373
        %p1358 = pneg %p397
        %p1359 = pneg %p394
        %p1360 = pneg %p418
        %p1361 = pneg %p415
        %p1362 = pneg %p439
        %p1363 = pneg %p436
        %p1364 = pneg %p460
        %p1365 = pneg %p457
        %p1366 = pneg %p481
        %p1367 = pneg %p478
        %p1368 = pneg %p502
        %p1369 = pneg %p499
        %p1370 = pneg %p523
        %p1371 = pneg %p520
        %p1372 = pneg %p544
        %p1373 = pneg %p541
        %p1374 = pneg %p565
        %p1375 = pneg %p562
        %p1376 = pneg %p586
        %p1377 = pneg %p583
        %p1378 = pneg %p607
        %p1379 = pneg %p604
        %p1380 = pneg %p628
        %p1381 = pneg %p625
        %p1382 = pneg %p649
        %p1383 = pneg %p646
        %p1384 = pneg %p670
        %p1385 = pneg %p667
        %p1386 = pneg %p691
        %p1387 = pneg %p688
        %p1388 = pneg %p712
        %p1389 = pneg %p709
        %p1390 = pneg %p733
        %p1391 = pneg %p730
        %p1392 = pneg %p754
        %p1393 = pneg %p751
        %p1394 = pneg %p775
        %p1395 = pneg %p772
        %p1396 = pneg %p796
        %p1397 = pneg %p793
        %p1398 = pneg %p817
        %p1399 = pneg %p814
        %p1400 = pneg %p838
        %p1401 = pneg %p835
        %p1402 = pneg %p859
        %p1403 = pneg %p856
        %p1404 = pneg %p880
        %p1405 = pneg %p877
        %p1406 = pneg %p901
        %p1407 = pneg %p898
        %p1408 = pneg %p922
        %p1409 = pneg %p919
        %p1410 = pneg %p943
        %p1411 = pneg %p940
        %p1412 = pneg %p964
        %p1413 = pneg %p961
        %p1414 = pneg %p985
        %p1415 = pneg %p982
        %p1416 = pneg %p1006
        %p1417 = pneg %p1003
        %p1418 = pneg %p1027
        %p1419 = pneg %p1024
        %p1420 = pneg %p1048
        %p1421 = pneg %p1045
        %p1422 = pneg %p1069
        %p1423 = pneg %p1066
        %p1424 = pneg %p1090
        %p1425 = pneg %p1087
        %p1426 = pneg %p1111
        %p1427 = pneg %p1108
        %p1428 = pneg %p1137
        %p1429 = pneg %p1134
        %s1430 = sand.u32 %s1124, 1
        %s1431 = scalar_lea.sflag [#allocation3], %s1430
        %s1432 = sand.u32 %s1124, 1
        %s1433 = smul.addr %s1432, 8
        %s1434 = scalar_lea.vmem [#allocation2], %s1433
        %p1435 = scmp.lt.s32.totalorder %s109, 1
        %s1436 = scalar_select %p1435, %s109, 1
        %s1437 = smul.addr %s1436, 8
        %s1438 = scalar_lea.vmem %s1, %s1437
        %p1439 = scmp.lt.s32.totalorder %s109, 1
        %s1440 = scalar_select %p1439, %s109, 1
        %s1441 = smul.addr %s1440, 8
        %s1442 = scalar_lea.vmem %s3, %s1441
        %p1443 = scmp.lt.s32.totalorder %s109, 1
        %s1444 = scalar_select %p1443, %s109, 1
        %s1445 = scalar_lea.vmem %s5, %s1444
        %p1446 = scmp.lt.s32.totalorder %s109, 1
        %s1447 = scalar_select %p1446, %s109, 1
        %s1448 = smul.addr %s1447, 8
        %s1449 = scalar_lea.vmem %s7, %s1448
        %v1451 = vld [vmem:[%s15] sm:$0xff]
        %v1452 = vld [vmem:[%s15 + $0x8] sm:$0xff]
        %v1453 = vld [vmem:[%s15 + $0x10] sm:$0xff]
        %v1454 = vld [vmem:[%s15 + $0x18] sm:$0xff]
        %v1455 = vld [vmem:[%s17] sm:$0xff]
        %v1456 = vld [vmem:[%s17 + $0x8] sm:$0xff]
        %v1457 = vld [vmem:[%s17 + $0x10] sm:$0xff]
        %v1458 = vld [vmem:[%s17 + $0x18] sm:$0xff]
        %v1459 = vld [vmem:[%s19] sm:$0xff]
        %v1460 = vld [vmem:[%s19 + $0x8] sm:$0xff]
        %v1461 = vld [vmem:[%s19 + $0x10] sm:$0xff]
        %v1462 = vld [vmem:[%s19 + $0x18] sm:$0xff]
        %v1463 = vld [vmem:[%s21] sm:$0xff]
        %v1464 = vld [vmem:[%s21 + $0x8] sm:$0xff]
        %v1465 = vld [vmem:[%s21 + $0x10] sm:$0xff]
        %v1466 = vld [vmem:[%s21 + $0x18] sm:$0xff]
        %v1467 = vld [vmem:[%s1445] sm:$0x1]
        %v1468 = vld [vmem:[%s1449] sm:$0xff]
        %v1469 = vld [vmem:[%s13] sm:$0xff]
        %v1470 = vld [vmem:[%s1438] sm:$0xff]
        %v1471 = vlaneseq
        %v1472 = vand.u32 %v1471, 127
        %1473 = vset.pattern.permute.xlu0 0
        %1474 = vperm.xlu0 %1473, %v1470
        %v1475 = vpop.permute.xlu0 %1474
        %vm1476 = vcmp.eq.s32.totalorder %v1475, %v1472
        %v1477 = vsel %vm1476, 1, 0
        %v1478 = vcvt.s32.f32 %v1477
        %v1479 = vld [vmem:[%s9] sm:$0xff]
        %v1480 = vld [vmem:[%s9 + $0x8] sm:$0xff]
        %v1481 = vld [vmem:[%s9 + $0x10] sm:$0xff]
        %v1482 = vld [vmem:[%s9 + $0x18] sm:$0xff]
        %v1483 = vld [vmem:[%s9 + $0x20] sm:$0xff]
        %vm1484 = vcmask 326656
        %v1486 = vsel %vm1484, %v1478, 0
        %1488 = vmatprep.subr.mxu0 0.0
        %1489 = vmatpush1.msra.mxu0 %v1479
        %1490 = vmatprep.subr.mxu0 0.0
        %1491 = vmatpush1.msra.mxu0 %v1480
        %1492 = vmatprep.subr.mxu0 0.0
        %1493 = vmatpush1.msra.mxu0 %v1481
        %1494 = vmatprep.subr.mxu0 0.0
        %1495 = vmatpush1.msra.mxu0 %v1482
        %1496 = vmatprep.subr.mxu0 0.0
        %1497 = vmatpush1.msra.mxu0 %v1483
        %1498 = vmatprep.subr.mxu0 0.0
        %1499 = vmatpush1.msra.mxu0 0.0
        %1500 = vmatprep.subr.mxu0 0.0
        %1501 = vmatpush1.msra.mxu0 0.0
        %1502 = vmatprep.subr.mxu0 0.0
        %1503 = vmatpush1.msra.mxu0 0.0
        %1504 = vmatprep.subr.mxu0 0.0
        %1505 = vmatpush1.msra.mxu0 0.0
        %1506 = vmatprep.subr.mxu0 0.0
        %1507 = vmatpush1.msra.mxu0 0.0
        %1508 = vmatprep.subr.mxu0 0.0
        %1509 = vmatpush1.msra.mxu0 0.0
        %1510 = vmatprep.subr.mxu0 0.0
        %1511 = vmatpush1.msra.mxu0 0.0
        %1512 = vmatprep.subr.mxu0 0.0
        %1513 = vmatpush1.msra.mxu0 0.0
        %1514 = vmatprep.subr.mxu0 0.0
        %1515 = vmatpush1.msra.mxu0 0.0
        %1516 = vmatprep.subr.mxu0 0.0
        %1517 = vmatpush1.msra.mxu0 0.0
        %1518 = vmatprep.subr.mxu0 0.0
        %1519 = vmatpush1.msra.mxu0 0.0
        %1520 = vmatprep.subr.mxu0 0.0
        %1521 = vmatpush1.msra.mxu0 0.0
        %1522 = vmatprep.subr.mxu0 0.0
        %1523 = vmatpush1.msra.mxu0 0.0
        %1524 = vmatprep.subr.mxu0 0.0
        %1525 = vmatpush1.msra.mxu0 0.0
        %1526 = vmatprep.subr.mxu0 0.0
        %1527 = vmatpush1.msra.mxu0 0.0
        %1528 = vmatprep.subr.mxu0 0.0
        %1529 = vmatpush1.msra.mxu0 0.0
        %1530 = vmatprep.subr.mxu0 0.0
        %1531 = vmatpush1.msra.mxu0 0.0
        %1532 = vmatprep.subr.mxu0 0.0
        %1533 = vmatpush1.msra.mxu0 0.0
        %1534 = vmatprep.subr.mxu0 0.0
        %1535 = vmatpush1.msra.mxu0 0.0
        %1536 = vmatprep.subr.mxu0 0.0
        %1537 = vmatpush1.msra.mxu0 0.0
        %1538 = vmatprep.subr.mxu0 0.0
        %1539 = vmatpush1.msra.mxu0 0.0
        %1540 = vmatprep.subr.mxu0 0.0
        %1541 = vmatpush1.msra.mxu0 0.0
        %1542 = vmatprep.subr.mxu0 0.0
        %1543 = vmatpush1.msra.mxu0 0.0
        %1544 = vmatprep.subr.mxu0 0.0
        %1545 = vmatpush1.msra.mxu0 0.0
        %1546 = vmatprep.subr.mxu0 0.0
        %1547 = vmatpush1.msra.mxu0 0.0
        %1548 = vmatprep.subr.mxu0 0.0
        %1549 = vmatpush1.msra.mxu0 0.0
        %1550 = vmatprep.subr.mxu0 0.0
        %1551 = vmatpush1.msra.mxu0 0.0
        %1552 = vmatprep.mubr.f32.mxu0 0.0
        %1553 = vmatmul.mubr.f32.gmra.mrb[0].mxu0 %v1486
        %v1554 = vpop.f32.mrb[0].mxu0
        %v1555 = vadd.f32 %v1469, %v1554
        %v1556 = vpop.f32.mrb[0].mxu0
        %1557 = vdwg.mxu0
        %v1558 = vld [vmem:[%s1442] sm:$0xff]
        %1559 = vset.pattern.permute.xlu0 0
        %1560 = vperm.xlu0 %1559, %v1558
        %v1561 = vpop.permute.xlu0 %1560
        %vm1562 = vcmp.eq.s32.totalorder %v1561, %v1472
        %v1563 = vsel %vm1562, 1, 0
        %v1564 = vcvt.s32.f32 %v1563
        %v1565 = vld [vmem:[%s11] sm:$0xff]
        %v1566 = vld [vmem:[%s11 + $0x8] sm:$0xff]
        %v1567 = vld [vmem:[%s11 + $0x10] sm:$0xff]
        %v1568 = vld [vmem:[%s11 + $0x18] sm:$0xff]
        %v1569 = vld [vmem:[%s11 + $0x20] sm:$0xff]
        %v1570 = vld [vmem:[%s11 + $0x28] sm:$0xff]
        %vm1571 = vcmask 392192
        %v1573 = vsel %vm1571, %v1564, 0
        %1575 = vmatprep.subr.mxu0 0.0
        %1576 = vmatpush1.msra.mxu0 %v1565
        %1577 = vmatprep.subr.mxu0 0.0
        %1578 = vmatpush1.msra.mxu0 %v1566
        %1579 = vmatprep.subr.mxu0 0.0
        %1580 = vmatpush1.msra.mxu0 %v1567
        %1581 = vmatprep.subr.mxu0 0.0
        %1582 = vmatpush1.msra.mxu0 %v1568
        %1583 = vmatprep.subr.mxu0 0.0
        %1584 = vmatpush1.msra.mxu0 %v1569
        %1585 = vmatprep.subr.mxu0 0.0
        %1586 = vmatpush1.msra.mxu0 %v1570
        %1587 = vmatprep.subr.mxu0 0.0
        %1588 = vmatpush1.msra.mxu0 0.0
        %1589 = vmatprep.subr.mxu0 0.0
        %1590 = vmatpush1.msra.mxu0 0.0
        %1591 = vmatprep.subr.mxu0 0.0
        %1592 = vmatpush1.msra.mxu0 0.0
        %1593 = vmatprep.subr.mxu0 0.0
        %1594 = vmatpush1.msra.mxu0 0.0
        %1595 = vmatprep.subr.mxu0 0.0
        %1596 = vmatpush1.msra.mxu0 0.0
        %1597 = vmatprep.subr.mxu0 0.0
        %1598 = vmatpush1.msra.mxu0 0.0
        %1599 = vmatprep.subr.mxu0 0.0
        %1600 = vmatpush1.msra.mxu0 0.0
        %1601 = vmatprep.subr.mxu0 0.0
        %1602 = vmatpush1.msra.mxu0 0.0
        %1603 = vmatprep.subr.mxu0 0.0
        %1604 = vmatpush1.msra.mxu0 0.0
        %1605 = vmatprep.subr.mxu0 0.0
        %1606 = vmatpush1.msra.mxu0 0.0
        %1607 = vmatprep.subr.mxu0 0.0
        %1608 = vmatpush1.msra.mxu0 0.0
        %1609 = vmatprep.subr.mxu0 0.0
        %1610 = vmatpush1.msra.mxu0 0.0
        %1611 = vmatprep.subr.mxu0 0.0
        %1612 = vmatpush1.msra.mxu0 0.0
        %1613 = vmatprep.subr.mxu0 0.0
        %1614 = vmatpush1.msra.mxu0 0.0
        %1615 = vmatprep.subr.mxu0 0.0
        %1616 = vmatpush1.msra.mxu0 0.0
        %1617 = vmatprep.subr.mxu0 0.0
        %1618 = vmatpush1.msra.mxu0 0.0
        %1619 = vmatprep.subr.mxu0 0.0
        %1620 = vmatpush1.msra.mxu0 0.0
        %1621 = vmatprep.subr.mxu0 0.0
        %1622 = vmatpush1.msra.mxu0 0.0
        %1623 = vmatprep.subr.mxu0 0.0
        %1624 = vmatpush1.msra.mxu0 0.0
        %1625 = vmatprep.subr.mxu0 0.0
        %1626 = vmatpush1.msra.mxu0 0.0
        %1627 = vmatprep.subr.mxu0 0.0
        %1628 = vmatpush1.msra.mxu0 0.0
        %1629 = vmatprep.subr.mxu0 0.0
        %1630 = vmatpush1.msra.mxu0 0.0
        %1631 = vmatprep.subr.mxu0 0.0
        %1632 = vmatpush1.msra.mxu0 0.0
        %1633 = vmatprep.subr.mxu0 0.0
        %1634 = vmatpush1.msra.mxu0 0.0
        %1635 = vmatprep.subr.mxu0 0.0
        %1636 = vmatpush1.msra.mxu0 0.0
        %1637 = vmatprep.subr.mxu0 0.0
        %1638 = vmatpush1.msra.mxu0 0.0
        %1639 = vmatprep.mubr.f32.mxu0 0.0
        %1640 = vmatmul.mubr.f32.gmra.mrb[0].mxu0 %v1573
        %v1641 = vpop.f32.mrb[0].mxu0
        %v1642 = vadd.f32 %v1469, %v1641
        %v1643 = vpop.f32.mrb[0].mxu0
        %1644 = vdwg.mxu0
        %v1645 = vld [vmem:[%s23] sm:$0xf]
        %v1646 = vld [vmem:[%s23 + $0x4] sm:$0xf]
        %v1647 = vld [vmem:[%s23 + $0x8] sm:$0xf]
        %v1648 = vld [vmem:[%s23 + $0xc] sm:$0xf]
        %v1649 = vld [vmem:[%s25] sm:$0x1]
        %v1650 = vld [vmem:[%s27] sm:$0xf]
        %v1651 = vld [vmem:[%s27 + $0x4] sm:$0xf]
        %v1652 = vld [vmem:[%s27 + $0x8] sm:$0xf]
        %v1653 = vld [vmem:[%s27 + $0xc] sm:$0xf]
        %v1654 = vld [vmem:[%s29] sm:$0x1]
        %v1655 = vld [vmem:[%s31] sm:$0xf]
        %v1656 = vld [vmem:[%s31 + $0x4] sm:$0xf]
        %v1657 = vld [vmem:[%s31 + $0x8] sm:$0xf]
        %v1658 = vld [vmem:[%s31 + $0xc] sm:$0xf]
        %v1659 = vld [vmem:[%s33] sm:$0x1]
        %v1660 = vld [vmem:[%s35] sm:$0xf]
        %v1661 = vld [vmem:[%s35 + $0x4] sm:$0xf]
        %v1662 = vld [vmem:[%s35 + $0x8] sm:$0xf]
        %v1663 = vld [vmem:[%s35 + $0xc] sm:$0xf]
        %v1664 = vld [vmem:[%s35 + $0x10] sm:$0xf]
        %v1665 = vld [vmem:[%s35 + $0x14] sm:$0xf]
        %v1666 = vld [vmem:[%s35 + $0x18] sm:$0xf]
        %v1667 = vld [vmem:[%s35 + $0x1c] sm:$0xf]
        %v1668 = vld [vmem:[%s37] sm:$0x1]
        %v1669 = vld [vmem:[%s39] sm:$0x1]
        %v1670 = vld [vmem:[%s41] sm:$0x1]
        %v1671 = vld [vmem:[%s43] sm:$0x1]
        %v1672 = vld [vmem:[%s45] sm:$0x1]
        %v1673 = vpack.c.bf16 %v1555, %v1555
        %v1675 = vlaneseq
        %v1676 = vshrl.u32 %v1675, 7
        %v1677 = vsub.s32 0, %v1676
        %v1678 = vrot.slane %v1649, %v1677
        %v1684 = vunpack.c.l.b16 %v1645
        %v1685 = vunpack.c.l.b16 %v1646
        %v1686 = vunpack.c.l.b16 %v1647
        %v1687 = vunpack.c.l.b16 %v1648
        %v1688 = vpack.c.b16 %v1685, %v1684
        %v1689 = vpack.c.b16 %v1687, %v1686
        %vm1692 = vcmask 261120
        %v1694 = vsel %vm1692, %v1673, 0
        %1696 = vmatprep.subr.bf16.mxu0 0
        %1697 = vmatpush1.bf16.msra.mxu0 %v1688
        %1698 = vmatprep.subr.bf16.mxu0 0
        %1699 = vmatpush1.bf16.msra.mxu0 %v1689
        %1700 = vmatprep.subr.bf16.mxu0 0
        %1701 = vmatpush1.bf16.msra.mxu0 0
        %1702 = vmatprep.subr.bf16.mxu0 0
        %1703 = vmatpush1.bf16.msra.mxu0 0
        %1704 = vmatprep.subr.bf16.mxu0 0
        %1705 = vmatpush1.bf16.msra.mxu0 0
        %1706 = vmatprep.subr.bf16.mxu0 0
        %1707 = vmatpush1.bf16.msra.mxu0 0
        %1708 = vmatprep.subr.bf16.mxu0 0
        %1709 = vmatpush1.bf16.msra.mxu0 0
        %1710 = vmatprep.subr.bf16.mxu0 0
        %1711 = vmatpush1.bf16.msra.mxu0 0
        %1712 = vmatprep.subr.bf16.mxu0 0
        %1713 = vmatpush1.bf16.msra.mxu0 0
        %1714 = vmatprep.subr.bf16.mxu0 0
        %1715 = vmatpush1.bf16.msra.mxu0 0
        %1716 = vmatprep.subr.bf16.mxu0 0
        %1717 = vmatpush1.bf16.msra.mxu0 0
        %1718 = vmatprep.subr.bf16.mxu0 0
        %1719 = vmatpush1.bf16.msra.mxu0 0
        %1720 = vmatprep.subr.bf16.mxu0 0
        %1721 = vmatpush1.bf16.msra.mxu0 0
        %1722 = vmatprep.subr.bf16.mxu0 0
        %1723 = vmatpush1.bf16.msra.mxu0 0
        %1724 = vmatprep.subr.bf16.mxu0 0
        %1725 = vmatpush1.bf16.msra.mxu0 0
        %1726 = vmatprep.subr.bf16.mxu0 0
        %1727 = vmatpush1.bf16.msra.mxu0 0
        %1728 = vmatprep.mubr.bf16.mxu0 0
        %1729 = vmatmul.mubr.bf16.gmra.mrb[0].mxu0 %v1694
        %v1730 = vpop.f32.mrb[0].mxu0
        %v1731 = vadd.f32 %v1678, %v1730
        %v1732 = vpop.f32.mrb[0].mxu0
        %v1733 = vpop.f32.mrb[0].mxu0
        %v1734 = vpop.f32.mrb[0].mxu0
        %1735 = vdwg.mxu0
        %1740 = vrot.lane.b32.xlu0 %v1451, 32
        %v1741 = vpop.permute.xlu0 %1740
        %1742 = vrot.lane.b32.xlu0 %v1452, 32
        %v1743 = vpop.permute.xlu0 %1742
        %1744 = vrot.lane.b32.xlu0 %v1453, 32
        %v1745 = vpop.permute.xlu0 %1744
        %1746 = vrot.lane.b32.xlu0 %v1454, 32
        %v1747 = vpop.permute.xlu0 %1746
        %v1752 = vmul.f32 %v1731, %v1741
        %v1753 = vmul.f32 %v1731, %v1743
        %v1754 = vmul.f32 %v1731, %v1745
        %v1755 = vmul.f32 %v1731, %v1747
        %v1756 = vpack.c.bf16 %v1753, %v1752
        %v1757 = vpack.c.bf16 %v1755, %v1754
        %1758 = vrot.lane.b32.xlu0 %v1451, 64
        %v1759 = vpop.permute.xlu0 %1758
        %1760 = vrot.lane.b32.xlu0 %v1452, 64
        %v1761 = vpop.permute.xlu0 %1760
        %1762 = vrot.lane.b32.xlu0 %v1453, 64
        %v1763 = vpop.permute.xlu0 %1762
        %1764 = vrot.lane.b32.xlu0 %v1454, 64
        %v1765 = vpop.permute.xlu0 %1764
        %v1770 = vmul.f32 %v1731, %v1759
        %v1771 = vmul.f32 %v1731, %v1761
        %v1772 = vmul.f32 %v1731, %v1763
        %v1773 = vmul.f32 %v1731, %v1765
        %v1774 = vpack.c.bf16 %v1771, %v1770
        %v1775 = vpack.c.bf16 %v1773, %v1772
        %v1776 = vpack.c.bf16 %v1731, %v1731
        %v1778 = vlaneseq
        %v1779 = vshrl.u32 %v1778, 7
        %v1780 = vsub.s32 0, %v1779
        %v1781 = vrot.slane %v1467, %v1780
        %1785 = vrot.lane.b32.xlu0 %v1756, 96
        %v1786 = vpop.permute.xlu0 %1785
        %1787 = vrot.lane.b32.xlu0 %v1757, 96
        %v1788 = vpop.permute.xlu0 %1787
        %v1790 = vsel %vm1692, %v1776, 0
        %v1793 = vsel %vm1692, %v1786, 0
        %v1796 = vsel %vm1692, %v1788, 0
        %1798 = vmatprep.subr.bf16.mxu0 0
        %1799 = vmatpush1.bf16.xpose.msra.mxu0 %v1793
        %1800 = vmatprep.subr.bf16.mxu0 0
        %1801 = vmatpush1.bf16.xpose.msra.mxu0 %v1796
        %1802 = vmatprep.subr.bf16.mxu0 0
        %1803 = vmatpush1.bf16.xpose.msra.mxu0 0
        %1804 = vmatprep.subr.bf16.mxu0 0
        %1805 = vmatpush1.bf16.xpose.msra.mxu0 0
        %1806 = vmatprep.subr.bf16.mxu0 0
        %1807 = vmatpush1.bf16.xpose.msra.mxu0 0
        %1808 = vmatprep.subr.bf16.mxu0 0
        %1809 = vmatpush1.bf16.xpose.msra.mxu0 0
        %1810 = vmatprep.subr.bf16.mxu0 0
        %1811 = vmatpush1.bf16.xpose.msra.mxu0 0
        %1812 = vmatprep.subr.bf16.mxu0 0
        %1813 = vmatpush1.bf16.xpose.msra.mxu0 0
        %1814 = vmatprep.subr.bf16.mxu0 0
        %1815 = vmatpush1.bf16.xpose.msra.mxu0 0
        %1816 = vmatprep.subr.bf16.mxu0 0
        %1817 = vmatpush1.bf16.xpose.msra.mxu0 0
        %1818 = vmatprep.subr.bf16.mxu0 0
        %1819 = vmatpush1.bf16.xpose.msra.mxu0 0
        %1820 = vmatprep.subr.bf16.mxu0 0
        %1821 = vmatpush1.bf16.xpose.msra.mxu0 0
        %1822 = vmatprep.subr.bf16.mxu0 0
        %1823 = vmatpush1.bf16.xpose.msra.mxu0 0
        %1824 = vmatprep.subr.bf16.mxu0 0
        %1825 = vmatpush1.bf16.xpose.msra.mxu0 0
        %1826 = vmatprep.subr.bf16.mxu0 0
        %1827 = vmatpush1.bf16.xpose.msra.mxu0 0
        %1828 = vmatprep.subr.bf16.mxu0 0
        %1829 = vmatpush1.bf16.xpose.msra.mxu0 0
        %1830 = vmatprep.mubr.bf16.mxu0 0
        %1831 = vmatmul.mubr.bf16.gmra.mrb[0].mxu0 %v1790
        %v1832 = vpop.f32.mrb[0].mxu0
        %v1833 = vadd.f32 %v1781, %v1832
        %v1834 = vpop.f32.mrb[0].mxu0
        %v1835 = vpop.f32.mrb[0].mxu0
        %v1836 = vpop.f32.mrb[0].mxu0
        %1837 = vdwg.mxu0
        %v1838 = vsel %vm1692, %v1833, -inf
        %1839 = vmax.xlane.f32.xlu0 %v1838
        %v1840 = vpop.xlane.xlu0 %1839
        %v1841 = vsub.f32 %v1833, %v1840
        %v1842 = vmul.f32 %v1841, 1.442695
        %v1843 = vpow.pop %v1842
        %v1845 = vsel %vm1692, %v1843, 0
        %1847 = vmatprep.subr.mxu0 0.0
        %1848 = vmatpush1.msra.mxu0 %v1459
        %1849 = vmatprep.subr.mxu0 0.0
        %1850 = vmatpush1.msra.mxu0 %v1460
        %1851 = vmatprep.subr.mxu0 0.0
        %1852 = vmatpush1.msra.mxu0 %v1461
        %1853 = vmatprep.subr.mxu0 0.0
        %1854 = vmatpush1.msra.mxu0 %v1462
        %1855 = vmatprep.subr.mxu0 0.0
        %1856 = vmatpush1.msra.mxu0 0.0
        %1857 = vmatprep.subr.mxu0 0.0
        %1858 = vmatpush1.msra.mxu0 0.0
        %1859 = vmatprep.subr.mxu0 0.0
        %1860 = vmatpush1.msra.mxu0 0.0
        %1861 = vmatprep.subr.mxu0 0.0
        %1862 = vmatpush1.msra.mxu0 0.0
        %1863 = vmatprep.subr.mxu0 0.0
        %1864 = vmatpush1.msra.mxu0 0.0
        %1865 = vmatprep.subr.mxu0 0.0
        %1866 = vmatpush1.msra.mxu0 0.0
        %1867 = vmatprep.subr.mxu0 0.0
        %1868 = vmatpush1.msra.mxu0 0.0
        %1869 = vmatprep.subr.mxu0 0.0
        %1870 = vmatpush1.msra.mxu0 0.0
        %1871 = vmatprep.subr.mxu0 0.0
        %1872 = vmatpush1.msra.mxu0 0.0
        %1873 = vmatprep.subr.mxu0 0.0
        %1874 = vmatpush1.msra.mxu0 0.0
        %1875 = vmatprep.subr.mxu0 0.0
        %1876 = vmatpush1.msra.mxu0 0.0
        %1877 = vmatprep.subr.mxu0 0.0
        %1878 = vmatpush1.msra.mxu0 0.0
        %1879 = vmatprep.subr.mxu0 0.0
        %1880 = vmatpush1.msra.mxu0 0.0
        %1881 = vmatprep.subr.mxu0 0.0
        %1882 = vmatpush1.msra.mxu0 0.0
        %1883 = vmatprep.subr.mxu0 0.0
        %1884 = vmatpush1.msra.mxu0 0.0
        %1885 = vmatprep.subr.mxu0 0.0
        %1886 = vmatpush1.msra.mxu0 0.0
        %1887 = vmatprep.subr.mxu0 0.0
        %1888 = vmatpush1.msra.mxu0 0.0
        %1889 = vmatprep.subr.mxu0 0.0
        %1890 = vmatpush1.msra.mxu0 0.0
        %1891 = vmatprep.subr.mxu0 0.0
        %1892 = vmatpush1.msra.mxu0 0.0
        %1893 = vmatprep.subr.mxu0 0.0
        %1894 = vmatpush1.msra.mxu0 0.0
        %1895 = vmatprep.subr.mxu0 0.0
        %1896 = vmatpush1.msra.mxu0 0.0
        %1897 = vmatprep.subr.mxu0 0.0
        %1898 = vmatpush1.msra.mxu0 0.0
        %1899 = vmatprep.subr.mxu0 0.0
        %1900 = vmatpush1.msra.mxu0 0.0
        %1901 = vmatprep.subr.mxu0 0.0
        %1902 = vmatpush1.msra.mxu0 0.0
        %1903 = vmatprep.subr.mxu0 0.0
        %1904 = vmatpush1.msra.mxu0 0.0
        %1905 = vmatprep.subr.mxu0 0.0
        %1906 = vmatpush1.msra.mxu0 0.0
        %1907 = vmatprep.subr.mxu0 0.0
        %1908 = vmatpush1.msra.mxu0 0.0
        %1909 = vmatprep.subr.mxu0 0.0
        %1910 = vmatpush1.msra.mxu0 0.0
        %1911 = vmatprep.mubr.f32.mxu0 0.0
        %1912 = vmatmul.mubr.f32.gmra.mrb[0].mxu0 %v1845
        %v1913 = vpop.f32.mrb[0].mxu0
        %v1914 = vadd.f32 0.0, %v1913
        %v1915 = vpop.f32.mrb[0].mxu0
        %1916 = vdwg.mxu0
        %v1917 = vrcp.pop %v1914
        %v1918 = vmul.f32 %v1843, %v1917
        %v1919 = vpack.c.bf16 %v1918, %v1918
        %1922 = vrot.lane.b32.xlu0 %v1774, 64
        %v1923 = vpop.permute.xlu0 %1922
        %1924 = vrot.lane.b32.xlu0 %v1775, 64
        %v1925 = vpop.permute.xlu0 %1924
        %v1929 = vsel %vm1692, %v1919, 0
        %1931 = vmatprep.subr.bf16.mxu0 0
        %1932 = vmatpush1.bf16.msra.mxu0 %v1923
        %1933 = vmatprep.subr.bf16.mxu0 0
        %1934 = vmatpush1.bf16.msra.mxu0 %v1925
        %1935 = vmatprep.subr.bf16.mxu0 0
        %1936 = vmatpush1.bf16.msra.mxu0 0
        %1937 = vmatprep.subr.bf16.mxu0 0
        %1938 = vmatpush1.bf16.msra.mxu0 0
        %1939 = vmatprep.subr.bf16.mxu0 0
        %1940 = vmatpush1.bf16.msra.mxu0 0
        %1941 = vmatprep.subr.bf16.mxu0 0
        %1942 = vmatpush1.bf16.msra.mxu0 0
        %1943 = vmatprep.subr.bf16.mxu0 0
        %1944 = vmatpush1.bf16.msra.mxu0 0
        %1945 = vmatprep.subr.bf16.mxu0 0
        %1946 = vmatpush1.bf16.msra.mxu0 0
        %1947 = vmatprep.subr.bf16.mxu0 0
        %1948 = vmatpush1.bf16.msra.mxu0 0
        %1949 = vmatprep.subr.bf16.mxu0 0
        %1950 = vmatpush1.bf16.msra.mxu0 0
        %1951 = vmatprep.subr.bf16.mxu0 0
        %1952 = vmatpush1.bf16.msra.mxu0 0
        %1953 = vmatprep.subr.bf16.mxu0 0
        %1954 = vmatpush1.bf16.msra.mxu0 0
        %1955 = vmatprep.subr.bf16.mxu0 0
        %1956 = vmatpush1.bf16.msra.mxu0 0
        %1957 = vmatprep.subr.bf16.mxu0 0
        %1958 = vmatpush1.bf16.msra.mxu0 0
        %1959 = vmatprep.subr.bf16.mxu0 0
        %1960 = vmatpush1.bf16.msra.mxu0 0
        %1961 = vmatprep.subr.bf16.mxu0 0
        %1962 = vmatpush1.bf16.msra.mxu0 0
        %1963 = vmatprep.mubr.bf16.mxu0 0
        %1964 = vmatmul.mubr.bf16.gmra.mrb[0].mxu0 %v1929
        %v1965 = vpop.f32.mrb[0].mxu0
        %v1966 = vadd.f32 0.0, %v1965
        %v1967 = vpop.f32.mrb[0].mxu0
        %v1968 = vpop.f32.mrb[0].mxu0
        %v1969 = vpop.f32.mrb[0].mxu0
        %1970 = vdwg.mxu0
        %v1971 = vpack.c.bf16 %v1966, %v1966
        %v1973 = vlaneseq
        %v1974 = vshrl.u32 %v1973, 7
        %v1975 = vsub.s32 0, %v1974
        %v1976 = vrot.slane %v1654, %v1975
        %v1982 = vunpack.c.l.b16 %v1650
        %v1983 = vunpack.c.l.b16 %v1651
        %v1984 = vunpack.c.l.b16 %v1652
        %v1985 = vunpack.c.l.b16 %v1653
        %v1986 = vpack.c.b16 %v1983, %v1982
        %v1987 = vpack.c.b16 %v1985, %v1984
        %v1991 = vsel %vm1692, %v1971, 0
        %1993 = vmatprep.subr.bf16.mxu0 0
        %1994 = vmatpush1.bf16.msra.mxu0 %v1986
        %1995 = vmatprep.subr.bf16.mxu0 0
        %1996 = vmatpush1.bf16.msra.mxu0 %v1987
        %1997 = vmatprep.subr.bf16.mxu0 0
        %1998 = vmatpush1.bf16.msra.mxu0 0
        %1999 = vmatprep.subr.bf16.mxu0 0
        %2000 = vmatpush1.bf16.msra.mxu0 0
        %2001 = vmatprep.subr.bf16.mxu0 0
        %2002 = vmatpush1.bf16.msra.mxu0 0
        %2003 = vmatprep.subr.bf16.mxu0 0
        %2004 = vmatpush1.bf16.msra.mxu0 0
        %2005 = vmatprep.subr.bf16.mxu0 0
        %2006 = vmatpush1.bf16.msra.mxu0 0
        %2007 = vmatprep.subr.bf16.mxu0 0
        %2008 = vmatpush1.bf16.msra.mxu0 0
        %2009 = vmatprep.subr.bf16.mxu0 0
        %2010 = vmatpush1.bf16.msra.mxu0 0
        %2011 = vmatprep.subr.bf16.mxu0 0
        %2012 = vmatpush1.bf16.msra.mxu0 0
        %2013 = vmatprep.subr.bf16.mxu0 0
        %2014 = vmatpush1.bf16.msra.mxu0 0
        %2015 = vmatprep.subr.bf16.mxu0 0
        %2016 = vmatpush1.bf16.msra.mxu0 0
        %2017 = vmatprep.subr.bf16.mxu0 0
        %2018 = vmatpush1.bf16.msra.mxu0 0
        %2019 = vmatprep.subr.bf16.mxu0 0
        %2020 = vmatpush1.bf16.msra.mxu0 0
        %2021 = vmatprep.subr.bf16.mxu0 0
        %2022 = vmatpush1.bf16.msra.mxu0 0
        %2023 = vmatprep.subr.bf16.mxu0 0
        %2024 = vmatpush1.bf16.msra.mxu0 0
        %2025 = vmatprep.mubr.bf16.mxu0 0
        %2026 = vmatmul.mubr.bf16.gmra.mrb[0].mxu0 %v1991
        %v2027 = vpop.f32.mrb[0].mxu0
        %v2028 = vadd.f32 %v1976, %v2027
        %v2029 = vpop.f32.mrb[0].mxu0
        %v2030 = vpop.f32.mrb[0].mxu0
        %v2031 = vpop.f32.mrb[0].mxu0
        %2032 = vdwg.mxu0
        %v2033 = vadd.f32 %v1555, %v2028
        %v2034 = vsel %vm1692, %v2033, 0.0
        %2035 = vadd.xlane.f32.xlu0 %v2034
        %v2036 = vpop.xlane.xlu0 %2035
        %v2037 = vrcp.pop 32.0
        %v2038 = vmul.f32 %v2036, %v2037
        %v2039 = vsub.f32 %v2033, %v2038
        %v2040 = vmul.f32 %v2039, %v2039
        %v2041 = vsel %vm1692, %v2040, 0.0
        %2042 = vadd.xlane.f32.xlu0 %v2041
        %v2043 = vpop.xlane.xlu0 %2042
        %v2044 = vmul.f32 %v2043, %v2037
        %v2045 = vadd.f32 %v2044, 1e-05
        %v2046 = vrsqrt.pop %v2045
        %v2047 = vmul.f32 %v2039, %v2046
        %v2049 = vlaneseq
        %v2050 = vshrl.u32 %v2049, 7
        %v2051 = vsub.s32 0, %v2050
        %v2052 = vrot.slane %v1669, %v2051
        %v2054 = vmul.f32 %v2047, %v2052
        %v2056 = vlaneseq
        %v2057 = vshrl.u32 %v2056, 7
        %v2058 = vsub.s32 0, %v2057
        %v2059 = vrot.slane %v1670, %v2058
        %v2061 = vadd.f32 %v2054, %v2059
        %v2062 = vpack.c.bf16 %v2061, %v2061
        %v2064 = vlaneseq
        %v2065 = vshrl.u32 %v2064, 7
        %v2066 = vsub.s32 0, %v2065
        %v2067 = vrot.slane %v1659, %v2066
        %v2073 = vunpack.c.l.b16 %v1655
        %v2074 = vunpack.c.l.b16 %v1656
        %v2075 = vunpack.c.l.b16 %v1657
        %v2076 = vunpack.c.l.b16 %v1658
        %v2077 = vpack.c.b16 %v2074, %v2073
        %v2078 = vpack.c.b16 %v2076, %v2075
        %v2082 = vsel %vm1692, %v2062, 0
        %2084 = vmatprep.subr.bf16.mxu0 0
        %2085 = vmatpush1.bf16.msra.mxu0 %v2077
        %2086 = vmatprep.subr.bf16.mxu0 0
        %2087 = vmatpush1.bf16.msra.mxu0 %v2078
        %2088 = vmatprep.subr.bf16.mxu0 0
        %2089 = vmatpush1.bf16.msra.mxu0 0
        %2090 = vmatprep.subr.bf16.mxu0 0
        %2091 = vmatpush1.bf16.msra.mxu0 0
        %2092 = vmatprep.subr.bf16.mxu0 0
        %2093 = vmatpush1.bf16.msra.mxu0 0
        %2094 = vmatprep.subr.bf16.mxu0 0
        %2095 = vmatpush1.bf16.msra.mxu0 0
        %2096 = vmatprep.subr.bf16.mxu0 0
        %2097 = vmatpush1.bf16.msra.mxu0 0
        %2098 = vmatprep.subr.bf16.mxu0 0
        %2099 = vmatpush1.bf16.msra.mxu0 0
        %2100 = vmatprep.subr.bf16.mxu0 0
        %2101 = vmatpush1.bf16.msra.mxu0 0
        %2102 = vmatprep.subr.bf16.mxu0 0
        %2103 = vmatpush1.bf16.msra.mxu0 0
        %2104 = vmatprep.subr.bf16.mxu0 0
        %2105 = vmatpush1.bf16.msra.mxu0 0
        %2106 = vmatprep.subr.bf16.mxu0 0
        %2107 = vmatpush1.bf16.msra.mxu0 0
        %2108 = vmatprep.subr.bf16.mxu0 0
        %2109 = vmatpush1.bf16.msra.mxu0 0
        %2110 = vmatprep.subr.bf16.mxu0 0
        %2111 = vmatpush1.bf16.msra.mxu0 0
        %2112 = vmatprep.subr.bf16.mxu0 0
        %2113 = vmatpush1.bf16.msra.mxu0 0
        %2114 = vmatprep.subr.bf16.mxu0 0
        %2115 = vmatpush1.bf16.msra.mxu0 0
        %2116 = vmatprep.mubr.bf16.mxu0 0
        %2117 = vmatmul.mubr.bf16.gmra.mrb[0].mxu0 %v2082
        %v2118 = vpop.f32.mrb[0].mxu0
        %v2119 = vadd.f32 %v2067, %v2118
        %v2120 = vpop.f32.mrb[0].mxu0
        %v2121 = vpop.f32.mrb[0].mxu0
        %v2122 = vpop.f32.mrb[0].mxu0
        %2123 = vdwg.mxu0
        %v2124 = vmax.f32 %v2119, 0.0
        %v2125 = vpack.c.bf16 %v2124, %v2124
        %v2127 = vlaneseq
        %v2128 = vshrl.u32 %v2127, 7
        %v2129 = vsub.s32 0, %v2128
        %v2130 = vrot.slane %v1668, %v2129
        %v2140 = vunpack.c.l.b16 %v1660
        %v2141 = vunpack.c.l.b16 %v1661
        %v2142 = vunpack.c.l.b16 %v1662
        %v2143 = vunpack.c.l.b16 %v1663
        %v2144 = vunpack.c.l.b16 %v1664
        %v2145 = vunpack.c.l.b16 %v1665
        %v2146 = vunpack.c.l.b16 %v1666
        %v2147 = vunpack.c.l.b16 %v1667
        %v2148 = vpack.c.b16 %v2141, %v2140
        %v2149 = vpack.c.b16 %v2143, %v2142
        %v2150 = vpack.c.b16 %v2145, %v2144
        %v2151 = vpack.c.b16 %v2147, %v2146
        %vm2156 = vcmask 523264
        %v2158 = vsel %vm2156, %v2125, 0
        %2160 = vmatprep.subr.bf16.mxu0 0
        %2161 = vmatpush1.bf16.msra.mxu0 %v2148
        %2162 = vmatprep.subr.bf16.mxu0 0
        %2163 = vmatpush1.bf16.msra.mxu0 %v2149
        %2164 = vmatprep.subr.bf16.mxu0 0
        %2165 = vmatpush1.bf16.msra.mxu0 %v2150
        %2166 = vmatprep.subr.bf16.mxu0 0
        %2167 = vmatpush1.bf16.msra.mxu0 %v2151
        %2168 = vmatprep.subr.bf16.mxu0 0
        %2169 = vmatpush1.bf16.msra.mxu0 0
        %2170 = vmatprep.subr.bf16.mxu0 0
        %2171 = vmatpush1.bf16.msra.mxu0 0
        %2172 = vmatprep.subr.bf16.mxu0 0
        %2173 = vmatpush1.bf16.msra.mxu0 0
        %2174 = vmatprep.subr.bf16.mxu0 0
        %2175 = vmatpush1.bf16.msra.mxu0 0
        %2176 = vmatprep.subr.bf16.mxu0 0
        %2177 = vmatpush1.bf16.msra.mxu0 0
        %2178 = vmatprep.subr.bf16.mxu0 0
        %2179 = vmatpush1.bf16.msra.mxu0 0
        %2180 = vmatprep.subr.bf16.mxu0 0
        %2181 = vmatpush1.bf16.msra.mxu0 0
        %2182 = vmatprep.subr.bf16.mxu0 0
        %2183 = vmatpush1.bf16.msra.mxu0 0
        %2184 = vmatprep.subr.bf16.mxu0 0
        %2185 = vmatpush1.bf16.msra.mxu0 0
        %2186 = vmatprep.subr.bf16.mxu0 0
        %2187 = vmatpush1.bf16.msra.mxu0 0
        %2188 = vmatprep.subr.bf16.mxu0 0
        %2189 = vmatpush1.bf16.msra.mxu0 0
        %2190 = vmatprep.subr.bf16.mxu0 0
        %2191 = vmatpush1.bf16.msra.mxu0 0
        %2192 = vmatprep.mubr.bf16.mxu0 0
        %2193 = vmatmul.mubr.bf16.gmra.mrb[0].mxu0 %v2158
        %v2194 = vpop.f32.mrb[0].mxu0
        %v2195 = vadd.f32 %v2130, %v2194
        %v2196 = vpop.f32.mrb[0].mxu0
        %v2197 = vpop.f32.mrb[0].mxu0
        %v2198 = vpop.f32.mrb[0].mxu0
        %2199 = vdwg.mxu0
        %v2200 = vadd.f32 %v2061, %v2195
        %v2201 = vsel %vm1692, %v2200, 0.0
        %2202 = vadd.xlane.f32.xlu0 %v2201
        %v2203 = vpop.xlane.xlu0 %2202
        %v2204 = vmul.f32 %v2203, %v2037
        %v2205 = vsub.f32 %v2200, %v2204
        %v2206 = vmul.f32 %v2205, %v2205
        %v2207 = vsel %vm1692, %v2206, 0.0
        %2208 = vadd.xlane.f32.xlu0 %v2207
        %v2209 = vpop.xlane.xlu0 %2208
        %v2210 = vmul.f32 %v2209, %v2037
        %v2211 = vadd.f32 %v2210, 1e-05
        %v2212 = vrsqrt.pop %v2211
        %v2213 = vmul.f32 %v2205, %v2212
        %v2215 = vlaneseq
        %v2216 = vshrl.u32 %v2215, 7
        %v2217 = vsub.s32 0, %v2216
        %v2218 = vrot.slane %v1671, %v2217
        %v2220 = vmul.f32 %v2213, %v2218
        %v2222 = vlaneseq
        %v2223 = vshrl.u32 %v2222, 7
        %v2224 = vsub.s32 0, %v2223
        %v2225 = vrot.slane %v1672, %v2224
        %v2227 = vadd.f32 %v2220, %v2225
        %s2228 = scalar_lea.vmem %s23, 16
        %v2229 = vld [vmem:[%s2228] sm:$0xf]
        %v2230 = vld [vmem:[%s2228 + $0x4] sm:$0xf]
        %v2231 = vld [vmem:[%s2228 + $0x8] sm:$0xf]
        %v2232 = vld [vmem:[%s2228 + $0xc] sm:$0xf]
        %s2233 = scalar_lea.vmem %s25, 1
        %v2234 = vld [vmem:[%s2233] sm:$0x1]
        %s2235 = scalar_lea.vmem %s27, 16
        %v2236 = vld [vmem:[%s2235] sm:$0xf]
        %v2237 = vld [vmem:[%s2235 + $0x4] sm:$0xf]
        %v2238 = vld [vmem:[%s2235 + $0x8] sm:$0xf]
        %v2239 = vld [vmem:[%s2235 + $0xc] sm:$0xf]
        %s2240 = scalar_lea.vmem %s29, 1
        %v2241 = vld [vmem:[%s2240] sm:$0x1]
        %s2242 = scalar_lea.vmem %s31, 16
        %v2243 = vld [vmem:[%s2242] sm:$0xf]
        %v2244 = vld [vmem:[%s2242 + $0x4] sm:$0xf]
        %v2245 = vld [vmem:[%s2242 + $0x8] sm:$0xf]
        %v2246 = vld [vmem:[%s2242 + $0xc] sm:$0xf]
        %s2247 = scalar_lea.vmem %s33, 1
        %v2248 = vld [vmem:[%s2247] sm:$0x1]
        %s2249 = scalar_lea.vmem %s35, 32
        %v2250 = vld [vmem:[%s2249] sm:$0xf]
        %v2251 = vld [vmem:[%s2249 + $0x4] sm:$0xf]
        %v2252 = vld [vmem:[%s2249 + $0x8] sm:$0xf]
        %v2253 = vld [vmem:[%s2249 + $0xc] sm:$0xf]
        %v2254 = vld [vmem:[%s2249 + $0x10] sm:$0xf]
        %v2255 = vld [vmem:[%s2249 + $0x14] sm:$0xf]
        %v2256 = vld [vmem:[%s2249 + $0x18] sm:$0xf]
        %v2257 = vld [vmem:[%s2249 + $0x1c] sm:$0xf]
        %s2258 = scalar_lea.vmem %s37, 1
        %v2259 = vld [vmem:[%s2258] sm:$0x1]
        %s2260 = scalar_lea.vmem %s39, 1
        %v2261 = vld [vmem:[%s2260] sm:$0x1]
        %s2262 = scalar_lea.vmem %s41, 1
        %v2263 = vld [vmem:[%s2262] sm:$0x1]
        %s2264 = scalar_lea.vmem %s43, 1
        %v2265 = vld [vmem:[%s2264] sm:$0x1]
        %s2266 = scalar_lea.vmem %s45, 1
        %v2267 = vld [vmem:[%s2266] sm:$0x1]
        %v2268 = vpack.c.bf16 %v2227, %v2227
        %v2270 = vlaneseq
        %v2271 = vshrl.u32 %v2270, 7
        %v2272 = vsub.s32 0, %v2271
        %v2273 = vrot.slane %v2234, %v2272
        %v2279 = vunpack.c.l.b16 %v2229
        %v2280 = vunpack.c.l.b16 %v2230
        %v2281 = vunpack.c.l.b16 %v2231
        %v2282 = vunpack.c.l.b16 %v2232
        %v2283 = vpack.c.b16 %v2280, %v2279
        %v2284 = vpack.c.b16 %v2282, %v2281
        %v2288 = vsel %vm1692, %v2268, 0
        %2290 = vmatprep.subr.bf16.mxu0 0
        %2291 = vmatpush1.bf16.msra.mxu0 %v2283
        %2292 = vmatprep.subr.bf16.mxu0 0
        %2293 = vmatpush1.bf16.msra.mxu0 %v2284
        %2294 = vmatprep.subr.bf16.mxu0 0
        %2295 = vmatpush1.bf16.msra.mxu0 0
        %2296 = vmatprep.subr.bf16.mxu0 0
        %2297 = vmatpush1.bf16.msra.mxu0 0
        %2298 = vmatprep.subr.bf16.mxu0 0
        %2299 = vmatpush1.bf16.msra.mxu0 0
        %2300 = vmatprep.subr.bf16.mxu0 0
        %2301 = vmatpush1.bf16.msra.mxu0 0
        %2302 = vmatprep.subr.bf16.mxu0 0
        %2303 = vmatpush1.bf16.msra.mxu0 0
        %2304 = vmatprep.subr.bf16.mxu0 0
        %2305 = vmatpush1.bf16.msra.mxu0 0
        %2306 = vmatprep.subr.bf16.mxu0 0
        %2307 = vmatpush1.bf16.msra.mxu0 0
        %2308 = vmatprep.subr.bf16.mxu0 0
        %2309 = vmatpush1.bf16.msra.mxu0 0
        %2310 = vmatprep.subr.bf16.mxu0 0
        %2311 = vmatpush1.bf16.msra.mxu0 0
        %2312 = vmatprep.subr.bf16.mxu0 0
        %2313 = vmatpush1.bf16.msra.mxu0 0
        %2314 = vmatprep.subr.bf16.mxu0 0
        %2315 = vmatpush1.bf16.msra.mxu0 0
        %2316 = vmatprep.subr.bf16.mxu0 0
        %2317 = vmatpush1.bf16.msra.mxu0 0
        %2318 = vmatprep.subr.bf16.mxu0 0
        %2319 = vmatpush1.bf16.msra.mxu0 0
        %2320 = vmatprep.subr.bf16.mxu0 0
        %2321 = vmatpush1.bf16.msra.mxu0 0
        %2322 = vmatprep.mubr.bf16.mxu0 0
        %2323 = vmatmul.mubr.bf16.gmra.mrb[0].mxu0 %v2288
        %v2324 = vpop.f32.mrb[0].mxu0
        %v2325 = vadd.f32 %v2273, %v2324
        %v2326 = vpop.f32.mrb[0].mxu0
        %v2327 = vpop.f32.mrb[0].mxu0
        %v2328 = vpop.f32.mrb[0].mxu0
        %2329 = vdwg.mxu0
        %v2330 = vmul.f32 %v2325, %v1741
        %v2331 = vmul.f32 %v2325, %v1743
        %v2332 = vmul.f32 %v2325, %v1745
        %v2333 = vmul.f32 %v2325, %v1747
        %v2334 = vpack.c.bf16 %v2331, %v2330
        %v2335 = vpack.c.bf16 %v2333, %v2332
        %v2336 = vmul.f32 %v2325, %v1759
        %v2337 = vmul.f32 %v2325, %v1761
        %v2338 = vmul.f32 %v2325, %v1763
        %v2339 = vmul.f32 %v2325, %v1765
        %v2340 = vpack.c.bf16 %v2337, %v2336
        %v2341 = vpack.c.bf16 %v2339, %v2338
        %v2342 = vpack.c.bf16 %v2325, %v2325
        %2345 = vrot.lane.b32.xlu0 %v2334, 96
        %v2346 = vpop.permute.xlu0 %2345
        %2347 = vrot.lane.b32.xlu0 %v2335, 96
        %v2348 = vpop.permute.xlu0 %2347
        %v2350 = vsel %vm1692, %v2342, 0
        %v2353 = vsel %vm1692, %v2346, 0
        %v2356 = vsel %vm1692, %v2348, 0
        %2358 = vmatprep.subr.bf16.mxu0 0
        %2359 = vmatpush1.bf16.xpose.msra.mxu0 %v2353
        %2360 = vmatprep.subr.bf16.mxu0 0
        %2361 = vmatpush1.bf16.xpose.msra.mxu0 %v2356
        %2362 = vmatprep.subr.bf16.mxu0 0
        %2363 = vmatpush1.bf16.xpose.msra.mxu0 0
        %2364 = vmatprep.subr.bf16.mxu0 0
        %2365 = vmatpush1.bf16.xpose.msra.mxu0 0
        %2366 = vmatprep.subr.bf16.mxu0 0
        %2367 = vmatpush1.bf16.xpose.msra.mxu0 0
        %2368 = vmatprep.subr.bf16.mxu0 0
        %2369 = vmatpush1.bf16.xpose.msra.mxu0 0
        %2370 = vmatprep.subr.bf16.mxu0 0
        %2371 = vmatpush1.bf16.xpose.msra.mxu0 0
        %2372 = vmatprep.subr.bf16.mxu0 0
        %2373 = vmatpush1.bf16.xpose.msra.mxu0 0
        %2374 = vmatprep.subr.bf16.mxu0 0
        %2375 = vmatpush1.bf16.xpose.msra.mxu0 0
        %2376 = vmatprep.subr.bf16.mxu0 0
        %2377 = vmatpush1.bf16.xpose.msra.mxu0 0
        %2378 = vmatprep.subr.bf16.mxu0 0
        %2379 = vmatpush1.bf16.xpose.msra.mxu0 0
        %2380 = vmatprep.subr.bf16.mxu0 0
        %2381 = vmatpush1.bf16.xpose.msra.mxu0 0
        %2382 = vmatprep.subr.bf16.mxu0 0
        %2383 = vmatpush1.bf16.xpose.msra.mxu0 0
        %2384 = vmatprep.subr.bf16.mxu0 0
        %2385 = vmatpush1.bf16.xpose.msra.mxu0 0
        %2386 = vmatprep.subr.bf16.mxu0 0
        %2387 = vmatpush1.bf16.xpose.msra.mxu0 0
        %2388 = vmatprep.subr.bf16.mxu0 0
        %2389 = vmatpush1.bf16.xpose.msra.mxu0 0
        %2390 = vmatprep.mubr.bf16.mxu0 0
        %2391 = vmatmul.mubr.bf16.gmra.mrb[0].mxu0 %v2350
        %v2392 = vpop.f32.mrb[0].mxu0
        %v2393 = vadd.f32 %v1781, %v2392
        %v2394 = vpop.f32.mrb[0].mxu0
        %v2395 = vpop.f32.mrb[0].mxu0
        %v2396 = vpop.f32.mrb[0].mxu0
        %2397 = vdwg.mxu0
        %v2398 = vsel %vm1692, %v2393, -inf
        %2399 = vmax.xlane.f32.xlu0 %v2398
        %v2400 = vpop.xlane.xlu0 %2399
        %v2401 = vsub.f32 %v2393, %v2400
        %v2402 = vmul.f32 %v2401, 1.442695
        %v2403 = vpow.pop %v2402
        %v2405 = vsel %vm1692, %v2403, 0
        %2407 = vmatprep.subr.mxu0 0.0
        %2408 = vmatpush1.msra.mxu0 %v1459
        %2409 = vmatprep.subr.mxu0 0.0
        %2410 = vmatpush1.msra.mxu0 %v1460
        %2411 = vmatprep.subr.mxu0 0.0
        %2412 = vmatpush1.msra.mxu0 %v1461
        %2413 = vmatprep.subr.mxu0 0.0
        %2414 = vmatpush1.msra.mxu0 %v1462
        %2415 = vmatprep.subr.mxu0 0.0
        %2416 = vmatpush1.msra.mxu0 0.0
        %2417 = vmatprep.subr.mxu0 0.0
        %2418 = vmatpush1.msra.mxu0 0.0
        %2419 = vmatprep.subr.mxu0 0.0
        %2420 = vmatpush1.msra.mxu0 0.0
        %2421 = vmatprep.subr.mxu0 0.0
        %2422 = vmatpush1.msra.mxu0 0.0
        %2423 = vmatprep.subr.mxu0 0.0
        %2424 = vmatpush1.msra.mxu0 0.0
        %2425 = vmatprep.subr.mxu0 0.0
        %2426 = vmatpush1.msra.mxu0 0.0
        %2427 = vmatprep.subr.mxu0 0.0
        %2428 = vmatpush1.msra.mxu0 0.0
        %2429 = vmatprep.subr.mxu0 0.0
        %2430 = vmatpush1.msra.mxu0 0.0
        %2431 = vmatprep.subr.mxu0 0.0
        %2432 = vmatpush1.msra.mxu0 0.0
        %2433 = vmatprep.subr.mxu0 0.0
        %2434 = vmatpush1.msra.mxu0 0.0
        %2435 = vmatprep.subr.mxu0 0.0
        %2436 = vmatpush1.msra.mxu0 0.0
        %2437 = vmatprep.subr.mxu0 0.0
        %2438 = vmatpush1.msra.mxu0 0.0
        %2439 = vmatprep.subr.mxu0 0.0
        %2440 = vmatpush1.msra.mxu0 0.0
        %2441 = vmatprep.subr.mxu0 0.0
        %2442 = vmatpush1.msra.mxu0 0.0
        %2443 = vmatprep.subr.mxu0 0.0
        %2444 = vmatpush1.msra.mxu0 0.0
        %2445 = vmatprep.subr.mxu0 0.0
        %2446 = vmatpush1.msra.mxu0 0.0
        %2447 = vmatprep.subr.mxu0 0.0
        %2448 = vmatpush1.msra.mxu0 0.0
        %2449 = vmatprep.subr.mxu0 0.0
        %2450 = vmatpush1.msra.mxu0 0.0
        %2451 = vmatprep.subr.mxu0 0.0
        %2452 = vmatpush1.msra.mxu0 0.0
        %2453 = vmatprep.subr.mxu0 0.0
        %2454 = vmatpush1.msra.mxu0 0.0
        %2455 = vmatprep.subr.mxu0 0.0
        %2456 = vmatpush1.msra.mxu0 0.0
        %2457 = vmatprep.subr.mxu0 0.0
        %2458 = vmatpush1.msra.mxu0 0.0
        %2459 = vmatprep.subr.mxu0 0.0
        %2460 = vmatpush1.msra.mxu0 0.0
        %2461 = vmatprep.subr.mxu0 0.0
        %2462 = vmatpush1.msra.mxu0 0.0
        %2463 = vmatprep.subr.mxu0 0.0
        %2464 = vmatpush1.msra.mxu0 0.0
        %2465 = vmatprep.subr.mxu0 0.0
        %2466 = vmatpush1.msra.mxu0 0.0
        %2467 = vmatprep.subr.mxu0 0.0
        %2468 = vmatpush1.msra.mxu0 0.0
        %2469 = vmatprep.subr.mxu0 0.0
        %2470 = vmatpush1.msra.mxu0 0.0
        %2471 = vmatprep.mubr.f32.mxu0 0.0
        %2472 = vmatmul.mubr.f32.gmra.mrb[0].mxu0 %v2405
        %v2473 = vpop.f32.mrb[0].mxu0
        %v2474 = vadd.f32 0.0, %v2473
        %v2475 = vpop.f32.mrb[0].mxu0
        %2476 = vdwg.mxu0
        %v2477 = vrcp.pop %v2474
        %v2478 = vmul.f32 %v2403, %v2477
        %v2479 = vpack.c.bf16 %v2478, %v2478
        %2482 = vrot.lane.b32.xlu0 %v2340, 64
        %v2483 = vpop.permute.xlu0 %2482
        %2484 = vrot.lane.b32.xlu0 %v2341, 64
        %v2485 = vpop.permute.xlu0 %2484
        %v2489 = vsel %vm1692, %v2479, 0
        %2491 = vmatprep.subr.bf16.mxu0 0
        %2492 = vmatpush1.bf16.msra.mxu0 %v2483
        %2493 = vmatprep.subr.bf16.mxu0 0
        %2494 = vmatpush1.bf16.msra.mxu0 %v2485
        %2495 = vmatprep.subr.bf16.mxu0 0
        %2496 = vmatpush1.bf16.msra.mxu0 0
        %2497 = vmatprep.subr.bf16.mxu0 0
        %2498 = vmatpush1.bf16.msra.mxu0 0
        %2499 = vmatprep.subr.bf16.mxu0 0
        %2500 = vmatpush1.bf16.msra.mxu0 0
        %2501 = vmatprep.subr.bf16.mxu0 0
        %2502 = vmatpush1.bf16.msra.mxu0 0
        %2503 = vmatprep.subr.bf16.mxu0 0
        %2504 = vmatpush1.bf16.msra.mxu0 0
        %2505 = vmatprep.subr.bf16.mxu0 0
        %2506 = vmatpush1.bf16.msra.mxu0 0
        %2507 = vmatprep.subr.bf16.mxu0 0
        %2508 = vmatpush1.bf16.msra.mxu0 0
        %2509 = vmatprep.subr.bf16.mxu0 0
        %2510 = vmatpush1.bf16.msra.mxu0 0
        %2511 = vmatprep.subr.bf16.mxu0 0
        %2512 = vmatpush1.bf16.msra.mxu0 0
        %2513 = vmatprep.subr.bf16.mxu0 0
        %2514 = vmatpush1.bf16.msra.mxu0 0
        %2515 = vmatprep.subr.bf16.mxu0 0
        %2516 = vmatpush1.bf16.msra.mxu0 0
        %2517 = vmatprep.subr.bf16.mxu0 0
        %2518 = vmatpush1.bf16.msra.mxu0 0
        %2519 = vmatprep.subr.bf16.mxu0 0
        %2520 = vmatpush1.bf16.msra.mxu0 0
        %2521 = vmatprep.subr.bf16.mxu0 0
        %2522 = vmatpush1.bf16.msra.mxu0 0
        %2523 = vmatprep.mubr.bf16.mxu0 0
        %2524 = vmatmul.mubr.bf16.gmra.mrb[0].mxu0 %v2489
        %v2525 = vpop.f32.mrb[0].mxu0
        %v2526 = vadd.f32 0.0, %v2525
        %v2527 = vpop.f32.mrb[0].mxu0
        %v2528 = vpop.f32.mrb[0].mxu0
        %v2529 = vpop.f32.mrb[0].mxu0
        %2530 = vdwg.mxu0
        %v2531 = vpack.c.bf16 %v2526, %v2526
        %v2533 = vlaneseq
        %v2534 = vshrl.u32 %v2533, 7
        %v2535 = vsub.s32 0, %v2534
        %v2536 = vrot.slane %v2241, %v2535
        %v2542 = vunpack.c.l.b16 %v2236
        %v2543 = vunpack.c.l.b16 %v2237
        %v2544 = vunpack.c.l.b16 %v2238
        %v2545 = vunpack.c.l.b16 %v2239
        %v2546 = vpack.c.b16 %v2543, %v2542
        %v2547 = vpack.c.b16 %v2545, %v2544
        %v2551 = vsel %vm1692, %v2531, 0
        %2553 = vmatprep.subr.bf16.mxu0 0
        %2554 = vmatpush1.bf16.msra.mxu0 %v2546
        %2555 = vmatprep.subr.bf16.mxu0 0
        %2556 = vmatpush1.bf16.msra.mxu0 %v2547
        %2557 = vmatprep.subr.bf16.mxu0 0
        %2558 = vmatpush1.bf16.msra.mxu0 0
        %2559 = vmatprep.subr.bf16.mxu0 0
        %2560 = vmatpush1.bf16.msra.mxu0 0
        %2561 = vmatprep.subr.bf16.mxu0 0
        %2562 = vmatpush1.bf16.msra.mxu0 0
        %2563 = vmatprep.subr.bf16.mxu0 0
        %2564 = vmatpush1.bf16.msra.mxu0 0
        %2565 = vmatprep.subr.bf16.mxu0 0
        %2566 = vmatpush1.bf16.msra.mxu0 0
        %2567 = vmatprep.subr.bf16.mxu0 0
        %2568 = vmatpush1.bf16.msra.mxu0 0
        %2569 = vmatprep.subr.bf16.mxu0 0
        %2570 = vmatpush1.bf16.msra.mxu0 0
        %2571 = vmatprep.subr.bf16.mxu0 0
        %2572 = vmatpush1.bf16.msra.mxu0 0
        %2573 = vmatprep.subr.bf16.mxu0 0
        %2574 = vmatpush1.bf16.msra.mxu0 0
        %2575 = vmatprep.subr.bf16.mxu0 0
        %2576 = vmatpush1.bf16.msra.mxu0 0
        %2577 = vmatprep.subr.bf16.mxu0 0
        %2578 = vmatpush1.bf16.msra.mxu0 0
        %2579 = vmatprep.subr.bf16.mxu0 0
        %2580 = vmatpush1.bf16.msra.mxu0 0
        %2581 = vmatprep.subr.bf16.mxu0 0
        %2582 = vmatpush1.bf16.msra.mxu0 0
        %2583 = vmatprep.subr.bf16.mxu0 0
        %2584 = vmatpush1.bf16.msra.mxu0 0
        %2585 = vmatprep.mubr.bf16.mxu0 0
        %2586 = vmatmul.mubr.bf16.gmra.mrb[0].mxu0 %v2551
        %v2587 = vpop.f32.mrb[0].mxu0
        %v2588 = vadd.f32 %v2536, %v2587
        %v2589 = vpop.f32.mrb[0].mxu0
        %v2590 = vpop.f32.mrb[0].mxu0
        %v2591 = vpop.f32.mrb[0].mxu0
        %2592 = vdwg.mxu0
        %v2593 = vadd.f32 %v2227, %v2588
        %v2594 = vsel %vm1692, %v2593, 0.0
        %2595 = vadd.xlane.f32.xlu0 %v2594
        %v2596 = vpop.xlane.xlu0 %2595
        %v2597 = vmul.f32 %v2596, %v2037
        %v2598 = vsub.f32 %v2593, %v2597
        %v2599 = vmul.f32 %v2598, %v2598
        %v2600 = vsel %vm1692, %v2599, 0.0
        %2601 = vadd.xlane.f32.xlu0 %v2600
        %v2602 = vpop.xlane.xlu0 %2601
        %v2603 = vmul.f32 %v2602, %v2037
        %v2604 = vadd.f32 %v2603, 1e-05
        %v2605 = vrsqrt.pop %v2604
        %v2606 = vmul.f32 %v2598, %v2605
        %v2608 = vlaneseq
        %v2609 = vshrl.u32 %v2608, 7
        %v2610 = vsub.s32 0, %v2609
        %v2611 = vrot.slane %v2261, %v2610
        %v2613 = vmul.f32 %v2606, %v2611
        %v2615 = vlaneseq
        %v2616 = vshrl.u32 %v2615, 7
        %v2617 = vsub.s32 0, %v2616
        %v2618 = vrot.slane %v2263, %v2617
        %v2620 = vadd.f32 %v2613, %v2618
        %v2621 = vpack.c.bf16 %v2620, %v2620
        %v2623 = vlaneseq
        %v2624 = vshrl.u32 %v2623, 7
        %v2625 = vsub.s32 0, %v2624
        %v2626 = vrot.slane %v2248, %v2625
        %v2632 = vunpack.c.l.b16 %v2243
        %v2633 = vunpack.c.l.b16 %v2244
        %v2634 = vunpack.c.l.b16 %v2245
        %v2635 = vunpack.c.l.b16 %v2246
        %v2636 = vpack.c.b16 %v2633, %v2632
        %v2637 = vpack.c.b16 %v2635, %v2634
        %v2641 = vsel %vm1692, %v2621, 0
        %2643 = vmatprep.subr.bf16.mxu0 0
        %2644 = vmatpush1.bf16.msra.mxu0 %v2636
        %2645 = vmatprep.subr.bf16.mxu0 0
        %2646 = vmatpush1.bf16.msra.mxu0 %v2637
        %2647 = vmatprep.subr.bf16.mxu0 0
        %2648 = vmatpush1.bf16.msra.mxu0 0
        %2649 = vmatprep.subr.bf16.mxu0 0
        %2650 = vmatpush1.bf16.msra.mxu0 0
        %2651 = vmatprep.subr.bf16.mxu0 0
        %2652 = vmatpush1.bf16.msra.mxu0 0
        %2653 = vmatprep.subr.bf16.mxu0 0
        %2654 = vmatpush1.bf16.msra.mxu0 0
        %2655 = vmatprep.subr.bf16.mxu0 0
        %2656 = vmatpush1.bf16.msra.mxu0 0
        %2657 = vmatprep.subr.bf16.mxu0 0
        %2658 = vmatpush1.bf16.msra.mxu0 0
        %2659 = vmatprep.subr.bf16.mxu0 0
        %2660 = vmatpush1.bf16.msra.mxu0 0
        %2661 = vmatprep.subr.bf16.mxu0 0
        %2662 = vmatpush1.bf16.msra.mxu0 0
        %2663 = vmatprep.subr.bf16.mxu0 0
        %2664 = vmatpush1.bf16.msra.mxu0 0
        %2665 = vmatprep.subr.bf16.mxu0 0
        %2666 = vmatpush1.bf16.msra.mxu0 0
        %2667 = vmatprep.subr.bf16.mxu0 0
        %2668 = vmatpush1.bf16.msra.mxu0 0
        %2669 = vmatprep.subr.bf16.mxu0 0
        %2670 = vmatpush1.bf16.msra.mxu0 0
        %2671 = vmatprep.subr.bf16.mxu0 0
        %2672 = vmatpush1.bf16.msra.mxu0 0
        %2673 = vmatprep.subr.bf16.mxu0 0
        %2674 = vmatpush1.bf16.msra.mxu0 0
        %2675 = vmatprep.mubr.bf16.mxu0 0
        %2676 = vmatmul.mubr.bf16.gmra.mrb[0].mxu0 %v2641
        %v2677 = vpop.f32.mrb[0].mxu0
        %v2678 = vadd.f32 %v2626, %v2677
        %v2679 = vpop.f32.mrb[0].mxu0
        %v2680 = vpop.f32.mrb[0].mxu0
        %v2681 = vpop.f32.mrb[0].mxu0
        %2682 = vdwg.mxu0
        %v2683 = vmax.f32 %v2678, 0.0
        %v2684 = vpack.c.bf16 %v2683, %v2683
        %v2686 = vlaneseq
        %v2687 = vshrl.u32 %v2686, 7
        %v2688 = vsub.s32 0, %v2687
        %v2689 = vrot.slane %v2259, %v2688
        %v2699 = vunpack.c.l.b16 %v2250
        %v2700 = vunpack.c.l.b16 %v2251
        %v2701 = vunpack.c.l.b16 %v2252
        %v2702 = vunpack.c.l.b16 %v2253
        %v2703 = vunpack.c.l.b16 %v2254
        %v2704 = vunpack.c.l.b16 %v2255
        %v2705 = vunpack.c.l.b16 %v2256
        %v2706 = vunpack.c.l.b16 %v2257
        %v2707 = vpack.c.b16 %v2700, %v2699
        %v2708 = vpack.c.b16 %v2702, %v2701
        %v2709 = vpack.c.b16 %v2704, %v2703
        %v2710 = vpack.c.b16 %v2706, %v2705
        %v2716 = vsel %vm2156, %v2684, 0
        %2718 = vmatprep.subr.bf16.mxu0 0
        %2719 = vmatpush1.bf16.msra.mxu0 %v2707
        %2720 = vmatprep.subr.bf16.mxu0 0
        %2721 = vmatpush1.bf16.msra.mxu0 %v2708
        %2722 = vmatprep.subr.bf16.mxu0 0
        %2723 = vmatpush1.bf16.msra.mxu0 %v2709
        %2724 = vmatprep.subr.bf16.mxu0 0
        %2725 = vmatpush1.bf16.msra.mxu0 %v2710
        %2726 = vmatprep.subr.bf16.mxu0 0
        %2727 = vmatpush1.bf16.msra.mxu0 0
        %2728 = vmatprep.subr.bf16.mxu0 0
        %2729 = vmatpush1.bf16.msra.mxu0 0
        %2730 = vmatprep.subr.bf16.mxu0 0
        %2731 = vmatpush1.bf16.msra.mxu0 0
        %2732 = vmatprep.subr.bf16.mxu0 0
        %2733 = vmatpush1.bf16.msra.mxu0 0
        %2734 = vmatprep.subr.bf16.mxu0 0
        %2735 = vmatpush1.bf16.msra.mxu0 0
        %2736 = vmatprep.subr.bf16.mxu0 0
        %2737 = vmatpush1.bf16.msra.mxu0 0
        %2738 = vmatprep.subr.bf16.mxu0 0
        %2739 = vmatpush1.bf16.msra.mxu0 0
        %2740 = vmatprep.subr.bf16.mxu0 0
        %2741 = vmatpush1.bf16.msra.mxu0 0
        %2742 = vmatprep.subr.bf16.mxu0 0
        %2743 = vmatpush1.bf16.msra.mxu0 0
        %2744 = vmatprep.subr.bf16.mxu0 0
        %2745 = vmatpush1.bf16.msra.mxu0 0
        %2746 = vmatprep.subr.bf16.mxu0 0
        %2747 = vmatpush1.bf16.msra.mxu0 0
        %2748 = vmatprep.subr.bf16.mxu0 0
        %2749 = vmatpush1.bf16.msra.mxu0 0
        %2750 = vmatprep.mubr.bf16.mxu0 0
        %2751 = vmatmul.mubr.bf16.gmra.mrb[0].mxu0 %v2716
        %v2752 = vpop.f32.mrb[0].mxu0
        %v2753 = vadd.f32 %v2689, %v2752
        %v2754 = vpop.f32.mrb[0].mxu0
        %v2755 = vpop.f32.mrb[0].mxu0
        %v2756 = vpop.f32.mrb[0].mxu0
        %2757 = vdwg.mxu0
        %v2758 = vadd.f32 %v2620, %v2753
        %v2759 = vsel %vm1692, %v2758, 0.0
        %2760 = vadd.xlane.f32.xlu0 %v2759
        %v2761 = vpop.xlane.xlu0 %2760
        %v2762 = vmul.f32 %v2761, %v2037
        %v2763 = vsub.f32 %v2758, %v2762
        %v2764 = vmul.f32 %v2763, %v2763
        %v2765 = vsel %vm1692, %v2764, 0.0
        %2766 = vadd.xlane.f32.xlu0 %v2765
        %v2767 = vpop.xlane.xlu0 %2766
        %v2768 = vmul.f32 %v2767, %v2037
        %v2769 = vadd.f32 %v2768, 1e-05
        %v2770 = vrsqrt.pop %v2769
        %v2771 = vmul.f32 %v2763, %v2770
        %v2773 = vlaneseq
        %v2774 = vshrl.u32 %v2773, 7
        %v2775 = vsub.s32 0, %v2774
        %v2776 = vrot.slane %v2265, %v2775
        %v2778 = vmul.f32 %v2771, %v2776
        %v2780 = vlaneseq
        %v2781 = vshrl.u32 %v2780, 7
        %v2782 = vsub.s32 0, %v2781
        %v2783 = vrot.slane %v2267, %v2782
        %v2785 = vadd.f32 %v2778, %v2783
        %v2786 = vld [vmem:[%s47] sm:$0xf]
        %v2787 = vld [vmem:[%s47 + $0x4] sm:$0xf]
        %v2788 = vld [vmem:[%s47 + $0x8] sm:$0xf]
        %v2789 = vld [vmem:[%s47 + $0xc] sm:$0xf]
        %v2790 = vld [vmem:[%s49] sm:$0x1]
        %v2791 = vld [vmem:[%s51] sm:$0xf]
        %v2792 = vld [vmem:[%s51 + $0x4] sm:$0xf]
        %v2793 = vld [vmem:[%s51 + $0x8] sm:$0xf]
        %v2794 = vld [vmem:[%s51 + $0xc] sm:$0xf]
        %v2795 = vld [vmem:[%s53] sm:$0x1]
        %v2796 = vld [vmem:[%s55] sm:$0xf]
        %v2797 = vld [vmem:[%s55 + $0x4] sm:$0xf]
        %v2798 = vld [vmem:[%s55 + $0x8] sm:$0xf]
        %v2799 = vld [vmem:[%s55 + $0xc] sm:$0xf]
        %v2800 = vld [vmem:[%s57] sm:$0x1]
        %v2801 = vld [vmem:[%s59] sm:$0xf]
        %v2802 = vld [vmem:[%s59 + $0x4] sm:$0xf]
        %v2803 = vld [vmem:[%s59 + $0x8] sm:$0xf]
        %v2804 = vld [vmem:[%s59 + $0xc] sm:$0xf]
        %v2805 = vld [vmem:[%s61] sm:$0x1]
        %v2806 = vld [vmem:[%s63] sm:$0xf]
        %v2807 = vld [vmem:[%s63 + $0x4] sm:$0xf]
        %v2808 = vld [vmem:[%s63 + $0x8] sm:$0xf]
        %v2809 = vld [vmem:[%s63 + $0xc] sm:$0xf]
        %v2810 = vld [vmem:[%s65] sm:$0x1]
        %v2811 = vld [vmem:[%s67] sm:$0xf]
        %v2812 = vld [vmem:[%s67 + $0x4] sm:$0xf]
        %v2813 = vld [vmem:[%s67 + $0x8] sm:$0xf]
        %v2814 = vld [vmem:[%s67 + $0xc] sm:$0xf]
        %v2815 = vld [vmem:[%s69] sm:$0x1]
        %v2816 = vld [vmem:[%s71] sm:$0xf]
        %v2817 = vld [vmem:[%s71 + $0x4] sm:$0xf]
        %v2818 = vld [vmem:[%s71 + $0x8] sm:$0xf]
        %v2819 = vld [vmem:[%s71 + $0xc] sm:$0xf]
        %v2820 = vld [vmem:[%s71 + $0x10] sm:$0xf]
        %v2821 = vld [vmem:[%s71 + $0x14] sm:$0xf]
        %v2822 = vld [vmem:[%s71 + $0x18] sm:$0xf]
        %v2823 = vld [vmem:[%s71 + $0x1c] sm:$0xf]
        %v2824 = vld [vmem:[%s73] sm:$0x1]
        %v2825 = vld [vmem:[%s75] sm:$0x1]
        %v2826 = vld [vmem:[%s77] sm:$0x1]
        %v2827 = vld [vmem:[%s79] sm:$0x1]
        %v2828 = vld [vmem:[%s81] sm:$0x1]
        %v2829 = vld [vmem:[%s83] sm:$0x1]
        %v2830 = vld [vmem:[%s85] sm:$0x1]
        %v2831 = vpack.c.bf16 %v1642, %v1642
        %v2833 = vlaneseq
        %v2834 = vshrl.u32 %v2833, 7
        %v2835 = vsub.s32 0, %v2834
        %v2836 = vrot.slane %v2790, %v2835
        %v2842 = vunpack.c.l.b16 %v2786
        %v2843 = vunpack.c.l.b16 %v2787
        %v2844 = vunpack.c.l.b16 %v2788
        %v2845 = vunpack.c.l.b16 %v2789
        %v2846 = vpack.c.b16 %v2843, %v2842
        %v2847 = vpack.c.b16 %v2845, %v2844
        %v2851 = vsel %vm1692, %v2831, 0
        %2853 = vmatprep.subr.bf16.mxu0 0
        %2854 = vmatpush1.bf16.msra.mxu0 %v2846
        %2855 = vmatprep.subr.bf16.mxu0 0
        %2856 = vmatpush1.bf16.msra.mxu0 %v2847
        %2857 = vmatprep.subr.bf16.mxu0 0
        %2858 = vmatpush1.bf16.msra.mxu0 0
        %2859 = vmatprep.subr.bf16.mxu0 0
        %2860 = vmatpush1.bf16.msra.mxu0 0
        %2861 = vmatprep.subr.bf16.mxu0 0
        %2862 = vmatpush1.bf16.msra.mxu0 0
        %2863 = vmatprep.subr.bf16.mxu0 0
        %2864 = vmatpush1.bf16.msra.mxu0 0
        %2865 = vmatprep.subr.bf16.mxu0 0
        %2866 = vmatpush1.bf16.msra.mxu0 0
        %2867 = vmatprep.subr.bf16.mxu0 0
        %2868 = vmatpush1.bf16.msra.mxu0 0
        %2869 = vmatprep.subr.bf16.mxu0 0
        %2870 = vmatpush1.bf16.msra.mxu0 0
        %2871 = vmatprep.subr.bf16.mxu0 0
        %2872 = vmatpush1.bf16.msra.mxu0 0
        %2873 = vmatprep.subr.bf16.mxu0 0
        %2874 = vmatpush1.bf16.msra.mxu0 0
        %2875 = vmatprep.subr.bf16.mxu0 0
        %2876 = vmatpush1.bf16.msra.mxu0 0
        %2877 = vmatprep.subr.bf16.mxu0 0
        %2878 = vmatpush1.bf16.msra.mxu0 0
        %2879 = vmatprep.subr.bf16.mxu0 0
        %2880 = vmatpush1.bf16.msra.mxu0 0
        %2881 = vmatprep.subr.bf16.mxu0 0
        %2882 = vmatpush1.bf16.msra.mxu0 0
        %2883 = vmatprep.subr.bf16.mxu0 0
        %2884 = vmatpush1.bf16.msra.mxu0 0
        %2885 = vmatprep.mubr.bf16.mxu0 0
        %2886 = vmatmul.mubr.bf16.gmra.mrb[0].mxu0 %v2851
        %v2887 = vpop.f32.mrb[0].mxu0
        %v2888 = vadd.f32 %v2836, %v2887
        %v2889 = vpop.f32.mrb[0].mxu0
        %v2890 = vpop.f32.mrb[0].mxu0
        %v2891 = vpop.f32.mrb[0].mxu0
        %2892 = vdwg.mxu0
        %2897 = vrot.lane.b32.xlu0 %v1455, 32
        %v2898 = vpop.permute.xlu0 %2897
        %2899 = vrot.lane.b32.xlu0 %v1456, 32
        %v2900 = vpop.permute.xlu0 %2899
        %2901 = vrot.lane.b32.xlu0 %v1457, 32
        %v2902 = vpop.permute.xlu0 %2901
        %2903 = vrot.lane.b32.xlu0 %v1458, 32
        %v2904 = vpop.permute.xlu0 %2903
        %v2909 = vmul.f32 %v2888, %v2898
        %v2910 = vmul.f32 %v2888, %v2900
        %v2911 = vmul.f32 %v2888, %v2902
        %v2912 = vmul.f32 %v2888, %v2904
        %v2913 = vpack.c.bf16 %v2910, %v2909
        %v2914 = vpack.c.bf16 %v2912, %v2911
        %2915 = vrot.lane.b32.xlu0 %v1455, 64
        %v2916 = vpop.permute.xlu0 %2915
        %2917 = vrot.lane.b32.xlu0 %v1456, 64
        %v2918 = vpop.permute.xlu0 %2917
        %2919 = vrot.lane.b32.xlu0 %v1457, 64
        %v2920 = vpop.permute.xlu0 %2919
        %2921 = vrot.lane.b32.xlu0 %v1458, 64
        %v2922 = vpop.permute.xlu0 %2921
        %v2927 = vmul.f32 %v2888, %v2916
        %v2928 = vmul.f32 %v2888, %v2918
        %v2929 = vmul.f32 %v2888, %v2920
        %v2930 = vmul.f32 %v2888, %v2922
        %v2931 = vpack.c.bf16 %v2928, %v2927
        %v2932 = vpack.c.bf16 %v2930, %v2929
        %v2933 = vpack.c.bf16 %v2888, %v2888
        %2936 = vrot.lane.b32.xlu0 %v2913, 96
        %v2937 = vpop.permute.xlu0 %2936
        %2938 = vrot.lane.b32.xlu0 %v2914, 96
        %v2939 = vpop.permute.xlu0 %2938
        %v2941 = vsel %vm1692, %v2933, 0
        %v2944 = vsel %vm1692, %v2937, 0
        %v2947 = vsel %vm1692, %v2939, 0
        %2949 = vmatprep.subr.bf16.mxu0 0
        %2950 = vmatpush1.bf16.xpose.msra.mxu0 %v2944
        %2951 = vmatprep.subr.bf16.mxu0 0
        %2952 = vmatpush1.bf16.xpose.msra.mxu0 %v2947
        %2953 = vmatprep.subr.bf16.mxu0 0
        %2954 = vmatpush1.bf16.xpose.msra.mxu0 0
        %2955 = vmatprep.subr.bf16.mxu0 0
        %2956 = vmatpush1.bf16.xpose.msra.mxu0 0
        %2957 = vmatprep.subr.bf16.mxu0 0
        %2958 = vmatpush1.bf16.xpose.msra.mxu0 0
        %2959 = vmatprep.subr.bf16.mxu0 0
        %2960 = vmatpush1.bf16.xpose.msra.mxu0 0
        %2961 = vmatprep.subr.bf16.mxu0 0
        %2962 = vmatpush1.bf16.xpose.msra.mxu0 0
        %2963 = vmatprep.subr.bf16.mxu0 0
        %2964 = vmatpush1.bf16.xpose.msra.mxu0 0
        %2965 = vmatprep.subr.bf16.mxu0 0
        %2966 = vmatpush1.bf16.xpose.msra.mxu0 0
        %2967 = vmatprep.subr.bf16.mxu0 0
        %2968 = vmatpush1.bf16.xpose.msra.mxu0 0
        %2969 = vmatprep.subr.bf16.mxu0 0
        %2970 = vmatpush1.bf16.xpose.msra.mxu0 0
        %2971 = vmatprep.subr.bf16.mxu0 0
        %2972 = vmatpush1.bf16.xpose.msra.mxu0 0
        %2973 = vmatprep.subr.bf16.mxu0 0
        %2974 = vmatpush1.bf16.xpose.msra.mxu0 0
        %2975 = vmatprep.subr.bf16.mxu0 0
        %2976 = vmatpush1.bf16.xpose.msra.mxu0 0
        %2977 = vmatprep.subr.bf16.mxu0 0
        %2978 = vmatpush1.bf16.xpose.msra.mxu0 0
        %2979 = vmatprep.subr.bf16.mxu0 0
        %2980 = vmatpush1.bf16.xpose.msra.mxu0 0
        %2981 = vmatprep.mubr.bf16.mxu0 0
        %2982 = vmatmul.mubr.bf16.gmra.mrb[0].mxu0 %v2941
        %v2983 = vpop.f32.mrb[0].mxu0
        %v2984 = vadd.f32 %v1468, %v2983
        %v2985 = vpop.f32.mrb[0].mxu0
        %v2986 = vpop.f32.mrb[0].mxu0
        %v2987 = vpop.f32.mrb[0].mxu0
        %2988 = vdwg.mxu0
        %v2989 = vsel %vm1692, %v2984, -inf
        %2990 = vmax.xlane.f32.xlu0 %v2989
        %v2991 = vpop.xlane.xlu0 %2990
        %v2992 = vsub.f32 %v2984, %v2991
        %v2993 = vmul.f32 %v2992, 1.442695
        %v2994 = vpow.pop %v2993
        %v2996 = vsel %vm1692, %v2994, 0
        %2998 = vmatprep.subr.mxu0 0.0
        %2999 = vmatpush1.msra.mxu0 %v1463
        %3000 = vmatprep.subr.mxu0 0.0
        %3001 = vmatpush1.msra.mxu0 %v1464
        %3002 = vmatprep.subr.mxu0 0.0
        %3003 = vmatpush1.msra.mxu0 %v1465
        %3004 = vmatprep.subr.mxu0 0.0
        %3005 = vmatpush1.msra.mxu0 %v1466
        %3006 = vmatprep.subr.mxu0 0.0
        %3007 = vmatpush1.msra.mxu0 0.0
        %3008 = vmatprep.subr.mxu0 0.0
        %3009 = vmatpush1.msra.mxu0 0.0
        %3010 = vmatprep.subr.mxu0 0.0
        %3011 = vmatpush1.msra.mxu0 0.0
        %3012 = vmatprep.subr.mxu0 0.0
        %3013 = vmatpush1.msra.mxu0 0.0
        %3014 = vmatprep.subr.mxu0 0.0
        %3015 = vmatpush1.msra.mxu0 0.0
        %3016 = vmatprep.subr.mxu0 0.0
        %3017 = vmatpush1.msra.mxu0 0.0
        %3018 = vmatprep.subr.mxu0 0.0
        %3019 = vmatpush1.msra.mxu0 0.0
        %3020 = vmatprep.subr.mxu0 0.0
        %3021 = vmatpush1.msra.mxu0 0.0
        %3022 = vmatprep.subr.mxu0 0.0
        %3023 = vmatpush1.msra.mxu0 0.0
        %3024 = vmatprep.subr.mxu0 0.0
        %3025 = vmatpush1.msra.mxu0 0.0
        %3026 = vmatprep.subr.mxu0 0.0
        %3027 = vmatpush1.msra.mxu0 0.0
        %3028 = vmatprep.subr.mxu0 0.0
        %3029 = vmatpush1.msra.mxu0 0.0
        %3030 = vmatprep.subr.mxu0 0.0
        %3031 = vmatpush1.msra.mxu0 0.0
        %3032 = vmatprep.subr.mxu0 0.0
        %3033 = vmatpush1.msra.mxu0 0.0
        %3034 = vmatprep.subr.mxu0 0.0
        %3035 = vmatpush1.msra.mxu0 0.0
        %3036 = vmatprep.subr.mxu0 0.0
        %3037 = vmatpush1.msra.mxu0 0.0
        %3038 = vmatprep.subr.mxu0 0.0
        %3039 = vmatpush1.msra.mxu0 0.0
        %3040 = vmatprep.subr.mxu0 0.0
        %3041 = vmatpush1.msra.mxu0 0.0
        %3042 = vmatprep.subr.mxu0 0.0
        %3043 = vmatpush1.msra.mxu0 0.0
        %3044 = vmatprep.subr.mxu0 0.0
        %3045 = vmatpush1.msra.mxu0 0.0
        %3046 = vmatprep.subr.mxu0 0.0
        %3047 = vmatpush1.msra.mxu0 0.0
        %3048 = vmatprep.subr.mxu0 0.0
        %3049 = vmatpush1.msra.mxu0 0.0
        %3050 = vmatprep.subr.mxu0 0.0
        %3051 = vmatpush1.msra.mxu0 0.0
        %3052 = vmatprep.subr.mxu0 0.0
        %3053 = vmatpush1.msra.mxu0 0.0
        %3054 = vmatprep.subr.mxu0 0.0
        %3055 = vmatpush1.msra.mxu0 0.0
        %3056 = vmatprep.subr.mxu0 0.0
        %3057 = vmatpush1.msra.mxu0 0.0
        %3058 = vmatprep.subr.mxu0 0.0
        %3059 = vmatpush1.msra.mxu0 0.0
        %3060 = vmatprep.subr.mxu0 0.0
        %3061 = vmatpush1.msra.mxu0 0.0
        %3062 = vmatprep.mubr.f32.mxu0 0.0
        %3063 = vmatmul.mubr.f32.gmra.mrb[0].mxu0 %v2996
        %v3064 = vpop.f32.mrb[0].mxu0
        %v3065 = vadd.f32 0.0, %v3064
        %v3066 = vpop.f32.mrb[0].mxu0
        %3067 = vdwg.mxu0
        %v3068 = vrcp.pop %v3065
        %v3069 = vmul.f32 %v2994, %v3068
        %v3070 = vpack.c.bf16 %v3069, %v3069
        %3073 = vrot.lane.b32.xlu0 %v2931, 64
        %v3074 = vpop.permute.xlu0 %3073
        %3075 = vrot.lane.b32.xlu0 %v2932, 64
        %v3076 = vpop.permute.xlu0 %3075
        %v3080 = vsel %vm1692, %v3070, 0
        %3082 = vmatprep.subr.bf16.mxu0 0
        %3083 = vmatpush1.bf16.msra.mxu0 %v3074
        %3084 = vmatprep.subr.bf16.mxu0 0
        %3085 = vmatpush1.bf16.msra.mxu0 %v3076
        %3086 = vmatprep.subr.bf16.mxu0 0
        %3087 = vmatpush1.bf16.msra.mxu0 0
        %3088 = vmatprep.subr.bf16.mxu0 0
        %3089 = vmatpush1.bf16.msra.mxu0 0
        %3090 = vmatprep.subr.bf16.mxu0 0
        %3091 = vmatpush1.bf16.msra.mxu0 0
        %3092 = vmatprep.subr.bf16.mxu0 0
        %3093 = vmatpush1.bf16.msra.mxu0 0
        %3094 = vmatprep.subr.bf16.mxu0 0
        %3095 = vmatpush1.bf16.msra.mxu0 0
        %3096 = vmatprep.subr.bf16.mxu0 0
        %3097 = vmatpush1.bf16.msra.mxu0 0
        %3098 = vmatprep.subr.bf16.mxu0 0
        %3099 = vmatpush1.bf16.msra.mxu0 0
        %3100 = vmatprep.subr.bf16.mxu0 0
        %3101 = vmatpush1.bf16.msra.mxu0 0
        %3102 = vmatprep.subr.bf16.mxu0 0
        %3103 = vmatpush1.bf16.msra.mxu0 0
        %3104 = vmatprep.subr.bf16.mxu0 0
        %3105 = vmatpush1.bf16.msra.mxu0 0
        %3106 = vmatprep.subr.bf16.mxu0 0
        %3107 = vmatpush1.bf16.msra.mxu0 0
        %3108 = vmatprep.subr.bf16.mxu0 0
        %3109 = vmatpush1.bf16.msra.mxu0 0
        %3110 = vmatprep.subr.bf16.mxu0 0
        %3111 = vmatpush1.bf16.msra.mxu0 0
        %3112 = vmatprep.subr.bf16.mxu0 0
        %3113 = vmatpush1.bf16.msra.mxu0 0
        %3114 = vmatprep.mubr.bf16.mxu0 0
        %3115 = vmatmul.mubr.bf16.gmra.mrb[0].mxu0 %v3080
        %v3116 = vpop.f32.mrb[0].mxu0
        %v3117 = vadd.f32 0.0, %v3116
        %v3118 = vpop.f32.mrb[0].mxu0
        %v3119 = vpop.f32.mrb[0].mxu0
        %v3120 = vpop.f32.mrb[0].mxu0
        %3121 = vdwg.mxu0
        %v3122 = vpack.c.bf16 %v3117, %v3117
        %v3124 = vlaneseq
        %v3125 = vshrl.u32 %v3124, 7
        %v3126 = vsub.s32 0, %v3125
        %v3127 = vrot.slane %v2795, %v3126
        %v3133 = vunpack.c.l.b16 %v2791
        %v3134 = vunpack.c.l.b16 %v2792
        %v3135 = vunpack.c.l.b16 %v2793
        %v3136 = vunpack.c.l.b16 %v2794
        %v3137 = vpack.c.b16 %v3134, %v3133
        %v3138 = vpack.c.b16 %v3136, %v3135
        %v3142 = vsel %vm1692, %v3122, 0
        %3144 = vmatprep.subr.bf16.mxu0 0
        %3145 = vmatpush1.bf16.msra.mxu0 %v3137
        %3146 = vmatprep.subr.bf16.mxu0 0
        %3147 = vmatpush1.bf16.msra.mxu0 %v3138
        %3148 = vmatprep.subr.bf16.mxu0 0
        %3149 = vmatpush1.bf16.msra.mxu0 0
        %3150 = vmatprep.subr.bf16.mxu0 0
        %3151 = vmatpush1.bf16.msra.mxu0 0
        %3152 = vmatprep.subr.bf16.mxu0 0
        %3153 = vmatpush1.bf16.msra.mxu0 0
        %3154 = vmatprep.subr.bf16.mxu0 0
        %3155 = vmatpush1.bf16.msra.mxu0 0
        %3156 = vmatprep.subr.bf16.mxu0 0
        %3157 = vmatpush1.bf16.msra.mxu0 0
        %3158 = vmatprep.subr.bf16.mxu0 0
        %3159 = vmatpush1.bf16.msra.mxu0 0
        %3160 = vmatprep.subr.bf16.mxu0 0
        %3161 = vmatpush1.bf16.msra.mxu0 0
        %3162 = vmatprep.subr.bf16.mxu0 0
        %3163 = vmatpush1.bf16.msra.mxu0 0
        %3164 = vmatprep.subr.bf16.mxu0 0
        %3165 = vmatpush1.bf16.msra.mxu0 0
        %3166 = vmatprep.subr.bf16.mxu0 0
        %3167 = vmatpush1.bf16.msra.mxu0 0
        %3168 = vmatprep.subr.bf16.mxu0 0
        %3169 = vmatpush1.bf16.msra.mxu0 0
        %3170 = vmatprep.subr.bf16.mxu0 0
        %3171 = vmatpush1.bf16.msra.mxu0 0
        %3172 = vmatprep.subr.bf16.mxu0 0
        %3173 = vmatpush1.bf16.msra.mxu0 0
        %3174 = vmatprep.subr.bf16.mxu0 0
        %3175 = vmatpush1.bf16.msra.mxu0 0
        %3176 = vmatprep.mubr.bf16.mxu0 0
        %3177 = vmatmul.mubr.bf16.gmra.mrb[0].mxu0 %v3142
        %v3178 = vpop.f32.mrb[0].mxu0
        %v3179 = vadd.f32 %v3127, %v3178
        %v3180 = vpop.f32.mrb[0].mxu0
        %v3181 = vpop.f32.mrb[0].mxu0
        %v3182 = vpop.f32.mrb[0].mxu0
        %3183 = vdwg.mxu0
        %v3184 = vadd.f32 %v1642, %v3179
        %v3185 = vsel %vm1692, %v3184, 0.0
        %3186 = vadd.xlane.f32.xlu0 %v3185
        %v3187 = vpop.xlane.xlu0 %3186
        %v3188 = vmul.f32 %v3187, %v2037
        %v3189 = vsub.f32 %v3184, %v3188
        %v3190 = vmul.f32 %v3189, %v3189
        %v3191 = vsel %vm1692, %v3190, 0.0
        %3192 = vadd.xlane.f32.xlu0 %v3191
        %v3193 = vpop.xlane.xlu0 %3192
        %v3194 = vmul.f32 %v3193, %v2037
        %v3195 = vadd.f32 %v3194, 1e-05
        %v3196 = vrsqrt.pop %v3195
        %v3197 = vmul.f32 %v3189, %v3196
        %v3199 = vlaneseq
        %v3200 = vshrl.u32 %v3199, 7
        %v3201 = vsub.s32 0, %v3200
        %v3202 = vrot.slane %v2825, %v3201
        %v3204 = vmul.f32 %v3197, %v3202
        %v3206 = vlaneseq
        %v3207 = vshrl.u32 %v3206, 7
        %v3208 = vsub.s32 0, %v3207
        %v3209 = vrot.slane %v2826, %v3208
        %v3211 = vadd.f32 %v3204, %v3209
        %v3212 = vpack.c.bf16 %v3211, %v3211
        %v3214 = vlaneseq
        %v3215 = vshrl.u32 %v3214, 7
        %v3216 = vsub.s32 0, %v3215
        %v3217 = vrot.slane %v2800, %v3216
        %v3223 = vunpack.c.l.b16 %v2796
        %v3224 = vunpack.c.l.b16 %v2797
        %v3225 = vunpack.c.l.b16 %v2798
        %v3226 = vunpack.c.l.b16 %v2799
        %v3227 = vpack.c.b16 %v3224, %v3223
        %v3228 = vpack.c.b16 %v3226, %v3225
        %v3232 = vsel %vm1692, %v3212, 0
        %3234 = vmatprep.subr.bf16.mxu0 0
        %3235 = vmatpush1.bf16.msra.mxu0 %v3227
        %3236 = vmatprep.subr.bf16.mxu0 0
        %3237 = vmatpush1.bf16.msra.mxu0 %v3228
        %3238 = vmatprep.subr.bf16.mxu0 0
        %3239 = vmatpush1.bf16.msra.mxu0 0
        %3240 = vmatprep.subr.bf16.mxu0 0
        %3241 = vmatpush1.bf16.msra.mxu0 0
        %3242 = vmatprep.subr.bf16.mxu0 0
        %3243 = vmatpush1.bf16.msra.mxu0 0
        %3244 = vmatprep.subr.bf16.mxu0 0
        %3245 = vmatpush1.bf16.msra.mxu0 0
        %3246 = vmatprep.subr.bf16.mxu0 0
        %3247 = vmatpush1.bf16.msra.mxu0 0
        %3248 = vmatprep.subr.bf16.mxu0 0
        %3249 = vmatpush1.bf16.msra.mxu0 0
        %3250 = vmatprep.subr.bf16.mxu0 0
        %3251 = vmatpush1.bf16.msra.mxu0 0
        %3252 = vmatprep.subr.bf16.mxu0 0
        %3253 = vmatpush1.bf16.msra.mxu0 0
        %3254 = vmatprep.subr.bf16.mxu0 0
        %3255 = vmatpush1.bf16.msra.mxu0 0
        %3256 = vmatprep.subr.bf16.mxu0 0
        %3257 = vmatpush1.bf16.msra.mxu0 0
        %3258 = vmatprep.subr.bf16.mxu0 0
        %3259 = vmatpush1.bf16.msra.mxu0 0
        %3260 = vmatprep.subr.bf16.mxu0 0
        %3261 = vmatpush1.bf16.msra.mxu0 0
        %3262 = vmatprep.subr.bf16.mxu0 0
        %3263 = vmatpush1.bf16.msra.mxu0 0
        %3264 = vmatprep.subr.bf16.mxu0 0
        %3265 = vmatpush1.bf16.msra.mxu0 0
        %3266 = vmatprep.mubr.bf16.mxu0 0
        %3267 = vmatmul.mubr.bf16.gmra.mrb[0].mxu0 %v3232
        %v3268 = vpop.f32.mrb[0].mxu0
        %v3269 = vadd.f32 %v3217, %v3268
        %v3270 = vpop.f32.mrb[0].mxu0
        %v3271 = vpop.f32.mrb[0].mxu0
        %v3272 = vpop.f32.mrb[0].mxu0
        %3273 = vdwg.mxu0
        %v3274 = vpack.c.bf16 %v2785, %v2785
        %v3276 = vlaneseq
        %v3277 = vshrl.u32 %v3276, 7
        %v3278 = vsub.s32 0, %v3277
        %v3279 = vrot.slane %v2805, %v3278
        %v3285 = vunpack.c.l.b16 %v2801
        %v3286 = vunpack.c.l.b16 %v2802
        %v3287 = vunpack.c.l.b16 %v2803
        %v3288 = vunpack.c.l.b16 %v2804
        %v3289 = vpack.c.b16 %v3286, %v3285
        %v3290 = vpack.c.b16 %v3288, %v3287
        %v3294 = vsel %vm1692, %v3274, 0
        %3296 = vmatprep.subr.bf16.mxu0 0
        %3297 = vmatpush1.bf16.msra.mxu0 %v3289
        %3298 = vmatprep.subr.bf16.mxu0 0
        %3299 = vmatpush1.bf16.msra.mxu0 %v3290
        %3300 = vmatprep.subr.bf16.mxu0 0
        %3301 = vmatpush1.bf16.msra.mxu0 0
        %3302 = vmatprep.subr.bf16.mxu0 0
        %3303 = vmatpush1.bf16.msra.mxu0 0
        %3304 = vmatprep.subr.bf16.mxu0 0
        %3305 = vmatpush1.bf16.msra.mxu0 0
        %3306 = vmatprep.subr.bf16.mxu0 0
        %3307 = vmatpush1.bf16.msra.mxu0 0
        %3308 = vmatprep.subr.bf16.mxu0 0
        %3309 = vmatpush1.bf16.msra.mxu0 0
        %3310 = vmatprep.subr.bf16.mxu0 0
        %3311 = vmatpush1.bf16.msra.mxu0 0
        %3312 = vmatprep.subr.bf16.mxu0 0
        %3313 = vmatpush1.bf16.msra.mxu0 0
        %3314 = vmatprep.subr.bf16.mxu0 0
        %3315 = vmatpush1.bf16.msra.mxu0 0
        %3316 = vmatprep.subr.bf16.mxu0 0
        %3317 = vmatpush1.bf16.msra.mxu0 0
        %3318 = vmatprep.subr.bf16.mxu0 0
        %3319 = vmatpush1.bf16.msra.mxu0 0
        %3320 = vmatprep.subr.bf16.mxu0 0
        %3321 = vmatpush1.bf16.msra.mxu0 0
        %3322 = vmatprep.subr.bf16.mxu0 0
        %3323 = vmatpush1.bf16.msra.mxu0 0
        %3324 = vmatprep.subr.bf16.mxu0 0
        %3325 = vmatpush1.bf16.msra.mxu0 0
        %3326 = vmatprep.subr.bf16.mxu0 0
        %3327 = vmatpush1.bf16.msra.mxu0 0
        %3328 = vmatprep.mubr.bf16.mxu0 0
        %3329 = vmatmul.mubr.bf16.gmra.mrb[0].mxu0 %v3294
        %v3330 = vpop.f32.mrb[0].mxu0
        %v3331 = vadd.f32 %v3279, %v3330
        %v3332 = vpop.f32.mrb[0].mxu0
        %v3333 = vpop.f32.mrb[0].mxu0
        %v3334 = vpop.f32.mrb[0].mxu0
        %3335 = vdwg.mxu0
        %v3336 = vmul.f32 %v3331, %v1451
        %v3337 = vmul.f32 %v3331, %v1452
        %v3338 = vmul.f32 %v3331, %v1453
        %v3339 = vmul.f32 %v3331, %v1454
        %v3340 = vpack.c.bf16 %v3337, %v3336
        %v3341 = vpack.c.bf16 %v3339, %v3338
        %v3342 = vmul.f32 %v3331, %v1741
        %v3343 = vmul.f32 %v3331, %v1743
        %v3344 = vmul.f32 %v3331, %v1745
        %v3345 = vmul.f32 %v3331, %v1747
        %v3346 = vpack.c.bf16 %v3343, %v3342
        %v3347 = vpack.c.bf16 %v3345, %v3344
        %v3348 = vpack.c.bf16 %v3269, %v3269
        %v3350 = vsel %vm1692, %v3348, 0
        %v3353 = vsel %vm1692, %v3340, 0
        %v3356 = vsel %vm1692, %v3341, 0
        %3358 = vmatprep.subr.bf16.mxu0 0
        %3359 = vmatpush1.bf16.xpose.msra.mxu0 %v3353
        %3360 = vmatprep.subr.bf16.mxu0 0
        %3361 = vmatpush1.bf16.xpose.msra.mxu0 %v3356
        %3362 = vmatprep.subr.bf16.mxu0 0
        %3363 = vmatpush1.bf16.xpose.msra.mxu0 0
        %3364 = vmatprep.subr.bf16.mxu0 0
        %3365 = vmatpush1.bf16.xpose.msra.mxu0 0
        %3366 = vmatprep.subr.bf16.mxu0 0
        %3367 = vmatpush1.bf16.xpose.msra.mxu0 0
        %3368 = vmatprep.subr.bf16.mxu0 0
        %3369 = vmatpush1.bf16.xpose.msra.mxu0 0
        %3370 = vmatprep.subr.bf16.mxu0 0
        %3371 = vmatpush1.bf16.xpose.msra.mxu0 0
        %3372 = vmatprep.subr.bf16.mxu0 0
        %3373 = vmatpush1.bf16.xpose.msra.mxu0 0
        %3374 = vmatprep.subr.bf16.mxu0 0
        %3375 = vmatpush1.bf16.xpose.msra.mxu0 0
        %3376 = vmatprep.subr.bf16.mxu0 0
        %3377 = vmatpush1.bf16.xpose.msra.mxu0 0
        %3378 = vmatprep.subr.bf16.mxu0 0
        %3379 = vmatpush1.bf16.xpose.msra.mxu0 0
        %3380 = vmatprep.subr.bf16.mxu0 0
        %3381 = vmatpush1.bf16.xpose.msra.mxu0 0
        %3382 = vmatprep.subr.bf16.mxu0 0
        %3383 = vmatpush1.bf16.xpose.msra.mxu0 0
        %3384 = vmatprep.subr.bf16.mxu0 0
        %3385 = vmatpush1.bf16.xpose.msra.mxu0 0
        %3386 = vmatprep.subr.bf16.mxu0 0
        %3387 = vmatpush1.bf16.xpose.msra.mxu0 0
        %3388 = vmatprep.subr.bf16.mxu0 0
        %3389 = vmatpush1.bf16.xpose.msra.mxu0 0
        %3390 = vmatprep.mubr.bf16.mxu0 0
        %3391 = vmatmul.mubr.bf16.gmra.mrb[0].mxu0 %v3350
        %v3392 = vpop.f32.mrb[0].mxu0
        %v3393 = vadd.f32 %v1781, %v3392
        %v3394 = vpop.f32.mrb[0].mxu0
        %v3395 = vpop.f32.mrb[0].mxu0
        %v3396 = vpop.f32.mrb[0].mxu0
        %3397 = vdwg.mxu0
        %v3398 = vsel %vm1692, %v3393, -inf
        %3399 = vmax.xlane.f32.xlu0 %v3398
        %v3400 = vpop.xlane.xlu0 %3399
        %v3401 = vsub.f32 %v3393, %v3400
        %v3402 = vmul.f32 %v3401, 1.442695
        %v3403 = vpow.pop %v3402
        %v3405 = vsel %vm1692, %v3403, 0
        %3407 = vmatprep.subr.mxu0 0.0
        %3408 = vmatpush1.msra.mxu0 %v1459
        %3409 = vmatprep.subr.mxu0 0.0
        %3410 = vmatpush1.msra.mxu0 %v1460
        %3411 = vmatprep.subr.mxu0 0.0
        %3412 = vmatpush1.msra.mxu0 %v1461
        %3413 = vmatprep.subr.mxu0 0.0
        %3414 = vmatpush1.msra.mxu0 %v1462
        %3415 = vmatprep.subr.mxu0 0.0
        %3416 = vmatpush1.msra.mxu0 0.0
        %3417 = vmatprep.subr.mxu0 0.0
        %3418 = vmatpush1.msra.mxu0 0.0
        %3419 = vmatprep.subr.mxu0 0.0
        %3420 = vmatpush1.msra.mxu0 0.0
        %3421 = vmatprep.subr.mxu0 0.0
        %3422 = vmatpush1.msra.mxu0 0.0
        %3423 = vmatprep.subr.mxu0 0.0
        %3424 = vmatpush1.msra.mxu0 0.0
        %3425 = vmatprep.subr.mxu0 0.0
        %3426 = vmatpush1.msra.mxu0 0.0
        %3427 = vmatprep.subr.mxu0 0.0
        %3428 = vmatpush1.msra.mxu0 0.0
        %3429 = vmatprep.subr.mxu0 0.0
        %3430 = vmatpush1.msra.mxu0 0.0
        %3431 = vmatprep.subr.mxu0 0.0
        %3432 = vmatpush1.msra.mxu0 0.0
        %3433 = vmatprep.subr.mxu0 0.0
        %3434 = vmatpush1.msra.mxu0 0.0
        %3435 = vmatprep.subr.mxu0 0.0
        %3436 = vmatpush1.msra.mxu0 0.0
        %3437 = vmatprep.subr.mxu0 0.0
        %3438 = vmatpush1.msra.mxu0 0.0
        %3439 = vmatprep.subr.mxu0 0.0
        %3440 = vmatpush1.msra.mxu0 0.0
        %3441 = vmatprep.subr.mxu0 0.0
        %3442 = vmatpush1.msra.mxu0 0.0
        %3443 = vmatprep.subr.mxu0 0.0
        %3444 = vmatpush1.msra.mxu0 0.0
        %3445 = vmatprep.subr.mxu0 0.0
        %3446 = vmatpush1.msra.mxu0 0.0
        %3447 = vmatprep.subr.mxu0 0.0
        %3448 = vmatpush1.msra.mxu0 0.0
        %3449 = vmatprep.subr.mxu0 0.0
        %3450 = vmatpush1.msra.mxu0 0.0
        %3451 = vmatprep.subr.mxu0 0.0
        %3452 = vmatpush1.msra.mxu0 0.0
        %3453 = vmatprep.subr.mxu0 0.0
        %3454 = vmatpush1.msra.mxu0 0.0
        %3455 = vmatprep.subr.mxu0 0.0
        %3456 = vmatpush1.msra.mxu0 0.0
        %3457 = vmatprep.subr.mxu0 0.0
        %3458 = vmatpush1.msra.mxu0 0.0
        %3459 = vmatprep.subr.mxu0 0.0
        %3460 = vmatpush1.msra.mxu0 0.0
        %3461 = vmatprep.subr.mxu0 0.0
        %3462 = vmatpush1.msra.mxu0 0.0
        %3463 = vmatprep.subr.mxu0 0.0
        %3464 = vmatpush1.msra.mxu0 0.0
        %3465 = vmatprep.subr.mxu0 0.0
        %3466 = vmatpush1.msra.mxu0 0.0
        %3467 = vmatprep.subr.mxu0 0.0
        %3468 = vmatpush1.msra.mxu0 0.0
        %3469 = vmatprep.subr.mxu0 0.0
        %3470 = vmatpush1.msra.mxu0 0.0
        %3471 = vmatprep.mubr.f32.mxu0 0.0
        %3472 = vmatmul.mubr.f32.gmra.mrb[0].mxu0 %v3405
        %v3473 = vpop.f32.mrb[0].mxu0
        %v3474 = vadd.f32 0.0, %v3473
        %v3475 = vpop.f32.mrb[0].mxu0
        %3476 = vdwg.mxu0
        %v3477 = vrcp.pop %v3474
        %v3478 = vmul.f32 %v3403, %v3477
        %v3479 = vpack.c.bf16 %v3478, %v3478
        %3482 = vrot.lane.b32.xlu0 %v3346, 96
        %v3483 = vpop.permute.xlu0 %3482
        %3484 = vrot.lane.b32.xlu0 %v3347, 96
        %v3485 = vpop.permute.xlu0 %3484
        %v3489 = vsel %vm1692, %v3479, 0
        %3491 = vmatprep.subr.bf16.mxu0 0
        %3492 = vmatpush1.bf16.msra.mxu0 %v3483
        %3493 = vmatprep.subr.bf16.mxu0 0
        %3494 = vmatpush1.bf16.msra.mxu0 %v3485
        %3495 = vmatprep.subr.bf16.mxu0 0
        %3496 = vmatpush1.bf16.msra.mxu0 0
        %3497 = vmatprep.subr.bf16.mxu0 0
        %3498 = vmatpush1.bf16.msra.mxu0 0
        %3499 = vmatprep.subr.bf16.mxu0 0
        %3500 = vmatpush1.bf16.msra.mxu0 0
        %3501 = vmatprep.subr.bf16.mxu0 0
        %3502 = vmatpush1.bf16.msra.mxu0 0
        %3503 = vmatprep.subr.bf16.mxu0 0
        %3504 = vmatpush1.bf16.msra.mxu0 0
        %3505 = vmatprep.subr.bf16.mxu0 0
        %3506 = vmatpush1.bf16.msra.mxu0 0
        %3507 = vmatprep.subr.bf16.mxu0 0
        %3508 = vmatpush1.bf16.msra.mxu0 0
        %3509 = vmatprep.subr.bf16.mxu0 0
        %3510 = vmatpush1.bf16.msra.mxu0 0
        %3511 = vmatprep.subr.bf16.mxu0 0
        %3512 = vmatpush1.bf16.msra.mxu0 0
        %3513 = vmatprep.subr.bf16.mxu0 0
        %3514 = vmatpush1.bf16.msra.mxu0 0
        %3515 = vmatprep.subr.bf16.mxu0 0
        %3516 = vmatpush1.bf16.msra.mxu0 0
        %3517 = vmatprep.subr.bf16.mxu0 0
        %3518 = vmatpush1.bf16.msra.mxu0 0
        %3519 = vmatprep.subr.bf16.mxu0 0
        %3520 = vmatpush1.bf16.msra.mxu0 0
        %3521 = vmatprep.subr.bf16.mxu0 0
        %3522 = vmatpush1.bf16.msra.mxu0 0
        %3523 = vmatprep.mubr.bf16.mxu0 0
        %3524 = vmatmul.mubr.bf16.gmra.mrb[0].mxu0 %v3489
        %v3525 = vpop.f32.mrb[0].mxu0
        %v3526 = vadd.f32 0.0, %v3525
        %v3527 = vpop.f32.mrb[0].mxu0
        %v3528 = vpop.f32.mrb[0].mxu0
        %v3529 = vpop.f32.mrb[0].mxu0
        %3530 = vdwg.mxu0
        %v3531 = vpack.c.bf16 %v3526, %v3526
        %v3533 = vlaneseq
        %v3534 = vshrl.u32 %v3533, 7
        %v3535 = vsub.s32 0, %v3534
        %v3536 = vrot.slane %v2810, %v3535
        %v3542 = vunpack.c.l.b16 %v2806
        %v3543 = vunpack.c.l.b16 %v2807
        %v3544 = vunpack.c.l.b16 %v2808
        %v3545 = vunpack.c.l.b16 %v2809
        %v3546 = vpack.c.b16 %v3543, %v3542
        %v3547 = vpack.c.b16 %v3545, %v3544
        %v3551 = vsel %vm1692, %v3531, 0
        %3553 = vmatprep.subr.bf16.mxu0 0
        %3554 = vmatpush1.bf16.msra.mxu0 %v3546
        %3555 = vmatprep.subr.bf16.mxu0 0
        %3556 = vmatpush1.bf16.msra.mxu0 %v3547
        %3557 = vmatprep.subr.bf16.mxu0 0
        %3558 = vmatpush1.bf16.msra.mxu0 0
        %3559 = vmatprep.subr.bf16.mxu0 0
        %3560 = vmatpush1.bf16.msra.mxu0 0
        %3561 = vmatprep.subr.bf16.mxu0 0
        %3562 = vmatpush1.bf16.msra.mxu0 0
        %3563 = vmatprep.subr.bf16.mxu0 0
        %3564 = vmatpush1.bf16.msra.mxu0 0
        %3565 = vmatprep.subr.bf16.mxu0 0
        %3566 = vmatpush1.bf16.msra.mxu0 0
        %3567 = vmatprep.subr.bf16.mxu0 0
        %3568 = vmatpush1.bf16.msra.mxu0 0
        %3569 = vmatprep.subr.bf16.mxu0 0
        %3570 = vmatpush1.bf16.msra.mxu0 0
        %3571 = vmatprep.subr.bf16.mxu0 0
        %3572 = vmatpush1.bf16.msra.mxu0 0
        %3573 = vmatprep.subr.bf16.mxu0 0
        %3574 = vmatpush1.bf16.msra.mxu0 0
        %3575 = vmatprep.subr.bf16.mxu0 0
        %3576 = vmatpush1.bf16.msra.mxu0 0
        %3577 = vmatprep.subr.bf16.mxu0 0
        %3578 = vmatpush1.bf16.msra.mxu0 0
        %3579 = vmatprep.subr.bf16.mxu0 0
        %3580 = vmatpush1.bf16.msra.mxu0 0
        %3581 = vmatprep.subr.bf16.mxu0 0
        %3582 = vmatpush1.bf16.msra.mxu0 0
        %3583 = vmatprep.subr.bf16.mxu0 0
        %3584 = vmatpush1.bf16.msra.mxu0 0
        %3585 = vmatprep.mubr.bf16.mxu0 0
        %3586 = vmatmul.mubr.bf16.gmra.mrb[0].mxu0 %v3551
        %v3587 = vpop.f32.mrb[0].mxu0
        %v3588 = vadd.f32 %v3536, %v3587
        %v3589 = vpop.f32.mrb[0].mxu0
        %v3590 = vpop.f32.mrb[0].mxu0
        %v3591 = vpop.f32.mrb[0].mxu0
        %3592 = vdwg.mxu0
        %v3593 = vadd.f32 %v3211, %v3588
        %v3594 = vsel %vm1692, %v3593, 0.0
        %3595 = vadd.xlane.f32.xlu0 %v3594
        %v3596 = vpop.xlane.xlu0 %3595
        %v3597 = vmul.f32 %v3596, %v2037
        %v3598 = vsub.f32 %v3593, %v3597
        %v3599 = vmul.f32 %v3598, %v3598
        %v3600 = vsel %vm1692, %v3599, 0.0
        %3601 = vadd.xlane.f32.xlu0 %v3600
        %v3602 = vpop.xlane.xlu0 %3601
        %v3603 = vmul.f32 %v3602, %v2037
        %v3604 = vadd.f32 %v3603, 1e-05
        %v3605 = vrsqrt.pop %v3604
        %v3606 = vmul.f32 %v3598, %v3605
        %v3608 = vlaneseq
        %v3609 = vshrl.u32 %v3608, 7
        %v3610 = vsub.s32 0, %v3609
        %v3611 = vrot.slane %v2827, %v3610
        %v3613 = vmul.f32 %v3606, %v3611
        %v3615 = vlaneseq
        %v3616 = vshrl.u32 %v3615, 7
        %v3617 = vsub.s32 0, %v3616
        %v3618 = vrot.slane %v2828, %v3617
        %v3620 = vadd.f32 %v3613, %v3618
        %v3621 = vpack.c.bf16 %v3620, %v3620
        %v3623 = vlaneseq
        %v3624 = vshrl.u32 %v3623, 7
        %v3625 = vsub.s32 0, %v3624
        %v3626 = vrot.slane %v2815, %v3625
        %v3632 = vunpack.c.l.b16 %v2811
        %v3633 = vunpack.c.l.b16 %v2812
        %v3634 = vunpack.c.l.b16 %v2813
        %v3635 = vunpack.c.l.b16 %v2814
        %v3636 = vpack.c.b16 %v3633, %v3632
        %v3637 = vpack.c.b16 %v3635, %v3634
        %v3641 = vsel %vm1692, %v3621, 0
        %3643 = vmatprep.subr.bf16.mxu0 0
        %3644 = vmatpush1.bf16.msra.mxu0 %v3636
        %3645 = vmatprep.subr.bf16.mxu0 0
        %3646 = vmatpush1.bf16.msra.mxu0 %v3637
        %3647 = vmatprep.subr.bf16.mxu0 0
        %3648 = vmatpush1.bf16.msra.mxu0 0
        %3649 = vmatprep.subr.bf16.mxu0 0
        %3650 = vmatpush1.bf16.msra.mxu0 0
        %3651 = vmatprep.subr.bf16.mxu0 0
        %3652 = vmatpush1.bf16.msra.mxu0 0
        %3653 = vmatprep.subr.bf16.mxu0 0
        %3654 = vmatpush1.bf16.msra.mxu0 0
        %3655 = vmatprep.subr.bf16.mxu0 0
        %3656 = vmatpush1.bf16.msra.mxu0 0
        %3657 = vmatprep.subr.bf16.mxu0 0
        %3658 = vmatpush1.bf16.msra.mxu0 0
        %3659 = vmatprep.subr.bf16.mxu0 0
        %3660 = vmatpush1.bf16.msra.mxu0 0
        %3661 = vmatprep.subr.bf16.mxu0 0
        %3662 = vmatpush1.bf16.msra.mxu0 0
        %3663 = vmatprep.subr.bf16.mxu0 0
        %3664 = vmatpush1.bf16.msra.mxu0 0
        %3665 = vmatprep.subr.bf16.mxu0 0
        %3666 = vmatpush1.bf16.msra.mxu0 0
        %3667 = vmatprep.subr.bf16.mxu0 0
        %3668 = vmatpush1.bf16.msra.mxu0 0
        %3669 = vmatprep.subr.bf16.mxu0 0
        %3670 = vmatpush1.bf16.msra.mxu0 0
        %3671 = vmatprep.subr.bf16.mxu0 0
        %3672 = vmatpush1.bf16.msra.mxu0 0
        %3673 = vmatprep.subr.bf16.mxu0 0
        %3674 = vmatpush1.bf16.msra.mxu0 0
        %3675 = vmatprep.mubr.bf16.mxu0 0
        %3676 = vmatmul.mubr.bf16.gmra.mrb[0].mxu0 %v3641
        %v3677 = vpop.f32.mrb[0].mxu0
        %v3678 = vadd.f32 %v3626, %v3677
        %v3679 = vpop.f32.mrb[0].mxu0
        %v3680 = vpop.f32.mrb[0].mxu0
        %v3681 = vpop.f32.mrb[0].mxu0
        %3682 = vdwg.mxu0
        %v3683 = vmax.f32 %v3678, 0.0
        %v3684 = vpack.c.bf16 %v3683, %v3683
        %v3686 = vlaneseq
        %v3687 = vshrl.u32 %v3686, 7
        %v3688 = vsub.s32 0, %v3687
        %v3689 = vrot.slane %v2824, %v3688
        %v3699 = vunpack.c.l.b16 %v2816
        %v3700 = vunpack.c.l.b16 %v2817
        %v3701 = vunpack.c.l.b16 %v2818
        %v3702 = vunpack.c.l.b16 %v2819
        %v3703 = vunpack.c.l.b16 %v2820
        %v3704 = vunpack.c.l.b16 %v2821
        %v3705 = vunpack.c.l.b16 %v2822
        %v3706 = vunpack.c.l.b16 %v2823
        %v3707 = vpack.c.b16 %v3700, %v3699
        %v3708 = vpack.c.b16 %v3702, %v3701
        %v3709 = vpack.c.b16 %v3704, %v3703
        %v3710 = vpack.c.b16 %v3706, %v3705
        %v3716 = vsel %vm2156, %v3684, 0
        %3718 = vmatprep.subr.bf16.mxu0 0
        %3719 = vmatpush1.bf16.msra.mxu0 %v3707
        %3720 = vmatprep.subr.bf16.mxu0 0
        %3721 = vmatpush1.bf16.msra.mxu0 %v3708
        %3722 = vmatprep.subr.bf16.mxu0 0
        %3723 = vmatpush1.bf16.msra.mxu0 %v3709
        %3724 = vmatprep.subr.bf16.mxu0 0
        %3725 = vmatpush1.bf16.msra.mxu0 %v3710
        %3726 = vmatprep.subr.bf16.mxu0 0
        %3727 = vmatpush1.bf16.msra.mxu0 0
        %3728 = vmatprep.subr.bf16.mxu0 0
        %3729 = vmatpush1.bf16.msra.mxu0 0
        %3730 = vmatprep.subr.bf16.mxu0 0
        %3731 = vmatpush1.bf16.msra.mxu0 0
        %3732 = vmatprep.subr.bf16.mxu0 0
        %3733 = vmatpush1.bf16.msra.mxu0 0
        %3734 = vmatprep.subr.bf16.mxu0 0
        %3735 = vmatpush1.bf16.msra.mxu0 0
        %3736 = vmatprep.subr.bf16.mxu0 0
        %3737 = vmatpush1.bf16.msra.mxu0 0
        %3738 = vmatprep.subr.bf16.mxu0 0
        %3739 = vmatpush1.bf16.msra.mxu0 0
        %3740 = vmatprep.subr.bf16.mxu0 0
        %3741 = vmatpush1.bf16.msra.mxu0 0
        %3742 = vmatprep.subr.bf16.mxu0 0
        %3743 = vmatpush1.bf16.msra.mxu0 0
        %3744 = vmatprep.subr.bf16.mxu0 0
        %3745 = vmatpush1.bf16.msra.mxu0 0
        %3746 = vmatprep.subr.bf16.mxu0 0
        %3747 = vmatpush1.bf16.msra.mxu0 0
        %3748 = vmatprep.subr.bf16.mxu0 0
        %3749 = vmatpush1.bf16.msra.mxu0 0
        %3750 = vmatprep.mubr.bf16.mxu0 0
        %3751 = vmatmul.mubr.bf16.gmra.mrb[0].mxu0 %v3716
        %v3752 = vpop.f32.mrb[0].mxu0
        %v3753 = vadd.f32 %v3689, %v3752
        %v3754 = vpop.f32.mrb[0].mxu0
        %v3755 = vpop.f32.mrb[0].mxu0
        %v3756 = vpop.f32.mrb[0].mxu0
        %3757 = vdwg.mxu0
        %v3758 = vadd.f32 %v3620, %v3753
        %v3759 = vsel %vm1692, %v3758, 0.0
        %3760 = vadd.xlane.f32.xlu0 %v3759
        %v3761 = vpop.xlane.xlu0 %3760
        %v3762 = vmul.f32 %v3761, %v2037
        %v3763 = vsub.f32 %v3758, %v3762
        %v3764 = vmul.f32 %v3763, %v3763
        %v3765 = vsel %vm1692, %v3764, 0.0
        %3766 = vadd.xlane.f32.xlu0 %v3765
        %v3767 = vpop.xlane.xlu0 %3766
        %v3768 = vmul.f32 %v3767, %v2037
        %v3769 = vadd.f32 %v3768, 1e-05
        %v3770 = vrsqrt.pop %v3769
        %v3771 = vmul.f32 %v3763, %v3770
        %v3773 = vlaneseq
        %v3774 = vshrl.u32 %v3773, 7
        %v3775 = vsub.s32 0, %v3774
        %v3776 = vrot.slane %v2829, %v3775
        %v3778 = vmul.f32 %v3771, %v3776
        %v3780 = vlaneseq
        %v3781 = vshrl.u32 %v3780, 7
        %v3782 = vsub.s32 0, %v3781
        %v3783 = vrot.slane %v2830, %v3782
        %v3785 = vadd.f32 %v3778, %v3783
        %s3786 = scalar_lea.vmem %s47, 16
        %v3787 = vld [vmem:[%s3786] sm:$0xf]
        %v3788 = vld [vmem:[%s3786 + $0x4] sm:$0xf]
        %v3789 = vld [vmem:[%s3786 + $0x8] sm:$0xf]
        %v3790 = vld [vmem:[%s3786 + $0xc] sm:$0xf]
        %s3791 = scalar_lea.vmem %s49, 1
        %v3792 = vld [vmem:[%s3791] sm:$0x1]
        %s3793 = scalar_lea.vmem %s51, 16
        %v3794 = vld [vmem:[%s3793] sm:$0xf]
        %v3795 = vld [vmem:[%s3793 + $0x4] sm:$0xf]
        %v3796 = vld [vmem:[%s3793 + $0x8] sm:$0xf]
        %v3797 = vld [vmem:[%s3793 + $0xc] sm:$0xf]
        %s3798 = scalar_lea.vmem %s53, 1
        %v3799 = vld [vmem:[%s3798] sm:$0x1]
        %s3800 = scalar_lea.vmem %s55, 16
        %v3801 = vld [vmem:[%s3800] sm:$0xf]
        %v3802 = vld [vmem:[%s3800 + $0x4] sm:$0xf]
        %v3803 = vld [vmem:[%s3800 + $0x8] sm:$0xf]
        %v3804 = vld [vmem:[%s3800 + $0xc] sm:$0xf]
        %s3805 = scalar_lea.vmem %s57, 1
        %v3806 = vld [vmem:[%s3805] sm:$0x1]
        %s3807 = scalar_lea.vmem %s59, 16
        %v3808 = vld [vmem:[%s3807] sm:$0xf]
        %v3809 = vld [vmem:[%s3807 + $0x4] sm:$0xf]
        %v3810 = vld [vmem:[%s3807 + $0x8] sm:$0xf]
        %v3811 = vld [vmem:[%s3807 + $0xc] sm:$0xf]
        %s3812 = scalar_lea.vmem %s61, 1
        %v3813 = vld [vmem:[%s3812] sm:$0x1]
        %s3814 = scalar_lea.vmem %s63, 16
        %v3815 = vld [vmem:[%s3814] sm:$0xf]
        %v3816 = vld [vmem:[%s3814 + $0x4] sm:$0xf]
        %v3817 = vld [vmem:[%s3814 + $0x8] sm:$0xf]
        %v3818 = vld [vmem:[%s3814 + $0xc] sm:$0xf]
        %s3819 = scalar_lea.vmem %s65, 1
        %v3820 = vld [vmem:[%s3819] sm:$0x1]
        %s3821 = scalar_lea.vmem %s67, 16
        %v3822 = vld [vmem:[%s3821] sm:$0xf]
        %v3823 = vld [vmem:[%s3821 + $0x4] sm:$0xf]
        %v3824 = vld [vmem:[%s3821 + $0x8] sm:$0xf]
        %v3825 = vld [vmem:[%s3821 + $0xc] sm:$0xf]
        %s3826 = scalar_lea.vmem %s69, 1
        %v3827 = vld [vmem:[%s3826] sm:$0x1]
        %s3828 = scalar_lea.vmem %s71, 32
        %v3829 = vld [vmem:[%s3828] sm:$0xf]
        %v3830 = vld [vmem:[%s3828 + $0x4] sm:$0xf]
        %v3831 = vld [vmem:[%s3828 + $0x8] sm:$0xf]
        %v3832 = vld [vmem:[%s3828 + $0xc] sm:$0xf]
        %v3833 = vld [vmem:[%s3828 + $0x10] sm:$0xf]
        %v3834 = vld [vmem:[%s3828 + $0x14] sm:$0xf]
        %v3835 = vld [vmem:[%s3828 + $0x18] sm:$0xf]
        %v3836 = vld [vmem:[%s3828 + $0x1c] sm:$0xf]
        %s3837 = scalar_lea.vmem %s73, 1
        %v3838 = vld [vmem:[%s3837] sm:$0x1]
        %s3839 = scalar_lea.vmem %s75, 1
        %v3840 = vld [vmem:[%s3839] sm:$0x1]
        %s3841 = scalar_lea.vmem %s77, 1
        %v3842 = vld [vmem:[%s3841] sm:$0x1]
        %s3843 = scalar_lea.vmem %s79, 1
        %v3844 = vld [vmem:[%s3843] sm:$0x1]
        %s3845 = scalar_lea.vmem %s81, 1
        %v3846 = vld [vmem:[%s3845] sm:$0x1]
        %s3847 = scalar_lea.vmem %s83, 1
        %v3848 = vld [vmem:[%s3847] sm:$0x1]
        %s3849 = scalar_lea.vmem %s85, 1
        %v3850 = vld [vmem:[%s3849] sm:$0x1]
        %v3851 = vpack.c.bf16 %v3785, %v3785
        %v3853 = vlaneseq
        %v3854 = vshrl.u32 %v3853, 7
        %v3855 = vsub.s32 0, %v3854
        %v3856 = vrot.slane %v3792, %v3855
        %v3862 = vunpack.c.l.b16 %v3787
        %v3863 = vunpack.c.l.b16 %v3788
        %v3864 = vunpack.c.l.b16 %v3789
        %v3865 = vunpack.c.l.b16 %v3790
        %v3866 = vpack.c.b16 %v3863, %v3862
        %v3867 = vpack.c.b16 %v3865, %v3864
        %v3871 = vsel %vm1692, %v3851, 0
        %3873 = vmatprep.subr.bf16.mxu0 0
        %3874 = vmatpush1.bf16.msra.mxu0 %v3866
        %3875 = vmatprep.subr.bf16.mxu0 0
        %3876 = vmatpush1.bf16.msra.mxu0 %v3867
        %3877 = vmatprep.subr.bf16.mxu0 0
        %3878 = vmatpush1.bf16.msra.mxu0 0
        %3879 = vmatprep.subr.bf16.mxu0 0
        %3880 = vmatpush1.bf16.msra.mxu0 0
        %3881 = vmatprep.subr.bf16.mxu0 0
        %3882 = vmatpush1.bf16.msra.mxu0 0
        %3883 = vmatprep.subr.bf16.mxu0 0
        %3884 = vmatpush1.bf16.msra.mxu0 0
        %3885 = vmatprep.subr.bf16.mxu0 0
        %3886 = vmatpush1.bf16.msra.mxu0 0
        %3887 = vmatprep.subr.bf16.mxu0 0
        %3888 = vmatpush1.bf16.msra.mxu0 0
        %3889 = vmatprep.subr.bf16.mxu0 0
        %3890 = vmatpush1.bf16.msra.mxu0 0
        %3891 = vmatprep.subr.bf16.mxu0 0
        %3892 = vmatpush1.bf16.msra.mxu0 0
        %3893 = vmatprep.subr.bf16.mxu0 0
        %3894 = vmatpush1.bf16.msra.mxu0 0
        %3895 = vmatprep.subr.bf16.mxu0 0
        %3896 = vmatpush1.bf16.msra.mxu0 0
        %3897 = vmatprep.subr.bf16.mxu0 0
        %3898 = vmatpush1.bf16.msra.mxu0 0
        %3899 = vmatprep.subr.bf16.mxu0 0
        %3900 = vmatpush1.bf16.msra.mxu0 0
        %3901 = vmatprep.subr.bf16.mxu0 0
        %3902 = vmatpush1.bf16.msra.mxu0 0
        %3903 = vmatprep.subr.bf16.mxu0 0
        %3904 = vmatpush1.bf16.msra.mxu0 0
        %3905 = vmatprep.mubr.bf16.mxu0 0
        %3906 = vmatmul.mubr.bf16.gmra.mrb[0].mxu0 %v3871
        %v3907 = vpop.f32.mrb[0].mxu0
        %v3908 = vadd.f32 %v3856, %v3907
        %v3909 = vpop.f32.mrb[0].mxu0
        %v3910 = vpop.f32.mrb[0].mxu0
        %v3911 = vpop.f32.mrb[0].mxu0
        %3912 = vdwg.mxu0
        %v3913 = vmul.f32 %v3908, %v2898
        %v3914 = vmul.f32 %v3908, %v2900
        %v3915 = vmul.f32 %v3908, %v2902
        %v3916 = vmul.f32 %v3908, %v2904
        %v3917 = vpack.c.bf16 %v3914, %v3913
        %v3918 = vpack.c.bf16 %v3916, %v3915
        %v3919 = vmul.f32 %v3908, %v2916
        %v3920 = vmul.f32 %v3908, %v2918
        %v3921 = vmul.f32 %v3908, %v2920
        %v3922 = vmul.f32 %v3908, %v2922
        %v3923 = vpack.c.bf16 %v3920, %v3919
        %v3924 = vpack.c.bf16 %v3922, %v3921
        %v3925 = vpack.c.bf16 %v3908, %v3908
        %3928 = vrot.lane.b32.xlu0 %v3917, 96
        %v3929 = vpop.permute.xlu0 %3928
        %3930 = vrot.lane.b32.xlu0 %v3918, 96
        %v3931 = vpop.permute.xlu0 %3930
        %v3933 = vsel %vm1692, %v3925, 0
        %v3936 = vsel %vm1692, %v3929, 0
        %v3939 = vsel %vm1692, %v3931, 0
        %3941 = vmatprep.subr.bf16.mxu0 0
        %3942 = vmatpush1.bf16.xpose.msra.mxu0 %v3936
        %3943 = vmatprep.subr.bf16.mxu0 0
        %3944 = vmatpush1.bf16.xpose.msra.mxu0 %v3939
        %3945 = vmatprep.subr.bf16.mxu0 0
        %3946 = vmatpush1.bf16.xpose.msra.mxu0 0
        %3947 = vmatprep.subr.bf16.mxu0 0
        %3948 = vmatpush1.bf16.xpose.msra.mxu0 0
        %3949 = vmatprep.subr.bf16.mxu0 0
        %3950 = vmatpush1.bf16.xpose.msra.mxu0 0
        %3951 = vmatprep.subr.bf16.mxu0 0
        %3952 = vmatpush1.bf16.xpose.msra.mxu0 0
        %3953 = vmatprep.subr.bf16.mxu0 0
        %3954 = vmatpush1.bf16.xpose.msra.mxu0 0
        %3955 = vmatprep.subr.bf16.mxu0 0
        %3956 = vmatpush1.bf16.xpose.msra.mxu0 0
        %3957 = vmatprep.subr.bf16.mxu0 0
        %3958 = vmatpush1.bf16.xpose.msra.mxu0 0
        %3959 = vmatprep.subr.bf16.mxu0 0
        %3960 = vmatpush1.bf16.xpose.msra.mxu0 0
        %3961 = vmatprep.subr.bf16.mxu0 0
        %3962 = vmatpush1.bf16.xpose.msra.mxu0 0
        %3963 = vmatprep.subr.bf16.mxu0 0
        %3964 = vmatpush1.bf16.xpose.msra.mxu0 0
        %3965 = vmatprep.subr.bf16.mxu0 0
        %3966 = vmatpush1.bf16.xpose.msra.mxu0 0
        %3967 = vmatprep.subr.bf16.mxu0 0
        %3968 = vmatpush1.bf16.xpose.msra.mxu0 0
        %3969 = vmatprep.subr.bf16.mxu0 0
        %3970 = vmatpush1.bf16.xpose.msra.mxu0 0
        %3971 = vmatprep.subr.bf16.mxu0 0
        %3972 = vmatpush1.bf16.xpose.msra.mxu0 0
        %3973 = vmatprep.mubr.bf16.mxu0 0
        %3974 = vmatmul.mubr.bf16.gmra.mrb[0].mxu0 %v3933
        %v3975 = vpop.f32.mrb[0].mxu0
        %v3976 = vadd.f32 %v1468, %v3975
        %v3977 = vpop.f32.mrb[0].mxu0
        %v3978 = vpop.f32.mrb[0].mxu0
        %v3979 = vpop.f32.mrb[0].mxu0
        %3980 = vdwg.mxu0
        %v3981 = vsel %vm1692, %v3976, -inf
        %3982 = vmax.xlane.f32.xlu0 %v3981
        %v3983 = vpop.xlane.xlu0 %3982
        %v3984 = vsub.f32 %v3976, %v3983
        %v3985 = vmul.f32 %v3984, 1.442695
        %v3986 = vpow.pop %v3985
        %v3988 = vsel %vm1692, %v3986, 0
        %3990 = vmatprep.subr.mxu0 0.0
        %3991 = vmatpush1.msra.mxu0 %v1463
        %3992 = vmatprep.subr.mxu0 0.0
        %3993 = vmatpush1.msra.mxu0 %v1464
        %3994 = vmatprep.subr.mxu0 0.0
        %3995 = vmatpush1.msra.mxu0 %v1465
        %3996 = vmatprep.subr.mxu0 0.0
        %3997 = vmatpush1.msra.mxu0 %v1466
        %3998 = vmatprep.subr.mxu0 0.0
        %3999 = vmatpush1.msra.mxu0 0.0
        %4000 = vmatprep.subr.mxu0 0.0
        %4001 = vmatpush1.msra.mxu0 0.0
        %4002 = vmatprep.subr.mxu0 0.0
        %4003 = vmatpush1.msra.mxu0 0.0
        %4004 = vmatprep.subr.mxu0 0.0
        %4005 = vmatpush1.msra.mxu0 0.0
        %4006 = vmatprep.subr.mxu0 0.0
        %4007 = vmatpush1.msra.mxu0 0.0
        %4008 = vmatprep.subr.mxu0 0.0
        %4009 = vmatpush1.msra.mxu0 0.0
        %4010 = vmatprep.subr.mxu0 0.0
        %4011 = vmatpush1.msra.mxu0 0.0
        %4012 = vmatprep.subr.mxu0 0.0
        %4013 = vmatpush1.msra.mxu0 0.0
        %4014 = vmatprep.subr.mxu0 0.0
        %4015 = vmatpush1.msra.mxu0 0.0
        %4016 = vmatprep.subr.mxu0 0.0
        %4017 = vmatpush1.msra.mxu0 0.0
        %4018 = vmatprep.subr.mxu0 0.0
        %4019 = vmatpush1.msra.mxu0 0.0
        %4020 = vmatprep.subr.mxu0 0.0
        %4021 = vmatpush1.msra.mxu0 0.0
        %4022 = vmatprep.subr.mxu0 0.0
        %4023 = vmatpush1.msra.mxu0 0.0
        %4024 = vmatprep.subr.mxu0 0.0
        %4025 = vmatpush1.msra.mxu0 0.0
        %4026 = vmatprep.subr.mxu0 0.0
        %4027 = vmatpush1.msra.mxu0 0.0
        %4028 = vmatprep.subr.mxu0 0.0
        %4029 = vmatpush1.msra.mxu0 0.0
        %4030 = vmatprep.subr.mxu0 0.0
        %4031 = vmatpush1.msra.mxu0 0.0
        %4032 = vmatprep.subr.mxu0 0.0
        %4033 = vmatpush1.msra.mxu0 0.0
        %4034 = vmatprep.subr.mxu0 0.0
        %4035 = vmatpush1.msra.mxu0 0.0
        %4036 = vmatprep.subr.mxu0 0.0
        %4037 = vmatpush1.msra.mxu0 0.0
        %4038 = vmatprep.subr.mxu0 0.0
        %4039 = vmatpush1.msra.mxu0 0.0
        %4040 = vmatprep.subr.mxu0 0.0
        %4041 = vmatpush1.msra.mxu0 0.0
        %4042 = vmatprep.subr.mxu0 0.0
        %4043 = vmatpush1.msra.mxu0 0.0
        %4044 = vmatprep.subr.mxu0 0.0
        %4045 = vmatpush1.msra.mxu0 0.0
        %4046 = vmatprep.subr.mxu0 0.0
        %4047 = vmatpush1.msra.mxu0 0.0
        %4048 = vmatprep.subr.mxu0 0.0
        %4049 = vmatpush1.msra.mxu0 0.0
        %4050 = vmatprep.subr.mxu0 0.0
        %4051 = vmatpush1.msra.mxu0 0.0
        %4052 = vmatprep.subr.mxu0 0.0
        %4053 = vmatpush1.msra.mxu0 0.0
        %4054 = vmatprep.mubr.f32.mxu0 0.0
        %4055 = vmatmul.mubr.f32.gmra.mrb[0].mxu0 %v3988
        %v4056 = vpop.f32.mrb[0].mxu0
        %v4057 = vadd.f32 0.0, %v4056
        %v4058 = vpop.f32.mrb[0].mxu0
        %4059 = vdwg.mxu0
        %v4060 = vrcp.pop %v4057
        %v4061 = vmul.f32 %v3986, %v4060
        %v4062 = vpack.c.bf16 %v4061, %v4061
        %4065 = vrot.lane.b32.xlu0 %v3923, 64
        %v4066 = vpop.permute.xlu0 %4065
        %4067 = vrot.lane.b32.xlu0 %v3924, 64
        %v4068 = vpop.permute.xlu0 %4067
        %v4072 = vsel %vm1692, %v4062, 0
        %4074 = vmatprep.subr.bf16.mxu0 0
        %4075 = vmatpush1.bf16.msra.mxu0 %v4066
        %4076 = vmatprep.subr.bf16.mxu0 0
        %4077 = vmatpush1.bf16.msra.mxu0 %v4068
        %4078 = vmatprep.subr.bf16.mxu0 0
        %4079 = vmatpush1.bf16.msra.mxu0 0
        %4080 = vmatprep.subr.bf16.mxu0 0
        %4081 = vmatpush1.bf16.msra.mxu0 0
        %4082 = vmatprep.subr.bf16.mxu0 0
        %4083 = vmatpush1.bf16.msra.mxu0 0
        %4084 = vmatprep.subr.bf16.mxu0 0
        %4085 = vmatpush1.bf16.msra.mxu0 0
        %4086 = vmatprep.subr.bf16.mxu0 0
        %4087 = vmatpush1.bf16.msra.mxu0 0
        %4088 = vmatprep.subr.bf16.mxu0 0
        %4089 = vmatpush1.bf16.msra.mxu0 0
        %4090 = vmatprep.subr.bf16.mxu0 0
        %4091 = vmatpush1.bf16.msra.mxu0 0
        %4092 = vmatprep.subr.bf16.mxu0 0
        %4093 = vmatpush1.bf16.msra.mxu0 0
        %4094 = vmatprep.subr.bf16.mxu0 0
        %4095 = vmatpush1.bf16.msra.mxu0 0
        %4096 = vmatprep.subr.bf16.mxu0 0
        %4097 = vmatpush1.bf16.msra.mxu0 0
        %4098 = vmatprep.subr.bf16.mxu0 0
        %4099 = vmatpush1.bf16.msra.mxu0 0
        %4100 = vmatprep.subr.bf16.mxu0 0
        %4101 = vmatpush1.bf16.msra.mxu0 0
        %4102 = vmatprep.subr.bf16.mxu0 0
        %4103 = vmatpush1.bf16.msra.mxu0 0
        %4104 = vmatprep.subr.bf16.mxu0 0
        %4105 = vmatpush1.bf16.msra.mxu0 0
        %4106 = vmatprep.mubr.bf16.mxu0 0
        %4107 = vmatmul.mubr.bf16.gmra.mrb[0].mxu0 %v4072
        %v4108 = vpop.f32.mrb[0].mxu0
        %v4109 = vadd.f32 0.0, %v4108
        %v4110 = vpop.f32.mrb[0].mxu0
        %v4111 = vpop.f32.mrb[0].mxu0
        %v4112 = vpop.f32.mrb[0].mxu0
        %4113 = vdwg.mxu0
        %v4114 = vpack.c.bf16 %v4109, %v4109
        %v4116 = vlaneseq
        %v4117 = vshrl.u32 %v4116, 7
        %v4118 = vsub.s32 0, %v4117
        %v4119 = vrot.slane %v3799, %v4118
        %v4125 = vunpack.c.l.b16 %v3794
        %v4126 = vunpack.c.l.b16 %v3795
        %v4127 = vunpack.c.l.b16 %v3796
        %v4128 = vunpack.c.l.b16 %v3797
        %v4129 = vpack.c.b16 %v4126, %v4125
        %v4130 = vpack.c.b16 %v4128, %v4127
        %v4134 = vsel %vm1692, %v4114, 0
        %4136 = vmatprep.subr.bf16.mxu0 0
        %4137 = vmatpush1.bf16.msra.mxu0 %v4129
        %4138 = vmatprep.subr.bf16.mxu0 0
        %4139 = vmatpush1.bf16.msra.mxu0 %v4130
        %4140 = vmatprep.subr.bf16.mxu0 0
        %4141 = vmatpush1.bf16.msra.mxu0 0
        %4142 = vmatprep.subr.bf16.mxu0 0
        %4143 = vmatpush1.bf16.msra.mxu0 0
        %4144 = vmatprep.subr.bf16.mxu0 0
        %4145 = vmatpush1.bf16.msra.mxu0 0
        %4146 = vmatprep.subr.bf16.mxu0 0
        %4147 = vmatpush1.bf16.msra.mxu0 0
        %4148 = vmatprep.subr.bf16.mxu0 0
        %4149 = vmatpush1.bf16.msra.mxu0 0
        %4150 = vmatprep.subr.bf16.mxu0 0
        %4151 = vmatpush1.bf16.msra.mxu0 0
        %4152 = vmatprep.subr.bf16.mxu0 0
        %4153 = vmatpush1.bf16.msra.mxu0 0
        %4154 = vmatprep.subr.bf16.mxu0 0
        %4155 = vmatpush1.bf16.msra.mxu0 0
        %4156 = vmatprep.subr.bf16.mxu0 0
        %4157 = vmatpush1.bf16.msra.mxu0 0
        %4158 = vmatprep.subr.bf16.mxu0 0
        %4159 = vmatpush1.bf16.msra.mxu0 0
        %4160 = vmatprep.subr.bf16.mxu0 0
        %4161 = vmatpush1.bf16.msra.mxu0 0
        %4162 = vmatprep.subr.bf16.mxu0 0
        %4163 = vmatpush1.bf16.msra.mxu0 0
        %4164 = vmatprep.subr.bf16.mxu0 0
        %4165 = vmatpush1.bf16.msra.mxu0 0
        %4166 = vmatprep.subr.bf16.mxu0 0
        %4167 = vmatpush1.bf16.msra.mxu0 0
        %4168 = vmatprep.mubr.bf16.mxu0 0
        %4169 = vmatmul.mubr.bf16.gmra.mrb[0].mxu0 %v4134
        %v4170 = vpop.f32.mrb[0].mxu0
        %v4171 = vadd.f32 %v4119, %v4170
        %v4172 = vpop.f32.mrb[0].mxu0
        %v4173 = vpop.f32.mrb[0].mxu0
        %v4174 = vpop.f32.mrb[0].mxu0
        %4175 = vdwg.mxu0
        %v4176 = vadd.f32 %v3785, %v4171
        %v4177 = vsel %vm1692, %v4176, 0.0
        %4178 = vadd.xlane.f32.xlu0 %v4177
        %v4179 = vpop.xlane.xlu0 %4178
        %v4180 = vmul.f32 %v4179, %v2037
        %v4181 = vsub.f32 %v4176, %v4180
        %v4182 = vmul.f32 %v4181, %v4181
        %v4183 = vsel %vm1692, %v4182, 0.0
        %4184 = vadd.xlane.f32.xlu0 %v4183
        %v4185 = vpop.xlane.xlu0 %4184
        %v4186 = vmul.f32 %v4185, %v2037
        %v4187 = vadd.f32 %v4186, 1e-05
        %v4188 = vrsqrt.pop %v4187
        %v4189 = vmul.f32 %v4181, %v4188
        %v4191 = vlaneseq
        %v4192 = vshrl.u32 %v4191, 7
        %v4193 = vsub.s32 0, %v4192
        %v4194 = vrot.slane %v3840, %v4193
        %v4196 = vmul.f32 %v4189, %v4194
        %v4198 = vlaneseq
        %v4199 = vshrl.u32 %v4198, 7
        %v4200 = vsub.s32 0, %v4199
        %v4201 = vrot.slane %v3842, %v4200
        %v4203 = vadd.f32 %v4196, %v4201
        %v4204 = vpack.c.bf16 %v4203, %v4203
        %v4206 = vlaneseq
        %v4207 = vshrl.u32 %v4206, 7
        %v4208 = vsub.s32 0, %v4207
        %v4209 = vrot.slane %v3806, %v4208
        %v4215 = vunpack.c.l.b16 %v3801
        %v4216 = vunpack.c.l.b16 %v3802
        %v4217 = vunpack.c.l.b16 %v3803
        %v4218 = vunpack.c.l.b16 %v3804
        %v4219 = vpack.c.b16 %v4216, %v4215
        %v4220 = vpack.c.b16 %v4218, %v4217
        %v4224 = vsel %vm1692, %v4204, 0
        %4226 = vmatprep.subr.bf16.mxu0 0
        %4227 = vmatpush1.bf16.msra.mxu0 %v4219
        %4228 = vmatprep.subr.bf16.mxu0 0
        %4229 = vmatpush1.bf16.msra.mxu0 %v4220
        %4230 = vmatprep.subr.bf16.mxu0 0
        %4231 = vmatpush1.bf16.msra.mxu0 0
        %4232 = vmatprep.subr.bf16.mxu0 0
        %4233 = vmatpush1.bf16.msra.mxu0 0
        %4234 = vmatprep.subr.bf16.mxu0 0
        %4235 = vmatpush1.bf16.msra.mxu0 0
        %4236 = vmatprep.subr.bf16.mxu0 0
        %4237 = vmatpush1.bf16.msra.mxu0 0
        %4238 = vmatprep.subr.bf16.mxu0 0
        %4239 = vmatpush1.bf16.msra.mxu0 0
        %4240 = vmatprep.subr.bf16.mxu0 0
        %4241 = vmatpush1.bf16.msra.mxu0 0
        %4242 = vmatprep.subr.bf16.mxu0 0
        %4243 = vmatpush1.bf16.msra.mxu0 0
        %4244 = vmatprep.subr.bf16.mxu0 0
        %4245 = vmatpush1.bf16.msra.mxu0 0
        %4246 = vmatprep.subr.bf16.mxu0 0
        %4247 = vmatpush1.bf16.msra.mxu0 0
        %4248 = vmatprep.subr.bf16.mxu0 0
        %4249 = vmatpush1.bf16.msra.mxu0 0
        %4250 = vmatprep.subr.bf16.mxu0 0
        %4251 = vmatpush1.bf16.msra.mxu0 0
        %4252 = vmatprep.subr.bf16.mxu0 0
        %4253 = vmatpush1.bf16.msra.mxu0 0
        %4254 = vmatprep.subr.bf16.mxu0 0
        %4255 = vmatpush1.bf16.msra.mxu0 0
        %4256 = vmatprep.subr.bf16.mxu0 0
        %4257 = vmatpush1.bf16.msra.mxu0 0
        %4258 = vmatprep.mubr.bf16.mxu0 0
        %4259 = vmatmul.mubr.bf16.gmra.mrb[0].mxu0 %v4224
        %v4260 = vpop.f32.mrb[0].mxu0
        %v4261 = vadd.f32 %v4209, %v4260
        %v4262 = vpop.f32.mrb[0].mxu0
        %v4263 = vpop.f32.mrb[0].mxu0
        %v4264 = vpop.f32.mrb[0].mxu0
        %4265 = vdwg.mxu0
        %v4267 = vlaneseq
        %v4268 = vshrl.u32 %v4267, 7
        %v4269 = vsub.s32 0, %v4268
        %v4270 = vrot.slane %v3813, %v4269
        %v4276 = vunpack.c.l.b16 %v3808
        %v4277 = vunpack.c.l.b16 %v3809
        %v4278 = vunpack.c.l.b16 %v3810
        %v4279 = vunpack.c.l.b16 %v3811
        %v4280 = vpack.c.b16 %v4277, %v4276
        %v4281 = vpack.c.b16 %v4279, %v4278
        %4284 = vmatprep.subr.bf16.mxu0 0
        %4285 = vmatpush1.bf16.msra.mxu0 %v4280
        %4286 = vmatprep.subr.bf16.mxu0 0
        %4287 = vmatpush1.bf16.msra.mxu0 %v4281
        %4288 = vmatprep.subr.bf16.mxu0 0
        %4289 = vmatpush1.bf16.msra.mxu0 0
        %4290 = vmatprep.subr.bf16.mxu0 0
        %4291 = vmatpush1.bf16.msra.mxu0 0
        %4292 = vmatprep.subr.bf16.mxu0 0
        %4293 = vmatpush1.bf16.msra.mxu0 0
        %4294 = vmatprep.subr.bf16.mxu0 0
        %4295 = vmatpush1.bf16.msra.mxu0 0
        %4296 = vmatprep.subr.bf16.mxu0 0
        %4297 = vmatpush1.bf16.msra.mxu0 0
        %4298 = vmatprep.subr.bf16.mxu0 0
        %4299 = vmatpush1.bf16.msra.mxu0 0
        %4300 = vmatprep.subr.bf16.mxu0 0
        %4301 = vmatpush1.bf16.msra.mxu0 0
        %4302 = vmatprep.subr.bf16.mxu0 0
        %4303 = vmatpush1.bf16.msra.mxu0 0
        %4304 = vmatprep.subr.bf16.mxu0 0
        %4305 = vmatpush1.bf16.msra.mxu0 0
        %4306 = vmatprep.subr.bf16.mxu0 0
        %4307 = vmatpush1.bf16.msra.mxu0 0
        %4308 = vmatprep.subr.bf16.mxu0 0
        %4309 = vmatpush1.bf16.msra.mxu0 0
        %4310 = vmatprep.subr.bf16.mxu0 0
        %4311 = vmatpush1.bf16.msra.mxu0 0
        %4312 = vmatprep.subr.bf16.mxu0 0
        %4313 = vmatpush1.bf16.msra.mxu0 0
        %4314 = vmatprep.subr.bf16.mxu0 0
        %4315 = vmatpush1.bf16.msra.mxu0 0
        %4316 = vmatprep.mubr.bf16.mxu0 0
        %4317 = vmatmul.mubr.bf16.gmra.mrb[0].mxu0 %v3294
        %v4318 = vpop.f32.mrb[0].mxu0
        %v4319 = vadd.f32 %v4270, %v4318
        %v4320 = vpop.f32.mrb[0].mxu0
        %v4321 = vpop.f32.mrb[0].mxu0
        %v4322 = vpop.f32.mrb[0].mxu0
        %4323 = vdwg.mxu0
        %v4324 = vmul.f32 %v4319, %v1451
        %v4325 = vmul.f32 %v4319, %v1452
        %v4326 = vmul.f32 %v4319, %v1453
        %v4327 = vmul.f32 %v4319, %v1454
        %v4328 = vpack.c.bf16 %v4325, %v4324
        %v4329 = vpack.c.bf16 %v4327, %v4326
        %v4330 = vmul.f32 %v4319, %v1741
        %v4331 = vmul.f32 %v4319, %v1743
        %v4332 = vmul.f32 %v4319, %v1745
        %v4333 = vmul.f32 %v4319, %v1747
        %v4334 = vpack.c.bf16 %v4331, %v4330
        %v4335 = vpack.c.bf16 %v4333, %v4332
        %v4336 = vpack.c.bf16 %v4261, %v4261
        %v4338 = vsel %vm1692, %v4336, 0
        %v4341 = vsel %vm1692, %v4328, 0
        %v4344 = vsel %vm1692, %v4329, 0
        %4346 = vmatprep.subr.bf16.mxu0 0
        %4347 = vmatpush1.bf16.xpose.msra.mxu0 %v4341
        %4348 = vmatprep.subr.bf16.mxu0 0
        %4349 = vmatpush1.bf16.xpose.msra.mxu0 %v4344
        %4350 = vmatprep.subr.bf16.mxu0 0
        %4351 = vmatpush1.bf16.xpose.msra.mxu0 0
        %4352 = vmatprep.subr.bf16.mxu0 0
        %4353 = vmatpush1.bf16.xpose.msra.mxu0 0
        %4354 = vmatprep.subr.bf16.mxu0 0
        %4355 = vmatpush1.bf16.xpose.msra.mxu0 0
        %4356 = vmatprep.subr.bf16.mxu0 0
        %4357 = vmatpush1.bf16.xpose.msra.mxu0 0
        %4358 = vmatprep.subr.bf16.mxu0 0
        %4359 = vmatpush1.bf16.xpose.msra.mxu0 0
        %4360 = vmatprep.subr.bf16.mxu0 0
        %4361 = vmatpush1.bf16.xpose.msra.mxu0 0
        %4362 = vmatprep.subr.bf16.mxu0 0
        %4363 = vmatpush1.bf16.xpose.msra.mxu0 0
        %4364 = vmatprep.subr.bf16.mxu0 0
        %4365 = vmatpush1.bf16.xpose.msra.mxu0 0
        %4366 = vmatprep.subr.bf16.mxu0 0
        %4367 = vmatpush1.bf16.xpose.msra.mxu0 0
        %4368 = vmatprep.subr.bf16.mxu0 0
        %4369 = vmatpush1.bf16.xpose.msra.mxu0 0
        %4370 = vmatprep.subr.bf16.mxu0 0
        %4371 = vmatpush1.bf16.xpose.msra.mxu0 0
        %4372 = vmatprep.subr.bf16.mxu0 0
        %4373 = vmatpush1.bf16.xpose.msra.mxu0 0
        %4374 = vmatprep.subr.bf16.mxu0 0
        %4375 = vmatpush1.bf16.xpose.msra.mxu0 0
        %4376 = vmatprep.subr.bf16.mxu0 0
        %4377 = vmatpush1.bf16.xpose.msra.mxu0 0
        %4378 = vmatprep.mubr.bf16.mxu0 0
        %4379 = vmatmul.mubr.bf16.gmra.mrb[0].mxu0 %v4338
        %v4380 = vpop.f32.mrb[0].mxu0
        %v4381 = vadd.f32 %v1781, %v4380
        %v4382 = vpop.f32.mrb[0].mxu0
        %v4383 = vpop.f32.mrb[0].mxu0
        %v4384 = vpop.f32.mrb[0].mxu0
        %4385 = vdwg.mxu0
        %v4386 = vsel %vm1692, %v4381, -inf
        %4387 = vmax.xlane.f32.xlu0 %v4386
        %v4388 = vpop.xlane.xlu0 %4387
        %v4389 = vsub.f32 %v4381, %v4388
        %v4390 = vmul.f32 %v4389, 1.442695
        %v4391 = vpow.pop %v4390
        %v4393 = vsel %vm1692, %v4391, 0
        %4395 = vmatprep.subr.mxu0 0.0
        %4396 = vmatpush1.msra.mxu0 %v1459
        %4397 = vmatprep.subr.mxu0 0.0
        %4398 = vmatpush1.msra.mxu0 %v1460
        %4399 = vmatprep.subr.mxu0 0.0
        %4400 = vmatpush1.msra.mxu0 %v1461
        %4401 = vmatprep.subr.mxu0 0.0
        %4402 = vmatpush1.msra.mxu0 %v1462
        %4403 = vmatprep.subr.mxu0 0.0
        %4404 = vmatpush1.msra.mxu0 0.0
        %4405 = vmatprep.subr.mxu0 0.0
        %4406 = vmatpush1.msra.mxu0 0.0
        %4407 = vmatprep.subr.mxu0 0.0
        %4408 = vmatpush1.msra.mxu0 0.0
        %4409 = vmatprep.subr.mxu0 0.0
        %4410 = vmatpush1.msra.mxu0 0.0
        %4411 = vmatprep.subr.mxu0 0.0
        %4412 = vmatpush1.msra.mxu0 0.0
        %4413 = vmatprep.subr.mxu0 0.0
        %4414 = vmatpush1.msra.mxu0 0.0
        %4415 = vmatprep.subr.mxu0 0.0
        %4416 = vmatpush1.msra.mxu0 0.0
        %4417 = vmatprep.subr.mxu0 0.0
        %4418 = vmatpush1.msra.mxu0 0.0
        %4419 = vmatprep.subr.mxu0 0.0
        %4420 = vmatpush1.msra.mxu0 0.0
        %4421 = vmatprep.subr.mxu0 0.0
        %4422 = vmatpush1.msra.mxu0 0.0
        %4423 = vmatprep.subr.mxu0 0.0
        %4424 = vmatpush1.msra.mxu0 0.0
        %4425 = vmatprep.subr.mxu0 0.0
        %4426 = vmatpush1.msra.mxu0 0.0
        %4427 = vmatprep.subr.mxu0 0.0
        %4428 = vmatpush1.msra.mxu0 0.0
        %4429 = vmatprep.subr.mxu0 0.0
        %4430 = vmatpush1.msra.mxu0 0.0
        %4431 = vmatprep.subr.mxu0 0.0
        %4432 = vmatpush1.msra.mxu0 0.0
        %4433 = vmatprep.subr.mxu0 0.0
        %4434 = vmatpush1.msra.mxu0 0.0
        %4435 = vmatprep.subr.mxu0 0.0
        %4436 = vmatpush1.msra.mxu0 0.0
        %4437 = vmatprep.subr.mxu0 0.0
        %4438 = vmatpush1.msra.mxu0 0.0
        %4439 = vmatprep.subr.mxu0 0.0
        %4440 = vmatpush1.msra.mxu0 0.0
        %4441 = vmatprep.subr.mxu0 0.0
        %4442 = vmatpush1.msra.mxu0 0.0
        %4443 = vmatprep.subr.mxu0 0.0
        %4444 = vmatpush1.msra.mxu0 0.0
        %4445 = vmatprep.subr.mxu0 0.0
        %4446 = vmatpush1.msra.mxu0 0.0
        %4447 = vmatprep.subr.mxu0 0.0
        %4448 = vmatpush1.msra.mxu0 0.0
        %4449 = vmatprep.subr.mxu0 0.0
        %4450 = vmatpush1.msra.mxu0 0.0
        %4451 = vmatprep.subr.mxu0 0.0
        %4452 = vmatpush1.msra.mxu0 0.0
        %4453 = vmatprep.subr.mxu0 0.0
        %4454 = vmatpush1.msra.mxu0 0.0
        %4455 = vmatprep.subr.mxu0 0.0
        %4456 = vmatpush1.msra.mxu0 0.0
        %4457 = vmatprep.subr.mxu0 0.0
        %4458 = vmatpush1.msra.mxu0 0.0
        %4459 = vmatprep.mubr.f32.mxu0 0.0
        %4460 = vmatmul.mubr.f32.gmra.mrb[0].mxu0 %v4393
        %v4461 = vpop.f32.mrb[0].mxu0
        %v4462 = vadd.f32 0.0, %v4461
        %v4463 = vpop.f32.mrb[0].mxu0
        %4464 = vdwg.mxu0
        %v4465 = vrcp.pop %v4462
        %v4466 = vmul.f32 %v4391, %v4465
        %v4467 = vpack.c.bf16 %v4466, %v4466
        %4470 = vrot.lane.b32.xlu0 %v4334, 96
        %v4471 = vpop.permute.xlu0 %4470
        %4472 = vrot.lane.b32.xlu0 %v4335, 96
        %v4473 = vpop.permute.xlu0 %4472
        %v4477 = vsel %vm1692, %v4467, 0
        %4479 = vmatprep.subr.bf16.mxu0 0
        %4480 = vmatpush1.bf16.msra.mxu0 %v4471
        %4481 = vmatprep.subr.bf16.mxu0 0
        %4482 = vmatpush1.bf16.msra.mxu0 %v4473
        %4483 = vmatprep.subr.bf16.mxu0 0
        %4484 = vmatpush1.bf16.msra.mxu0 0
        %4485 = vmatprep.subr.bf16.mxu0 0
        %4486 = vmatpush1.bf16.msra.mxu0 0
        %4487 = vmatprep.subr.bf16.mxu0 0
        %4488 = vmatpush1.bf16.msra.mxu0 0
        %4489 = vmatprep.subr.bf16.mxu0 0
        %4490 = vmatpush1.bf16.msra.mxu0 0
        %4491 = vmatprep.subr.bf16.mxu0 0
        %4492 = vmatpush1.bf16.msra.mxu0 0
        %4493 = vmatprep.subr.bf16.mxu0 0
        %4494 = vmatpush1.bf16.msra.mxu0 0
        %4495 = vmatprep.subr.bf16.mxu0 0
        %4496 = vmatpush1.bf16.msra.mxu0 0
        %4497 = vmatprep.subr.bf16.mxu0 0
        %4498 = vmatpush1.bf16.msra.mxu0 0
        %4499 = vmatprep.subr.bf16.mxu0 0
        %4500 = vmatpush1.bf16.msra.mxu0 0
        %4501 = vmatprep.subr.bf16.mxu0 0
        %4502 = vmatpush1.bf16.msra.mxu0 0
        %4503 = vmatprep.subr.bf16.mxu0 0
        %4504 = vmatpush1.bf16.msra.mxu0 0
        %4505 = vmatprep.subr.bf16.mxu0 0
        %4506 = vmatpush1.bf16.msra.mxu0 0
        %4507 = vmatprep.subr.bf16.mxu0 0
        %4508 = vmatpush1.bf16.msra.mxu0 0
        %4509 = vmatprep.subr.bf16.mxu0 0
        %4510 = vmatpush1.bf16.msra.mxu0 0
        %4511 = vmatprep.mubr.bf16.mxu0 0
        %4512 = vmatmul.mubr.bf16.gmra.mrb[0].mxu0 %v4477
        %v4513 = vpop.f32.mrb[0].mxu0
        %v4514 = vadd.f32 0.0, %v4513
        %v4515 = vpop.f32.mrb[0].mxu0
        %v4516 = vpop.f32.mrb[0].mxu0
        %v4517 = vpop.f32.mrb[0].mxu0
        %4518 = vdwg.mxu0
        %v4519 = vpack.c.bf16 %v4514, %v4514
        %v4521 = vlaneseq
        %v4522 = vshrl.u32 %v4521, 7
        %v4523 = vsub.s32 0, %v4522
        %v4524 = vrot.slane %v3820, %v4523
        %v4530 = vunpack.c.l.b16 %v3815
        %v4531 = vunpack.c.l.b16 %v3816
        %v4532 = vunpack.c.l.b16 %v3817
        %v4533 = vunpack.c.l.b16 %v3818
        %v4534 = vpack.c.b16 %v4531, %v4530
        %v4535 = vpack.c.b16 %v4533, %v4532
        %v4539 = vsel %vm1692, %v4519, 0
        %4541 = vmatprep.subr.bf16.mxu0 0
        %4542 = vmatpush1.bf16.msra.mxu0 %v4534
        %4543 = vmatprep.subr.bf16.mxu0 0
        %4544 = vmatpush1.bf16.msra.mxu0 %v4535
        %4545 = vmatprep.subr.bf16.mxu0 0
        %4546 = vmatpush1.bf16.msra.mxu0 0
        %4547 = vmatprep.subr.bf16.mxu0 0
        %4548 = vmatpush1.bf16.msra.mxu0 0
        %4549 = vmatprep.subr.bf16.mxu0 0
        %4550 = vmatpush1.bf16.msra.mxu0 0
        %4551 = vmatprep.subr.bf16.mxu0 0
        %4552 = vmatpush1.bf16.msra.mxu0 0
        %4553 = vmatprep.subr.bf16.mxu0 0
        %4554 = vmatpush1.bf16.msra.mxu0 0
        %4555 = vmatprep.subr.bf16.mxu0 0
        %4556 = vmatpush1.bf16.msra.mxu0 0
        %4557 = vmatprep.subr.bf16.mxu0 0
        %4558 = vmatpush1.bf16.msra.mxu0 0
        %4559 = vmatprep.subr.bf16.mxu0 0
        %4560 = vmatpush1.bf16.msra.mxu0 0
        %4561 = vmatprep.subr.bf16.mxu0 0
        %4562 = vmatpush1.bf16.msra.mxu0 0
        %4563 = vmatprep.subr.bf16.mxu0 0
        %4564 = vmatpush1.bf16.msra.mxu0 0
        %4565 = vmatprep.subr.bf16.mxu0 0
        %4566 = vmatpush1.bf16.msra.mxu0 0
        %4567 = vmatprep.subr.bf16.mxu0 0
        %4568 = vmatpush1.bf16.msra.mxu0 0
        %4569 = vmatprep.subr.bf16.mxu0 0
        %4570 = vmatpush1.bf16.msra.mxu0 0
        %4571 = vmatprep.subr.bf16.mxu0 0
        %4572 = vmatpush1.bf16.msra.mxu0 0
        %4573 = vmatprep.mubr.bf16.mxu0 0
        %4574 = vmatmul.mubr.bf16.gmra.mrb[0].mxu0 %v4539
        %v4575 = vpop.f32.mrb[0].mxu0
        %v4576 = vadd.f32 %v4524, %v4575
        %v4577 = vpop.f32.mrb[0].mxu0
        %v4578 = vpop.f32.mrb[0].mxu0
        %v4579 = vpop.f32.mrb[0].mxu0
        %4580 = vdwg.mxu0
        %v4581 = vadd.f32 %v4203, %v4576
        %v4582 = vsel %vm1692, %v4581, 0.0
        %4583 = vadd.xlane.f32.xlu0 %v4582
        %v4584 = vpop.xlane.xlu0 %4583
        %v4585 = vmul.f32 %v4584, %v2037
        %v4586 = vsub.f32 %v4581, %v4585
        %v4587 = vmul.f32 %v4586, %v4586
        %v4588 = vsel %vm1692, %v4587, 0.0
        %4589 = vadd.xlane.f32.xlu0 %v4588
        %v4590 = vpop.xlane.xlu0 %4589
        %v4591 = vmul.f32 %v4590, %v2037
        %v4592 = vadd.f32 %v4591, 1e-05
        %v4593 = vrsqrt.pop %v4592
        %v4594 = vmul.f32 %v4586, %v4593
        %v4596 = vlaneseq
        %v4597 = vshrl.u32 %v4596, 7
        %v4598 = vsub.s32 0, %v4597
        %v4599 = vrot.slane %v3844, %v4598
        %v4601 = vmul.f32 %v4594, %v4599
        %v4603 = vlaneseq
        %v4604 = vshrl.u32 %v4603, 7
        %v4605 = vsub.s32 0, %v4604
        %v4606 = vrot.slane %v3846, %v4605
        %v4608 = vadd.f32 %v4601, %v4606
        %v4609 = vpack.c.bf16 %v4608, %v4608
        %v4611 = vlaneseq
        %v4612 = vshrl.u32 %v4611, 7
        %v4613 = vsub.s32 0, %v4612
        %v4614 = vrot.slane %v3827, %v4613
        %v4620 = vunpack.c.l.b16 %v3822
        %v4621 = vunpack.c.l.b16 %v3823
        %v4622 = vunpack.c.l.b16 %v3824
        %v4623 = vunpack.c.l.b16 %v3825
        %v4624 = vpack.c.b16 %v4621, %v4620
        %v4625 = vpack.c.b16 %v4623, %v4622
        %v4629 = vsel %vm1692, %v4609, 0
        %4631 = vmatprep.subr.bf16.mxu0 0
        %4632 = vmatpush1.bf16.msra.mxu0 %v4624
        %4633 = vmatprep.subr.bf16.mxu0 0
        %4634 = vmatpush1.bf16.msra.mxu0 %v4625
        %4635 = vmatprep.subr.bf16.mxu0 0
        %4636 = vmatpush1.bf16.msra.mxu0 0
        %4637 = vmatprep.subr.bf16.mxu0 0
        %4638 = vmatpush1.bf16.msra.mxu0 0
        %4639 = vmatprep.subr.bf16.mxu0 0
        %4640 = vmatpush1.bf16.msra.mxu0 0
        %4641 = vmatprep.subr.bf16.mxu0 0
        %4642 = vmatpush1.bf16.msra.mxu0 0
        %4643 = vmatprep.subr.bf16.mxu0 0
        %4644 = vmatpush1.bf16.msra.mxu0 0
        %4645 = vmatprep.subr.bf16.mxu0 0
        %4646 = vmatpush1.bf16.msra.mxu0 0
        %4647 = vmatprep.subr.bf16.mxu0 0
        %4648 = vmatpush1.bf16.msra.mxu0 0
        %4649 = vmatprep.subr.bf16.mxu0 0
        %4650 = vmatpush1.bf16.msra.mxu0 0
        %4651 = vmatprep.subr.bf16.mxu0 0
        %4652 = vmatpush1.bf16.msra.mxu0 0
        %4653 = vmatprep.subr.bf16.mxu0 0
        %4654 = vmatpush1.bf16.msra.mxu0 0
        %4655 = vmatprep.subr.bf16.mxu0 0
        %4656 = vmatpush1.bf16.msra.mxu0 0
        %4657 = vmatprep.subr.bf16.mxu0 0
        %4658 = vmatpush1.bf16.msra.mxu0 0
        %4659 = vmatprep.subr.bf16.mxu0 0
        %4660 = vmatpush1.bf16.msra.mxu0 0
        %4661 = vmatprep.subr.bf16.mxu0 0
        %4662 = vmatpush1.bf16.msra.mxu0 0
        %4663 = vmatprep.mubr.bf16.mxu0 0
        %4664 = vmatmul.mubr.bf16.gmra.mrb[0].mxu0 %v4629
        %v4665 = vpop.f32.mrb[0].mxu0
        %v4666 = vadd.f32 %v4614, %v4665
        %v4667 = vpop.f32.mrb[0].mxu0
        %v4668 = vpop.f32.mrb[0].mxu0
        %v4669 = vpop.f32.mrb[0].mxu0
        %4670 = vdwg.mxu0
        %v4671 = vmax.f32 %v4666, 0.0
        %v4672 = vpack.c.bf16 %v4671, %v4671
        %v4674 = vlaneseq
        %v4675 = vshrl.u32 %v4674, 7
        %v4676 = vsub.s32 0, %v4675
        %v4677 = vrot.slane %v3838, %v4676
        %v4687 = vunpack.c.l.b16 %v3829
        %v4688 = vunpack.c.l.b16 %v3830
        %v4689 = vunpack.c.l.b16 %v3831
        %v4690 = vunpack.c.l.b16 %v3832
        %v4691 = vunpack.c.l.b16 %v3833
        %v4692 = vunpack.c.l.b16 %v3834
        %v4693 = vunpack.c.l.b16 %v3835
        %v4694 = vunpack.c.l.b16 %v3836
        %v4695 = vpack.c.b16 %v4688, %v4687
        %v4696 = vpack.c.b16 %v4690, %v4689
        %v4697 = vpack.c.b16 %v4692, %v4691
        %v4698 = vpack.c.b16 %v4694, %v4693
        %v4704 = vsel %vm2156, %v4672, 0
        %4706 = vmatprep.subr.bf16.mxu0 0
        %4707 = vmatpush1.bf16.msra.mxu0 %v4695
        %4708 = vmatprep.subr.bf16.mxu0 0
        %4709 = vmatpush1.bf16.msra.mxu0 %v4696
        %4710 = vmatprep.subr.bf16.mxu0 0
        %4711 = vmatpush1.bf16.msra.mxu0 %v4697
        %4712 = vmatprep.subr.bf16.mxu0 0
        %4713 = vmatpush1.bf16.msra.mxu0 %v4698
        %4714 = vmatprep.subr.bf16.mxu0 0
        %4715 = vmatpush1.bf16.msra.mxu0 0
        %4716 = vmatprep.subr.bf16.mxu0 0
        %4717 = vmatpush1.bf16.msra.mxu0 0
        %4718 = vmatprep.subr.bf16.mxu0 0
        %4719 = vmatpush1.bf16.msra.mxu0 0
        %4720 = vmatprep.subr.bf16.mxu0 0
        %4721 = vmatpush1.bf16.msra.mxu0 0
        %4722 = vmatprep.subr.bf16.mxu0 0
        %4723 = vmatpush1.bf16.msra.mxu0 0
        %4724 = vmatprep.subr.bf16.mxu0 0
        %4725 = vmatpush1.bf16.msra.mxu0 0
        %4726 = vmatprep.subr.bf16.mxu0 0
        %4727 = vmatpush1.bf16.msra.mxu0 0
        %4728 = vmatprep.subr.bf16.mxu0 0
        %4729 = vmatpush1.bf16.msra.mxu0 0
        %4730 = vmatprep.subr.bf16.mxu0 0
        %4731 = vmatpush1.bf16.msra.mxu0 0
        %4732 = vmatprep.subr.bf16.mxu0 0
        %4733 = vmatpush1.bf16.msra.mxu0 0
        %4734 = vmatprep.subr.bf16.mxu0 0
        %4735 = vmatpush1.bf16.msra.mxu0 0
        %4736 = vmatprep.subr.bf16.mxu0 0
        %4737 = vmatpush1.bf16.msra.mxu0 0
        %4738 = vmatprep.mubr.bf16.mxu0 0
        %4739 = vmatmul.mubr.bf16.gmra.mrb[0].mxu0 %v4704
        %v4740 = vpop.f32.mrb[0].mxu0
        %v4741 = vadd.f32 %v4677, %v4740
        %v4742 = vpop.f32.mrb[0].mxu0
        %v4743 = vpop.f32.mrb[0].mxu0
        %v4744 = vpop.f32.mrb[0].mxu0
        %4745 = vdwg.mxu0
        %v4746 = vadd.f32 %v4608, %v4741
        %v4747 = vsel %vm1692, %v4746, 0.0
        %4748 = vadd.xlane.f32.xlu0 %v4747
        %v4749 = vpop.xlane.xlu0 %4748
        %v4750 = vmul.f32 %v4749, %v2037
        %v4751 = vsub.f32 %v4746, %v4750
        %v4752 = vmul.f32 %v4751, %v4751
        %v4753 = vsel %vm1692, %v4752, 0.0
        %4754 = vadd.xlane.f32.xlu0 %v4753
        %v4755 = vpop.xlane.xlu0 %4754
        %v4756 = vmul.f32 %v4755, %v2037
        %v4757 = vadd.f32 %v4756, 1e-05
        %v4758 = vrsqrt.pop %v4757
        %v4759 = vmul.f32 %v4751, %v4758
        %v4761 = vlaneseq
        %v4762 = vshrl.u32 %v4761, 7
        %v4763 = vsub.s32 0, %v4762
        %v4764 = vrot.slane %v3848, %v4763
        %v4766 = vmul.f32 %v4759, %v4764
        %v4768 = vlaneseq
        %v4769 = vshrl.u32 %v4768, 7
        %v4770 = vsub.s32 0, %v4769
        %v4771 = vrot.slane %v3850, %v4770
        %v4773 = vadd.f32 %v4766, %v4771
        %v4774 = vld [vmem:[%s87] sm:$0xf]
        %v4775 = vld [vmem:[%s87 + $0x4] sm:$0xf]
        %v4776 = vld [vmem:[%s87 + $0x8] sm:$0xf]
        %v4777 = vld [vmem:[%s87 + $0xc] sm:$0xf]
        %v4778 = vld [vmem:[%s89] sm:$0x1]
        %v4779 = vpack.c.bf16 %v4773, %v4773
        %v4781 = vlaneseq
        %v4782 = vshrl.u32 %v4781, 7
        %v4783 = vsub.s32 0, %v4782
        %v4784 = vrot.slane %v4778, %v4783
        %v4790 = vunpack.c.l.b16 %v4774
        %v4791 = vunpack.c.l.b16 %v4775
        %v4792 = vunpack.c.l.b16 %v4776
        %v4793 = vunpack.c.l.b16 %v4777
        %v4794 = vpack.c.b16 %v4791, %v4790
        %v4795 = vpack.c.b16 %v4793, %v4792
        %v4799 = vsel %vm1692, %v4779, 0
        %4801 = vmatprep.subr.bf16.mxu0 0
        %4802 = vmatpush1.bf16.msra.mxu0 %v4794
        %4803 = vmatprep.subr.bf16.mxu0 0
        %4804 = vmatpush1.bf16.msra.mxu0 %v4795
        %4805 = vmatprep.subr.bf16.mxu0 0
        %4806 = vmatpush1.bf16.msra.mxu0 0
        %4807 = vmatprep.subr.bf16.mxu0 0
        %4808 = vmatpush1.bf16.msra.mxu0 0
        %4809 = vmatprep.subr.bf16.mxu0 0
        %4810 = vmatpush1.bf16.msra.mxu0 0
        %4811 = vmatprep.subr.bf16.mxu0 0
        %4812 = vmatpush1.bf16.msra.mxu0 0
        %4813 = vmatprep.subr.bf16.mxu0 0
        %4814 = vmatpush1.bf16.msra.mxu0 0
        %4815 = vmatprep.subr.bf16.mxu0 0
        %4816 = vmatpush1.bf16.msra.mxu0 0
        %4817 = vmatprep.subr.bf16.mxu0 0
        %4818 = vmatpush1.bf16.msra.mxu0 0
        %4819 = vmatprep.subr.bf16.mxu0 0
        %4820 = vmatpush1.bf16.msra.mxu0 0
        %4821 = vmatprep.subr.bf16.mxu0 0
        %4822 = vmatpush1.bf16.msra.mxu0 0
        %4823 = vmatprep.subr.bf16.mxu0 0
        %4824 = vmatpush1.bf16.msra.mxu0 0
        %4825 = vmatprep.subr.bf16.mxu0 0
        %4826 = vmatpush1.bf16.msra.mxu0 0
        %4827 = vmatprep.subr.bf16.mxu0 0
        %4828 = vmatpush1.bf16.msra.mxu0 0
        %4829 = vmatprep.subr.bf16.mxu0 0
        %4830 = vmatpush1.bf16.msra.mxu0 0
        %4831 = vmatprep.subr.bf16.mxu0 0
        %4832 = vmatpush1.bf16.msra.mxu0 0
        %4833 = vmatprep.mubr.bf16.mxu0 0
        %4834 = vmatmul.mubr.bf16.gmra.mrb[0].mxu0 %v4799
        %v4835 = vpop.f32.mrb[0].mxu0
        %v4836 = vadd.f32 %v4784, %v4835
        %v4837 = vpop.f32.mrb[0].mxu0
        %v4838 = vpop.f32.mrb[0].mxu0
        %v4839 = vpop.f32.mrb[0].mxu0
        %4840 = vdwg.mxu0
        %v4841 = vmax.f32 %v4836, 0.0
        %v4842 = vld [vmem:[%s91] sm:$0xf]
        %v4843 = vld [vmem:[%s91 + $0x4] sm:$0xf]
        %v4844 = vld [vmem:[%s91 + $0x8] sm:$0xf]
        %v4845 = vld [vmem:[%s91 + $0xc] sm:$0xf]
        %v4846 = vld [vmem:[%s91 + $0x10] sm:$0xf]
        %v4847 = vld [vmem:[%s91 + $0x14] sm:$0xf]
        %v4848 = vld [vmem:[%s93] sm:$0x1]
        %v4849 = vpack.c.bf16 %v4841, %v4841
        %v4851 = vlaneseq
        %v4852 = vshrl.u32 %v4851, 7
        %v4853 = vsub.s32 0, %v4852
        %v4854 = vrot.slane %v4848, %v4853
        %v4862 = vunpack.c.l.b16 %v4842
        %v4863 = vunpack.c.l.b16 %v4843
        %v4864 = vunpack.c.l.b16 %v4844
        %v4865 = vunpack.c.l.b16 %v4845
        %v4866 = vunpack.c.l.b16 %v4846
        %v4867 = vunpack.c.l.b16 %v4847
        %v4868 = vpack.c.b16 %v4863, %v4862
        %v4869 = vpack.c.b16 %v4865, %v4864
        %v4870 = vpack.c.b16 %v4867, %v4866
        %v4875 = vsel %vm1571, %v4849, 0
        %4877 = vmatprep.subr.bf16.mxu0 0
        %4878 = vmatpush1.bf16.msra.mxu0 %v4868
        %4879 = vmatprep.subr.bf16.mxu0 0
        %4880 = vmatpush1.bf16.msra.mxu0 %v4869
        %4881 = vmatprep.subr.bf16.mxu0 0
        %4882 = vmatpush1.bf16.msra.mxu0 %v4870
        %4883 = vmatprep.subr.bf16.mxu0 0
        %4884 = vmatpush1.bf16.msra.mxu0 0
        %4885 = vmatprep.subr.bf16.mxu0 0
        %4886 = vmatpush1.bf16.msra.mxu0 0
        %4887 = vmatprep.subr.bf16.mxu0 0
        %4888 = vmatpush1.bf16.msra.mxu0 0
        %4889 = vmatprep.subr.bf16.mxu0 0
        %4890 = vmatpush1.bf16.msra.mxu0 0
        %4891 = vmatprep.subr.bf16.mxu0 0
        %4892 = vmatpush1.bf16.msra.mxu0 0
        %4893 = vmatprep.subr.bf16.mxu0 0
        %4894 = vmatpush1.bf16.msra.mxu0 0
        %4895 = vmatprep.subr.bf16.mxu0 0
        %4896 = vmatpush1.bf16.msra.mxu0 0
        %4897 = vmatprep.subr.bf16.mxu0 0
        %4898 = vmatpush1.bf16.msra.mxu0 0
        %4899 = vmatprep.subr.bf16.mxu0 0
        %4900 = vmatpush1.bf16.msra.mxu0 0
        %4901 = vmatprep.subr.bf16.mxu0 0
        %4902 = vmatpush1.bf16.msra.mxu0 0
        %4903 = vmatprep.subr.bf16.mxu0 0
        %4904 = vmatpush1.bf16.msra.mxu0 0
        %4905 = vmatprep.subr.bf16.mxu0 0
        %4906 = vmatpush1.bf16.msra.mxu0 0
        %4907 = vmatprep.subr.bf16.mxu0 0
        %4908 = vmatpush1.bf16.msra.mxu0 0
        %4909 = vmatprep.mubr.bf16.mxu0 0
        %4910 = vmatmul.mubr.bf16.gmra.mrb[0].mxu0 %v4875
        %v4911 = vpop.f32.mrb[0].mxu0
        %v4912 = vadd.f32 %v4854, %v4911
        %v4913 = vpop.f32.mrb[0].mxu0
        %v4914 = vpop.f32.mrb[0].mxu0
        %v4915 = vpop.f32.mrb[0].mxu0
        %4916 = vdwg.mxu0
        %4917 = vst [vmem:[%s1434] sm:$0xff] %v4912
        %s4918 = sand.u32 %s1124, 1
        %s4919 = scalar_lea.sflag [#allocation3], %s4918
        %s4920 = sand.u32 %s1124, 1
        %s4921 = smul.addr %s4920, 8
        %s4922 = scalar_lea.vmem [#allocation2], %s4921
        // Predicated region
        $region209: #{transformer_translator_forward.1} parent=207 // pred_check
          %p4923 = pneg %p1134
        $region210: #{transformer_translator_forward.1} parent=207 // pred_check_branch
          %4925 = sbr.rel (%p4923) target = $region212
        $region211: #{transformer_translator_forward.1} parent=207 // pred_region
          %s4927 = ssub.s32 128, 128
          %4928 = vsyncadd %s4919, %s4927
          %s4929 = smul.addr %s109, 128
          %s4930 = scalar_lea.hbm %s95, %s4929
          %s4932 = sshll.u32 %s4922, 4
          %s4933 = int_to_ptr.vmem [resolvable:$true] %s4932
          %4935 = dma.vmem_to_hbm [thread:$0]  %s4933, 128, %s4930, %s4919
        $region212: #{transformer_translator_forward.1} parent=207 // pred_fallthru
          _
      $region208: #{transformer_translator_forward.1} parent=5 // pred_fallthru
        _
      %p4936 = scmp.le.s32.totalorder 2, %s104
      // Predicated region
      $region213: #{transformer_translator_forward.1} parent=5 // pred_check
        %p4937 = pneg %p4936
      $region214: #{transformer_translator_forward.1} parent=5 // pred_check_branch
        %4939 = sbr.rel (%p4937) target = $region216
      $region215: #{transformer_translator_forward.1} parent=5 // pred_region
        %s4940 = ssub.s32 %s104, 2
        // Predicated region
        $region217: #{transformer_translator_forward.1} parent=215 // pred_check
          %p4941 = pneg %p1140
        $region218: #{transformer_translator_forward.1} parent=215 // pred_check_branch
          %4943 = sbr.rel (%p4941) target = $region220
        $region219: #{transformer_translator_forward.1} parent=215 // pred_region
          %s4944 = sand.u32 %s1125, 1
          %s4945 = scalar_lea.sflag [#allocation3], %s4944
          %s4946 = sand.u32 %s1125, 1
          %s4947 = smul.addr %s4946, 8
          %s4948 = scalar_lea.vmem [#allocation2], %s4947
          %4949 = dma.done %s4945, 128
        $region220: #{transformer_translator_forward.1} parent=215 // pred_fallthru
          _
      $region216: #{transformer_translator_forward.1} parent=5 // pred_fallthru
        _
    $region6: #{transformer_translator_forward.1} parent=1 // loop_footer
      %s108 = sadd.s32 1, %s104
    $region7: #{transformer_translator_forward.1} parent=1 // loop_footer_branch
      %103 = sbr.rel target = $region3
    $region8: #{transformer_translator_forward.1} parent=1 // loop_exit
      _
    %4950 = vsyncpa [#allocation3], 1
    %s4951 = scalar_lea.sflag [#allocation3], 1
    %4952 = vsyncpa %s4951, 1

</llo_original>
